<compile_context>
chip_gen: v7x
topology: tpu7x:2x2x1
jax: 0.10.0
libtpu: 0.0.40
codegen_flags: <defaults>
</compile_context>

<pallas_src>
import numpy as np
import jax
import jax.numpy as jnp
from jax.experimental import pallas as pl
from jax.experimental.pallas import tpu as pltpu

EPS = 1e-5


# ----------------------------------------------------------------------------
# The single fused generator kernel
# ----------------------------------------------------------------------------
def _generator_kernel(x_ref, lw_ref, g0_ref, b0_ref,
                      w1_ref, f1_ref, bc1_ref, g1_ref, be1_ref,
                      w2_ref, f2_ref, bc2_ref, g2_ref, be2_ref,
                      w3_hbm, f3_ref, bc3_ref, g3_ref, be3_ref,
                      w4_hbm, b4_ref,
                      o_ref,
                      w3_buf, w4_buf, sem):
    # Prefetch the two large bf16 block-diagonal weights HBM->VMEM; their DMA is
    # hidden behind the Linear/b1/b2 (and b3) compute instead of being paid
    # serially in the pallas prologue.
    cp3 = pltpu.make_async_copy(w3_hbm, w3_buf, sem.at[0])
    cp4 = pltpu.make_async_copy(w4_hbm, w4_buf, sem.at[1])
    cp3.start()
    cp4.start()

    n = x_ref.shape[0]
    c0p = w1_ref.shape[0]            # padded seed channel count (multiple of 128)

    # ---- preprocess: Linear + BatchNorm1d (training batch stats) + ReLU ------
    # Linear bias dropped: a per-feature constant is removed exactly by the
    # batch-mean subtraction of training-mode BN.
    y = jnp.dot(x_ref[...], lw_ref[...], preferred_element_type=jnp.float32)
    ones_n = jnp.ones((1, n), jnp.float32)
    m = jnp.dot(ones_n, y, preferred_element_type=jnp.float32) * (1.0 / n)
    e2 = jnp.dot(ones_n, y * y, preferred_element_type=jnp.float32) * (1.0 / n)
    scale = jax.lax.rsqrt(e2 - m * m + EPS) * g0_ref[...]
    shift = b0_ref[...] - m * scale
    y = jnp.maximum(y * scale + shift, 0.0)

    # ---- view(-1, 8*dim, 4, 4): regroup (N, 16*c0p) -> (16N, c0p) ------------
    # Linear columns were permuted/zero-padded at init to (spatial, channel[pad])
    # order with c0p a multiple of 128, so every slice is lane-aligned.
    h = jnp.concatenate([y[:, s * c0p:(s + 1) * c0p] for s in range(16)], axis=0)

    rows = 16 * n
    ones_p = jnp.ones((1, rows), jnp.float32)

    # ---- ConvTranspose2d(2,2) + BatchNorm2d + ReLU; taps stay in lanes -------
    # Per-channel batch stats on the MXU: column sums of y / y^2 (ones @ .),
    # tap-group fold (@F) and broadcast (@B) are tiny 0/1 matmuls.
    def deconv_bn_relu(h, w, fmat, bmat, g, be, groups):
        yb = jnp.dot(h, w, preferred_element_type=jnp.float32)
        inv_cnt = 1.0 / (rows * groups)
        cs = jnp.dot(ones_p, yb, preferred_element_type=jnp.float32)
        cs2 = jnp.dot(ones_p, yb * yb, preferred_element_type=jnp.float32)
        mc = jnp.dot(cs, fmat, preferred_element_type=jnp.float32) * inv_cnt
        e2c = jnp.dot(cs2, fmat, preferred_element_type=jnp.float32) * inv_cnt
        sc = jax.lax.rsqrt(e2c - mc * mc + EPS) * g            # (1, C)
        sh = be - mc * sc                                      # (1, C)
        scf = jnp.dot(sc, bmat, preferred_element_type=jnp.float32)   # (1, W)
        shf = jnp.dot(sh, bmat, preferred_element_type=jnp.float32)
        return jnp.maximum(yb * scf + shf, 0.0)

    h = deconv_bn_relu(h, w1_ref[...], f1_ref[...], bc1_ref[...],
                       g1_ref[...], be1_ref[...], 4)
    h = deconv_bn_relu(h, w2_ref[...], f2_ref[...], bc2_ref[...],
                       g2_ref[...], be2_ref[...], 16)

    cp3.wait()
    h = deconv_bn_relu(h, w3_buf[...].astype(jnp.float32), f3_ref[...],
                       bc3_ref[...], g3_ref[...], be3_ref[...], 64)

    # ---- deconv_out + tanh; lane-dense (16N, 768) output ---------------------
    cp4.wait()
    y = jnp.dot(h, w4_buf[...].astype(jnp.float32),
                preferred_element_type=jnp.float32) + b4_ref[...]
    o_ref[...] = jnp.tanh(y)


# ----------------------------------------------------------------------------
# Parameters: torch-layout synthetic init + one-time packing into kernel layout
# ----------------------------------------------------------------------------
def init_params(key, dim):
    keys = jax.random.split(key, 8)
    feat = 2 * 4 * 4 * 4 * dim
    p = {}
    p["lin_w"] = jax.random.normal(keys[0], (dim, feat), jnp.float32) / jnp.sqrt(dim)
    p["lin_b"] = 0.1 * jax.random.normal(keys[1], (feat,), jnp.float32)
    p["bn0_g"] = jnp.ones((feat,), jnp.float32)
    p["bn0_b"] = jnp.zeros((feat,), jnp.float32)
    blocks = [("b1", 8 * dim, 4 * dim), ("b2", 4 * dim, 2 * dim), ("b3", 2 * dim, dim)]
    for i, (name, cin, cout) in enumerate(blocks):
        kw, kb = jax.random.split(keys[2 + i], 2)
        # torch ConvTranspose2d weight, stored in matmul layout (cin, ki, kj, cout)
        # flattened to (cin, 4*cout).
        w = jax.random.normal(kw, (cin, 2, 2, cout), jnp.float32) / jnp.sqrt(4.0 * cin)
        p[name + "_w"] = w.reshape(cin, 4 * cout)
        p[name + "_b"] = 0.1 * jax.random.normal(kb, (cout,), jnp.float32)
        p[name + "_g"] = jnp.ones((cout,), jnp.float32)
        p[name + "_beta"] = jnp.zeros((cout,), jnp.float32)
    kw, kb = jax.random.split(keys[5], 2)
    w = jax.random.normal(kw, (dim, 2, 2, 3), jnp.float32) / jnp.sqrt(4.0 * dim)
    p["out_w"] = w.reshape(dim, 12)
    p["out_b"] = 0.1 * jax.random.normal(kb, (3,), jnp.float32)
    return p


def _fold_bcast_mats(groups, ch):
    # F (groups*ch, ch): sums the tap groups per channel.  B = F.T broadcasts
    # per-channel stats back to full width.  Both are tiny 0/1 matrices.
    f = np.tile(np.eye(ch, dtype=np.float32), (groups, 1))
    return jnp.asarray(f), jnp.asarray(np.ascontiguousarray(f.T))


def pack_params(p, dim):
    """One-time conversion to the fused-kernel layout (done once, outside jit)."""
    c0 = 8 * dim
    c0p = ((c0 + 127) // 128) * 128      # pad seed channels to a multiple of 128
    featp = 16 * c0p
    k = {}

    # Linear columns: torch feature c*16 + s  ->  kernel column s*c0p + c (padded).
    src = (np.arange(c0)[None, :] * 16 + np.arange(16)[:, None]).reshape(-1)
    dst = (np.arange(16)[:, None] * c0p + np.arange(c0)[None, :]).reshape(-1)
    lw = np.zeros((dim, featp), np.float32)
    lw[:, dst] = np.asarray(p["lin_w"])[:, src]
    g0 = np.ones((featp,), np.float32)
    b0 = np.zeros((featp,), np.float32)
    g0[dst] = np.asarray(p["bn0_g"])[src]
    b0[dst] = np.asarray(p["bn0_b"])[src]
    k["lin_w"] = jnp.asarray(lw)
    k["bn0_g"] = jnp.asarray(g0)[None, :]
    k["bn0_b"] = jnp.asarray(b0)[None, :]
    # NOTE: lin_b / conv biases feeding a BatchNorm are not packed: training-mode
    # BN subtracts the per-channel batch mean, which cancels them exactly.

    # Deconv blocks: block-diagonal weights over accumulated tap groups, group
    # fold/broadcast matrices, per-channel gamma/beta.
    blocks = [("b1", 1, 8 * dim, 4 * dim),
              ("b2", 4, 4 * dim, 2 * dim),
              ("b3", 16, 2 * dim, dim)]
    for name, gin, cin, cout in blocks:
        w = np.asarray(p[name + "_w"], np.float32)             # (cin, 4*cout)
        if name == "b1" and cin < c0p:
            w = np.concatenate([w, np.zeros((c0p - cin, 4 * cout), np.float32)], 0)
        wk = np.kron(np.eye(gin, dtype=np.float32), w)
        # b3's kron is 93.75% structural zeros -> store bf16 (halves DMA/VMEM bytes)
        k[name + "_w"] = jnp.asarray(wk, jnp.bfloat16 if name == "b3" else jnp.float32)
        k[name + "_F"], k[name + "_B"] = _fold_bcast_mats(4 * gin, cout)
        k[name + "_g"] = jnp.asarray(p[name + "_g"])[None, :]
        k[name + "_beta"] = jnp.asarray(p[name + "_beta"])[None, :]

    # Final deconv: block-diagonal over 64 groups; output columns permuted so the
    # kernel output columns are ordered (h-offset 0..15, w-offset 0..15, rgb).
    w4 = np.kron(np.eye(64, dtype=np.float32), np.asarray(p["out_w"], np.float32))
    idx = np.indices((2, 2, 2, 2, 2, 2, 2, 2, 3))
    ki1, kj1, ki2, kj2, ki3, kj3, ki4, kj4, c = [a.reshape(-1) for a in idx]
    old = ((((ki1 * 2 + kj1) * 4 + (ki2 * 2 + kj2)) * 4
            + (ki3 * 2 + kj3)) * 4 + (ki4 * 2 + kj4)) * 3 + c
    hk = ki1 * 8 + ki2 * 4 + ki3 * 2 + ki4
    wk_ = kj1 * 8 + kj2 * 4 + kj3 * 2 + kj4
    new = (hk * 16 + wk_) * 3 + c
    perm_f = np.zeros(768, dtype=np.int64)
    perm_f[new] = old
    k["out_w"] = jnp.asarray(w4[:, perm_f], jnp.bfloat16)       # 98.4% zeros -> bf16
    k["out_b"] = jnp.asarray(np.tile(np.asarray(p["out_b"]), 256))[None, :]
    return k


# ----------------------------------------------------------------------------
# Forward pass: one fused pallas_call + one final spatial permutation
# ----------------------------------------------------------------------------
def _full_spec(shape):
    nd = len(shape)
    return pl.BlockSpec(shape, lambda i, nd=nd: (0,) * nd)


def generator_forward(kp, x):
    n = x.shape[0]          # multiples of 8 keep the in-kernel regroup aligned
    rows = 16 * n
    dim = x.shape[1]

    vmem_inputs = [x, kp["lin_w"], kp["bn0_g"], kp["bn0_b"],
                   kp["b1_w"], kp["b1_F"], kp["b1_B"], kp["b1_g"], kp["b1_beta"],
                   kp["b2_w"], kp["b2_F"], kp["b2_B"], kp["b2_g"], kp["b2_beta"]]
    vmem_b3 = [kp["b3_F"], kp["b3_B"], kp["b3_g"], kp["b3_beta"]]
    inputs = vmem_inputs + [kp["b3_w"]] + vmem_b3 + [kp["out_w"], kp["out_b"]]

    in_specs = ([_full_spec(a.shape) for a in vmem_inputs]
                + [pl.BlockSpec(memory_space=pl.ANY)]           # b3_w stays in HBM
                + [_full_spec(a.shape) for a in vmem_b3]
                + [pl.BlockSpec(memory_space=pl.ANY),           # out_w stays in HBM
                   _full_spec(kp["out_b"].shape)])

    # Useful MACs only (the structural zeros of the block-diagonal weights and the
    # lane padding are not counted).
    c0, c1, c2, c3 = 8 * dim, 4 * dim, 2 * dim, dim
    flops = (2 * n * dim * 16 * c0
             + 2 * rows * (c0 * 4 * c1 + c1 * 4 * c2 + c2 * 4 * c3 + c3 * 12))
    bytes_acc = (sum(int(a.size) * a.dtype.itemsize for a in inputs)
                 + rows * 768 * 4)
    cost = pl.CostEstimate(flops=int(flops),
                           transcendentals=int(rows * 768 + 4096),
                           bytes_accessed=int(bytes_acc))

    out = pl.pallas_call(
        _generator_kernel,
        grid=(1,),
        in_specs=in_specs,
        out_specs=_full_spec((rows, 768)),
        out_shape=jax.ShapeDtypeStruct((rows, 768), jnp.float32),
        scratch_shapes=[pltpu.VMEM(kp["b3_w"].shape, kp["b3_w"].dtype),
                        pltpu.VMEM(kp["out_w"].shape, kp["out_w"].dtype),
                        pltpu.SemaphoreType.DMA((2,))],
        compiler_params=pltpu.CompilerParams(
            dimension_semantics=("arbitrary",),
            # Explicit scoped-VMEM limit; raise + row-tile the grid (two-pass BN,
            # "parallel") when batch grows, especially on v7x (64 MiB physical).
            vmem_limit_bytes=32 * 1024 * 1024),
        cost_estimate=cost,
    )(*inputs)

    # Single spatial permutation: rows (h4, w4, n), cols (hk, wk, c) -> NCHW.
    # TODO(synk): fold this into a row-tiled out_spec (or let the consumer accept
    # the packed layout) to avoid the extra ~2x HBM round trip on the output.
    o = out.reshape(4, 4, n, 16, 16, 3)
    o = jnp.transpose(o, (2, 5, 0, 3, 1, 4))          # (n, c, h4, hk, w4, wk)
    return o.reshape(n, 3, 64, 64)


# ----------------------------------------------------------------------------
# Pure-JAX reference (torch semantics, no Pallas) for the correctness check
# ----------------------------------------------------------------------------
def _pixel_shuffle(y, n, h, w, cout):
    y = y.reshape(n, h, w, 2, 2, cout)
    y = jnp.transpose(y, (0, 1, 3, 2, 4, 5))
    return y.reshape(n, 2 * h, 2 * w, cout)


def reference_forward(params, x, dim):
    def bn(y, g, b, axes):
        m = jnp.mean(y, axis=axes, keepdims=True)
        v = jnp.mean((y - m) ** 2, axis=axes, keepdims=True)
        return (y - m) * jax.lax.rsqrt(v + EPS) * g + b

    n = x.shape[0]
    y = x @ params["lin_w"] + params["lin_b"]
    y = jnp.maximum(bn(y, params["bn0_g"], params["bn0_b"], (0,)), 0.0)
    h = jnp.transpose(y.reshape(n, 8 * dim, 4, 4), (0, 2, 3, 1))
    hgt = wid = 4
    cin = 8 * dim
    for name, cout in (("b1", 4 * dim), ("b2", 2 * dim), ("b3", dim)):
        xf = h.reshape(n * hgt * wid, cin)
        y = xf @ params[name + "_w"] + jnp.tile(params[name + "_b"], 4)
        y = y.reshape(n * hgt * wid, 4, cout)
        y = bn(y, params[name + "_g"], params[name + "_beta"], (0, 1))
        y = jnp.maximum(y, 0.0).reshape(n * hgt * wid, 4 * cout)
        h = _pixel_shuffle(y, n, hgt, wid, cout)
        hgt, wid, cin = 2 * hgt, 2 * wid, cout
    xf = h.reshape(n * hgt * wid, cin)
    y = jnp.tanh(xf @ params["out_w"] + jnp.tile(params["out_b"], 4))
    out = _pixel_shuffle(y, n, hgt, wid, 3)
    return jnp.transpose(out, (0, 3, 1, 2))


# ----------------------------------------------------------------------------
if __name__ == "__main__":
    dim = 8          # Generator(dim=8): latent dim 8, output (N, 3, 64, 64)
    batch = 8        # multiple of 8 -> sublane-aligned in-kernel regroup

    key = jax.random.PRNGKey(0)
    kp_key, kx = jax.random.split(key)
    params = init_params(kp_key, dim)
    # The two large block-diagonal weights are stored (and DMA'd) in bf16 inside
    # the kernel; round the master copies once so the pure-JAX reference uses the
    # identical values and the comparison measures only the kernel implementation.
    params["b3_w"] = params["b3_w"].astype(jnp.bfloat16).astype(jnp.float32)
    params["out_w"] = params["out_w"].astype(jnp.bfloat16).astype(jnp.float32)

    kparams = pack_params(params, dim)          # one-time layout packing
    x = jax.random.normal(kx, (batch, dim), jnp.float32)

    fwd = jax.jit(generator_forward)
    out = jax.block_until_ready(fwd(kparams, x))

    assert out.shape == (batch, 3, 64, 64), out.shape
    assert out.dtype == jnp.float32

    ref = jax.block_until_ready(reference_forward(params, x, dim))
    assert bool(jnp.all(jnp.isfinite(out)))
    err = float(jnp.max(jnp.abs(out - ref)))
    assert err < 5e-3, err

    print("KERNEL_OK")
</pallas_src>

<mosaic_0001>
module attributes {stable_mosaic.version = 11 : i64} {
  func.func @_generator_kernel(%arg0: i32, %arg1: memref<8x8xf32, #tpu.memory_space<vmem>>, %arg2: memref<8x2048xf32, #tpu.memory_space<vmem>>, %arg3: memref<1x2048xf32, #tpu.memory_space<vmem>>, %arg4: memref<1x2048xf32, #tpu.memory_space<vmem>>, %arg5: memref<128x128xf32, #tpu.memory_space<vmem>>, %arg6: memref<128x32xf32, #tpu.memory_space<vmem>>, %arg7: memref<32x128xf32, #tpu.memory_space<vmem>>, %arg8: memref<1x32xf32, #tpu.memory_space<vmem>>, %arg9: memref<1x32xf32, #tpu.memory_space<vmem>>, %arg10: memref<128x256xf32, #tpu.memory_space<vmem>>, %arg11: memref<256x16xf32, #tpu.memory_space<vmem>>, %arg12: memref<16x256xf32, #tpu.memory_space<vmem>>, %arg13: memref<1x16xf32, #tpu.memory_space<vmem>>, %arg14: memref<1x16xf32, #tpu.memory_space<vmem>>, %arg15: memref<256x512xbf16, #tpu.memory_space<any>>, %arg16: memref<512x8xf32, #tpu.memory_space<vmem>>, %arg17: memref<8x512xf32, #tpu.memory_space<vmem>>, %arg18: memref<1x8xf32, #tpu.memory_space<vmem>>, %arg19: memref<1x8xf32, #tpu.memory_space<vmem>>, %arg20: memref<512x768xbf16, #tpu.memory_space<any>>, %arg21: memref<1x768xf32, #tpu.memory_space<vmem>>, %arg22: memref<128x768xf32, #tpu.memory_space<vmem>>, %arg23: memref<256x512xbf16, #tpu.memory_space<vmem>>, %arg24: memref<512x768xbf16, #tpu.memory_space<vmem>>, %arg25: memref<2x!tpu.dma_semaphore, #tpu.memory_space<semaphore_mem>>) attributes {dimension_semantics = [#tpu.dimension_semantics<arbitrary>], iteration_bounds = array<i64: 1>, scalar_prefetch = 0 : i64, scratch_operands = 3 : i64, tpu.core_type = #tpu.core_type<tc>, window_params = [{pipeline_mode = #tpu.pipeline_mode<synchronous>, transform_indices = @transform_0, window_bounds = array<i64: 8, 8>}, {pipeline_mode = #tpu.pipeline_mode<synchronous>, transform_indices = @transform_1, window_bounds = array<i64: 8, 2048>}, {pipeline_mode = #tpu.pipeline_mode<synchronous>, transform_indices = @transform_2, window_bounds = array<i64: 1, 2048>}, {pipeline_mode = #tpu.pipeline_mode<synchronous>, transform_indices = @transform_3, window_bounds = array<i64: 1, 2048>}, {pipeline_mode = #tpu.pipeline_mode<synchronous>, transform_indices = @transform_4, window_bounds = array<i64: 128, 128>}, {pipeline_mode = #tpu.pipeline_mode<synchronous>, transform_indices = @transform_5, window_bounds = array<i64: 128, 32>}, {pipeline_mode = #tpu.pipeline_mode<synchronous>, transform_indices = @transform_6, window_bounds = array<i64: 32, 128>}, {pipeline_mode = #tpu.pipeline_mode<synchronous>, transform_indices = @transform_7, window_bounds = array<i64: 1, 32>}, {pipeline_mode = #tpu.pipeline_mode<synchronous>, transform_indices = @transform_8, window_bounds = array<i64: 1, 32>}, {pipeline_mode = #tpu.pipeline_mode<synchronous>, transform_indices = @transform_9, window_bounds = array<i64: 128, 256>}, {pipeline_mode = #tpu.pipeline_mode<synchronous>, transform_indices = @transform_10, window_bounds = array<i64: 256, 16>}, {pipeline_mode = #tpu.pipeline_mode<synchronous>, transform_indices = @transform_11, window_bounds = array<i64: 16, 256>}, {pipeline_mode = #tpu.pipeline_mode<synchronous>, transform_indices = @transform_12, window_bounds = array<i64: 1, 16>}, {pipeline_mode = #tpu.pipeline_mode<synchronous>, transform_indices = @transform_13, window_bounds = array<i64: 1, 16>}, {}, {pipeline_mode = #tpu.pipeline_mode<synchronous>, transform_indices = @transform_15, window_bounds = array<i64: 512, 8>}, {pipeline_mode = #tpu.pipeline_mode<synchronous>, transform_indices = @transform_16, window_bounds = array<i64: 8, 512>}, {pipeline_mode = #tpu.pipeline_mode<synchronous>, transform_indices = @transform_17, window_bounds = array<i64: 1, 8>}, {pipeline_mode = #tpu.pipeline_mode<synchronous>, transform_indices = @transform_18, window_bounds = array<i64: 1, 8>}, {}, {pipeline_mode = #tpu.pipeline_mode<synchronous>, transform_indices = @transform_20, window_bounds = array<i64: 1, 768>}, {pipeline_mode = #tpu.pipeline_mode<synchronous>, transform_indices = @transform_21, window_bounds = array<i64: 128, 768>}]} {
    %c0_i32 = arith.constant 0 : i32
    %0 = tpu.memref_slice %arg25[%c0_i32] : memref<2x!tpu.dma_semaphore, #tpu.memory_space<semaphore_mem>> -> memref<1x!tpu.dma_semaphore, #tpu.memory_space<semaphore_mem>>
    %1 = tpu.memref_squeeze %0 : memref<1x!tpu.dma_semaphore, #tpu.memory_space<semaphore_mem>> -> memref<!tpu.dma_semaphore, #tpu.memory_space<semaphore_mem>>
    tpu.enqueue_dma source(%arg15 : memref<256x512xbf16, #tpu.memory_space<any>>) target(%arg23 : memref<256x512xbf16, #tpu.memory_space<vmem>>) target_semaphore(%1 : memref<!tpu.dma_semaphore, #tpu.memory_space<semaphore_mem>>)
    %c1_i32 = arith.constant 1 : i32
    %2 = tpu.memref_slice %arg25[%c1_i32] : memref<2x!tpu.dma_semaphore, #tpu.memory_space<semaphore_mem>> -> memref<1x!tpu.dma_semaphore, #tpu.memory_space<semaphore_mem>>
    %3 = tpu.memref_squeeze %2 : memref<1x!tpu.dma_semaphore, #tpu.memory_space<semaphore_mem>> -> memref<!tpu.dma_semaphore, #tpu.memory_space<semaphore_mem>>
    tpu.enqueue_dma source(%arg20 : memref<512x768xbf16, #tpu.memory_space<any>>) target(%arg24 : memref<512x768xbf16, #tpu.memory_space<vmem>>) target_semaphore(%3 : memref<!tpu.dma_semaphore, #tpu.memory_space<semaphore_mem>>)
    %c0 = arith.constant 0 : index
    %c0_0 = arith.constant 0 : index
    %4 = vector.load %arg1[%c0, %c0_0] : memref<8x8xf32, #tpu.memory_space<vmem>>, vector<8x8xf32>
    %c0_1 = arith.constant 0 : index
    %c0_2 = arith.constant 0 : index
    %5 = vector.load %arg2[%c0_1, %c0_2] : memref<8x2048xf32, #tpu.memory_space<vmem>>, vector<8x2048xf32>
    %cst = arith.constant dense<0.000000e+00> : vector<8x2048xf32>
    %6 = tpu.matmul %4, %5, %cst {dimension_numbers = #tpu.dot_dimension_numbers<[1], [0], [0], [1], [0, 0, 1, 1], [], []>} : vector<8x8xf32>, vector<8x2048xf32>, vector<8x2048xf32> -> vector<8x2048xf32>
    %cst_3 = arith.constant 1.000000e+00 : f32
    %7 = vector.broadcast %cst_3 : f32 to vector<1x8xf32>
    %cst_4 = arith.constant dense<0.000000e+00> : vector<1x2048xf32>
    %8 = tpu.matmul %7, %6, %cst_4 {dimension_numbers = #tpu.dot_dimension_numbers<[1], [0], [0], [1], [0, 0, 1, 1], [], []>} : vector<1x8xf32>, vector<8x2048xf32>, vector<1x2048xf32> -> vector<1x2048xf32>
    %cst_5 = arith.constant 1.250000e-01 : f32
    %9 = vector.broadcast %cst_5 : f32 to vector<1x2048xf32>
    %10 = arith.mulf %8, %9 : vector<1x2048xf32>
    %11 = arith.mulf %6, %6 : vector<8x2048xf32>
    %cst_6 = arith.constant dense<0.000000e+00> : vector<1x2048xf32>
    %12 = tpu.matmul %7, %11, %cst_6 {dimension_numbers = #tpu.dot_dimension_numbers<[1], [0], [0], [1], [0, 0, 1, 1], [], []>} : vector<1x8xf32>, vector<8x2048xf32>, vector<1x2048xf32> -> vector<1x2048xf32>
    %cst_7 = arith.constant 1.250000e-01 : f32
    %13 = vector.broadcast %cst_7 : f32 to vector<1x2048xf32>
    %14 = arith.mulf %12, %13 : vector<1x2048xf32>
    %15 = arith.mulf %10, %10 : vector<1x2048xf32>
    %16 = arith.subf %14, %15 : vector<1x2048xf32>
    %cst_8 = arith.constant 9.99999974E-6 : f32
    %17 = vector.broadcast %cst_8 : f32 to vector<1x2048xf32>
    %18 = arith.addf %16, %17 : vector<1x2048xf32>
    %19 = math.rsqrt %18 : vector<1x2048xf32>
    %c0_9 = arith.constant 0 : index
    %c0_10 = arith.constant 0 : index
    %20 = vector.load %arg3[%c0_9, %c0_10] : memref<1x2048xf32, #tpu.memory_space<vmem>>, vector<1x2048xf32>
    %21 = arith.mulf %19, %20 : vector<1x2048xf32>
    %c0_11 = arith.constant 0 : index
    %c0_12 = arith.constant 0 : index
    %22 = vector.load %arg4[%c0_11, %c0_12] : memref<1x2048xf32, #tpu.memory_space<vmem>>, vector<1x2048xf32>
    %23 = arith.mulf %10, %21 : vector<1x2048xf32>
    %24 = arith.subf %22, %23 : vector<1x2048xf32>
    %25 = vector.broadcast %21 : vector<1x2048xf32> to vector<8x2048xf32>
    %26 = arith.mulf %6, %25 : vector<8x2048xf32>
    %27 = vector.broadcast %24 : vector<1x2048xf32> to vector<8x2048xf32>
    %28 = arith.addf %26, %27 : vector<8x2048xf32>
    %cst_13 = arith.constant 0.000000e+00 : f32
    %29 = vector.broadcast %cst_13 : f32 to vector<8x2048xf32>
    %30 = arith.maximumf %28, %29 : vector<8x2048xf32>
    %31 = vector.extract_strided_slice %30 {offsets = [0, 0], sizes = [8, 128], strides = [1, 1]} : vector<8x2048xf32> to vector<8x128xf32>
    %32 = vector.extract_strided_slice %30 {offsets = [0, 128], sizes = [8, 128], strides = [1, 1]} : vector<8x2048xf32> to vector<8x128xf32>
    %33 = vector.extract_strided_slice %30 {offsets = [0, 256], sizes = [8, 128], strides = [1, 1]} : vector<8x2048xf32> to vector<8x128xf32>
    %34 = vector.extract_strided_slice %30 {offsets = [0, 384], sizes = [8, 128], strides = [1, 1]} : vector<8x2048xf32> to vector<8x128xf32>
    %35 = vector.extract_strided_slice %30 {offsets = [0, 512], sizes = [8, 128], strides = [1, 1]} : vector<8x2048xf32> to vector<8x128xf32>
    %36 = vector.extract_strided_slice %30 {offsets = [0, 640], sizes = [8, 128], strides = [1, 1]} : vector<8x2048xf32> to vector<8x128xf32>
    %37 = vector.extract_strided_slice %30 {offsets = [0, 768], sizes = [8, 128], strides = [1, 1]} : vector<8x2048xf32> to vector<8x128xf32>
    %38 = vector.extract_strided_slice %30 {offsets = [0, 896], sizes = [8, 128], strides = [1, 1]} : vector<8x2048xf32> to vector<8x128xf32>
    %39 = vector.extract_strided_slice %30 {offsets = [0, 1024], sizes = [8, 128], strides = [1, 1]} : vector<8x2048xf32> to vector<8x128xf32>
    %40 = vector.extract_strided_slice %30 {offsets = [0, 1152], sizes = [8, 128], strides = [1, 1]} : vector<8x2048xf32> to vector<8x128xf32>
    %41 = vector.extract_strided_slice %30 {offsets = [0, 1280], sizes = [8, 128], strides = [1, 1]} : vector<8x2048xf32> to vector<8x128xf32>
    %42 = vector.extract_strided_slice %30 {offsets = [0, 1408], sizes = [8, 128], strides = [1, 1]} : vector<8x2048xf32> to vector<8x128xf32>
    %43 = vector.extract_strided_slice %30 {offsets = [0, 1536], sizes = [8, 128], strides = [1, 1]} : vector<8x2048xf32> to vector<8x128xf32>
    %44 = vector.extract_strided_slice %30 {offsets = [0, 1664], sizes = [8, 128], strides = [1, 1]} : vector<8x2048xf32> to vector<8x128xf32>
    %45 = vector.extract_strided_slice %30 {offsets = [0, 1792], sizes = [8, 128], strides = [1, 1]} : vector<8x2048xf32> to vector<8x128xf32>
    %46 = vector.extract_strided_slice %30 {offsets = [0, 1920], sizes = [8, 128], strides = [1, 1]} : vector<8x2048xf32> to vector<8x128xf32>
    %47 = tpu.concatenate %31, %32, %33, %34, %35, %36, %37, %38, %39, %40, %41, %42, %43, %44, %45, %46 in 0 : vector<8x128xf32>, vector<8x128xf32>, vector<8x128xf32>, vector<8x128xf32>, vector<8x128xf32>, vector<8x128xf32>, vector<8x128xf32>, vector<8x128xf32>, vector<8x128xf32>, vector<8x128xf32>, vector<8x128xf32>, vector<8x128xf32>, vector<8x128xf32>, vector<8x128xf32>, vector<8x128xf32>, vector<8x128xf32> -> vector<128x128xf32>
    %cst_14 = arith.constant 1.000000e+00 : f32
    %48 = vector.broadcast %cst_14 : f32 to vector<1x128xf32>
    %c0_15 = arith.constant 0 : index
    %c0_16 = arith.constant 0 : index
    %49 = vector.load %arg5[%c0_15, %c0_16] : memref<128x128xf32, #tpu.memory_space<vmem>>, vector<128x128xf32>
    %c0_17 = arith.constant 0 : index
    %c0_18 = arith.constant 0 : index
    %50 = vector.load %arg6[%c0_17, %c0_18] : memref<128x32xf32, #tpu.memory_space<vmem>>, vector<128x32xf32>
    %c0_19 = arith.constant 0 : index
    %c0_20 = arith.constant 0 : index
    %51 = vector.load %arg7[%c0_19, %c0_20] : memref<32x128xf32, #tpu.memory_space<vmem>>, vector<32x128xf32>
    %c0_21 = arith.constant 0 : index
    %c0_22 = arith.constant 0 : index
    %52 = vector.load %arg8[%c0_21, %c0_22] : memref<1x32xf32, #tpu.memory_space<vmem>>, vector<1x32xf32>
    %c0_23 = arith.constant 0 : index
    %c0_24 = arith.constant 0 : index
    %53 = vector.load %arg9[%c0_23, %c0_24] : memref<1x32xf32, #tpu.memory_space<vmem>>, vector<1x32xf32>
    %cst_25 = arith.constant dense<0.000000e+00> : vector<128x128xf32>
    %54 = tpu.matmul %47, %49, %cst_25 {dimension_numbers = #tpu.dot_dimension_numbers<[1], [0], [0], [1], [0, 0, 1, 1], [], []>} : vector<128x128xf32>, vector<128x128xf32>, vector<128x128xf32> -> vector<128x128xf32>
    %cst_26 = arith.constant dense<0.000000e+00> : vector<1x128xf32>
    %55 = tpu.matmul %48, %54, %cst_26 {dimension_numbers = #tpu.dot_dimension_numbers<[1], [0], [0], [1], [0, 0, 1, 1], [], []>} : vector<1x128xf32>, vector<128x128xf32>, vector<1x128xf32> -> vector<1x128xf32>
    %56 = arith.mulf %54, %54 : vector<128x128xf32>
    %cst_27 = arith.constant dense<0.000000e+00> : vector<1x128xf32>
    %57 = tpu.matmul %48, %56, %cst_27 {dimension_numbers = #tpu.dot_dimension_numbers<[1], [0], [0], [1], [0, 0, 1, 1], [], []>} : vector<1x128xf32>, vector<128x128xf32>, vector<1x128xf32> -> vector<1x128xf32>
    %cst_28 = arith.constant dense<0.000000e+00> : vector<1x32xf32>
    %58 = tpu.matmul %55, %50, %cst_28 {dimension_numbers = #tpu.dot_dimension_numbers<[1], [0], [0], [1], [0, 0, 1, 1], [], []>} : vector<1x128xf32>, vector<128x32xf32>, vector<1x32xf32> -> vector<1x32xf32>
    %cst_29 = arith.constant 0.001953125 : f32
    %59 = vector.broadcast %cst_29 : f32 to vector<1x32xf32>
    %60 = arith.mulf %58, %59 : vector<1x32xf32>
    %cst_30 = arith.constant dense<0.000000e+00> : vector<1x32xf32>
    %61 = tpu.matmul %57, %50, %cst_30 {dimension_numbers = #tpu.dot_dimension_numbers<[1], [0], [0], [1], [0, 0, 1, 1], [], []>} : vector<1x128xf32>, vector<128x32xf32>, vector<1x32xf32> -> vector<1x32xf32>
    %cst_31 = arith.constant 0.001953125 : f32
    %62 = vector.broadcast %cst_31 : f32 to vector<1x32xf32>
    %63 = arith.mulf %61, %62 : vector<1x32xf32>
    %64 = arith.mulf %60, %60 : vector<1x32xf32>
    %65 = arith.subf %63, %64 : vector<1x32xf32>
    %cst_32 = arith.constant 9.99999974E-6 : f32
    %66 = vector.broadcast %cst_32 : f32 to vector<1x32xf32>
    %67 = arith.addf %65, %66 : vector<1x32xf32>
    %68 = math.rsqrt %67 : vector<1x32xf32>
    %69 = arith.mulf %68, %52 : vector<1x32xf32>
    %70 = arith.mulf %60, %69 : vector<1x32xf32>
    %71 = arith.subf %53, %70 : vector<1x32xf32>
    %cst_33 = arith.constant dense<0.000000e+00> : vector<1x128xf32>
    %72 = tpu.matmul %69, %51, %cst_33 {dimension_numbers = #tpu.dot_dimension_numbers<[1], [0], [0], [1], [0, 0, 1, 1], [], []>} : vector<1x32xf32>, vector<32x128xf32>, vector<1x128xf32> -> vector<1x128xf32>
    %cst_34 = arith.constant dense<0.000000e+00> : vector<1x128xf32>
    %73 = tpu.matmul %71, %51, %cst_34 {dimension_numbers = #tpu.dot_dimension_numbers<[1], [0], [0], [1], [0, 0, 1, 1], [], []>} : vector<1x32xf32>, vector<32x128xf32>, vector<1x128xf32> -> vector<1x128xf32>
    %74 = vector.broadcast %72 : vector<1x128xf32> to vector<128x128xf32>
    %75 = arith.mulf %54, %74 : vector<128x128xf32>
    %76 = vector.broadcast %73 : vector<1x128xf32> to vector<128x128xf32>
    %77 = arith.addf %75, %76 : vector<128x128xf32>
    %cst_35 = arith.constant 0.000000e+00 : f32
    %78 = vector.broadcast %cst_35 : f32 to vector<128x128xf32>
    %79 = arith.maximumf %77, %78 : vector<128x128xf32>
    %c0_36 = arith.constant 0 : index
    %c0_37 = arith.constant 0 : index
    %80 = vector.load %arg10[%c0_36, %c0_37] : memref<128x256xf32, #tpu.memory_space<vmem>>, vector<128x256xf32>
    %c0_38 = arith.constant 0 : index
    %c0_39 = arith.constant 0 : index
    %81 = vector.load %arg11[%c0_38, %c0_39] : memref<256x16xf32, #tpu.memory_space<vmem>>, vector<256x16xf32>
    %c0_40 = arith.constant 0 : index
    %c0_41 = arith.constant 0 : index
    %82 = vector.load %arg12[%c0_40, %c0_41] : memref<16x256xf32, #tpu.memory_space<vmem>>, vector<16x256xf32>
    %c0_42 = arith.constant 0 : index
    %c0_43 = arith.constant 0 : index
    %83 = vector.load %arg13[%c0_42, %c0_43] : memref<1x16xf32, #tpu.memory_space<vmem>>, vector<1x16xf32>
    %c0_44 = arith.constant 0 : index
    %c0_45 = arith.constant 0 : index
    %84 = vector.load %arg14[%c0_44, %c0_45] : memref<1x16xf32, #tpu.memory_space<vmem>>, vector<1x16xf32>
    %cst_46 = arith.constant dense<0.000000e+00> : vector<128x256xf32>
    %85 = tpu.matmul %79, %80, %cst_46 {dimension_numbers = #tpu.dot_dimension_numbers<[1], [0], [0], [1], [0, 0, 1, 1], [], []>} : vector<128x128xf32>, vector<128x256xf32>, vector<128x256xf32> -> vector<128x256xf32>
    %cst_47 = arith.constant dense<0.000000e+00> : vector<1x256xf32>
    %86 = tpu.matmul %48, %85, %cst_47 {dimension_numbers = #tpu.dot_dimension_numbers<[1], [0], [0], [1], [0, 0, 1, 1], [], []>} : vector<1x128xf32>, vector<128x256xf32>, vector<1x256xf32> -> vector<1x256xf32>
    %87 = arith.mulf %85, %85 : vector<128x256xf32>
    %cst_48 = arith.constant dense<0.000000e+00> : vector<1x256xf32>
    %88 = tpu.matmul %48, %87, %cst_48 {dimension_numbers = #tpu.dot_dimension_numbers<[1], [0], [0], [1], [0, 0, 1, 1], [], []>} : vector<1x128xf32>, vector<128x256xf32>, vector<1x256xf32> -> vector<1x256xf32>
    %cst_49 = arith.constant dense<0.000000e+00> : vector<1x16xf32>
    %89 = tpu.matmul %86, %81, %cst_49 {dimension_numbers = #tpu.dot_dimension_numbers<[1], [0], [0], [1], [0, 0, 1, 1], [], []>} : vector<1x256xf32>, vector<256x16xf32>, vector<1x16xf32> -> vector<1x16xf32>
    %cst_50 = arith.constant 4.8828125E-4 : f32
    %90 = vector.broadcast %cst_50 : f32 to vector<1x16xf32>
    %91 = arith.mulf %89, %90 : vector<1x16xf32>
    %cst_51 = arith.constant dense<0.000000e+00> : vector<1x16xf32>
    %92 = tpu.matmul %88, %81, %cst_51 {dimension_numbers = #tpu.dot_dimension_numbers<[1], [0], [0], [1], [0, 0, 1, 1], [], []>} : vector<1x256xf32>, vector<256x16xf32>, vector<1x16xf32> -> vector<1x16xf32>
    %cst_52 = arith.constant 4.8828125E-4 : f32
    %93 = vector.broadcast %cst_52 : f32 to vector<1x16xf32>
    %94 = arith.mulf %92, %93 : vector<1x16xf32>
    %95 = arith.mulf %91, %91 : vector<1x16xf32>
    %96 = arith.subf %94, %95 : vector<1x16xf32>
    %cst_53 = arith.constant 9.99999974E-6 : f32
    %97 = vector.broadcast %cst_53 : f32 to vector<1x16xf32>
    %98 = arith.addf %96, %97 : vector<1x16xf32>
    %99 = math.rsqrt %98 : vector<1x16xf32>
    %100 = arith.mulf %99, %83 : vector<1x16xf32>
    %101 = arith.mulf %91, %100 : vector<1x16xf32>
    %102 = arith.subf %84, %101 : vector<1x16xf32>
    %cst_54 = arith.constant dense<0.000000e+00> : vector<1x256xf32>
    %103 = tpu.matmul %100, %82, %cst_54 {dimension_numbers = #tpu.dot_dimension_numbers<[1], [0], [0], [1], [0, 0, 1, 1], [], []>} : vector<1x16xf32>, vector<16x256xf32>, vector<1x256xf32> -> vector<1x256xf32>
    %cst_55 = arith.constant dense<0.000000e+00> : vector<1x256xf32>
    %104 = tpu.matmul %102, %82, %cst_55 {dimension_numbers = #tpu.dot_dimension_numbers<[1], [0], [0], [1], [0, 0, 1, 1], [], []>} : vector<1x16xf32>, vector<16x256xf32>, vector<1x256xf32> -> vector<1x256xf32>
    %105 = vector.broadcast %103 : vector<1x256xf32> to vector<128x256xf32>
    %106 = arith.mulf %85, %105 : vector<128x256xf32>
    %107 = vector.broadcast %104 : vector<1x256xf32> to vector<128x256xf32>
    %108 = arith.addf %106, %107 : vector<128x256xf32>
    %cst_56 = arith.constant 0.000000e+00 : f32
    %109 = vector.broadcast %cst_56 : f32 to vector<128x256xf32>
    %110 = arith.maximumf %108, %109 : vector<128x256xf32>
    %c0_i32_57 = arith.constant 0 : i32
    %111 = tpu.memref_slice %arg25[%c0_i32_57] : memref<2x!tpu.dma_semaphore, #tpu.memory_space<semaphore_mem>> -> memref<1x!tpu.dma_semaphore, #tpu.memory_space<semaphore_mem>>
    %112 = tpu.memref_squeeze %111 : memref<1x!tpu.dma_semaphore, #tpu.memory_space<semaphore_mem>> -> memref<!tpu.dma_semaphore, #tpu.memory_space<semaphore_mem>>
    tpu.wait_dma2 semaphore(%112 : memref<!tpu.dma_semaphore, #tpu.memory_space<semaphore_mem>>) src(%arg15 : memref<256x512xbf16, #tpu.memory_space<any>>) dst(%arg23 : memref<256x512xbf16, #tpu.memory_space<vmem>>)
    %c0_58 = arith.constant 0 : index
    %c0_59 = arith.constant 0 : index
    %113 = vector.load %arg23[%c0_58, %c0_59] : memref<256x512xbf16, #tpu.memory_space<vmem>>, vector<256x512xbf16>
    %114 = arith.extf %113 : vector<256x512xbf16> to vector<256x512xf32>
    %c0_60 = arith.constant 0 : index
    %c0_61 = arith.constant 0 : index
    %115 = vector.load %arg16[%c0_60, %c0_61] : memref<512x8xf32, #tpu.memory_space<vmem>>, vector<512x8xf32>
    %c0_62 = arith.constant 0 : index
    %c0_63 = arith.constant 0 : index
    %116 = vector.load %arg17[%c0_62, %c0_63] : memref<8x512xf32, #tpu.memory_space<vmem>>, vector<8x512xf32>
    %c0_64 = arith.constant 0 : index
    %c0_65 = arith.constant 0 : index
    %117 = vector.load %arg18[%c0_64, %c0_65] : memref<1x8xf32, #tpu.memory_space<vmem>>, vector<1x8xf32>
    %c0_66 = arith.constant 0 : index
    %c0_67 = arith.constant 0 : index
    %118 = vector.load %arg19[%c0_66, %c0_67] : memref<1x8xf32, #tpu.memory_space<vmem>>, vector<1x8xf32>
    %cst_68 = arith.constant dense<0.000000e+00> : vector<128x512xf32>
    %119 = tpu.matmul %110, %114, %cst_68 {dimension_numbers = #tpu.dot_dimension_numbers<[1], [0], [0], [1], [0, 0, 1, 1], [], []>} : vector<128x256xf32>, vector<256x512xf32>, vector<128x512xf32> -> vector<128x512xf32>
    %cst_69 = arith.constant dense<0.000000e+00> : vector<1x512xf32>
    %120 = tpu.matmul %48, %119, %cst_69 {dimension_numbers = #tpu.dot_dimension_numbers<[1], [0], [0], [1], [0, 0, 1, 1], [], []>} : vector<1x128xf32>, vector<128x512xf32>, vector<1x512xf32> -> vector<1x512xf32>
    %121 = arith.mulf %119, %119 : vector<128x512xf32>
    %cst_70 = arith.constant dense<0.000000e+00> : vector<1x512xf32>
    %122 = tpu.matmul %48, %121, %cst_70 {dimension_numbers = #tpu.dot_dimension_numbers<[1], [0], [0], [1], [0, 0, 1, 1], [], []>} : vector<1x128xf32>, vector<128x512xf32>, vector<1x512xf32> -> vector<1x512xf32>
    %cst_71 = arith.constant dense<0.000000e+00> : vector<1x8xf32>
    %123 = tpu.matmul %120, %115, %cst_71 {dimension_numbers = #tpu.dot_dimension_numbers<[1], [0], [0], [1], [0, 0, 1, 1], [], []>} : vector<1x512xf32>, vector<512x8xf32>, vector<1x8xf32> -> vector<1x8xf32>
    %cst_72 = arith.constant 1.22070313E-4 : f32
    %124 = vector.broadcast %cst_72 : f32 to vector<1x8xf32>
    %125 = arith.mulf %123, %124 : vector<1x8xf32>
    %cst_73 = arith.constant dense<0.000000e+00> : vector<1x8xf32>
    %126 = tpu.matmul %122, %115, %cst_73 {dimension_numbers = #tpu.dot_dimension_numbers<[1], [0], [0], [1], [0, 0, 1, 1], [], []>} : vector<1x512xf32>, vector<512x8xf32>, vector<1x8xf32> -> vector<1x8xf32>
    %cst_74 = arith.constant 1.22070313E-4 : f32
    %127 = vector.broadcast %cst_74 : f32 to vector<1x8xf32>
    %128 = arith.mulf %126, %127 : vector<1x8xf32>
    %129 = arith.mulf %125, %125 : vector<1x8xf32>
    %130 = arith.subf %128, %129 : vector<1x8xf32>
    %cst_75 = arith.constant 9.99999974E-6 : f32
    %131 = vector.broadcast %cst_75 : f32 to vector<1x8xf32>
    %132 = arith.addf %130, %131 : vector<1x8xf32>
    %133 = math.rsqrt %132 : vector<1x8xf32>
    %134 = arith.mulf %133, %117 : vector<1x8xf32>
    %135 = arith.mulf %125, %134 : vector<1x8xf32>
    %136 = arith.subf %118, %135 : vector<1x8xf32>
    %cst_76 = arith.constant dense<0.000000e+00> : vector<1x512xf32>
    %137 = tpu.matmul %134, %116, %cst_76 {dimension_numbers = #tpu.dot_dimension_numbers<[1], [0], [0], [1], [0, 0, 1, 1], [], []>} : vector<1x8xf32>, vector<8x512xf32>, vector<1x512xf32> -> vector<1x512xf32>
    %cst_77 = arith.constant dense<0.000000e+00> : vector<1x512xf32>
    %138 = tpu.matmul %136, %116, %cst_77 {dimension_numbers = #tpu.dot_dimension_numbers<[1], [0], [0], [1], [0, 0, 1, 1], [], []>} : vector<1x8xf32>, vector<8x512xf32>, vector<1x512xf32> -> vector<1x512xf32>
    %139 = vector.broadcast %137 : vector<1x512xf32> to vector<128x512xf32>
    %140 = arith.mulf %119, %139 : vector<128x512xf32>
    %141 = vector.broadcast %138 : vector<1x512xf32> to vector<128x512xf32>
    %142 = arith.addf %140, %141 : vector<128x512xf32>
    %cst_78 = arith.constant 0.000000e+00 : f32
    %143 = vector.broadcast %cst_78 : f32 to vector<128x512xf32>
    %144 = arith.maximumf %142, %143 : vector<128x512xf32>
    %c1_i32_79 = arith.constant 1 : i32
    %145 = tpu.memref_slice %arg25[%c1_i32_79] : memref<2x!tpu.dma_semaphore, #tpu.memory_space<semaphore_mem>> -> memref<1x!tpu.dma_semaphore, #tpu.memory_space<semaphore_mem>>
    %146 = tpu.memref_squeeze %145 : memref<1x!tpu.dma_semaphore, #tpu.memory_space<semaphore_mem>> -> memref<!tpu.dma_semaphore, #tpu.memory_space<semaphore_mem>>
    tpu.wait_dma2 semaphore(%146 : memref<!tpu.dma_semaphore, #tpu.memory_space<semaphore_mem>>) src(%arg20 : memref<512x768xbf16, #tpu.memory_space<any>>) dst(%arg24 : memref<512x768xbf16, #tpu.memory_space<vmem>>)
    %c0_80 = arith.constant 0 : index
    %c0_81 = arith.constant 0 : index
    %147 = vector.load %arg24[%c0_80, %c0_81] : memref<512x768xbf16, #tpu.memory_space<vmem>>, vector<512x768xbf16>
    %148 = arith.extf %147 : vector<512x768xbf16> to vector<512x768xf32>
    %cst_82 = arith.constant dense<0.000000e+00> : vector<128x768xf32>
    %149 = tpu.matmul %144, %148, %cst_82 {dimension_numbers = #tpu.dot_dimension_numbers<[1], [0], [0], [1], [0, 0, 1, 1], [], []>} : vector<128x512xf32>, vector<512x768xf32>, vector<128x768xf32> -> vector<128x768xf32>
    %c0_83 = arith.constant 0 : index
    %c0_84 = arith.constant 0 : index
    %150 = vector.load %arg21[%c0_83, %c0_84] : memref<1x768xf32, #tpu.memory_space<vmem>>, vector<1x768xf32>
    %151 = vector.broadcast %150 : vector<1x768xf32> to vector<128x768xf32>
    %152 = arith.addf %149, %151 : vector<128x768xf32>
    %153 = math.tanh %152 : vector<128x768xf32>
    %c0_85 = arith.constant 0 : index
    %c0_86 = arith.constant 0 : index
    %154 = vector.load %arg22[%c0_85, %c0_86] : memref<128x768xf32, #tpu.memory_space<vmem>>, vector<128x768xf32>
    tpu.vector_store %arg22[%c0_85, %c0_86], %153 {strides = array<i32>} : memref<128x768xf32, #tpu.memory_space<vmem>>, vector<128x768xf32>,
    return
  }
  func.func @transform_0(%arg0: i32) -> (i32, i32) {
    %c0_i32 = arith.constant 0 : i32
    %c0_i32_0 = arith.constant 0 : i32
    %c0_i32_1 = arith.constant 0 : i32
    return %c0_i32, %c0_i32_0 : i32, i32
  }
  func.func @transform_1(%arg0: i32) -> (i32, i32) {
    %c0_i32 = arith.constant 0 : i32
    %c0_i32_0 = arith.constant 0 : i32
    %c0_i32_1 = arith.constant 0 : i32
    return %c0_i32, %c0_i32_0 : i32, i32
  }
  func.func @transform_2(%arg0: i32) -> (i32, i32) {
    %c0_i32 = arith.constant 0 : i32
    %c0_i32_0 = arith.constant 0 : i32
    %c0_i32_1 = arith.constant 0 : i32
    return %c0_i32, %c0_i32_0 : i32, i32
  }
  func.func @transform_3(%arg0: i32) -> (i32, i32) {
    %c0_i32 = arith.constant 0 : i32
    %c0_i32_0 = arith.constant 0 : i32
    %c0_i32_1 = arith.constant 0 : i32
    return %c0_i32, %c0_i32_0 : i32, i32
  }
  func.func @transform_4(%arg0: i32) -> (i32, i32) {
    %c0_i32 = arith.constant 0 : i32
    %c0_i32_0 = arith.constant 0 : i32
    %c0_i32_1 = arith.constant 0 : i32
    return %c0_i32, %c0_i32_0 : i32, i32
  }
  func.func @transform_5(%arg0: i32) -> (i32, i32) {
    %c0_i32 = arith.constant 0 : i32
    %c0_i32_0 = arith.constant 0 : i32
    %c0_i32_1 = arith.constant 0 : i32
    return %c0_i32, %c0_i32_0 : i32, i32
  }
  func.func @transform_6(%arg0: i32) -> (i32, i32) {
    %c0_i32 = arith.constant 0 : i32
    %c0_i32_0 = arith.constant 0 : i32
    %c0_i32_1 = arith.constant 0 : i32
    return %c0_i32, %c0_i32_0 : i32, i32
  }
  func.func @transform_7(%arg0: i32) -> (i32, i32) {
    %c0_i32 = arith.constant 0 : i32
    %c0_i32_0 = arith.constant 0 : i32
    %c0_i32_1 = arith.constant 0 : i32
    return %c0_i32, %c0_i32_0 : i32, i32
  }
  func.func @transform_8(%arg0: i32) -> (i32, i32) {
    %c0_i32 = arith.constant 0 : i32
    %c0_i32_0 = arith.constant 0 : i32
    %c0_i32_1 = arith.constant 0 : i32
    return %c0_i32, %c0_i32_0 : i32, i32
  }
  func.func @transform_9(%arg0: i32) -> (i32, i32) {
    %c0_i32 = arith.constant 0 : i32
    %c0_i32_0 = arith.constant 0 : i32
    %c0_i32_1 = arith.constant 0 : i32
    return %c0_i32, %c0_i32_0 : i32, i32
  }
  func.func @transform_10(%arg0: i32) -> (i32, i32) {
    %c0_i32 = arith.constant 0 : i32
    %c0_i32_0 = arith.constant 0 : i32
    %c0_i32_1 = arith.constant 0 : i32
    return %c0_i32, %c0_i32_0 : i32, i32
  }
  func.func @transform_11(%arg0: i32) -> (i32, i32) {
    %c0_i32 = arith.constant 0 : i32
    %c0_i32_0 = arith.constant 0 : i32
    %c0_i32_1 = arith.constant 0 : i32
    return %c0_i32, %c0_i32_0 : i32, i32
  }
  func.func @transform_12(%arg0: i32) -> (i32, i32) {
    %c0_i32 = arith.constant 0 : i32
    %c0_i32_0 = arith.constant 0 : i32
    %c0_i32_1 = arith.constant 0 : i32
    return %c0_i32, %c0_i32_0 : i32, i32
  }
  func.func @transform_13(%arg0: i32) -> (i32, i32) {
    %c0_i32 = arith.constant 0 : i32
    %c0_i32_0 = arith.constant 0 : i32
    %c0_i32_1 = arith.constant 0 : i32
    return %c0_i32, %c0_i32_0 : i32, i32
  }
  func.func @transform_15(%arg0: i32) -> (i32, i32) {
    %c0_i32 = arith.constant 0 : i32
    %c0_i32_0 = arith.constant 0 : i32
    %c0_i32_1 = arith.constant 0 : i32
    return %c0_i32, %c0_i32_0 : i32, i32
  }
  func.func @transform_16(%arg0: i32) -> (i32, i32) {
    %c0_i32 = arith.constant 0 : i32
    %c0_i32_0 = arith.constant 0 : i32
    %c0_i32_1 = arith.constant 0 : i32
    return %c0_i32, %c0_i32_0 : i32, i32
  }
  func.func @transform_17(%arg0: i32) -> (i32, i32) {
    %c0_i32 = arith.constant 0 : i32
    %c0_i32_0 = arith.constant 0 : i32
    %c0_i32_1 = arith.constant 0 : i32
    return %c0_i32, %c0_i32_0 : i32, i32
  }
  func.func @transform_18(%arg0: i32) -> (i32, i32) {
    %c0_i32 = arith.constant 0 : i32
    %c0_i32_0 = arith.constant 0 : i32
    %c0_i32_1 = arith.constant 0 : i32
    return %c0_i32, %c0_i32_0 : i32, i32
  }
  func.func @transform_20(%arg0: i32) -> (i32, i32) {
    %c0_i32 = arith.constant 0 : i32
    %c0_i32_0 = arith.constant 0 : i32
    %c0_i32_1 = arith.constant 0 : i32
    return %c0_i32, %c0_i32_0 : i32, i32
  }
  func.func @transform_21(%arg0: i32) -> (i32, i32) {
    %c0_i32 = arith.constant 0 : i32
    %c0_i32_0 = arith.constant 0 : i32
    %c0_i32_1 = arith.constant 0 : i32
    return %c0_i32, %c0_i32_0 : i32, i32
  }
}

</mosaic_0001>

<llo_original>
// kernel: generator_forward.1
$region0: #{generator_forward.1}
  #allocation0 [shape = 'u32[]', space=smem, size = 0x4, offset = 0x4, fixed_abs, tag = 'smem constant byte address 0x4 - core index']
  #allocation1 [shape = 'u32[144,128]{1,0:T(1,128)}', space=vmem, size = 0x12000, scoped, tag = 'internal scratch']
  #allocation2 [shape = 'bf16[256,512]{1,0:T(16,128)(2,1)}', space=vmem, size = 0x40000, scoped, tag = 'scratch operand']
  #allocation3 [shape = 'bf16[512,768]{1,0:T(16,128)(2,1)}', space=vmem, size = 0xc0000, scoped, tag = 'scratch operand']
  #allocation4 [shape = 's32[2]{0}', space=sflag, size = 0x8, scoped, tag = 'scratch operand']
  #allocation30 [shape = 's32[]', space=sflag, size = 0x4, offset = 0, fixed_abs, tag = 'sflag constant byte address 0x0 - dummy sync flag']
  #allocation32 [shape = 's32[]', space=sflag, size = 0x4, offset = 0, fixed_abs, tag = 'sflag constant byte address 0x0 - dummy sync flag']
  %s0 = inlined_call_operand.hbm [shape: f32[8,8], index: 0, kind: input, shape index: {}]
  %s1 = inlined_call_operand.hbm [shape: f32[8,2048], index: 1, kind: input, shape index: {}]
  %s2 = inlined_call_operand.hbm [shape: f32[1,2048], index: 2, kind: input, shape index: {}]
  %s3 = inlined_call_operand.hbm [shape: f32[1,2048], index: 3, kind: input, shape index: {}]
  %s4 = inlined_call_operand.hbm [shape: f32[128,128], index: 4, kind: input, shape index: {}]
  %s5 = inlined_call_operand.vmem [shape: f32[128,32], index: 5, kind: input, shape index: {}]
  %s6 = inlined_call_operand.hbm [shape: f32[32,128], index: 6, kind: input, shape index: {}]
  %s7 = inlined_call_operand.hbm [shape: f32[1,32], index: 7, kind: input, shape index: {}]
  %s8 = inlined_call_operand.hbm [shape: f32[1,32], index: 8, kind: input, shape index: {}]
  %s9 = inlined_call_operand.hbm [shape: f32[128,256], index: 9, kind: input, shape index: {}]
  %s10 = inlined_call_operand.vmem [shape: f32[256,16], index: 10, kind: input, shape index: {}]
  %s11 = inlined_call_operand.hbm [shape: f32[16,256], index: 11, kind: input, shape index: {}]
  %s12 = inlined_call_operand.hbm [shape: f32[1,16], index: 12, kind: input, shape index: {}]
  %s13 = inlined_call_operand.hbm [shape: f32[1,16], index: 13, kind: input, shape index: {}]
  %s14 = inlined_call_operand.hbm [shape: bf16[256,512], index: 14, kind: input, shape index: {}]
  %s15 = inlined_call_operand.vmem [shape: f32[512,8], index: 15, kind: input, shape index: {}]
  %s16 = inlined_call_operand.hbm [shape: f32[8,512], index: 16, kind: input, shape index: {}]
  %s17 = inlined_call_operand.hbm [shape: f32[1,8], index: 17, kind: input, shape index: {}]
  %s18 = inlined_call_operand.hbm [shape: f32[1,8], index: 18, kind: input, shape index: {}]
  %s19 = inlined_call_operand.hbm [shape: bf16[512,768], index: 19, kind: input, shape index: {}]
  %s20 = inlined_call_operand.hbm [shape: f32[1,768], index: 20, kind: input, shape index: {}]
  %s21 = inlined_call_operand.vmem [shape: f32[128,768], index: 21, kind: output, shape index: {}]
  %s22 = sld [smem:[#allocation0]]
  $region150: #{generator_forward.1} parent=0
    _
  %s24 = ssub.s32 1, %s22
  %s25 = scalar_select 0, %s24, %s22
  $region1: #{generator_forward.1} parent=0
    #allocation5 [shape = 'u8[4096]{0}', space=vmem, size = 0x1000, scoped, tag = 'input window, operand 0, single buffered']
    #allocation6 [shape = 's32[1]{0}', space=sflag, size = 0x4, scoped, tag = 'scoped memory for generator_forward.1']
    #allocation7 [shape = 'u8[65536]{0}', space=vmem, size = 0x10000, scoped, tag = 'input window, operand 1, single buffered']
    #allocation8 [shape = 's32[1]{0}', space=sflag, size = 0x4, scoped, tag = 'scoped memory for generator_forward.1']
    #allocation9 [shape = 'u8[8192]{0}', space=vmem, size = 0x2000, scoped, tag = 'input window, operand 2, single buffered']
    #allocation10 [shape = 'u8[8192]{0}', space=vmem, size = 0x2000, scoped, tag = 'input window, operand 3, single buffered']
    #allocation11 [shape = 's32[1]{0}', space=sflag, size = 0x4, scoped, tag = 'scoped memory for generator_forward.1']
    #allocation12 [shape = 'u8[65536]{0}', space=vmem, size = 0x10000, scoped, tag = 'input window, operand 4, single buffered']
    #allocation13 [shape = 'u8[16384]{0}', space=vmem, size = 0x4000, scoped, tag = 'input window, operand 6, single buffered']
    #allocation14 [shape = 's32[1]{0}', space=sflag, size = 0x4, scoped, tag = 'scoped memory for generator_forward.1']
    #allocation15 [shape = 'u8[512]{0}', space=vmem, size = 0x400, scoped, tag = 'input window, operand 7, single buffered']
    #allocation16 [shape = 'u8[512]{0}', space=vmem, size = 0x400, scoped, tag = 'input window, operand 8, single buffered']
    #allocation17 [shape = 's32[1]{0}', space=sflag, size = 0x4, scoped, tag = 'scoped memory for generator_forward.1']
    #allocation18 [shape = 'u8[131072]{0}', space=vmem, size = 0x20000, scoped, tag = 'input window, operand 9, single buffered']
    #allocation19 [shape = 'u8[16384]{0}', space=vmem, size = 0x4000, scoped, tag = 'input window, operand 11, single buffered']
    #allocation20 [shape = 's32[1]{0}', space=sflag, size = 0x4, scoped, tag = 'scoped memory for generator_forward.1']
    #allocation21 [shape = 'u8[512]{0}', space=vmem, size = 0x400, scoped, tag = 'input window, operand 12, single buffered']
    #allocation22 [shape = 'u8[512]{0}', space=vmem, size = 0x400, scoped, tag = 'input window, operand 13, single buffered']
    #allocation23 [shape = 's32[1]{0}', space=sflag, size = 0x4, scoped, tag = 'scoped memory for generator_forward.1']
    #allocation24 [shape = 'u8[16384]{0}', space=vmem, size = 0x4000, scoped, tag = 'input window, operand 16, single buffered']
    #allocation25 [shape = 'u8[512]{0}', space=vmem, size = 0x400, scoped, tag = 'input window, operand 17, single buffered']
    #allocation26 [shape = 's32[1]{0}', space=sflag, size = 0x4, scoped, tag = 'scoped memory for generator_forward.1']
    #allocation27 [shape = 'u8[512]{0}', space=vmem, size = 0x400, scoped, tag = 'input window, operand 18, single buffered']
    #allocation28 [shape = 'u8[3072]{0}', space=vmem, size = 0xc00, scoped, tag = 'input window, operand 20, single buffered']
    #allocation29 [shape = 's32[1]{0}', space=sflag, size = 0x4, scoped, tag = 'scoped memory for generator_forward.1']
    #allocation31 [shape = 'u32[9]{0}', space=smem, size = 0x24, scoped, tag = 'DMA stride descriptor']
    #allocation33 [shape = 'u32[9]{0}', space=smem, size = 0x24, scoped, tag = 'DMA stride descriptor']
    %26 = vsyncpa [#allocation6], 0
    %27 = vsyncpa [#allocation8], 0
    %28 = vsyncpa [#allocation11], 0
    %29 = vsyncpa [#allocation14], 0
    %30 = vsyncpa [#allocation17], 0
    %31 = vsyncpa [#allocation20], 0
    %32 = vsyncpa [#allocation23], 0
    %33 = vsyncpa [#allocation26], 0
    %34 = vsyncpa [#allocation29], 0
    // Predicated region
    $region2: #{generator_forward.1} parent=1 // pred_check
      _
    $region3: #{generator_forward.1} parent=1 // pred_check_branch
      %36 = sbr.rel (0) target = $region5
    $region4: #{generator_forward.1} parent=1 // pred_region
      %s38 = ssub.s32 128, 128
      %39 = vsyncadd [#allocation6], %s38
      %s41 = sshll.u32 [#allocation5], 4
      %s42 = int_to_ptr.vmem [resolvable:$true] %s41
      %44 = dma.hbm_to_vmem [thread:$0]  %s0, 128, %s42, [#allocation6]
    $region5: #{generator_forward.1} parent=1 // pred_fallthru
      _
    // Predicated region
    $region6: #{generator_forward.1} parent=1 // pred_check
      _
    $region7: #{generator_forward.1} parent=1 // pred_check_branch
      %46 = sbr.rel (0) target = $region9
    $region8: #{generator_forward.1} parent=1 // pred_region
      %s48 = ssub.s32 2048, 2048
      %49 = vsyncadd [#allocation8], %s48
      %s51 = sshll.u32 [#allocation7], 4
      %s52 = int_to_ptr.vmem [resolvable:$true] %s51
      %54 = dma.hbm_to_vmem [thread:$0]  %s1, 2048, %s52, [#allocation8]
    $region9: #{generator_forward.1} parent=1 // pred_fallthru
      _
    // Predicated region
    $region10: #{generator_forward.1} parent=1 // pred_check
      _
    $region11: #{generator_forward.1} parent=1 // pred_check_branch
      %56 = sbr.rel (0) target = $region13
    $region12: #{generator_forward.1} parent=1 // pred_region
      %s58 = ssub.s32 256, 256
      %59 = vsyncadd [#allocation8], %s58
      %s61 = sshll.u32 [#allocation9], 4
      %s62 = int_to_ptr.vmem [resolvable:$true] %s61
      %64 = dma.hbm_to_vmem [thread:$0]  %s2, 256, %s62, [#allocation8]
    $region13: #{generator_forward.1} parent=1 // pred_fallthru
      _
    // Predicated region
    $region14: #{generator_forward.1} parent=1 // pred_check
      _
    $region15: #{generator_forward.1} parent=1 // pred_check_branch
      %66 = sbr.rel (0) target = $region17
    $region16: #{generator_forward.1} parent=1 // pred_region
      %s68 = ssub.s32 256, 256
      %69 = vsyncadd [#allocation11], %s68
      %s71 = sshll.u32 [#allocation10], 4
      %s72 = int_to_ptr.vmem [resolvable:$true] %s71
      %74 = dma.hbm_to_vmem [thread:$0]  %s3, 256, %s72, [#allocation11]
    $region17: #{generator_forward.1} parent=1 // pred_fallthru
      _
    // Predicated region
    $region18: #{generator_forward.1} parent=1 // pred_check
      _
    $region19: #{generator_forward.1} parent=1 // pred_check_branch
      %76 = sbr.rel (0) target = $region21
    $region20: #{generator_forward.1} parent=1 // pred_region
      %s78 = ssub.s32 2048, 2048
      %79 = vsyncadd [#allocation11], %s78
      %s80 = sshll.u32 [#allocation12], 4
      %s81 = int_to_ptr.vmem [resolvable:$true] %s80
      %86 = dma.hbm_to_vmem [thread:$0]  %s4, 2048, %s81, [#allocation11], 128, 128, 8
    $region21: #{generator_forward.1} parent=1 // pred_fallthru
      _
    // Predicated region
    $region22: #{generator_forward.1} parent=1 // pred_check
      _
    $region23: #{generator_forward.1} parent=1 // pred_check_branch
      %88 = sbr.rel (0) target = $region25
    $region24: #{generator_forward.1} parent=1 // pred_region
      _
    $region25: #{generator_forward.1} parent=1 // pred_fallthru
      _
    // Predicated region
    $region26: #{generator_forward.1} parent=1 // pred_check
      _
    $region27: #{generator_forward.1} parent=1 // pred_check_branch
      %90 = sbr.rel (0) target = $region29
    $region28: #{generator_forward.1} parent=1 // pred_region
      %s92 = ssub.s32 512, 512
      %93 = vsyncadd [#allocation14], %s92
      %s94 = sshll.u32 [#allocation13], 4
      %s95 = int_to_ptr.vmem [resolvable:$true] %s94
      %100 = dma.hbm_to_vmem [thread:$0]  %s6, 512, %s95, [#allocation14], 128, 128, 8
    $region29: #{generator_forward.1} parent=1 // pred_fallthru
      _
    // Predicated region
    $region30: #{generator_forward.1} parent=1 // pred_check
      _
    $region31: #{generator_forward.1} parent=1 // pred_check_branch
      %102 = sbr.rel (0) target = $region33
    $region32: #{generator_forward.1} parent=1 // pred_region
      %s104 = ssub.s32 16, 16
      %105 = vsyncadd [#allocation14], %s104
      %s107 = sshll.u32 [#allocation15], 4
      %s108 = int_to_ptr.vmem [resolvable:$true] %s107
      %110 = dma.hbm_to_vmem [thread:$0]  %s7, 16, %s108, [#allocation14]
    $region33: #{generator_forward.1} parent=1 // pred_fallthru
      _
    // Predicated region
    $region34: #{generator_forward.1} parent=1 // pred_check
      _
    $region35: #{generator_forward.1} parent=1 // pred_check_branch
      %112 = sbr.rel (0) target = $region37
    $region36: #{generator_forward.1} parent=1 // pred_region
      %s114 = ssub.s32 16, 16
      %115 = vsyncadd [#allocation17], %s114
      %s117 = sshll.u32 [#allocation16], 4
      %s118 = int_to_ptr.vmem [resolvable:$true] %s117
      %120 = dma.hbm_to_vmem [thread:$0]  %s8, 16, %s118, [#allocation17]
    $region37: #{generator_forward.1} parent=1 // pred_fallthru
      _
    // Predicated region
    $region38: #{generator_forward.1} parent=1 // pred_check
      _
    $region39: #{generator_forward.1} parent=1 // pred_check_branch
      %122 = sbr.rel (0) target = $region41
    $region40: #{generator_forward.1} parent=1 // pred_region
      %s124 = ssub.s32 4096, 4096
      %125 = vsyncadd [#allocation17], %s124
      %s126 = sshll.u32 [#allocation18], 4
      %s127 = int_to_ptr.vmem [resolvable:$true] %s126
      %132 = dma.hbm_to_vmem [thread:$0]  %s9, 4096, %s127, [#allocation17], 256, 256, 16
    $region41: #{generator_forward.1} parent=1 // pred_fallthru
      _
    // Predicated region
    $region42: #{generator_forward.1} parent=1 // pred_check
      _
    $region43: #{generator_forward.1} parent=1 // pred_check_branch
      %134 = sbr.rel (0) target = $region45
    $region44: #{generator_forward.1} parent=1 // pred_region
      _
    $region45: #{generator_forward.1} parent=1 // pred_fallthru
      _
    // Predicated region
    $region46: #{generator_forward.1} parent=1 // pred_check
      _
    $region47: #{generator_forward.1} parent=1 // pred_check_branch
      %136 = sbr.rel (0) target = $region49
    $region48: #{generator_forward.1} parent=1 // pred_region
      %s138 = ssub.s32 512, 512
      %139 = vsyncadd [#allocation20], %s138
      %s140 = sshll.u32 [#allocation19], 4
      %s141 = int_to_ptr.vmem [resolvable:$true] %s140
      %146 = dma.hbm_to_vmem [thread:$0]  %s11, 512, %s141, [#allocation20], 256, 256, 16
    $region49: #{generator_forward.1} parent=1 // pred_fallthru
      _
    // Predicated region
    $region50: #{generator_forward.1} parent=1 // pred_check
      _
    $region51: #{generator_forward.1} parent=1 // pred_check_branch
      %148 = sbr.rel (0) target = $region53
    $region52: #{generator_forward.1} parent=1 // pred_region
      %s150 = ssub.s32 16, 16
      %151 = vsyncadd [#allocation20], %s150
      %s153 = sshll.u32 [#allocation21], 4
      %s154 = int_to_ptr.vmem [resolvable:$true] %s153
      %156 = dma.hbm_to_vmem [thread:$0]  %s12, 16, %s154, [#allocation20]
    $region53: #{generator_forward.1} parent=1 // pred_fallthru
      _
    // Predicated region
    $region54: #{generator_forward.1} parent=1 // pred_check
      _
    $region55: #{generator_forward.1} parent=1 // pred_check_branch
      %158 = sbr.rel (0) target = $region57
    $region56: #{generator_forward.1} parent=1 // pred_region
      %s160 = ssub.s32 16, 16
      %161 = vsyncadd [#allocation23], %s160
      %s163 = sshll.u32 [#allocation22], 4
      %s164 = int_to_ptr.vmem [resolvable:$true] %s163
      %166 = dma.hbm_to_vmem [thread:$0]  %s13, 16, %s164, [#allocation23]
    $region57: #{generator_forward.1} parent=1 // pred_fallthru
      _
    // Predicated region
    $region58: #{generator_forward.1} parent=1 // pred_check
      _
    $region59: #{generator_forward.1} parent=1 // pred_check_branch
      %168 = sbr.rel (0) target = $region61
    $region60: #{generator_forward.1} parent=1 // pred_region
      _
    $region61: #{generator_forward.1} parent=1 // pred_fallthru
      _
    // Predicated region
    $region62: #{generator_forward.1} parent=1 // pred_check
      _
    $region63: #{generator_forward.1} parent=1 // pred_check_branch
      %170 = sbr.rel (0) target = $region65
    $region64: #{generator_forward.1} parent=1 // pred_region
      %s172 = ssub.s32 512, 512
      %173 = vsyncadd [#allocation23], %s172
      %s175 = sshll.u32 [#allocation24], 4
      %s176 = int_to_ptr.vmem [resolvable:$true] %s175
      %178 = dma.hbm_to_vmem [thread:$0]  %s16, 512, %s176, [#allocation23]
    $region65: #{generator_forward.1} parent=1 // pred_fallthru
      _
    // Predicated region
    $region66: #{generator_forward.1} parent=1 // pred_check
      _
    $region67: #{generator_forward.1} parent=1 // pred_check_branch
      %180 = sbr.rel (0) target = $region69
    $region68: #{generator_forward.1} parent=1 // pred_region
      %s182 = ssub.s32 16, 16
      %183 = vsyncadd [#allocation26], %s182
      %s185 = sshll.u32 [#allocation25], 4
      %s186 = int_to_ptr.vmem [resolvable:$true] %s185
      %188 = dma.hbm_to_vmem [thread:$0]  %s17, 16, %s186, [#allocation26]
    $region69: #{generator_forward.1} parent=1 // pred_fallthru
      _
    // Predicated region
    $region70: #{generator_forward.1} parent=1 // pred_check
      _
    $region71: #{generator_forward.1} parent=1 // pred_check_branch
      %190 = sbr.rel (0) target = $region73
    $region72: #{generator_forward.1} parent=1 // pred_region
      %s192 = ssub.s32 16, 16
      %193 = vsyncadd [#allocation26], %s192
      %s195 = sshll.u32 [#allocation27], 4
      %s196 = int_to_ptr.vmem [resolvable:$true] %s195
      %198 = dma.hbm_to_vmem [thread:$0]  %s18, 16, %s196, [#allocation26]
    $region73: #{generator_forward.1} parent=1 // pred_fallthru
      _
    // Predicated region
    $region74: #{generator_forward.1} parent=1 // pred_check
      _
    $region75: #{generator_forward.1} parent=1 // pred_check_branch
      %200 = sbr.rel (0) target = $region77
    $region76: #{generator_forward.1} parent=1 // pred_region
      %s202 = ssub.s32 96, 96
      %203 = vsyncadd [#allocation29], %s202
      %s205 = sshll.u32 [#allocation28], 4
      %s206 = int_to_ptr.vmem [resolvable:$true] %s205
      %208 = dma.hbm_to_vmem [thread:$0]  %s20, 96, %s206, [#allocation29]
    $region77: #{generator_forward.1} parent=1 // pred_fallthru
      _
    // Predicated region
    $region78: #{generator_forward.1} parent=1 // pred_check
      _
    $region79: #{generator_forward.1} parent=1 // pred_check_branch
      %210 = sbr.rel (0) target = $region81
    $region80: #{generator_forward.1} parent=1 // pred_region
      %211 = dma.done [#allocation6], 128
    $region81: #{generator_forward.1} parent=1 // pred_fallthru
      _
    // Predicated region
    $region82: #{generator_forward.1} parent=1 // pred_check
      _
    $region83: #{generator_forward.1} parent=1 // pred_check_branch
      %213 = sbr.rel (0) target = $region85
    $region84: #{generator_forward.1} parent=1 // pred_region
      %214 = dma.done [#allocation8], 2048
    $region85: #{generator_forward.1} parent=1 // pred_fallthru
      _
    // Predicated region
    $region86: #{generator_forward.1} parent=1 // pred_check
      _
    $region87: #{generator_forward.1} parent=1 // pred_check_branch
      %216 = sbr.rel (0) target = $region89
    $region88: #{generator_forward.1} parent=1 // pred_region
      %217 = dma.done [#allocation8], 256
    $region89: #{generator_forward.1} parent=1 // pred_fallthru
      _
    // Predicated region
    $region90: #{generator_forward.1} parent=1 // pred_check
      _
    $region91: #{generator_forward.1} parent=1 // pred_check_branch
      %219 = sbr.rel (0) target = $region93
    $region92: #{generator_forward.1} parent=1 // pred_region
      %220 = dma.done [#allocation11], 256
    $region93: #{generator_forward.1} parent=1 // pred_fallthru
      _
    // Predicated region
    $region94: #{generator_forward.1} parent=1 // pred_check
      _
    $region95: #{generator_forward.1} parent=1 // pred_check_branch
      %222 = sbr.rel (0) target = $region97
    $region96: #{generator_forward.1} parent=1 // pred_region
      %223 = dma.done [#allocation11], 2048
    $region97: #{generator_forward.1} parent=1 // pred_fallthru
      _
    // Predicated region
    $region98: #{generator_forward.1} parent=1 // pred_check
      _
    $region99: #{generator_forward.1} parent=1 // pred_check_branch
      %225 = sbr.rel (0) target = $region101
    $region100: #{generator_forward.1} parent=1 // pred_region
      %226 = dma.done [#allocation14], 512
    $region101: #{generator_forward.1} parent=1 // pred_fallthru
      _
    // Predicated region
    $region102: #{generator_forward.1} parent=1 // pred_check
      _
    $region103: #{generator_forward.1} parent=1 // pred_check_branch
      %228 = sbr.rel (0) target = $region105
    $region104: #{generator_forward.1} parent=1 // pred_region
      %229 = dma.done [#allocation14], 16
    $region105: #{generator_forward.1} parent=1 // pred_fallthru
      _
    // Predicated region
    $region106: #{generator_forward.1} parent=1 // pred_check
      _
    $region107: #{generator_forward.1} parent=1 // pred_check_branch
      %231 = sbr.rel (0) target = $region109
    $region108: #{generator_forward.1} parent=1 // pred_region
      %232 = dma.done [#allocation17], 16
    $region109: #{generator_forward.1} parent=1 // pred_fallthru
      _
    // Predicated region
    $region110: #{generator_forward.1} parent=1 // pred_check
      _
    $region111: #{generator_forward.1} parent=1 // pred_check_branch
      %234 = sbr.rel (0) target = $region113
    $region112: #{generator_forward.1} parent=1 // pred_region
      %235 = dma.done [#allocation17], 4096
    $region113: #{generator_forward.1} parent=1 // pred_fallthru
      _
    // Predicated region
    $region114: #{generator_forward.1} parent=1 // pred_check
      _
    $region115: #{generator_forward.1} parent=1 // pred_check_branch
      %237 = sbr.rel (0) target = $region117
    $region116: #{generator_forward.1} parent=1 // pred_region
      %238 = dma.done [#allocation20], 512
    $region117: #{generator_forward.1} parent=1 // pred_fallthru
      _
    // Predicated region
    $region118: #{generator_forward.1} parent=1 // pred_check
      _
    $region119: #{generator_forward.1} parent=1 // pred_check_branch
      %240 = sbr.rel (0) target = $region121
    $region120: #{generator_forward.1} parent=1 // pred_region
      %241 = dma.done [#allocation20], 16
    $region121: #{generator_forward.1} parent=1 // pred_fallthru
      _
    // Predicated region
    $region122: #{generator_forward.1} parent=1 // pred_check
      _
    $region123: #{generator_forward.1} parent=1 // pred_check_branch
      %243 = sbr.rel (0) target = $region125
    $region124: #{generator_forward.1} parent=1 // pred_region
      %244 = dma.done [#allocation23], 16
    $region125: #{generator_forward.1} parent=1 // pred_fallthru
      _
    // Predicated region
    $region126: #{generator_forward.1} parent=1 // pred_check
      _
    $region127: #{generator_forward.1} parent=1 // pred_check_branch
      %246 = sbr.rel (0) target = $region129
    $region128: #{generator_forward.1} parent=1 // pred_region
      %247 = dma.done [#allocation23], 512
    $region129: #{generator_forward.1} parent=1 // pred_fallthru
      _
    // Predicated region
    $region130: #{generator_forward.1} parent=1 // pred_check
      _
    $region131: #{generator_forward.1} parent=1 // pred_check_branch
      %249 = sbr.rel (0) target = $region133
    $region132: #{generator_forward.1} parent=1 // pred_region
      %250 = dma.done [#allocation26], 16
    $region133: #{generator_forward.1} parent=1 // pred_fallthru
      _
    // Predicated region
    $region134: #{generator_forward.1} parent=1 // pred_check
      _
    $region135: #{generator_forward.1} parent=1 // pred_check_branch
      %252 = sbr.rel (0) target = $region137
    $region136: #{generator_forward.1} parent=1 // pred_region
      %253 = dma.done [#allocation26], 16
    $region137: #{generator_forward.1} parent=1 // pred_fallthru
      _
    // Predicated region
    $region138: #{generator_forward.1} parent=1 // pred_check
      _
    $region139: #{generator_forward.1} parent=1 // pred_check_branch
      %255 = sbr.rel (0) target = $region141
    $region140: #{generator_forward.1} parent=1 // pred_region
      %256 = dma.done [#allocation29], 96
    $region141: #{generator_forward.1} parent=1 // pred_fallthru
      _
    %s258 = sshll.u32 1, 14
    %s259 = sxor.u32 4294967295, %s258
    %s261 = sld [smem:[#allocation0]]
    %s262 = sadd.s32 2, %s261
    %s264 = sshll.u32 7, 26
    %s265 = sxor.u32 4294967295, %s264
    %s266 = sand.u32 0, %s265
    %s267 = sshll.u32 %s262, 26
    %s268 = sor.u32 %s266, %s267
    %s269 = sshll.u32 [#allocation2], 4
    %s270 = int_to_ptr.vmem [resolvable:$true] %s269
    %273 = sst [smem:[#allocation31]] 512
    %s274 = scalar_lea.smem [#allocation31], 1
    %275 = sst [smem:[%s274]] 512
    %s276 = scalar_lea.smem [#allocation31], 2
    %277 = sst [smem:[%s276]] 4
    %s278 = scalar_lea.smem [#allocation31], 3
    %279 = sst [smem:[%s278]] 64
    %s280 = scalar_lea.smem [#allocation31], 4
    %281 = sst [smem:[%s280]] 128
    %s282 = scalar_lea.smem [#allocation31], 5
    %283 = sst [smem:[%s282]] 2
    %s284 = scalar_lea.smem [#allocation31], 6
    %285 = sst [smem:[%s284]] 256
    %s286 = scalar_lea.smem [#allocation31], 7
    %287 = sst [smem:[%s286]] 64
    %s288 = scalar_lea.smem [#allocation31], 8
    %289 = sst [smem:[%s288]] 4
    %291 = dma.general %s14, 8192, %s270, [#allocation4], [#allocation30], [#allocation31], %s268, 0
    %s292 = scalar_lea.sflag [#allocation4], 1
    %s294 = sshll.u32 1, 14
    %s295 = sxor.u32 4294967295, %s294
    %s297 = sadd.s32 2, %s261
    %s299 = sshll.u32 7, 26
    %s300 = sxor.u32 4294967295, %s299
    %s301 = sand.u32 0, %s300
    %s302 = sshll.u32 %s297, 26
    %s303 = sor.u32 %s301, %s302
    %s304 = sshll.u32 [#allocation3], 4
    %s305 = int_to_ptr.vmem [resolvable:$true] %s304
    %308 = sst [smem:[#allocation33]] 768
    %s309 = scalar_lea.smem [#allocation33], 1
    %310 = sst [smem:[%s309]] 768
    %s311 = scalar_lea.smem [#allocation33], 2
    %312 = sst [smem:[%s311]] 6
    %s313 = scalar_lea.smem [#allocation33], 3
    %314 = sst [smem:[%s313]] 64
    %s315 = scalar_lea.smem [#allocation33], 4
    %316 = sst [smem:[%s315]] 128
    %s317 = scalar_lea.smem [#allocation33], 5
    %318 = sst [smem:[%s317]] 2
    %s319 = scalar_lea.smem [#allocation33], 6
    %320 = sst [smem:[%s319]] 384
    %s321 = scalar_lea.smem [#allocation33], 7
    %322 = sst [smem:[%s321]] 64
    %s323 = scalar_lea.smem [#allocation33], 8
    %324 = sst [smem:[%s323]] 4
    %326 = dma.general %s19, 24576, %s305, %s292, [#allocation32], [#allocation33], %s303, 0
    %v327 = vld [vmem:[#allocation5] sm:$0xff]
    %v328 = vld [vmem:[#allocation7] sm:$0xff]
    %v329 = vld [vmem:[#allocation7 + $0x8] sm:$0xff]
    %v330 = vld [vmem:[#allocation7 + $0x10] sm:$0xff]
    %v331 = vld [vmem:[#allocation7 + $0x18] sm:$0xff]
    %v332 = vld [vmem:[#allocation7 + $0x20] sm:$0xff]
    %v333 = vld [vmem:[#allocation7 + $0x28] sm:$0xff]
    %v334 = vld [vmem:[#allocation7 + $0x30] sm:$0xff]
    %v335 = vld [vmem:[#allocation7 + $0x38] sm:$0xff]
    %v336 = vld [vmem:[#allocation7 + $0x40] sm:$0xff]
    %v337 = vld [vmem:[#allocation7 + $0x48] sm:$0xff]
    %v338 = vld [vmem:[#allocation7 + $0x50] sm:$0xff]
    %v339 = vld [vmem:[#allocation7 + $0x58] sm:$0xff]
    %v340 = vld [vmem:[#allocation7 + $0x60] sm:$0xff]
    %v341 = vld [vmem:[#allocation7 + $0x68] sm:$0xff]
    %v342 = vld [vmem:[#allocation7 + $0x70] sm:$0xff]
    %v343 = vld [vmem:[#allocation7 + $0x78] sm:$0xff]
    %vm344 = vcmask 64512
    %v346 = vsel %vm344, %v327, 0
    %348 = vmatprep.subr.mxu0 %v329
    %349 = vmatpush1.msra.mxu0 %v328
    %350 = vmatprep.subr.mxu0 0.0
    %351 = vmatpush1.msra.mxu0 0.0
    %352 = vmatprep.subr.mxu0 0.0
    %353 = vmatpush1.msra.mxu0 0.0
    %354 = vmatprep.subr.mxu0 0.0
    %355 = vmatpush1.msra.mxu0 0.0
    %356 = vmatprep.subr.mxu0 0.0
    %357 = vmatpush1.msra.mxu0 0.0
    %358 = vmatprep.subr.mxu0 0.0
    %359 = vmatpush1.msra.mxu0 0.0
    %360 = vmatprep.subr.mxu0 0.0
    %361 = vmatpush1.msra.mxu0 0.0
    %362 = vmatprep.subr.mxu0 0.0
    %363 = vmatpush1.msra.mxu0 0.0
    %364 = vmatprep.subr.mxu0 0.0
    %365 = vmatpush1.msra.mxu0 0.0
    %366 = vmatprep.subr.mxu0 0.0
    %367 = vmatpush1.msra.mxu0 0.0
    %368 = vmatprep.subr.mxu0 0.0
    %369 = vmatpush1.msra.mxu0 0.0
    %370 = vmatprep.subr.mxu0 0.0
    %371 = vmatpush1.msra.mxu0 0.0
    %372 = vmatprep.subr.mxu0 0.0
    %373 = vmatpush1.msra.mxu0 0.0
    %374 = vmatprep.subr.mxu0 0.0
    %375 = vmatpush1.msra.mxu0 0.0
    %376 = vmatprep.subr.mxu0 0.0
    %377 = vmatpush1.msra.mxu0 0.0
    %378 = vmatprep.subr.mxu0 0.0
    %379 = vmatpush1.msra.mxu0 0.0
    %380 = vmatprep.subr.mxu0 0.0
    %381 = vmatpush1.msra.mxu0 0.0
    %382 = vmatprep.subr.mxu0 0.0
    %383 = vmatpush1.msra.mxu0 0.0
    %384 = vmatprep.subr.mxu0 0.0
    %385 = vmatpush1.msra.mxu0 0.0
    %386 = vmatprep.subr.mxu0 0.0
    %387 = vmatpush1.msra.mxu0 0.0
    %388 = vmatprep.subr.mxu0 0.0
    %389 = vmatpush1.msra.mxu0 0.0
    %390 = vmatprep.subr.mxu0 0.0
    %391 = vmatpush1.msra.mxu0 0.0
    %392 = vmatprep.subr.mxu0 0.0
    %393 = vmatpush1.msra.mxu0 0.0
    %394 = vmatprep.subr.mxu0 0.0
    %395 = vmatpush1.msra.mxu0 0.0
    %396 = vmatprep.subr.mxu0 0.0
    %397 = vmatpush1.msra.mxu0 0.0
    %398 = vmatprep.subr.mxu0 0.0
    %399 = vmatpush1.msra.mxu0 0.0
    %400 = vmatprep.subr.mxu0 0.0
    %401 = vmatpush1.msra.mxu0 0.0
    %402 = vmatprep.subr.mxu0 0.0
    %403 = vmatpush1.msra.mxu0 0.0
    %404 = vmatprep.subr.mxu0 0.0
    %405 = vmatpush1.msra.mxu0 0.0
    %406 = vmatprep.subr.mxu0 0.0
    %407 = vmatpush1.msra.mxu0 0.0
    %408 = vmatprep.subr.mxu0 0.0
    %409 = vmatpush1.msra.mxu0 0.0
    %410 = vmatprep.subr.mxu0 0.0
    %411 = vmatpush1.msra.mxu0 0.0
    %412 = vmatprep.mubr.f32.mxu0 0.0
    %413 = vmatmul.mubr.f32.gmra.mrb[0].mxu0 %v346
    %v414 = vpop.f32.mrb[0].mxu0
    %v415 = vadd.f32 0.0, %v414
    %v416 = vpop.f32.mrb[0].mxu0
    %v417 = vadd.f32 0.0, %v416
    %418 = vdwg.mxu0
    %419 = vmatprep.subr.mxu0 %v331
    %420 = vmatpush1.msra.mxu0 %v330
    %421 = vmatprep.subr.mxu0 0.0
    %422 = vmatpush1.msra.mxu0 0.0
    %423 = vmatprep.subr.mxu0 0.0
    %424 = vmatpush1.msra.mxu0 0.0
    %425 = vmatprep.subr.mxu0 0.0
    %426 = vmatpush1.msra.mxu0 0.0
    %427 = vmatprep.subr.mxu0 0.0
    %428 = vmatpush1.msra.mxu0 0.0
    %429 = vmatprep.subr.mxu0 0.0
    %430 = vmatpush1.msra.mxu0 0.0
    %431 = vmatprep.subr.mxu0 0.0
    %432 = vmatpush1.msra.mxu0 0.0
    %433 = vmatprep.subr.mxu0 0.0
    %434 = vmatpush1.msra.mxu0 0.0
    %435 = vmatprep.subr.mxu0 0.0
    %436 = vmatpush1.msra.mxu0 0.0
    %437 = vmatprep.subr.mxu0 0.0
    %438 = vmatpush1.msra.mxu0 0.0
    %439 = vmatprep.subr.mxu0 0.0
    %440 = vmatpush1.msra.mxu0 0.0
    %441 = vmatprep.subr.mxu0 0.0
    %442 = vmatpush1.msra.mxu0 0.0
    %443 = vmatprep.subr.mxu0 0.0
    %444 = vmatpush1.msra.mxu0 0.0
    %445 = vmatprep.subr.mxu0 0.0
    %446 = vmatpush1.msra.mxu0 0.0
    %447 = vmatprep.subr.mxu0 0.0
    %448 = vmatpush1.msra.mxu0 0.0
    %449 = vmatprep.subr.mxu0 0.0
    %450 = vmatpush1.msra.mxu0 0.0
    %451 = vmatprep.subr.mxu0 0.0
    %452 = vmatpush1.msra.mxu0 0.0
    %453 = vmatprep.subr.mxu0 0.0
    %454 = vmatpush1.msra.mxu0 0.0
    %455 = vmatprep.subr.mxu0 0.0
    %456 = vmatpush1.msra.mxu0 0.0
    %457 = vmatprep.subr.mxu0 0.0
    %458 = vmatpush1.msra.mxu0 0.0
    %459 = vmatprep.subr.mxu0 0.0
    %460 = vmatpush1.msra.mxu0 0.0
    %461 = vmatprep.subr.mxu0 0.0
    %462 = vmatpush1.msra.mxu0 0.0
    %463 = vmatprep.subr.mxu0 0.0
    %464 = vmatpush1.msra.mxu0 0.0
    %465 = vmatprep.subr.mxu0 0.0
    %466 = vmatpush1.msra.mxu0 0.0
    %467 = vmatprep.subr.mxu0 0.0
    %468 = vmatpush1.msra.mxu0 0.0
    %469 = vmatprep.subr.mxu0 0.0
    %470 = vmatpush1.msra.mxu0 0.0
    %471 = vmatprep.subr.mxu0 0.0
    %472 = vmatpush1.msra.mxu0 0.0
    %473 = vmatprep.subr.mxu0 0.0
    %474 = vmatpush1.msra.mxu0 0.0
    %475 = vmatprep.subr.mxu0 0.0
    %476 = vmatpush1.msra.mxu0 0.0
    %477 = vmatprep.subr.mxu0 0.0
    %478 = vmatpush1.msra.mxu0 0.0
    %479 = vmatprep.subr.mxu0 0.0
    %480 = vmatpush1.msra.mxu0 0.0
    %481 = vmatprep.subr.mxu0 0.0
    %482 = vmatpush1.msra.mxu0 0.0
    %483 = vmatprep.mubr.f32.mxu0 0.0
    %484 = vmatmul.mubr.f32.gmra.mrb[0].mxu0 %v346
    %v485 = vpop.f32.mrb[0].mxu0
    %v486 = vadd.f32 0.0, %v485
    %v487 = vpop.f32.mrb[0].mxu0
    %v488 = vadd.f32 0.0, %v487
    %489 = vdwg.mxu0
    %490 = vmatprep.subr.mxu0 %v333
    %491 = vmatpush1.msra.mxu0 %v332
    %492 = vmatprep.subr.mxu0 0.0
    %493 = vmatpush1.msra.mxu0 0.0
    %494 = vmatprep.subr.mxu0 0.0
    %495 = vmatpush1.msra.mxu0 0.0
    %496 = vmatprep.subr.mxu0 0.0
    %497 = vmatpush1.msra.mxu0 0.0
    %498 = vmatprep.subr.mxu0 0.0
    %499 = vmatpush1.msra.mxu0 0.0
    %500 = vmatprep.subr.mxu0 0.0
    %501 = vmatpush1.msra.mxu0 0.0
    %502 = vmatprep.subr.mxu0 0.0
    %503 = vmatpush1.msra.mxu0 0.0
    %504 = vmatprep.subr.mxu0 0.0
    %505 = vmatpush1.msra.mxu0 0.0
    %506 = vmatprep.subr.mxu0 0.0
    %507 = vmatpush1.msra.mxu0 0.0
    %508 = vmatprep.subr.mxu0 0.0
    %509 = vmatpush1.msra.mxu0 0.0
    %510 = vmatprep.subr.mxu0 0.0
    %511 = vmatpush1.msra.mxu0 0.0
    %512 = vmatprep.subr.mxu0 0.0
    %513 = vmatpush1.msra.mxu0 0.0
    %514 = vmatprep.subr.mxu0 0.0
    %515 = vmatpush1.msra.mxu0 0.0
    %516 = vmatprep.subr.mxu0 0.0
    %517 = vmatpush1.msra.mxu0 0.0
    %518 = vmatprep.subr.mxu0 0.0
    %519 = vmatpush1.msra.mxu0 0.0
    %520 = vmatprep.subr.mxu0 0.0
    %521 = vmatpush1.msra.mxu0 0.0
    %522 = vmatprep.subr.mxu0 0.0
    %523 = vmatpush1.msra.mxu0 0.0
    %524 = vmatprep.subr.mxu0 0.0
    %525 = vmatpush1.msra.mxu0 0.0
    %526 = vmatprep.subr.mxu0 0.0
    %527 = vmatpush1.msra.mxu0 0.0
    %528 = vmatprep.subr.mxu0 0.0
    %529 = vmatpush1.msra.mxu0 0.0
    %530 = vmatprep.subr.mxu0 0.0
    %531 = vmatpush1.msra.mxu0 0.0
    %532 = vmatprep.subr.mxu0 0.0
    %533 = vmatpush1.msra.mxu0 0.0
    %534 = vmatprep.subr.mxu0 0.0
    %535 = vmatpush1.msra.mxu0 0.0
    %536 = vmatprep.subr.mxu0 0.0
    %537 = vmatpush1.msra.mxu0 0.0
    %538 = vmatprep.subr.mxu0 0.0
    %539 = vmatpush1.msra.mxu0 0.0
    %540 = vmatprep.subr.mxu0 0.0
    %541 = vmatpush1.msra.mxu0 0.0
    %542 = vmatprep.subr.mxu0 0.0
    %543 = vmatpush1.msra.mxu0 0.0
    %544 = vmatprep.subr.mxu0 0.0
    %545 = vmatpush1.msra.mxu0 0.0
    %546 = vmatprep.subr.mxu0 0.0
    %547 = vmatpush1.msra.mxu0 0.0
    %548 = vmatprep.subr.mxu0 0.0
    %549 = vmatpush1.msra.mxu0 0.0
    %550 = vmatprep.subr.mxu0 0.0
    %551 = vmatpush1.msra.mxu0 0.0
    %552 = vmatprep.subr.mxu0 0.0
    %553 = vmatpush1.msra.mxu0 0.0
    %554 = vmatprep.mubr.f32.mxu0 0.0
    %555 = vmatmul.mubr.f32.gmra.mrb[0].mxu0 %v346
    %v556 = vpop.f32.mrb[0].mxu0
    %v557 = vadd.f32 0.0, %v556
    %v558 = vpop.f32.mrb[0].mxu0
    %v559 = vadd.f32 0.0, %v558
    %560 = vdwg.mxu0
    %561 = vmatprep.subr.mxu0 %v335
    %562 = vmatpush1.msra.mxu0 %v334
    %563 = vmatprep.subr.mxu0 0.0
    %564 = vmatpush1.msra.mxu0 0.0
    %565 = vmatprep.subr.mxu0 0.0
    %566 = vmatpush1.msra.mxu0 0.0
    %567 = vmatprep.subr.mxu0 0.0
    %568 = vmatpush1.msra.mxu0 0.0
    %569 = vmatprep.subr.mxu0 0.0
    %570 = vmatpush1.msra.mxu0 0.0
    %571 = vmatprep.subr.mxu0 0.0
    %572 = vmatpush1.msra.mxu0 0.0
    %573 = vmatprep.subr.mxu0 0.0
    %574 = vmatpush1.msra.mxu0 0.0
    %575 = vmatprep.subr.mxu0 0.0
    %576 = vmatpush1.msra.mxu0 0.0
    %577 = vmatprep.subr.mxu0 0.0
    %578 = vmatpush1.msra.mxu0 0.0
    %579 = vmatprep.subr.mxu0 0.0
    %580 = vmatpush1.msra.mxu0 0.0
    %581 = vmatprep.subr.mxu0 0.0
    %582 = vmatpush1.msra.mxu0 0.0
    %583 = vmatprep.subr.mxu0 0.0
    %584 = vmatpush1.msra.mxu0 0.0
    %585 = vmatprep.subr.mxu0 0.0
    %586 = vmatpush1.msra.mxu0 0.0
    %587 = vmatprep.subr.mxu0 0.0
    %588 = vmatpush1.msra.mxu0 0.0
    %589 = vmatprep.subr.mxu0 0.0
    %590 = vmatpush1.msra.mxu0 0.0
    %591 = vmatprep.subr.mxu0 0.0
    %592 = vmatpush1.msra.mxu0 0.0
    %593 = vmatprep.subr.mxu0 0.0
    %594 = vmatpush1.msra.mxu0 0.0
    %595 = vmatprep.subr.mxu0 0.0
    %596 = vmatpush1.msra.mxu0 0.0
    %597 = vmatprep.subr.mxu0 0.0
    %598 = vmatpush1.msra.mxu0 0.0
    %599 = vmatprep.subr.mxu0 0.0
    %600 = vmatpush1.msra.mxu0 0.0
    %601 = vmatprep.subr.mxu0 0.0
    %602 = vmatpush1.msra.mxu0 0.0
    %603 = vmatprep.subr.mxu0 0.0
    %604 = vmatpush1.msra.mxu0 0.0
    %605 = vmatprep.subr.mxu0 0.0
    %606 = vmatpush1.msra.mxu0 0.0
    %607 = vmatprep.subr.mxu0 0.0
    %608 = vmatpush1.msra.mxu0 0.0
    %609 = vmatprep.subr.mxu0 0.0
    %610 = vmatpush1.msra.mxu0 0.0
    %611 = vmatprep.subr.mxu0 0.0
    %612 = vmatpush1.msra.mxu0 0.0
    %613 = vmatprep.subr.mxu0 0.0
    %614 = vmatpush1.msra.mxu0 0.0
    %615 = vmatprep.subr.mxu0 0.0
    %616 = vmatpush1.msra.mxu0 0.0
    %617 = vmatprep.subr.mxu0 0.0
    %618 = vmatpush1.msra.mxu0 0.0
    %619 = vmatprep.subr.mxu0 0.0
    %620 = vmatpush1.msra.mxu0 0.0
    %621 = vmatprep.subr.mxu0 0.0
    %622 = vmatpush1.msra.mxu0 0.0
    %623 = vmatprep.subr.mxu0 0.0
    %624 = vmatpush1.msra.mxu0 0.0
    %625 = vmatprep.mubr.f32.mxu0 0.0
    %626 = vmatmul.mubr.f32.gmra.mrb[0].mxu0 %v346
    %v627 = vpop.f32.mrb[0].mxu0
    %v628 = vadd.f32 0.0, %v627
    %v629 = vpop.f32.mrb[0].mxu0
    %v630 = vadd.f32 0.0, %v629
    %631 = vdwg.mxu0
    %632 = vmatprep.subr.mxu0 %v337
    %633 = vmatpush1.msra.mxu0 %v336
    %634 = vmatprep.subr.mxu0 0.0
    %635 = vmatpush1.msra.mxu0 0.0
    %636 = vmatprep.subr.mxu0 0.0
    %637 = vmatpush1.msra.mxu0 0.0
    %638 = vmatprep.subr.mxu0 0.0
    %639 = vmatpush1.msra.mxu0 0.0
    %640 = vmatprep.subr.mxu0 0.0
    %641 = vmatpush1.msra.mxu0 0.0
    %642 = vmatprep.subr.mxu0 0.0
    %643 = vmatpush1.msra.mxu0 0.0
    %644 = vmatprep.subr.mxu0 0.0
    %645 = vmatpush1.msra.mxu0 0.0
    %646 = vmatprep.subr.mxu0 0.0
    %647 = vmatpush1.msra.mxu0 0.0
    %648 = vmatprep.subr.mxu0 0.0
    %649 = vmatpush1.msra.mxu0 0.0
    %650 = vmatprep.subr.mxu0 0.0
    %651 = vmatpush1.msra.mxu0 0.0
    %652 = vmatprep.subr.mxu0 0.0
    %653 = vmatpush1.msra.mxu0 0.0
    %654 = vmatprep.subr.mxu0 0.0
    %655 = vmatpush1.msra.mxu0 0.0
    %656 = vmatprep.subr.mxu0 0.0
    %657 = vmatpush1.msra.mxu0 0.0
    %658 = vmatprep.subr.mxu0 0.0
    %659 = vmatpush1.msra.mxu0 0.0
    %660 = vmatprep.subr.mxu0 0.0
    %661 = vmatpush1.msra.mxu0 0.0
    %662 = vmatprep.subr.mxu0 0.0
    %663 = vmatpush1.msra.mxu0 0.0
    %664 = vmatprep.subr.mxu0 0.0
    %665 = vmatpush1.msra.mxu0 0.0
    %666 = vmatprep.subr.mxu0 0.0
    %667 = vmatpush1.msra.mxu0 0.0
    %668 = vmatprep.subr.mxu0 0.0
    %669 = vmatpush1.msra.mxu0 0.0
    %670 = vmatprep.subr.mxu0 0.0
    %671 = vmatpush1.msra.mxu0 0.0
    %672 = vmatprep.subr.mxu0 0.0
    %673 = vmatpush1.msra.mxu0 0.0
    %674 = vmatprep.subr.mxu0 0.0
    %675 = vmatpush1.msra.mxu0 0.0
    %676 = vmatprep.subr.mxu0 0.0
    %677 = vmatpush1.msra.mxu0 0.0
    %678 = vmatprep.subr.mxu0 0.0
    %679 = vmatpush1.msra.mxu0 0.0
    %680 = vmatprep.subr.mxu0 0.0
    %681 = vmatpush1.msra.mxu0 0.0
    %682 = vmatprep.subr.mxu0 0.0
    %683 = vmatpush1.msra.mxu0 0.0
    %684 = vmatprep.subr.mxu0 0.0
    %685 = vmatpush1.msra.mxu0 0.0
    %686 = vmatprep.subr.mxu0 0.0
    %687 = vmatpush1.msra.mxu0 0.0
    %688 = vmatprep.subr.mxu0 0.0
    %689 = vmatpush1.msra.mxu0 0.0
    %690 = vmatprep.subr.mxu0 0.0
    %691 = vmatpush1.msra.mxu0 0.0
    %692 = vmatprep.subr.mxu0 0.0
    %693 = vmatpush1.msra.mxu0 0.0
    %694 = vmatprep.subr.mxu0 0.0
    %695 = vmatpush1.msra.mxu0 0.0
    %696 = vmatprep.mubr.f32.mxu0 0.0
    %697 = vmatmul.mubr.f32.gmra.mrb[0].mxu0 %v346
    %v698 = vpop.f32.mrb[0].mxu0
    %v699 = vadd.f32 0.0, %v698
    %v700 = vpop.f32.mrb[0].mxu0
    %v701 = vadd.f32 0.0, %v700
    %702 = vdwg.mxu0
    %703 = vmatprep.subr.mxu0 %v339
    %704 = vmatpush1.msra.mxu0 %v338
    %705 = vmatprep.subr.mxu0 0.0
    %706 = vmatpush1.msra.mxu0 0.0
    %707 = vmatprep.subr.mxu0 0.0
    %708 = vmatpush1.msra.mxu0 0.0
    %709 = vmatprep.subr.mxu0 0.0
    %710 = vmatpush1.msra.mxu0 0.0
    %711 = vmatprep.subr.mxu0 0.0
    %712 = vmatpush1.msra.mxu0 0.0
    %713 = vmatprep.subr.mxu0 0.0
    %714 = vmatpush1.msra.mxu0 0.0
    %715 = vmatprep.subr.mxu0 0.0
    %716 = vmatpush1.msra.mxu0 0.0
    %717 = vmatprep.subr.mxu0 0.0
    %718 = vmatpush1.msra.mxu0 0.0
    %719 = vmatprep.subr.mxu0 0.0
    %720 = vmatpush1.msra.mxu0 0.0
    %721 = vmatprep.subr.mxu0 0.0
    %722 = vmatpush1.msra.mxu0 0.0
    %723 = vmatprep.subr.mxu0 0.0
    %724 = vmatpush1.msra.mxu0 0.0
    %725 = vmatprep.subr.mxu0 0.0
    %726 = vmatpush1.msra.mxu0 0.0
    %727 = vmatprep.subr.mxu0 0.0
    %728 = vmatpush1.msra.mxu0 0.0
    %729 = vmatprep.subr.mxu0 0.0
    %730 = vmatpush1.msra.mxu0 0.0
    %731 = vmatprep.subr.mxu0 0.0
    %732 = vmatpush1.msra.mxu0 0.0
    %733 = vmatprep.subr.mxu0 0.0
    %734 = vmatpush1.msra.mxu0 0.0
    %735 = vmatprep.subr.mxu0 0.0
    %736 = vmatpush1.msra.mxu0 0.0
    %737 = vmatprep.subr.mxu0 0.0
    %738 = vmatpush1.msra.mxu0 0.0
    %739 = vmatprep.subr.mxu0 0.0
    %740 = vmatpush1.msra.mxu0 0.0
    %741 = vmatprep.subr.mxu0 0.0
    %742 = vmatpush1.msra.mxu0 0.0
    %743 = vmatprep.subr.mxu0 0.0
    %744 = vmatpush1.msra.mxu0 0.0
    %745 = vmatprep.subr.mxu0 0.0
    %746 = vmatpush1.msra.mxu0 0.0
    %747 = vmatprep.subr.mxu0 0.0
    %748 = vmatpush1.msra.mxu0 0.0
    %749 = vmatprep.subr.mxu0 0.0
    %750 = vmatpush1.msra.mxu0 0.0
    %751 = vmatprep.subr.mxu0 0.0
    %752 = vmatpush1.msra.mxu0 0.0
    %753 = vmatprep.subr.mxu0 0.0
    %754 = vmatpush1.msra.mxu0 0.0
    %755 = vmatprep.subr.mxu0 0.0
    %756 = vmatpush1.msra.mxu0 0.0
    %757 = vmatprep.subr.mxu0 0.0
    %758 = vmatpush1.msra.mxu0 0.0
    %759 = vmatprep.subr.mxu0 0.0
    %760 = vmatpush1.msra.mxu0 0.0
    %761 = vmatprep.subr.mxu0 0.0
    %762 = vmatpush1.msra.mxu0 0.0
    %763 = vmatprep.subr.mxu0 0.0
    %764 = vmatpush1.msra.mxu0 0.0
    %765 = vmatprep.subr.mxu0 0.0
    %766 = vmatpush1.msra.mxu0 0.0
    %767 = vmatprep.mubr.f32.mxu0 0.0
    %768 = vmatmul.mubr.f32.gmra.mrb[0].mxu0 %v346
    %v769 = vpop.f32.mrb[0].mxu0
    %v770 = vadd.f32 0.0, %v769
    %v771 = vpop.f32.mrb[0].mxu0
    %v772 = vadd.f32 0.0, %v771
    %773 = vdwg.mxu0
    %774 = vmatprep.subr.mxu0 %v341
    %775 = vmatpush1.msra.mxu0 %v340
    %776 = vmatprep.subr.mxu0 0.0
    %777 = vmatpush1.msra.mxu0 0.0
    %778 = vmatprep.subr.mxu0 0.0
    %779 = vmatpush1.msra.mxu0 0.0
    %780 = vmatprep.subr.mxu0 0.0
    %781 = vmatpush1.msra.mxu0 0.0
    %782 = vmatprep.subr.mxu0 0.0
    %783 = vmatpush1.msra.mxu0 0.0
    %784 = vmatprep.subr.mxu0 0.0
    %785 = vmatpush1.msra.mxu0 0.0
    %786 = vmatprep.subr.mxu0 0.0
    %787 = vmatpush1.msra.mxu0 0.0
    %788 = vmatprep.subr.mxu0 0.0
    %789 = vmatpush1.msra.mxu0 0.0
    %790 = vmatprep.subr.mxu0 0.0
    %791 = vmatpush1.msra.mxu0 0.0
    %792 = vmatprep.subr.mxu0 0.0
    %793 = vmatpush1.msra.mxu0 0.0
    %794 = vmatprep.subr.mxu0 0.0
    %795 = vmatpush1.msra.mxu0 0.0
    %796 = vmatprep.subr.mxu0 0.0
    %797 = vmatpush1.msra.mxu0 0.0
    %798 = vmatprep.subr.mxu0 0.0
    %799 = vmatpush1.msra.mxu0 0.0
    %800 = vmatprep.subr.mxu0 0.0
    %801 = vmatpush1.msra.mxu0 0.0
    %802 = vmatprep.subr.mxu0 0.0
    %803 = vmatpush1.msra.mxu0 0.0
    %804 = vmatprep.subr.mxu0 0.0
    %805 = vmatpush1.msra.mxu0 0.0
    %806 = vmatprep.subr.mxu0 0.0
    %807 = vmatpush1.msra.mxu0 0.0
    %808 = vmatprep.subr.mxu0 0.0
    %809 = vmatpush1.msra.mxu0 0.0
    %810 = vmatprep.subr.mxu0 0.0
    %811 = vmatpush1.msra.mxu0 0.0
    %812 = vmatprep.subr.mxu0 0.0
    %813 = vmatpush1.msra.mxu0 0.0
    %814 = vmatprep.subr.mxu0 0.0
    %815 = vmatpush1.msra.mxu0 0.0
    %816 = vmatprep.subr.mxu0 0.0
    %817 = vmatpush1.msra.mxu0 0.0
    %818 = vmatprep.subr.mxu0 0.0
    %819 = vmatpush1.msra.mxu0 0.0
    %820 = vmatprep.subr.mxu0 0.0
    %821 = vmatpush1.msra.mxu0 0.0
    %822 = vmatprep.subr.mxu0 0.0
    %823 = vmatpush1.msra.mxu0 0.0
    %824 = vmatprep.subr.mxu0 0.0
    %825 = vmatpush1.msra.mxu0 0.0
    %826 = vmatprep.subr.mxu0 0.0
    %827 = vmatpush1.msra.mxu0 0.0
    %828 = vmatprep.subr.mxu0 0.0
    %829 = vmatpush1.msra.mxu0 0.0
    %830 = vmatprep.subr.mxu0 0.0
    %831 = vmatpush1.msra.mxu0 0.0
    %832 = vmatprep.subr.mxu0 0.0
    %833 = vmatpush1.msra.mxu0 0.0
    %834 = vmatprep.subr.mxu0 0.0
    %835 = vmatpush1.msra.mxu0 0.0
    %836 = vmatprep.subr.mxu0 0.0
    %837 = vmatpush1.msra.mxu0 0.0
    %838 = vmatprep.mubr.f32.mxu0 0.0
    %839 = vmatmul.mubr.f32.gmra.mrb[0].mxu0 %v346
    %v840 = vpop.f32.mrb[0].mxu0
    %v841 = vadd.f32 0.0, %v840
    %v842 = vpop.f32.mrb[0].mxu0
    %v843 = vadd.f32 0.0, %v842
    %844 = vdwg.mxu0
    %845 = vmatprep.subr.mxu0 %v343
    %846 = vmatpush1.msra.mxu0 %v342
    %847 = vmatprep.subr.mxu0 0.0
    %848 = vmatpush1.msra.mxu0 0.0
    %849 = vmatprep.subr.mxu0 0.0
    %850 = vmatpush1.msra.mxu0 0.0
    %851 = vmatprep.subr.mxu0 0.0
    %852 = vmatpush1.msra.mxu0 0.0
    %853 = vmatprep.subr.mxu0 0.0
    %854 = vmatpush1.msra.mxu0 0.0
    %855 = vmatprep.subr.mxu0 0.0
    %856 = vmatpush1.msra.mxu0 0.0
    %857 = vmatprep.subr.mxu0 0.0
    %858 = vmatpush1.msra.mxu0 0.0
    %859 = vmatprep.subr.mxu0 0.0
    %860 = vmatpush1.msra.mxu0 0.0
    %861 = vmatprep.subr.mxu0 0.0
    %862 = vmatpush1.msra.mxu0 0.0
    %863 = vmatprep.subr.mxu0 0.0
    %864 = vmatpush1.msra.mxu0 0.0
    %865 = vmatprep.subr.mxu0 0.0
    %866 = vmatpush1.msra.mxu0 0.0
    %867 = vmatprep.subr.mxu0 0.0
    %868 = vmatpush1.msra.mxu0 0.0
    %869 = vmatprep.subr.mxu0 0.0
    %870 = vmatpush1.msra.mxu0 0.0
    %871 = vmatprep.subr.mxu0 0.0
    %872 = vmatpush1.msra.mxu0 0.0
    %873 = vmatprep.subr.mxu0 0.0
    %874 = vmatpush1.msra.mxu0 0.0
    %875 = vmatprep.subr.mxu0 0.0
    %876 = vmatpush1.msra.mxu0 0.0
    %877 = vmatprep.subr.mxu0 0.0
    %878 = vmatpush1.msra.mxu0 0.0
    %879 = vmatprep.subr.mxu0 0.0
    %880 = vmatpush1.msra.mxu0 0.0
    %881 = vmatprep.subr.mxu0 0.0
    %882 = vmatpush1.msra.mxu0 0.0
    %883 = vmatprep.subr.mxu0 0.0
    %884 = vmatpush1.msra.mxu0 0.0
    %885 = vmatprep.subr.mxu0 0.0
    %886 = vmatpush1.msra.mxu0 0.0
    %887 = vmatprep.subr.mxu0 0.0
    %888 = vmatpush1.msra.mxu0 0.0
    %889 = vmatprep.subr.mxu0 0.0
    %890 = vmatpush1.msra.mxu0 0.0
    %891 = vmatprep.subr.mxu0 0.0
    %892 = vmatpush1.msra.mxu0 0.0
    %893 = vmatprep.subr.mxu0 0.0
    %894 = vmatpush1.msra.mxu0 0.0
    %895 = vmatprep.subr.mxu0 0.0
    %896 = vmatpush1.msra.mxu0 0.0
    %897 = vmatprep.subr.mxu0 0.0
    %898 = vmatpush1.msra.mxu0 0.0
    %899 = vmatprep.subr.mxu0 0.0
    %900 = vmatpush1.msra.mxu0 0.0
    %901 = vmatprep.subr.mxu0 0.0
    %902 = vmatpush1.msra.mxu0 0.0
    %903 = vmatprep.subr.mxu0 0.0
    %904 = vmatpush1.msra.mxu0 0.0
    %905 = vmatprep.subr.mxu0 0.0
    %906 = vmatpush1.msra.mxu0 0.0
    %907 = vmatprep.subr.mxu0 0.0
    %908 = vmatpush1.msra.mxu0 0.0
    %909 = vmatprep.mubr.f32.mxu0 0.0
    %910 = vmatmul.mubr.f32.gmra.mrb[0].mxu0 %v346
    %v911 = vpop.f32.mrb[0].mxu0
    %v912 = vadd.f32 0.0, %v911
    %v913 = vpop.f32.mrb[0].mxu0
    %v914 = vadd.f32 0.0, %v913
    %915 = vdwg.mxu0
    %v917 = vsel %vm344, 1.0, 0
    %919 = vmatprep.subr.mxu0 %v417
    %920 = vmatpush1.msra.mxu0 %v415
    %921 = vmatprep.subr.mxu0 0.0
    %922 = vmatpush1.msra.mxu0 0.0
    %923 = vmatprep.subr.mxu0 0.0
    %924 = vmatpush1.msra.mxu0 0.0
    %925 = vmatprep.subr.mxu0 0.0
    %926 = vmatpush1.msra.mxu0 0.0
    %927 = vmatprep.subr.mxu0 0.0
    %928 = vmatpush1.msra.mxu0 0.0
    %929 = vmatprep.subr.mxu0 0.0
    %930 = vmatpush1.msra.mxu0 0.0
    %931 = vmatprep.subr.mxu0 0.0
    %932 = vmatpush1.msra.mxu0 0.0
    %933 = vmatprep.subr.mxu0 0.0
    %934 = vmatpush1.msra.mxu0 0.0
    %935 = vmatprep.subr.mxu0 0.0
    %936 = vmatpush1.msra.mxu0 0.0
    %937 = vmatprep.subr.mxu0 0.0
    %938 = vmatpush1.msra.mxu0 0.0
    %939 = vmatprep.subr.mxu0 0.0
    %940 = vmatpush1.msra.mxu0 0.0
    %941 = vmatprep.subr.mxu0 0.0
    %942 = vmatpush1.msra.mxu0 0.0
    %943 = vmatprep.subr.mxu0 0.0
    %944 = vmatpush1.msra.mxu0 0.0
    %945 = vmatprep.subr.mxu0 0.0
    %946 = vmatpush1.msra.mxu0 0.0
    %947 = vmatprep.subr.mxu0 0.0
    %948 = vmatpush1.msra.mxu0 0.0
    %949 = vmatprep.subr.mxu0 0.0
    %950 = vmatpush1.msra.mxu0 0.0
    %951 = vmatprep.subr.mxu0 0.0
    %952 = vmatpush1.msra.mxu0 0.0
    %953 = vmatprep.subr.mxu0 0.0
    %954 = vmatpush1.msra.mxu0 0.0
    %955 = vmatprep.subr.mxu0 0.0
    %956 = vmatpush1.msra.mxu0 0.0
    %957 = vmatprep.subr.mxu0 0.0
    %958 = vmatpush1.msra.mxu0 0.0
    %959 = vmatprep.subr.mxu0 0.0
    %960 = vmatpush1.msra.mxu0 0.0
    %961 = vmatprep.subr.mxu0 0.0
    %962 = vmatpush1.msra.mxu0 0.0
    %963 = vmatprep.subr.mxu0 0.0
    %964 = vmatpush1.msra.mxu0 0.0
    %965 = vmatprep.subr.mxu0 0.0
    %966 = vmatpush1.msra.mxu0 0.0
    %967 = vmatprep.subr.mxu0 0.0
    %968 = vmatpush1.msra.mxu0 0.0
    %969 = vmatprep.subr.mxu0 0.0
    %970 = vmatpush1.msra.mxu0 0.0
    %971 = vmatprep.subr.mxu0 0.0
    %972 = vmatpush1.msra.mxu0 0.0
    %973 = vmatprep.subr.mxu0 0.0
    %974 = vmatpush1.msra.mxu0 0.0
    %975 = vmatprep.subr.mxu0 0.0
    %976 = vmatpush1.msra.mxu0 0.0
    %977 = vmatprep.subr.mxu0 0.0
    %978 = vmatpush1.msra.mxu0 0.0
    %979 = vmatprep.subr.mxu0 0.0
    %980 = vmatpush1.msra.mxu0 0.0
    %981 = vmatprep.subr.mxu0 0.0
    %982 = vmatpush1.msra.mxu0 0.0
    %983 = vmatprep.mubr.f32.mxu0 0.0
    %984 = vmatmul.mubr.f32.gmra.mrb[0].mxu0 %v917
    %v985 = vpop.f32.mrb[0].mxu0
    %v986 = vadd.f32 0.0, %v985
    %v987 = vpop.f32.mrb[0].mxu0
    %v988 = vadd.f32 0.0, %v987
    %989 = vdwg.mxu0
    %990 = vmatprep.subr.mxu0 %v488
    %991 = vmatpush1.msra.mxu0 %v486
    %992 = vmatprep.subr.mxu0 0.0
    %993 = vmatpush1.msra.mxu0 0.0
    %994 = vmatprep.subr.mxu0 0.0
    %995 = vmatpush1.msra.mxu0 0.0
    %996 = vmatprep.subr.mxu0 0.0
    %997 = vmatpush1.msra.mxu0 0.0
    %998 = vmatprep.subr.mxu0 0.0
    %999 = vmatpush1.msra.mxu0 0.0
    %1000 = vmatprep.subr.mxu0 0.0
    %1001 = vmatpush1.msra.mxu0 0.0
    %1002 = vmatprep.subr.mxu0 0.0
    %1003 = vmatpush1.msra.mxu0 0.0
    %1004 = vmatprep.subr.mxu0 0.0
    %1005 = vmatpush1.msra.mxu0 0.0
    %1006 = vmatprep.subr.mxu0 0.0
    %1007 = vmatpush1.msra.mxu0 0.0
    %1008 = vmatprep.subr.mxu0 0.0
    %1009 = vmatpush1.msra.mxu0 0.0
    %1010 = vmatprep.subr.mxu0 0.0
    %1011 = vmatpush1.msra.mxu0 0.0
    %1012 = vmatprep.subr.mxu0 0.0
    %1013 = vmatpush1.msra.mxu0 0.0
    %1014 = vmatprep.subr.mxu0 0.0
    %1015 = vmatpush1.msra.mxu0 0.0
    %1016 = vmatprep.subr.mxu0 0.0
    %1017 = vmatpush1.msra.mxu0 0.0
    %1018 = vmatprep.subr.mxu0 0.0
    %1019 = vmatpush1.msra.mxu0 0.0
    %1020 = vmatprep.subr.mxu0 0.0
    %1021 = vmatpush1.msra.mxu0 0.0
    %1022 = vmatprep.subr.mxu0 0.0
    %1023 = vmatpush1.msra.mxu0 0.0
    %1024 = vmatprep.subr.mxu0 0.0
    %1025 = vmatpush1.msra.mxu0 0.0
    %1026 = vmatprep.subr.mxu0 0.0
    %1027 = vmatpush1.msra.mxu0 0.0
    %1028 = vmatprep.subr.mxu0 0.0
    %1029 = vmatpush1.msra.mxu0 0.0
    %1030 = vmatprep.subr.mxu0 0.0
    %1031 = vmatpush1.msra.mxu0 0.0
    %1032 = vmatprep.subr.mxu0 0.0
    %1033 = vmatpush1.msra.mxu0 0.0
    %1034 = vmatprep.subr.mxu0 0.0
    %1035 = vmatpush1.msra.mxu0 0.0
    %1036 = vmatprep.subr.mxu0 0.0
    %1037 = vmatpush1.msra.mxu0 0.0
    %1038 = vmatprep.subr.mxu0 0.0
    %1039 = vmatpush1.msra.mxu0 0.0
    %1040 = vmatprep.subr.mxu0 0.0
    %1041 = vmatpush1.msra.mxu0 0.0
    %1042 = vmatprep.subr.mxu0 0.0
    %1043 = vmatpush1.msra.mxu0 0.0
    %1044 = vmatprep.subr.mxu0 0.0
    %1045 = vmatpush1.msra.mxu0 0.0
    %1046 = vmatprep.subr.mxu0 0.0
    %1047 = vmatpush1.msra.mxu0 0.0
    %1048 = vmatprep.subr.mxu0 0.0
    %1049 = vmatpush1.msra.mxu0 0.0
    %1050 = vmatprep.subr.mxu0 0.0
    %1051 = vmatpush1.msra.mxu0 0.0
    %1052 = vmatprep.subr.mxu0 0.0
    %1053 = vmatpush1.msra.mxu0 0.0
    %1054 = vmatprep.mubr.f32.mxu0 0.0
    %1055 = vmatmul.mubr.f32.gmra.mrb[0].mxu0 %v917
    %v1056 = vpop.f32.mrb[0].mxu0
    %v1057 = vadd.f32 0.0, %v1056
    %v1058 = vpop.f32.mrb[0].mxu0
    %v1059 = vadd.f32 0.0, %v1058
    %1060 = vdwg.mxu0
    %1061 = vmatprep.subr.mxu0 %v559
    %1062 = vmatpush1.msra.mxu0 %v557
    %1063 = vmatprep.subr.mxu0 0.0
    %1064 = vmatpush1.msra.mxu0 0.0
    %1065 = vmatprep.subr.mxu0 0.0
    %1066 = vmatpush1.msra.mxu0 0.0
    %1067 = vmatprep.subr.mxu0 0.0
    %1068 = vmatpush1.msra.mxu0 0.0
    %1069 = vmatprep.subr.mxu0 0.0
    %1070 = vmatpush1.msra.mxu0 0.0
    %1071 = vmatprep.subr.mxu0 0.0
    %1072 = vmatpush1.msra.mxu0 0.0
    %1073 = vmatprep.subr.mxu0 0.0
    %1074 = vmatpush1.msra.mxu0 0.0
    %1075 = vmatprep.subr.mxu0 0.0
    %1076 = vmatpush1.msra.mxu0 0.0
    %1077 = vmatprep.subr.mxu0 0.0
    %1078 = vmatpush1.msra.mxu0 0.0
    %1079 = vmatprep.subr.mxu0 0.0
    %1080 = vmatpush1.msra.mxu0 0.0
    %1081 = vmatprep.subr.mxu0 0.0
    %1082 = vmatpush1.msra.mxu0 0.0
    %1083 = vmatprep.subr.mxu0 0.0
    %1084 = vmatpush1.msra.mxu0 0.0
    %1085 = vmatprep.subr.mxu0 0.0
    %1086 = vmatpush1.msra.mxu0 0.0
    %1087 = vmatprep.subr.mxu0 0.0
    %1088 = vmatpush1.msra.mxu0 0.0
    %1089 = vmatprep.subr.mxu0 0.0
    %1090 = vmatpush1.msra.mxu0 0.0
    %1091 = vmatprep.subr.mxu0 0.0
    %1092 = vmatpush1.msra.mxu0 0.0
    %1093 = vmatprep.subr.mxu0 0.0
    %1094 = vmatpush1.msra.mxu0 0.0
    %1095 = vmatprep.subr.mxu0 0.0
    %1096 = vmatpush1.msra.mxu0 0.0
    %1097 = vmatprep.subr.mxu0 0.0
    %1098 = vmatpush1.msra.mxu0 0.0
    %1099 = vmatprep.subr.mxu0 0.0
    %1100 = vmatpush1.msra.mxu0 0.0
    %1101 = vmatprep.subr.mxu0 0.0
    %1102 = vmatpush1.msra.mxu0 0.0
    %1103 = vmatprep.subr.mxu0 0.0
    %1104 = vmatpush1.msra.mxu0 0.0
    %1105 = vmatprep.subr.mxu0 0.0
    %1106 = vmatpush1.msra.mxu0 0.0
    %1107 = vmatprep.subr.mxu0 0.0
    %1108 = vmatpush1.msra.mxu0 0.0
    %1109 = vmatprep.subr.mxu0 0.0
    %1110 = vmatpush1.msra.mxu0 0.0
    %1111 = vmatprep.subr.mxu0 0.0
    %1112 = vmatpush1.msra.mxu0 0.0
    %1113 = vmatprep.subr.mxu0 0.0
    %1114 = vmatpush1.msra.mxu0 0.0
    %1115 = vmatprep.subr.mxu0 0.0
    %1116 = vmatpush1.msra.mxu0 0.0
    %1117 = vmatprep.subr.mxu0 0.0
    %1118 = vmatpush1.msra.mxu0 0.0
    %1119 = vmatprep.subr.mxu0 0.0
    %1120 = vmatpush1.msra.mxu0 0.0
    %1121 = vmatprep.subr.mxu0 0.0
    %1122 = vmatpush1.msra.mxu0 0.0
    %1123 = vmatprep.subr.mxu0 0.0
    %1124 = vmatpush1.msra.mxu0 0.0
    %1125 = vmatprep.mubr.f32.mxu0 0.0
    %1126 = vmatmul.mubr.f32.gmra.mrb[0].mxu0 %v917
    %v1127 = vpop.f32.mrb[0].mxu0
    %v1128 = vadd.f32 0.0, %v1127
    %v1129 = vpop.f32.mrb[0].mxu0
    %v1130 = vadd.f32 0.0, %v1129
    %1131 = vdwg.mxu0
    %1132 = vmatprep.subr.mxu0 %v630
    %1133 = vmatpush1.msra.mxu0 %v628
    %1134 = vmatprep.subr.mxu0 0.0
    %1135 = vmatpush1.msra.mxu0 0.0
    %1136 = vmatprep.subr.mxu0 0.0
    %1137 = vmatpush1.msra.mxu0 0.0
    %1138 = vmatprep.subr.mxu0 0.0
    %1139 = vmatpush1.msra.mxu0 0.0
    %1140 = vmatprep.subr.mxu0 0.0
    %1141 = vmatpush1.msra.mxu0 0.0
    %1142 = vmatprep.subr.mxu0 0.0
    %1143 = vmatpush1.msra.mxu0 0.0
    %1144 = vmatprep.subr.mxu0 0.0
    %1145 = vmatpush1.msra.mxu0 0.0
    %1146 = vmatprep.subr.mxu0 0.0
    %1147 = vmatpush1.msra.mxu0 0.0
    %1148 = vmatprep.subr.mxu0 0.0
    %1149 = vmatpush1.msra.mxu0 0.0
    %1150 = vmatprep.subr.mxu0 0.0
    %1151 = vmatpush1.msra.mxu0 0.0
    %1152 = vmatprep.subr.mxu0 0.0
    %1153 = vmatpush1.msra.mxu0 0.0
    %1154 = vmatprep.subr.mxu0 0.0
    %1155 = vmatpush1.msra.mxu0 0.0
    %1156 = vmatprep.subr.mxu0 0.0
    %1157 = vmatpush1.msra.mxu0 0.0
    %1158 = vmatprep.subr.mxu0 0.0
    %1159 = vmatpush1.msra.mxu0 0.0
    %1160 = vmatprep.subr.mxu0 0.0
    %1161 = vmatpush1.msra.mxu0 0.0
    %1162 = vmatprep.subr.mxu0 0.0
    %1163 = vmatpush1.msra.mxu0 0.0
    %1164 = vmatprep.subr.mxu0 0.0
    %1165 = vmatpush1.msra.mxu0 0.0
    %1166 = vmatprep.subr.mxu0 0.0
    %1167 = vmatpush1.msra.mxu0 0.0
    %1168 = vmatprep.subr.mxu0 0.0
    %1169 = vmatpush1.msra.mxu0 0.0
    %1170 = vmatprep.subr.mxu0 0.0
    %1171 = vmatpush1.msra.mxu0 0.0
    %1172 = vmatprep.subr.mxu0 0.0
    %1173 = vmatpush1.msra.mxu0 0.0
    %1174 = vmatprep.subr.mxu0 0.0
    %1175 = vmatpush1.msra.mxu0 0.0
    %1176 = vmatprep.subr.mxu0 0.0
    %1177 = vmatpush1.msra.mxu0 0.0
    %1178 = vmatprep.subr.mxu0 0.0
    %1179 = vmatpush1.msra.mxu0 0.0
    %1180 = vmatprep.subr.mxu0 0.0
    %1181 = vmatpush1.msra.mxu0 0.0
    %1182 = vmatprep.subr.mxu0 0.0
    %1183 = vmatpush1.msra.mxu0 0.0
    %1184 = vmatprep.subr.mxu0 0.0
    %1185 = vmatpush1.msra.mxu0 0.0
    %1186 = vmatprep.subr.mxu0 0.0
    %1187 = vmatpush1.msra.mxu0 0.0
    %1188 = vmatprep.subr.mxu0 0.0
    %1189 = vmatpush1.msra.mxu0 0.0
    %1190 = vmatprep.subr.mxu0 0.0
    %1191 = vmatpush1.msra.mxu0 0.0
    %1192 = vmatprep.subr.mxu0 0.0
    %1193 = vmatpush1.msra.mxu0 0.0
    %1194 = vmatprep.subr.mxu0 0.0
    %1195 = vmatpush1.msra.mxu0 0.0
    %1196 = vmatprep.mubr.f32.mxu0 0.0
    %1197 = vmatmul.mubr.f32.gmra.mrb[0].mxu0 %v917
    %v1198 = vpop.f32.mrb[0].mxu0
    %v1199 = vadd.f32 0.0, %v1198
    %v1200 = vpop.f32.mrb[0].mxu0
    %v1201 = vadd.f32 0.0, %v1200
    %1202 = vdwg.mxu0
    %1203 = vmatprep.subr.mxu0 %v701
    %1204 = vmatpush1.msra.mxu0 %v699
    %1205 = vmatprep.subr.mxu0 0.0
    %1206 = vmatpush1.msra.mxu0 0.0
    %1207 = vmatprep.subr.mxu0 0.0
    %1208 = vmatpush1.msra.mxu0 0.0
    %1209 = vmatprep.subr.mxu0 0.0
    %1210 = vmatpush1.msra.mxu0 0.0
    %1211 = vmatprep.subr.mxu0 0.0
    %1212 = vmatpush1.msra.mxu0 0.0
    %1213 = vmatprep.subr.mxu0 0.0
    %1214 = vmatpush1.msra.mxu0 0.0
    %1215 = vmatprep.subr.mxu0 0.0
    %1216 = vmatpush1.msra.mxu0 0.0
    %1217 = vmatprep.subr.mxu0 0.0
    %1218 = vmatpush1.msra.mxu0 0.0
    %1219 = vmatprep.subr.mxu0 0.0
    %1220 = vmatpush1.msra.mxu0 0.0
    %1221 = vmatprep.subr.mxu0 0.0
    %1222 = vmatpush1.msra.mxu0 0.0
    %1223 = vmatprep.subr.mxu0 0.0
    %1224 = vmatpush1.msra.mxu0 0.0
    %1225 = vmatprep.subr.mxu0 0.0
    %1226 = vmatpush1.msra.mxu0 0.0
    %1227 = vmatprep.subr.mxu0 0.0
    %1228 = vmatpush1.msra.mxu0 0.0
    %1229 = vmatprep.subr.mxu0 0.0
    %1230 = vmatpush1.msra.mxu0 0.0
    %1231 = vmatprep.subr.mxu0 0.0
    %1232 = vmatpush1.msra.mxu0 0.0
    %1233 = vmatprep.subr.mxu0 0.0
    %1234 = vmatpush1.msra.mxu0 0.0
    %1235 = vmatprep.subr.mxu0 0.0
    %1236 = vmatpush1.msra.mxu0 0.0
    %1237 = vmatprep.subr.mxu0 0.0
    %1238 = vmatpush1.msra.mxu0 0.0
    %1239 = vmatprep.subr.mxu0 0.0
    %1240 = vmatpush1.msra.mxu0 0.0
    %1241 = vmatprep.subr.mxu0 0.0
    %1242 = vmatpush1.msra.mxu0 0.0
    %1243 = vmatprep.subr.mxu0 0.0
    %1244 = vmatpush1.msra.mxu0 0.0
    %1245 = vmatprep.subr.mxu0 0.0
    %1246 = vmatpush1.msra.mxu0 0.0
    %1247 = vmatprep.subr.mxu0 0.0
    %1248 = vmatpush1.msra.mxu0 0.0
    %1249 = vmatprep.subr.mxu0 0.0
    %1250 = vmatpush1.msra.mxu0 0.0
    %1251 = vmatprep.subr.mxu0 0.0
    %1252 = vmatpush1.msra.mxu0 0.0
    %1253 = vmatprep.subr.mxu0 0.0
    %1254 = vmatpush1.msra.mxu0 0.0
    %1255 = vmatprep.subr.mxu0 0.0
    %1256 = vmatpush1.msra.mxu0 0.0
    %1257 = vmatprep.subr.mxu0 0.0
    %1258 = vmatpush1.msra.mxu0 0.0
    %1259 = vmatprep.subr.mxu0 0.0
    %1260 = vmatpush1.msra.mxu0 0.0
    %1261 = vmatprep.subr.mxu0 0.0
    %1262 = vmatpush1.msra.mxu0 0.0
    %1263 = vmatprep.subr.mxu0 0.0
    %1264 = vmatpush1.msra.mxu0 0.0
    %1265 = vmatprep.subr.mxu0 0.0
    %1266 = vmatpush1.msra.mxu0 0.0
    %1267 = vmatprep.mubr.f32.mxu0 0.0
    %1268 = vmatmul.mubr.f32.gmra.mrb[0].mxu0 %v917
    %v1269 = vpop.f32.mrb[0].mxu0
    %v1270 = vadd.f32 0.0, %v1269
    %v1271 = vpop.f32.mrb[0].mxu0
    %v1272 = vadd.f32 0.0, %v1271
    %1273 = vdwg.mxu0
    %1274 = vmatprep.subr.mxu0 %v772
    %1275 = vmatpush1.msra.mxu0 %v770
    %1276 = vmatprep.subr.mxu0 0.0
    %1277 = vmatpush1.msra.mxu0 0.0
    %1278 = vmatprep.subr.mxu0 0.0
    %1279 = vmatpush1.msra.mxu0 0.0
    %1280 = vmatprep.subr.mxu0 0.0
    %1281 = vmatpush1.msra.mxu0 0.0
    %1282 = vmatprep.subr.mxu0 0.0
    %1283 = vmatpush1.msra.mxu0 0.0
    %1284 = vmatprep.subr.mxu0 0.0
    %1285 = vmatpush1.msra.mxu0 0.0
    %1286 = vmatprep.subr.mxu0 0.0
    %1287 = vmatpush1.msra.mxu0 0.0
    %1288 = vmatprep.subr.mxu0 0.0
    %1289 = vmatpush1.msra.mxu0 0.0
    %1290 = vmatprep.subr.mxu0 0.0
    %1291 = vmatpush1.msra.mxu0 0.0
    %1292 = vmatprep.subr.mxu0 0.0
    %1293 = vmatpush1.msra.mxu0 0.0
    %1294 = vmatprep.subr.mxu0 0.0
    %1295 = vmatpush1.msra.mxu0 0.0
    %1296 = vmatprep.subr.mxu0 0.0
    %1297 = vmatpush1.msra.mxu0 0.0
    %1298 = vmatprep.subr.mxu0 0.0
    %1299 = vmatpush1.msra.mxu0 0.0
    %1300 = vmatprep.subr.mxu0 0.0
    %1301 = vmatpush1.msra.mxu0 0.0
    %1302 = vmatprep.subr.mxu0 0.0
    %1303 = vmatpush1.msra.mxu0 0.0
    %1304 = vmatprep.subr.mxu0 0.0
    %1305 = vmatpush1.msra.mxu0 0.0
    %1306 = vmatprep.subr.mxu0 0.0
    %1307 = vmatpush1.msra.mxu0 0.0
    %1308 = vmatprep.subr.mxu0 0.0
    %1309 = vmatpush1.msra.mxu0 0.0
    %1310 = vmatprep.subr.mxu0 0.0
    %1311 = vmatpush1.msra.mxu0 0.0
    %1312 = vmatprep.subr.mxu0 0.0
    %1313 = vmatpush1.msra.mxu0 0.0
    %1314 = vmatprep.subr.mxu0 0.0
    %1315 = vmatpush1.msra.mxu0 0.0
    %1316 = vmatprep.subr.mxu0 0.0
    %1317 = vmatpush1.msra.mxu0 0.0
    %1318 = vmatprep.subr.mxu0 0.0
    %1319 = vmatpush1.msra.mxu0 0.0
    %1320 = vmatprep.subr.mxu0 0.0
    %1321 = vmatpush1.msra.mxu0 0.0
    %1322 = vmatprep.subr.mxu0 0.0
    %1323 = vmatpush1.msra.mxu0 0.0
    %1324 = vmatprep.subr.mxu0 0.0
    %1325 = vmatpush1.msra.mxu0 0.0
    %1326 = vmatprep.subr.mxu0 0.0
    %1327 = vmatpush1.msra.mxu0 0.0
    %1328 = vmatprep.subr.mxu0 0.0
    %1329 = vmatpush1.msra.mxu0 0.0
    %1330 = vmatprep.subr.mxu0 0.0
    %1331 = vmatpush1.msra.mxu0 0.0
    %1332 = vmatprep.subr.mxu0 0.0
    %1333 = vmatpush1.msra.mxu0 0.0
    %1334 = vmatprep.subr.mxu0 0.0
    %1335 = vmatpush1.msra.mxu0 0.0
    %1336 = vmatprep.subr.mxu0 0.0
    %1337 = vmatpush1.msra.mxu0 0.0
    %1338 = vmatprep.mubr.f32.mxu0 0.0
    %1339 = vmatmul.mubr.f32.gmra.mrb[0].mxu0 %v917
    %v1340 = vpop.f32.mrb[0].mxu0
    %v1341 = vadd.f32 0.0, %v1340
    %v1342 = vpop.f32.mrb[0].mxu0
    %v1343 = vadd.f32 0.0, %v1342
    %1344 = vdwg.mxu0
    %1345 = vmatprep.subr.mxu0 %v843
    %1346 = vmatpush1.msra.mxu0 %v841
    %1347 = vmatprep.subr.mxu0 0.0
    %1348 = vmatpush1.msra.mxu0 0.0
    %1349 = vmatprep.subr.mxu0 0.0
    %1350 = vmatpush1.msra.mxu0 0.0
    %1351 = vmatprep.subr.mxu0 0.0
    %1352 = vmatpush1.msra.mxu0 0.0
    %1353 = vmatprep.subr.mxu0 0.0
    %1354 = vmatpush1.msra.mxu0 0.0
    %1355 = vmatprep.subr.mxu0 0.0
    %1356 = vmatpush1.msra.mxu0 0.0
    %1357 = vmatprep.subr.mxu0 0.0
    %1358 = vmatpush1.msra.mxu0 0.0
    %1359 = vmatprep.subr.mxu0 0.0
    %1360 = vmatpush1.msra.mxu0 0.0
    %1361 = vmatprep.subr.mxu0 0.0
    %1362 = vmatpush1.msra.mxu0 0.0
    %1363 = vmatprep.subr.mxu0 0.0
    %1364 = vmatpush1.msra.mxu0 0.0
    %1365 = vmatprep.subr.mxu0 0.0
    %1366 = vmatpush1.msra.mxu0 0.0
    %1367 = vmatprep.subr.mxu0 0.0
    %1368 = vmatpush1.msra.mxu0 0.0
    %1369 = vmatprep.subr.mxu0 0.0
    %1370 = vmatpush1.msra.mxu0 0.0
    %1371 = vmatprep.subr.mxu0 0.0
    %1372 = vmatpush1.msra.mxu0 0.0
    %1373 = vmatprep.subr.mxu0 0.0
    %1374 = vmatpush1.msra.mxu0 0.0
    %1375 = vmatprep.subr.mxu0 0.0
    %1376 = vmatpush1.msra.mxu0 0.0
    %1377 = vmatprep.subr.mxu0 0.0
    %1378 = vmatpush1.msra.mxu0 0.0
    %1379 = vmatprep.subr.mxu0 0.0
    %1380 = vmatpush1.msra.mxu0 0.0
    %1381 = vmatprep.subr.mxu0 0.0
    %1382 = vmatpush1.msra.mxu0 0.0
    %1383 = vmatprep.subr.mxu0 0.0
    %1384 = vmatpush1.msra.mxu0 0.0
    %1385 = vmatprep.subr.mxu0 0.0
    %1386 = vmatpush1.msra.mxu0 0.0
    %1387 = vmatprep.subr.mxu0 0.0
    %1388 = vmatpush1.msra.mxu0 0.0
    %1389 = vmatprep.subr.mxu0 0.0
    %1390 = vmatpush1.msra.mxu0 0.0
    %1391 = vmatprep.subr.mxu0 0.0
    %1392 = vmatpush1.msra.mxu0 0.0
    %1393 = vmatprep.subr.mxu0 0.0
    %1394 = vmatpush1.msra.mxu0 0.0
    %1395 = vmatprep.subr.mxu0 0.0
    %1396 = vmatpush1.msra.mxu0 0.0
    %1397 = vmatprep.subr.mxu0 0.0
    %1398 = vmatpush1.msra.mxu0 0.0
    %1399 = vmatprep.subr.mxu0 0.0
    %1400 = vmatpush1.msra.mxu0 0.0
    %1401 = vmatprep.subr.mxu0 0.0
    %1402 = vmatpush1.msra.mxu0 0.0
    %1403 = vmatprep.subr.mxu0 0.0
    %1404 = vmatpush1.msra.mxu0 0.0
    %1405 = vmatprep.subr.mxu0 0.0
    %1406 = vmatpush1.msra.mxu0 0.0
    %1407 = vmatprep.subr.mxu0 0.0
    %1408 = vmatpush1.msra.mxu0 0.0
    %1409 = vmatprep.mubr.f32.mxu0 0.0
    %1410 = vmatmul.mubr.f32.gmra.mrb[0].mxu0 %v917
    %v1411 = vpop.f32.mrb[0].mxu0
    %v1412 = vadd.f32 0.0, %v1411
    %v1413 = vpop.f32.mrb[0].mxu0
    %v1414 = vadd.f32 0.0, %v1413
    %1415 = vdwg.mxu0
    %1416 = vmatprep.subr.mxu0 %v914
    %1417 = vmatpush1.msra.mxu0 %v912
    %1418 = vmatprep.subr.mxu0 0.0
    %1419 = vmatpush1.msra.mxu0 0.0
    %1420 = vmatprep.subr.mxu0 0.0
    %1421 = vmatpush1.msra.mxu0 0.0
    %1422 = vmatprep.subr.mxu0 0.0
    %1423 = vmatpush1.msra.mxu0 0.0
    %1424 = vmatprep.subr.mxu0 0.0
    %1425 = vmatpush1.msra.mxu0 0.0
    %1426 = vmatprep.subr.mxu0 0.0
    %1427 = vmatpush1.msra.mxu0 0.0
    %1428 = vmatprep.subr.mxu0 0.0
    %1429 = vmatpush1.msra.mxu0 0.0
    %1430 = vmatprep.subr.mxu0 0.0
    %1431 = vmatpush1.msra.mxu0 0.0
    %1432 = vmatprep.subr.mxu0 0.0
    %1433 = vmatpush1.msra.mxu0 0.0
    %1434 = vmatprep.subr.mxu0 0.0
    %1435 = vmatpush1.msra.mxu0 0.0
    %1436 = vmatprep.subr.mxu0 0.0
    %1437 = vmatpush1.msra.mxu0 0.0
    %1438 = vmatprep.subr.mxu0 0.0
    %1439 = vmatpush1.msra.mxu0 0.0
    %1440 = vmatprep.subr.mxu0 0.0
    %1441 = vmatpush1.msra.mxu0 0.0
    %1442 = vmatprep.subr.mxu0 0.0
    %1443 = vmatpush1.msra.mxu0 0.0
    %1444 = vmatprep.subr.mxu0 0.0
    %1445 = vmatpush1.msra.mxu0 0.0
    %1446 = vmatprep.subr.mxu0 0.0
    %1447 = vmatpush1.msra.mxu0 0.0
    %1448 = vmatprep.subr.mxu0 0.0
    %1449 = vmatpush1.msra.mxu0 0.0
    %1450 = vmatprep.subr.mxu0 0.0
    %1451 = vmatpush1.msra.mxu0 0.0
    %1452 = vmatprep.subr.mxu0 0.0
    %1453 = vmatpush1.msra.mxu0 0.0
    %1454 = vmatprep.subr.mxu0 0.0
    %1455 = vmatpush1.msra.mxu0 0.0
    %1456 = vmatprep.subr.mxu0 0.0
    %1457 = vmatpush1.msra.mxu0 0.0
    %1458 = vmatprep.subr.mxu0 0.0
    %1459 = vmatpush1.msra.mxu0 0.0
    %1460 = vmatprep.subr.mxu0 0.0
    %1461 = vmatpush1.msra.mxu0 0.0
    %1462 = vmatprep.subr.mxu0 0.0
    %1463 = vmatpush1.msra.mxu0 0.0
    %1464 = vmatprep.subr.mxu0 0.0
    %1465 = vmatpush1.msra.mxu0 0.0
    %1466 = vmatprep.subr.mxu0 0.0
    %1467 = vmatpush1.msra.mxu0 0.0
    %1468 = vmatprep.subr.mxu0 0.0
    %1469 = vmatpush1.msra.mxu0 0.0
    %1470 = vmatprep.subr.mxu0 0.0
    %1471 = vmatpush1.msra.mxu0 0.0
    %1472 = vmatprep.subr.mxu0 0.0
    %1473 = vmatpush1.msra.mxu0 0.0
    %1474 = vmatprep.subr.mxu0 0.0
    %1475 = vmatpush1.msra.mxu0 0.0
    %1476 = vmatprep.subr.mxu0 0.0
    %1477 = vmatpush1.msra.mxu0 0.0
    %1478 = vmatprep.subr.mxu0 0.0
    %1479 = vmatpush1.msra.mxu0 0.0
    %1480 = vmatprep.mubr.f32.mxu0 0.0
    %1481 = vmatmul.mubr.f32.gmra.mrb[0].mxu0 %v917
    %v1482 = vpop.f32.mrb[0].mxu0
    %v1483 = vadd.f32 0.0, %v1482
    %v1484 = vpop.f32.mrb[0].mxu0
    %v1485 = vadd.f32 0.0, %v1484
    %1486 = vdwg.mxu0
    %v1487 = vmul.f32 %v986, 0.125
    %v1488 = vmul.f32 %v988, 0.125
    %v1489 = vmul.f32 %v1057, 0.125
    %v1490 = vmul.f32 %v1059, 0.125
    %v1491 = vmul.f32 %v1128, 0.125
    %v1492 = vmul.f32 %v1130, 0.125
    %v1493 = vmul.f32 %v1199, 0.125
    %v1494 = vmul.f32 %v1201, 0.125
    %v1495 = vmul.f32 %v1270, 0.125
    %v1496 = vmul.f32 %v1272, 0.125
    %v1497 = vmul.f32 %v1341, 0.125
    %v1498 = vmul.f32 %v1343, 0.125
    %v1499 = vmul.f32 %v1412, 0.125
    %v1500 = vmul.f32 %v1414, 0.125
    %v1501 = vmul.f32 %v1483, 0.125
    %v1502 = vmul.f32 %v1485, 0.125
    %v1503 = vmul.f32 %v415, %v415
    %v1504 = vmul.f32 %v417, %v417
    %v1505 = vmul.f32 %v486, %v486
    %v1506 = vmul.f32 %v488, %v488
    %v1507 = vmul.f32 %v557, %v557
    %v1508 = vmul.f32 %v559, %v559
    %v1509 = vmul.f32 %v628, %v628
    %v1510 = vmul.f32 %v630, %v630
    %v1511 = vmul.f32 %v699, %v699
    %v1512 = vmul.f32 %v701, %v701
    %v1513 = vmul.f32 %v770, %v770
    %v1514 = vmul.f32 %v772, %v772
    %v1515 = vmul.f32 %v841, %v841
    %v1516 = vmul.f32 %v843, %v843
    %v1517 = vmul.f32 %v912, %v912
    %v1518 = vmul.f32 %v914, %v914
    %1519 = vmatprep.subr.mxu0 %v1504
    %1520 = vmatpush1.msra.mxu0 %v1503
    %1521 = vmatprep.subr.mxu0 0.0
    %1522 = vmatpush1.msra.mxu0 0.0
    %1523 = vmatprep.subr.mxu0 0.0
    %1524 = vmatpush1.msra.mxu0 0.0
    %1525 = vmatprep.subr.mxu0 0.0
    %1526 = vmatpush1.msra.mxu0 0.0
    %1527 = vmatprep.subr.mxu0 0.0
    %1528 = vmatpush1.msra.mxu0 0.0
    %1529 = vmatprep.subr.mxu0 0.0
    %1530 = vmatpush1.msra.mxu0 0.0
    %1531 = vmatprep.subr.mxu0 0.0
    %1532 = vmatpush1.msra.mxu0 0.0
    %1533 = vmatprep.subr.mxu0 0.0
    %1534 = vmatpush1.msra.mxu0 0.0
    %1535 = vmatprep.subr.mxu0 0.0
    %1536 = vmatpush1.msra.mxu0 0.0
    %1537 = vmatprep.subr.mxu0 0.0
    %1538 = vmatpush1.msra.mxu0 0.0
    %1539 = vmatprep.subr.mxu0 0.0
    %1540 = vmatpush1.msra.mxu0 0.0
    %1541 = vmatprep.subr.mxu0 0.0
    %1542 = vmatpush1.msra.mxu0 0.0
    %1543 = vmatprep.subr.mxu0 0.0
    %1544 = vmatpush1.msra.mxu0 0.0
    %1545 = vmatprep.subr.mxu0 0.0
    %1546 = vmatpush1.msra.mxu0 0.0
    %1547 = vmatprep.subr.mxu0 0.0
    %1548 = vmatpush1.msra.mxu0 0.0
    %1549 = vmatprep.subr.mxu0 0.0
    %1550 = vmatpush1.msra.mxu0 0.0
    %1551 = vmatprep.subr.mxu0 0.0
    %1552 = vmatpush1.msra.mxu0 0.0
    %1553 = vmatprep.subr.mxu0 0.0
    %1554 = vmatpush1.msra.mxu0 0.0
    %1555 = vmatprep.subr.mxu0 0.0
    %1556 = vmatpush1.msra.mxu0 0.0
    %1557 = vmatprep.subr.mxu0 0.0
    %1558 = vmatpush1.msra.mxu0 0.0
    %1559 = vmatprep.subr.mxu0 0.0
    %1560 = vmatpush1.msra.mxu0 0.0
    %1561 = vmatprep.subr.mxu0 0.0
    %1562 = vmatpush1.msra.mxu0 0.0
    %1563 = vmatprep.subr.mxu0 0.0
    %1564 = vmatpush1.msra.mxu0 0.0
    %1565 = vmatprep.subr.mxu0 0.0
    %1566 = vmatpush1.msra.mxu0 0.0
    %1567 = vmatprep.subr.mxu0 0.0
    %1568 = vmatpush1.msra.mxu0 0.0
    %1569 = vmatprep.subr.mxu0 0.0
    %1570 = vmatpush1.msra.mxu0 0.0
    %1571 = vmatprep.subr.mxu0 0.0
    %1572 = vmatpush1.msra.mxu0 0.0
    %1573 = vmatprep.subr.mxu0 0.0
    %1574 = vmatpush1.msra.mxu0 0.0
    %1575 = vmatprep.subr.mxu0 0.0
    %1576 = vmatpush1.msra.mxu0 0.0
    %1577 = vmatprep.subr.mxu0 0.0
    %1578 = vmatpush1.msra.mxu0 0.0
    %1579 = vmatprep.subr.mxu0 0.0
    %1580 = vmatpush1.msra.mxu0 0.0
    %1581 = vmatprep.subr.mxu0 0.0
    %1582 = vmatpush1.msra.mxu0 0.0
    %1583 = vmatprep.mubr.f32.mxu0 0.0
    %1584 = vmatmul.mubr.f32.gmra.mrb[0].mxu0 %v917
    %v1585 = vpop.f32.mrb[0].mxu0
    %v1586 = vadd.f32 0.0, %v1585
    %v1587 = vpop.f32.mrb[0].mxu0
    %v1588 = vadd.f32 0.0, %v1587
    %1589 = vdwg.mxu0
    %1590 = vmatprep.subr.mxu0 %v1506
    %1591 = vmatpush1.msra.mxu0 %v1505
    %1592 = vmatprep.subr.mxu0 0.0
    %1593 = vmatpush1.msra.mxu0 0.0
    %1594 = vmatprep.subr.mxu0 0.0
    %1595 = vmatpush1.msra.mxu0 0.0
    %1596 = vmatprep.subr.mxu0 0.0
    %1597 = vmatpush1.msra.mxu0 0.0
    %1598 = vmatprep.subr.mxu0 0.0
    %1599 = vmatpush1.msra.mxu0 0.0
    %1600 = vmatprep.subr.mxu0 0.0
    %1601 = vmatpush1.msra.mxu0 0.0
    %1602 = vmatprep.subr.mxu0 0.0
    %1603 = vmatpush1.msra.mxu0 0.0
    %1604 = vmatprep.subr.mxu0 0.0
    %1605 = vmatpush1.msra.mxu0 0.0
    %1606 = vmatprep.subr.mxu0 0.0
    %1607 = vmatpush1.msra.mxu0 0.0
    %1608 = vmatprep.subr.mxu0 0.0
    %1609 = vmatpush1.msra.mxu0 0.0
    %1610 = vmatprep.subr.mxu0 0.0
    %1611 = vmatpush1.msra.mxu0 0.0
    %1612 = vmatprep.subr.mxu0 0.0
    %1613 = vmatpush1.msra.mxu0 0.0
    %1614 = vmatprep.subr.mxu0 0.0
    %1615 = vmatpush1.msra.mxu0 0.0
    %1616 = vmatprep.subr.mxu0 0.0
    %1617 = vmatpush1.msra.mxu0 0.0
    %1618 = vmatprep.subr.mxu0 0.0
    %1619 = vmatpush1.msra.mxu0 0.0
    %1620 = vmatprep.subr.mxu0 0.0
    %1621 = vmatpush1.msra.mxu0 0.0
    %1622 = vmatprep.subr.mxu0 0.0
    %1623 = vmatpush1.msra.mxu0 0.0
    %1624 = vmatprep.subr.mxu0 0.0
    %1625 = vmatpush1.msra.mxu0 0.0
    %1626 = vmatprep.subr.mxu0 0.0
    %1627 = vmatpush1.msra.mxu0 0.0
    %1628 = vmatprep.subr.mxu0 0.0
    %1629 = vmatpush1.msra.mxu0 0.0
    %1630 = vmatprep.subr.mxu0 0.0
    %1631 = vmatpush1.msra.mxu0 0.0
    %1632 = vmatprep.subr.mxu0 0.0
    %1633 = vmatpush1.msra.mxu0 0.0
    %1634 = vmatprep.subr.mxu0 0.0
    %1635 = vmatpush1.msra.mxu0 0.0
    %1636 = vmatprep.subr.mxu0 0.0
    %1637 = vmatpush1.msra.mxu0 0.0
    %1638 = vmatprep.subr.mxu0 0.0
    %1639 = vmatpush1.msra.mxu0 0.0
    %1640 = vmatprep.subr.mxu0 0.0
    %1641 = vmatpush1.msra.mxu0 0.0
    %1642 = vmatprep.subr.mxu0 0.0
    %1643 = vmatpush1.msra.mxu0 0.0
    %1644 = vmatprep.subr.mxu0 0.0
    %1645 = vmatpush1.msra.mxu0 0.0
    %1646 = vmatprep.subr.mxu0 0.0
    %1647 = vmatpush1.msra.mxu0 0.0
    %1648 = vmatprep.subr.mxu0 0.0
    %1649 = vmatpush1.msra.mxu0 0.0
    %1650 = vmatprep.subr.mxu0 0.0
    %1651 = vmatpush1.msra.mxu0 0.0
    %1652 = vmatprep.subr.mxu0 0.0
    %1653 = vmatpush1.msra.mxu0 0.0
    %1654 = vmatprep.mubr.f32.mxu0 0.0
    %1655 = vmatmul.mubr.f32.gmra.mrb[0].mxu0 %v917
    %v1656 = vpop.f32.mrb[0].mxu0
    %v1657 = vadd.f32 0.0, %v1656
    %v1658 = vpop.f32.mrb[0].mxu0
    %v1659 = vadd.f32 0.0, %v1658
    %1660 = vdwg.mxu0
    %1661 = vmatprep.subr.mxu0 %v1508
    %1662 = vmatpush1.msra.mxu0 %v1507
    %1663 = vmatprep.subr.mxu0 0.0
    %1664 = vmatpush1.msra.mxu0 0.0
    %1665 = vmatprep.subr.mxu0 0.0
    %1666 = vmatpush1.msra.mxu0 0.0
    %1667 = vmatprep.subr.mxu0 0.0
    %1668 = vmatpush1.msra.mxu0 0.0
    %1669 = vmatprep.subr.mxu0 0.0
    %1670 = vmatpush1.msra.mxu0 0.0
    %1671 = vmatprep.subr.mxu0 0.0
    %1672 = vmatpush1.msra.mxu0 0.0
    %1673 = vmatprep.subr.mxu0 0.0
    %1674 = vmatpush1.msra.mxu0 0.0
    %1675 = vmatprep.subr.mxu0 0.0
    %1676 = vmatpush1.msra.mxu0 0.0
    %1677 = vmatprep.subr.mxu0 0.0
    %1678 = vmatpush1.msra.mxu0 0.0
    %1679 = vmatprep.subr.mxu0 0.0
    %1680 = vmatpush1.msra.mxu0 0.0
    %1681 = vmatprep.subr.mxu0 0.0
    %1682 = vmatpush1.msra.mxu0 0.0
    %1683 = vmatprep.subr.mxu0 0.0
    %1684 = vmatpush1.msra.mxu0 0.0
    %1685 = vmatprep.subr.mxu0 0.0
    %1686 = vmatpush1.msra.mxu0 0.0
    %1687 = vmatprep.subr.mxu0 0.0
    %1688 = vmatpush1.msra.mxu0 0.0
    %1689 = vmatprep.subr.mxu0 0.0
    %1690 = vmatpush1.msra.mxu0 0.0
    %1691 = vmatprep.subr.mxu0 0.0
    %1692 = vmatpush1.msra.mxu0 0.0
    %1693 = vmatprep.subr.mxu0 0.0
    %1694 = vmatpush1.msra.mxu0 0.0
    %1695 = vmatprep.subr.mxu0 0.0
    %1696 = vmatpush1.msra.mxu0 0.0
    %1697 = vmatprep.subr.mxu0 0.0
    %1698 = vmatpush1.msra.mxu0 0.0
    %1699 = vmatprep.subr.mxu0 0.0
    %1700 = vmatpush1.msra.mxu0 0.0
    %1701 = vmatprep.subr.mxu0 0.0
    %1702 = vmatpush1.msra.mxu0 0.0
    %1703 = vmatprep.subr.mxu0 0.0
    %1704 = vmatpush1.msra.mxu0 0.0
    %1705 = vmatprep.subr.mxu0 0.0
    %1706 = vmatpush1.msra.mxu0 0.0
    %1707 = vmatprep.subr.mxu0 0.0
    %1708 = vmatpush1.msra.mxu0 0.0
    %1709 = vmatprep.subr.mxu0 0.0
    %1710 = vmatpush1.msra.mxu0 0.0
    %1711 = vmatprep.subr.mxu0 0.0
    %1712 = vmatpush1.msra.mxu0 0.0
    %1713 = vmatprep.subr.mxu0 0.0
    %1714 = vmatpush1.msra.mxu0 0.0
    %1715 = vmatprep.subr.mxu0 0.0
    %1716 = vmatpush1.msra.mxu0 0.0
    %1717 = vmatprep.subr.mxu0 0.0
    %1718 = vmatpush1.msra.mxu0 0.0
    %1719 = vmatprep.subr.mxu0 0.0
    %1720 = vmatpush1.msra.mxu0 0.0
    %1721 = vmatprep.subr.mxu0 0.0
    %1722 = vmatpush1.msra.mxu0 0.0
    %1723 = vmatprep.subr.mxu0 0.0
    %1724 = vmatpush1.msra.mxu0 0.0
    %1725 = vmatprep.mubr.f32.mxu0 0.0
    %1726 = vmatmul.mubr.f32.gmra.mrb[0].mxu0 %v917
    %v1727 = vpop.f32.mrb[0].mxu0
    %v1728 = vadd.f32 0.0, %v1727
    %v1729 = vpop.f32.mrb[0].mxu0
    %v1730 = vadd.f32 0.0, %v1729
    %1731 = vdwg.mxu0
    %1732 = vmatprep.subr.mxu0 %v1510
    %1733 = vmatpush1.msra.mxu0 %v1509
    %1734 = vmatprep.subr.mxu0 0.0
    %1735 = vmatpush1.msra.mxu0 0.0
    %1736 = vmatprep.subr.mxu0 0.0
    %1737 = vmatpush1.msra.mxu0 0.0
    %1738 = vmatprep.subr.mxu0 0.0
    %1739 = vmatpush1.msra.mxu0 0.0
    %1740 = vmatprep.subr.mxu0 0.0
    %1741 = vmatpush1.msra.mxu0 0.0
    %1742 = vmatprep.subr.mxu0 0.0
    %1743 = vmatpush1.msra.mxu0 0.0
    %1744 = vmatprep.subr.mxu0 0.0
    %1745 = vmatpush1.msra.mxu0 0.0
    %1746 = vmatprep.subr.mxu0 0.0
    %1747 = vmatpush1.msra.mxu0 0.0
    %1748 = vmatprep.subr.mxu0 0.0
    %1749 = vmatpush1.msra.mxu0 0.0
    %1750 = vmatprep.subr.mxu0 0.0
    %1751 = vmatpush1.msra.mxu0 0.0
    %1752 = vmatprep.subr.mxu0 0.0
    %1753 = vmatpush1.msra.mxu0 0.0
    %1754 = vmatprep.subr.mxu0 0.0
    %1755 = vmatpush1.msra.mxu0 0.0
    %1756 = vmatprep.subr.mxu0 0.0
    %1757 = vmatpush1.msra.mxu0 0.0
    %1758 = vmatprep.subr.mxu0 0.0
    %1759 = vmatpush1.msra.mxu0 0.0
    %1760 = vmatprep.subr.mxu0 0.0
    %1761 = vmatpush1.msra.mxu0 0.0
    %1762 = vmatprep.subr.mxu0 0.0
    %1763 = vmatpush1.msra.mxu0 0.0
    %1764 = vmatprep.subr.mxu0 0.0
    %1765 = vmatpush1.msra.mxu0 0.0
    %1766 = vmatprep.subr.mxu0 0.0
    %1767 = vmatpush1.msra.mxu0 0.0
    %1768 = vmatprep.subr.mxu0 0.0
    %1769 = vmatpush1.msra.mxu0 0.0
    %1770 = vmatprep.subr.mxu0 0.0
    %1771 = vmatpush1.msra.mxu0 0.0
    %1772 = vmatprep.subr.mxu0 0.0
    %1773 = vmatpush1.msra.mxu0 0.0
    %1774 = vmatprep.subr.mxu0 0.0
    %1775 = vmatpush1.msra.mxu0 0.0
    %1776 = vmatprep.subr.mxu0 0.0
    %1777 = vmatpush1.msra.mxu0 0.0
    %1778 = vmatprep.subr.mxu0 0.0
    %1779 = vmatpush1.msra.mxu0 0.0
    %1780 = vmatprep.subr.mxu0 0.0
    %1781 = vmatpush1.msra.mxu0 0.0
    %1782 = vmatprep.subr.mxu0 0.0
    %1783 = vmatpush1.msra.mxu0 0.0
    %1784 = vmatprep.subr.mxu0 0.0
    %1785 = vmatpush1.msra.mxu0 0.0
    %1786 = vmatprep.subr.mxu0 0.0
    %1787 = vmatpush1.msra.mxu0 0.0
    %1788 = vmatprep.subr.mxu0 0.0
    %1789 = vmatpush1.msra.mxu0 0.0
    %1790 = vmatprep.subr.mxu0 0.0
    %1791 = vmatpush1.msra.mxu0 0.0
    %1792 = vmatprep.subr.mxu0 0.0
    %1793 = vmatpush1.msra.mxu0 0.0
    %1794 = vmatprep.subr.mxu0 0.0
    %1795 = vmatpush1.msra.mxu0 0.0
    %1796 = vmatprep.mubr.f32.mxu0 0.0
    %1797 = vmatmul.mubr.f32.gmra.mrb[0].mxu0 %v917
    %v1798 = vpop.f32.mrb[0].mxu0
    %v1799 = vadd.f32 0.0, %v1798
    %v1800 = vpop.f32.mrb[0].mxu0
    %v1801 = vadd.f32 0.0, %v1800
    %1802 = vdwg.mxu0
    %1803 = vmatprep.subr.mxu0 %v1512
    %1804 = vmatpush1.msra.mxu0 %v1511
    %1805 = vmatprep.subr.mxu0 0.0
    %1806 = vmatpush1.msra.mxu0 0.0
    %1807 = vmatprep.subr.mxu0 0.0
    %1808 = vmatpush1.msra.mxu0 0.0
    %1809 = vmatprep.subr.mxu0 0.0
    %1810 = vmatpush1.msra.mxu0 0.0
    %1811 = vmatprep.subr.mxu0 0.0
    %1812 = vmatpush1.msra.mxu0 0.0
    %1813 = vmatprep.subr.mxu0 0.0
    %1814 = vmatpush1.msra.mxu0 0.0
    %1815 = vmatprep.subr.mxu0 0.0
    %1816 = vmatpush1.msra.mxu0 0.0
    %1817 = vmatprep.subr.mxu0 0.0
    %1818 = vmatpush1.msra.mxu0 0.0
    %1819 = vmatprep.subr.mxu0 0.0
    %1820 = vmatpush1.msra.mxu0 0.0
    %1821 = vmatprep.subr.mxu0 0.0
    %1822 = vmatpush1.msra.mxu0 0.0
    %1823 = vmatprep.subr.mxu0 0.0
    %1824 = vmatpush1.msra.mxu0 0.0
    %1825 = vmatprep.subr.mxu0 0.0
    %1826 = vmatpush1.msra.mxu0 0.0
    %1827 = vmatprep.subr.mxu0 0.0
    %1828 = vmatpush1.msra.mxu0 0.0
    %1829 = vmatprep.subr.mxu0 0.0
    %1830 = vmatpush1.msra.mxu0 0.0
    %1831 = vmatprep.subr.mxu0 0.0
    %1832 = vmatpush1.msra.mxu0 0.0
    %1833 = vmatprep.subr.mxu0 0.0
    %1834 = vmatpush1.msra.mxu0 0.0
    %1835 = vmatprep.subr.mxu0 0.0
    %1836 = vmatpush1.msra.mxu0 0.0
    %1837 = vmatprep.subr.mxu0 0.0
    %1838 = vmatpush1.msra.mxu0 0.0
    %1839 = vmatprep.subr.mxu0 0.0
    %1840 = vmatpush1.msra.mxu0 0.0
    %1841 = vmatprep.subr.mxu0 0.0
    %1842 = vmatpush1.msra.mxu0 0.0
    %1843 = vmatprep.subr.mxu0 0.0
    %1844 = vmatpush1.msra.mxu0 0.0
    %1845 = vmatprep.subr.mxu0 0.0
    %1846 = vmatpush1.msra.mxu0 0.0
    %1847 = vmatprep.subr.mxu0 0.0
    %1848 = vmatpush1.msra.mxu0 0.0
    %1849 = vmatprep.subr.mxu0 0.0
    %1850 = vmatpush1.msra.mxu0 0.0
    %1851 = vmatprep.subr.mxu0 0.0
    %1852 = vmatpush1.msra.mxu0 0.0
    %1853 = vmatprep.subr.mxu0 0.0
    %1854 = vmatpush1.msra.mxu0 0.0
    %1855 = vmatprep.subr.mxu0 0.0
    %1856 = vmatpush1.msra.mxu0 0.0
    %1857 = vmatprep.subr.mxu0 0.0
    %1858 = vmatpush1.msra.mxu0 0.0
    %1859 = vmatprep.subr.mxu0 0.0
    %1860 = vmatpush1.msra.mxu0 0.0
    %1861 = vmatprep.subr.mxu0 0.0
    %1862 = vmatpush1.msra.mxu0 0.0
    %1863 = vmatprep.subr.mxu0 0.0
    %1864 = vmatpush1.msra.mxu0 0.0
    %1865 = vmatprep.subr.mxu0 0.0
    %1866 = vmatpush1.msra.mxu0 0.0
    %1867 = vmatprep.mubr.f32.mxu0 0.0
    %1868 = vmatmul.mubr.f32.gmra.mrb[0].mxu0 %v917
    %v1869 = vpop.f32.mrb[0].mxu0
    %v1870 = vadd.f32 0.0, %v1869
    %v1871 = vpop.f32.mrb[0].mxu0
    %v1872 = vadd.f32 0.0, %v1871
    %1873 = vdwg.mxu0
    %1874 = vmatprep.subr.mxu0 %v1514
    %1875 = vmatpush1.msra.mxu0 %v1513
    %1876 = vmatprep.subr.mxu0 0.0
    %1877 = vmatpush1.msra.mxu0 0.0
    %1878 = vmatprep.subr.mxu0 0.0
    %1879 = vmatpush1.msra.mxu0 0.0
    %1880 = vmatprep.subr.mxu0 0.0
    %1881 = vmatpush1.msra.mxu0 0.0
    %1882 = vmatprep.subr.mxu0 0.0
    %1883 = vmatpush1.msra.mxu0 0.0
    %1884 = vmatprep.subr.mxu0 0.0
    %1885 = vmatpush1.msra.mxu0 0.0
    %1886 = vmatprep.subr.mxu0 0.0
    %1887 = vmatpush1.msra.mxu0 0.0
    %1888 = vmatprep.subr.mxu0 0.0
    %1889 = vmatpush1.msra.mxu0 0.0
    %1890 = vmatprep.subr.mxu0 0.0
    %1891 = vmatpush1.msra.mxu0 0.0
    %1892 = vmatprep.subr.mxu0 0.0
    %1893 = vmatpush1.msra.mxu0 0.0
    %1894 = vmatprep.subr.mxu0 0.0
    %1895 = vmatpush1.msra.mxu0 0.0
    %1896 = vmatprep.subr.mxu0 0.0
    %1897 = vmatpush1.msra.mxu0 0.0
    %1898 = vmatprep.subr.mxu0 0.0
    %1899 = vmatpush1.msra.mxu0 0.0
    %1900 = vmatprep.subr.mxu0 0.0
    %1901 = vmatpush1.msra.mxu0 0.0
    %1902 = vmatprep.subr.mxu0 0.0
    %1903 = vmatpush1.msra.mxu0 0.0
    %1904 = vmatprep.subr.mxu0 0.0
    %1905 = vmatpush1.msra.mxu0 0.0
    %1906 = vmatprep.subr.mxu0 0.0
    %1907 = vmatpush1.msra.mxu0 0.0
    %1908 = vmatprep.subr.mxu0 0.0
    %1909 = vmatpush1.msra.mxu0 0.0
    %1910 = vmatprep.subr.mxu0 0.0
    %1911 = vmatpush1.msra.mxu0 0.0
    %1912 = vmatprep.subr.mxu0 0.0
    %1913 = vmatpush1.msra.mxu0 0.0
    %1914 = vmatprep.subr.mxu0 0.0
    %1915 = vmatpush1.msra.mxu0 0.0
    %1916 = vmatprep.subr.mxu0 0.0
    %1917 = vmatpush1.msra.mxu0 0.0
    %1918 = vmatprep.subr.mxu0 0.0
    %1919 = vmatpush1.msra.mxu0 0.0
    %1920 = vmatprep.subr.mxu0 0.0
    %1921 = vmatpush1.msra.mxu0 0.0
    %1922 = vmatprep.subr.mxu0 0.0
    %1923 = vmatpush1.msra.mxu0 0.0
    %1924 = vmatprep.subr.mxu0 0.0
    %1925 = vmatpush1.msra.mxu0 0.0
    %1926 = vmatprep.subr.mxu0 0.0
    %1927 = vmatpush1.msra.mxu0 0.0
    %1928 = vmatprep.subr.mxu0 0.0
    %1929 = vmatpush1.msra.mxu0 0.0
    %1930 = vmatprep.subr.mxu0 0.0
    %1931 = vmatpush1.msra.mxu0 0.0
    %1932 = vmatprep.subr.mxu0 0.0
    %1933 = vmatpush1.msra.mxu0 0.0
    %1934 = vmatprep.subr.mxu0 0.0
    %1935 = vmatpush1.msra.mxu0 0.0
    %1936 = vmatprep.subr.mxu0 0.0
    %1937 = vmatpush1.msra.mxu0 0.0
    %1938 = vmatprep.mubr.f32.mxu0 0.0
    %1939 = vmatmul.mubr.f32.gmra.mrb[0].mxu0 %v917
    %v1940 = vpop.f32.mrb[0].mxu0
    %v1941 = vadd.f32 0.0, %v1940
    %v1942 = vpop.f32.mrb[0].mxu0
    %v1943 = vadd.f32 0.0, %v1942
    %1944 = vdwg.mxu0
    %1945 = vmatprep.subr.mxu0 %v1516
    %1946 = vmatpush1.msra.mxu0 %v1515
    %1947 = vmatprep.subr.mxu0 0.0
    %1948 = vmatpush1.msra.mxu0 0.0
    %1949 = vmatprep.subr.mxu0 0.0
    %1950 = vmatpush1.msra.mxu0 0.0
    %1951 = vmatprep.subr.mxu0 0.0
    %1952 = vmatpush1.msra.mxu0 0.0
    %1953 = vmatprep.subr.mxu0 0.0
    %1954 = vmatpush1.msra.mxu0 0.0
    %1955 = vmatprep.subr.mxu0 0.0
    %1956 = vmatpush1.msra.mxu0 0.0
    %1957 = vmatprep.subr.mxu0 0.0
    %1958 = vmatpush1.msra.mxu0 0.0
    %1959 = vmatprep.subr.mxu0 0.0
    %1960 = vmatpush1.msra.mxu0 0.0
    %1961 = vmatprep.subr.mxu0 0.0
    %1962 = vmatpush1.msra.mxu0 0.0
    %1963 = vmatprep.subr.mxu0 0.0
    %1964 = vmatpush1.msra.mxu0 0.0
    %1965 = vmatprep.subr.mxu0 0.0
    %1966 = vmatpush1.msra.mxu0 0.0
    %1967 = vmatprep.subr.mxu0 0.0
    %1968 = vmatpush1.msra.mxu0 0.0
    %1969 = vmatprep.subr.mxu0 0.0
    %1970 = vmatpush1.msra.mxu0 0.0
    %1971 = vmatprep.subr.mxu0 0.0
    %1972 = vmatpush1.msra.mxu0 0.0
    %1973 = vmatprep.subr.mxu0 0.0
    %1974 = vmatpush1.msra.mxu0 0.0
    %1975 = vmatprep.subr.mxu0 0.0
    %1976 = vmatpush1.msra.mxu0 0.0
    %1977 = vmatprep.subr.mxu0 0.0
    %1978 = vmatpush1.msra.mxu0 0.0
    %1979 = vmatprep.subr.mxu0 0.0
    %1980 = vmatpush1.msra.mxu0 0.0
    %1981 = vmatprep.subr.mxu0 0.0
    %1982 = vmatpush1.msra.mxu0 0.0
    %1983 = vmatprep.subr.mxu0 0.0
    %1984 = vmatpush1.msra.mxu0 0.0
    %1985 = vmatprep.subr.mxu0 0.0
    %1986 = vmatpush1.msra.mxu0 0.0
    %1987 = vmatprep.subr.mxu0 0.0
    %1988 = vmatpush1.msra.mxu0 0.0
    %1989 = vmatprep.subr.mxu0 0.0
    %1990 = vmatpush1.msra.mxu0 0.0
    %1991 = vmatprep.subr.mxu0 0.0
    %1992 = vmatpush1.msra.mxu0 0.0
    %1993 = vmatprep.subr.mxu0 0.0
    %1994 = vmatpush1.msra.mxu0 0.0
    %1995 = vmatprep.subr.mxu0 0.0
    %1996 = vmatpush1.msra.mxu0 0.0
    %1997 = vmatprep.subr.mxu0 0.0
    %1998 = vmatpush1.msra.mxu0 0.0
    %1999 = vmatprep.subr.mxu0 0.0
    %2000 = vmatpush1.msra.mxu0 0.0
    %2001 = vmatprep.subr.mxu0 0.0
    %2002 = vmatpush1.msra.mxu0 0.0
    %2003 = vmatprep.subr.mxu0 0.0
    %2004 = vmatpush1.msra.mxu0 0.0
    %2005 = vmatprep.subr.mxu0 0.0
    %2006 = vmatpush1.msra.mxu0 0.0
    %2007 = vmatprep.subr.mxu0 0.0
    %2008 = vmatpush1.msra.mxu0 0.0
    %2009 = vmatprep.mubr.f32.mxu0 0.0
    %2010 = vmatmul.mubr.f32.gmra.mrb[0].mxu0 %v917
    %v2011 = vpop.f32.mrb[0].mxu0
    %v2012 = vadd.f32 0.0, %v2011
    %v2013 = vpop.f32.mrb[0].mxu0
    %v2014 = vadd.f32 0.0, %v2013
    %2015 = vdwg.mxu0
    %2016 = vmatprep.subr.mxu0 %v1518
    %2017 = vmatpush1.msra.mxu0 %v1517
    %2018 = vmatprep.subr.mxu0 0.0
    %2019 = vmatpush1.msra.mxu0 0.0
    %2020 = vmatprep.subr.mxu0 0.0
    %2021 = vmatpush1.msra.mxu0 0.0
    %2022 = vmatprep.subr.mxu0 0.0
    %2023 = vmatpush1.msra.mxu0 0.0
    %2024 = vmatprep.subr.mxu0 0.0
    %2025 = vmatpush1.msra.mxu0 0.0
    %2026 = vmatprep.subr.mxu0 0.0
    %2027 = vmatpush1.msra.mxu0 0.0
    %2028 = vmatprep.subr.mxu0 0.0
    %2029 = vmatpush1.msra.mxu0 0.0
    %2030 = vmatprep.subr.mxu0 0.0
    %2031 = vmatpush1.msra.mxu0 0.0
    %2032 = vmatprep.subr.mxu0 0.0
    %2033 = vmatpush1.msra.mxu0 0.0
    %2034 = vmatprep.subr.mxu0 0.0
    %2035 = vmatpush1.msra.mxu0 0.0
    %2036 = vmatprep.subr.mxu0 0.0
    %2037 = vmatpush1.msra.mxu0 0.0
    %2038 = vmatprep.subr.mxu0 0.0
    %2039 = vmatpush1.msra.mxu0 0.0
    %2040 = vmatprep.subr.mxu0 0.0
    %2041 = vmatpush1.msra.mxu0 0.0
    %2042 = vmatprep.subr.mxu0 0.0
    %2043 = vmatpush1.msra.mxu0 0.0
    %2044 = vmatprep.subr.mxu0 0.0
    %2045 = vmatpush1.msra.mxu0 0.0
    %2046 = vmatprep.subr.mxu0 0.0
    %2047 = vmatpush1.msra.mxu0 0.0
    %2048 = vmatprep.subr.mxu0 0.0
    %2049 = vmatpush1.msra.mxu0 0.0
    %2050 = vmatprep.subr.mxu0 0.0
    %2051 = vmatpush1.msra.mxu0 0.0
    %2052 = vmatprep.subr.mxu0 0.0
    %2053 = vmatpush1.msra.mxu0 0.0
    %2054 = vmatprep.subr.mxu0 0.0
    %2055 = vmatpush1.msra.mxu0 0.0
    %2056 = vmatprep.subr.mxu0 0.0
    %2057 = vmatpush1.msra.mxu0 0.0
    %2058 = vmatprep.subr.mxu0 0.0
    %2059 = vmatpush1.msra.mxu0 0.0
    %2060 = vmatprep.subr.mxu0 0.0
    %2061 = vmatpush1.msra.mxu0 0.0
    %2062 = vmatprep.subr.mxu0 0.0
    %2063 = vmatpush1.msra.mxu0 0.0
    %2064 = vmatprep.subr.mxu0 0.0
    %2065 = vmatpush1.msra.mxu0 0.0
    %2066 = vmatprep.subr.mxu0 0.0
    %2067 = vmatpush1.msra.mxu0 0.0
    %2068 = vmatprep.subr.mxu0 0.0
    %2069 = vmatpush1.msra.mxu0 0.0
    %2070 = vmatprep.subr.mxu0 0.0
    %2071 = vmatpush1.msra.mxu0 0.0
    %2072 = vmatprep.subr.mxu0 0.0
    %2073 = vmatpush1.msra.mxu0 0.0
    %2074 = vmatprep.subr.mxu0 0.0
    %2075 = vmatpush1.msra.mxu0 0.0
    %2076 = vmatprep.subr.mxu0 0.0
    %2077 = vmatpush1.msra.mxu0 0.0
    %2078 = vmatprep.subr.mxu0 0.0
    %2079 = vmatpush1.msra.mxu0 0.0
    %2080 = vmatprep.mubr.f32.mxu0 0.0
    %2081 = vmatmul.mubr.f32.gmra.mrb[0].mxu0 %v917
    %v2082 = vpop.f32.mrb[0].mxu0
    %v2083 = vadd.f32 0.0, %v2082
    %v2084 = vpop.f32.mrb[0].mxu0
    %v2085 = vadd.f32 0.0, %v2084
    %2086 = vdwg.mxu0
    %v2087 = vmul.f32 %v1586, 0.125
    %v2088 = vmul.f32 %v1588, 0.125
    %v2089 = vmul.f32 %v1657, 0.125
    %v2090 = vmul.f32 %v1659, 0.125
    %v2091 = vmul.f32 %v1728, 0.125
    %v2092 = vmul.f32 %v1730, 0.125
    %v2093 = vmul.f32 %v1799, 0.125
    %v2094 = vmul.f32 %v1801, 0.125
    %v2095 = vmul.f32 %v1870, 0.125
    %v2096 = vmul.f32 %v1872, 0.125
    %v2097 = vmul.f32 %v1941, 0.125
    %v2098 = vmul.f32 %v1943, 0.125
    %v2099 = vmul.f32 %v2012, 0.125
    %v2100 = vmul.f32 %v2014, 0.125
    %v2101 = vmul.f32 %v2083, 0.125
    %v2102 = vmul.f32 %v2085, 0.125
    %v2103 = vmul.f32 %v1487, %v1487
    %v2104 = vmul.f32 %v1488, %v1488
    %v2105 = vmul.f32 %v1489, %v1489
    %v2106 = vmul.f32 %v1490, %v1490
    %v2107 = vmul.f32 %v1491, %v1491
    %v2108 = vmul.f32 %v1492, %v1492
    %v2109 = vmul.f32 %v1493, %v1493
    %v2110 = vmul.f32 %v1494, %v1494
    %v2111 = vmul.f32 %v1495, %v1495
    %v2112 = vmul.f32 %v1496, %v1496
    %v2113 = vmul.f32 %v1497, %v1497
    %v2114 = vmul.f32 %v1498, %v1498
    %v2115 = vmul.f32 %v1499, %v1499
    %v2116 = vmul.f32 %v1500, %v1500
    %v2117 = vmul.f32 %v1501, %v1501
    %v2118 = vmul.f32 %v1502, %v1502
    %v2119 = vsub.f32 %v2087, %v2103
    %v2120 = vsub.f32 %v2088, %v2104
    %v2121 = vsub.f32 %v2089, %v2105
    %v2122 = vsub.f32 %v2090, %v2106
    %v2123 = vsub.f32 %v2091, %v2107
    %v2124 = vsub.f32 %v2092, %v2108
    %v2125 = vsub.f32 %v2093, %v2109
    %v2126 = vsub.f32 %v2094, %v2110
    %v2127 = vsub.f32 %v2095, %v2111
    %v2128 = vsub.f32 %v2096, %v2112
    %v2129 = vsub.f32 %v2097, %v2113
    %v2130 = vsub.f32 %v2098, %v2114
    %v2131 = vsub.f32 %v2099, %v2115
    %v2132 = vsub.f32 %v2100, %v2116
    %v2133 = vsub.f32 %v2101, %v2117
    %v2134 = vsub.f32 %v2102, %v2118
    %v2135 = vadd.f32 %v2119, 1e-05
    %v2136 = vadd.f32 %v2120, 1e-05
    %v2137 = vadd.f32 %v2121, 1e-05
    %v2138 = vadd.f32 %v2122, 1e-05
    %v2139 = vadd.f32 %v2123, 1e-05
    %v2140 = vadd.f32 %v2124, 1e-05
    %v2141 = vadd.f32 %v2125, 1e-05
    %v2142 = vadd.f32 %v2126, 1e-05
    %v2143 = vadd.f32 %v2127, 1e-05
    %v2144 = vadd.f32 %v2128, 1e-05
    %v2145 = vadd.f32 %v2129, 1e-05
    %v2146 = vadd.f32 %v2130, 1e-05
    %v2147 = vadd.f32 %v2131, 1e-05
    %v2148 = vadd.f32 %v2132, 1e-05
    %v2149 = vadd.f32 %v2133, 1e-05
    %v2150 = vadd.f32 %v2134, 1e-05
    %v2151 = vrsqrt.pop %v2135
    %v2152 = vrsqrt.pop %v2136
    %v2153 = vrsqrt.pop %v2137
    %v2154 = vrsqrt.pop %v2138
    %v2155 = vrsqrt.pop %v2139
    %v2156 = vrsqrt.pop %v2140
    %v2157 = vrsqrt.pop %v2141
    %v2158 = vrsqrt.pop %v2142
    %v2159 = vrsqrt.pop %v2143
    %v2160 = vrsqrt.pop %v2144
    %v2161 = vrsqrt.pop %v2145
    %v2162 = vrsqrt.pop %v2146
    %v2163 = vrsqrt.pop %v2147
    %v2164 = vrsqrt.pop %v2148
    %v2165 = vrsqrt.pop %v2149
    %v2166 = vrsqrt.pop %v2150
    %v2167 = vld [vmem:[#allocation9] sm:$0xff]
    %v2168 = vld [vmem:[#allocation9 + $0x8] sm:$0xff]
    %v2171 = vlaneseq
    %v2172 = vshrl.u32 %v2171, 7
    %v2173 = vsub.s32 0, %v2172
    %v2174 = vrot.slane %v2167, %v2173
    %v2175 = vlaneseq
    %v2176 = vshrl.u32 %v2175, 7
    %v2177 = vsub.s32 1, %v2176
    %v2178 = vrot.slane %v2167, %v2177
    %v2179 = vlaneseq
    %v2180 = vshrl.u32 %v2179, 7
    %v2181 = vsub.s32 2, %v2180
    %v2182 = vrot.slane %v2167, %v2181
    %v2183 = vlaneseq
    %v2184 = vshrl.u32 %v2183, 7
    %v2185 = vsub.s32 3, %v2184
    %v2186 = vrot.slane %v2167, %v2185
    %v2187 = vlaneseq
    %v2188 = vshrl.u32 %v2187, 7
    %v2189 = vsub.s32 4, %v2188
    %v2190 = vrot.slane %v2167, %v2189
    %v2191 = vlaneseq
    %v2192 = vshrl.u32 %v2191, 7
    %v2193 = vsub.s32 5, %v2192
    %v2194 = vrot.slane %v2167, %v2193
    %v2195 = vlaneseq
    %v2196 = vshrl.u32 %v2195, 7
    %v2197 = vsub.s32 6, %v2196
    %v2198 = vrot.slane %v2167, %v2197
    %v2199 = vlaneseq
    %v2200 = vshrl.u32 %v2199, 7
    %v2201 = vsub.s32 7, %v2200
    %v2202 = vrot.slane %v2167, %v2201
    %v2203 = vlaneseq
    %v2204 = vshrl.u32 %v2203, 7
    %v2205 = vsub.s32 0, %v2204
    %v2206 = vrot.slane %v2168, %v2205
    %v2207 = vlaneseq
    %v2208 = vshrl.u32 %v2207, 7
    %v2209 = vsub.s32 1, %v2208
    %v2210 = vrot.slane %v2168, %v2209
    %v2211 = vlaneseq
    %v2212 = vshrl.u32 %v2211, 7
    %v2213 = vsub.s32 2, %v2212
    %v2214 = vrot.slane %v2168, %v2213
    %v2215 = vlaneseq
    %v2216 = vshrl.u32 %v2215, 7
    %v2217 = vsub.s32 3, %v2216
    %v2218 = vrot.slane %v2168, %v2217
    %v2219 = vlaneseq
    %v2220 = vshrl.u32 %v2219, 7
    %v2221 = vsub.s32 4, %v2220
    %v2222 = vrot.slane %v2168, %v2221
    %v2223 = vlaneseq
    %v2224 = vshrl.u32 %v2223, 7
    %v2225 = vsub.s32 5, %v2224
    %v2226 = vrot.slane %v2168, %v2225
    %v2227 = vlaneseq
    %v2228 = vshrl.u32 %v2227, 7
    %v2229 = vsub.s32 6, %v2228
    %v2230 = vrot.slane %v2168, %v2229
    %v2231 = vlaneseq
    %v2232 = vshrl.u32 %v2231, 7
    %v2233 = vsub.s32 7, %v2232
    %v2234 = vrot.slane %v2168, %v2233
    %v2251 = vmul.f32 %v2151, %v2174
    %v2252 = vmul.f32 %v2152, %v2178
    %v2253 = vmul.f32 %v2153, %v2182
    %v2254 = vmul.f32 %v2154, %v2186
    %v2255 = vmul.f32 %v2155, %v2190
    %v2256 = vmul.f32 %v2156, %v2194
    %v2257 = vmul.f32 %v2157, %v2198
    %v2258 = vmul.f32 %v2158, %v2202
    %v2259 = vmul.f32 %v2159, %v2206
    %v2260 = vmul.f32 %v2160, %v2210
    %v2261 = vmul.f32 %v2161, %v2214
    %v2262 = vmul.f32 %v2162, %v2218
    %v2263 = vmul.f32 %v2163, %v2222
    %v2264 = vmul.f32 %v2164, %v2226
    %v2265 = vmul.f32 %v2165, %v2230
    %v2266 = vmul.f32 %v2166, %v2234
    %v2267 = vld [vmem:[#allocation10] sm:$0xff]
    %v2268 = vld [vmem:[#allocation10 + $0x8] sm:$0xff]
    %v2269 = vmul.f32 %v1487, %v2251
    %v2270 = vmul.f32 %v1488, %v2252
    %v2271 = vmul.f32 %v1489, %v2253
    %v2272 = vmul.f32 %v1490, %v2254
    %v2273 = vmul.f32 %v1491, %v2255
    %v2274 = vmul.f32 %v1492, %v2256
    %v2275 = vmul.f32 %v1493, %v2257
    %v2276 = vmul.f32 %v1494, %v2258
    %v2277 = vmul.f32 %v1495, %v2259
    %v2278 = vmul.f32 %v1496, %v2260
    %v2279 = vmul.f32 %v1497, %v2261
    %v2280 = vmul.f32 %v1498, %v2262
    %v2281 = vmul.f32 %v1499, %v2263
    %v2282 = vmul.f32 %v1500, %v2264
    %v2283 = vmul.f32 %v1501, %v2265
    %v2284 = vmul.f32 %v1502, %v2266
    %v2301 = vcombine.low %v2269, %v2270
    %v2302 = vcombine.low %v2271, %v2272
    %v2303 = vcombine.low %v2273, %v2274
    %v2304 = vcombine.low %v2275, %v2276
    %v2306 = vunpack.c.l.s4 1966171168
    %v2307 = vunpack.c.0.s8 %v2306
    %v2308 = vlaneseq
    %v2309 = vshrl.u32 %v2308, 7
    %v2310 = vsub.s32 %v2307, %v2309
    %v2311 = vrot.slane %v2301, %v2310
    %v2313 = vunpack.c.l.s4 1966171168
    %v2314 = vunpack.c.0.s8 %v2313
    %v2315 = vlaneseq
    %v2316 = vshrl.u32 %v2315, 7
    %v2317 = vsub.s32 %v2314, %v2316
    %v2318 = vrot.slane %v2302, %v2317
    %v2320 = vunpack.c.l.s4 1966171168
    %v2321 = vunpack.c.0.s8 %v2320
    %v2322 = vlaneseq
    %v2323 = vshrl.u32 %v2322, 7
    %v2324 = vsub.s32 %v2321, %v2323
    %v2325 = vrot.slane %v2303, %v2324
    %v2327 = vunpack.c.l.s4 1966171168
    %v2328 = vunpack.c.0.s8 %v2327
    %v2329 = vlaneseq
    %v2330 = vshrl.u32 %v2329, 7
    %v2331 = vsub.s32 %v2328, %v2330
    %v2332 = vrot.slane %v2304, %v2331
    %v2333 = vcombine.low %v2311, %v2318
    %v2334 = vcombine.low %v2325, %v2332
    %v2336 = vunpack.c.l.s4 1966171168
    %v2337 = vunpack.c.0.s8 %v2336
    %v2338 = vlaneseq
    %v2339 = vshrl.u32 %v2338, 7
    %v2340 = vsub.s32 %v2337, %v2339
    %v2341 = vrot.slane %v2333, %v2340
    %v2343 = vunpack.c.l.s4 1966171168
    %v2344 = vunpack.c.0.s8 %v2343
    %v2345 = vlaneseq
    %v2346 = vshrl.u32 %v2345, 7
    %v2347 = vsub.s32 %v2344, %v2346
    %v2348 = vrot.slane %v2334, %v2347
    %v2349 = vcombine.low %v2341, %v2348
    %v2350 = vcombine.low %v2277, %v2278
    %v2351 = vcombine.low %v2279, %v2280
    %v2352 = vcombine.low %v2281, %v2282
    %v2353 = vcombine.low %v2283, %v2284
    %v2355 = vunpack.c.l.s4 1966171168
    %v2356 = vunpack.c.0.s8 %v2355
    %v2357 = vlaneseq
    %v2358 = vshrl.u32 %v2357, 7
    %v2359 = vsub.s32 %v2356, %v2358
    %v2360 = vrot.slane %v2350, %v2359
    %v2362 = vunpack.c.l.s4 1966171168
    %v2363 = vunpack.c.0.s8 %v2362
    %v2364 = vlaneseq
    %v2365 = vshrl.u32 %v2364, 7
    %v2366 = vsub.s32 %v2363, %v2365
    %v2367 = vrot.slane %v2351, %v2366
    %v2369 = vunpack.c.l.s4 1966171168
    %v2370 = vunpack.c.0.s8 %v2369
    %v2371 = vlaneseq
    %v2372 = vshrl.u32 %v2371, 7
    %v2373 = vsub.s32 %v2370, %v2372
    %v2374 = vrot.slane %v2352, %v2373
    %v2376 = vunpack.c.l.s4 1966171168
    %v2377 = vunpack.c.0.s8 %v2376
    %v2378 = vlaneseq
    %v2379 = vshrl.u32 %v2378, 7
    %v2380 = vsub.s32 %v2377, %v2379
    %v2381 = vrot.slane %v2353, %v2380
    %v2382 = vcombine.low %v2360, %v2367
    %v2383 = vcombine.low %v2374, %v2381
    %v2385 = vunpack.c.l.s4 1966171168
    %v2386 = vunpack.c.0.s8 %v2385
    %v2387 = vlaneseq
    %v2388 = vshrl.u32 %v2387, 7
    %v2389 = vsub.s32 %v2386, %v2388
    %v2390 = vrot.slane %v2382, %v2389
    %v2392 = vunpack.c.l.s4 1966171168
    %v2393 = vunpack.c.0.s8 %v2392
    %v2394 = vlaneseq
    %v2395 = vshrl.u32 %v2394, 7
    %v2396 = vsub.s32 %v2393, %v2395
    %v2397 = vrot.slane %v2383, %v2396
    %v2398 = vcombine.low %v2390, %v2397
    %v2401 = vsub.f32 %v2267, %v2349
    %v2402 = vsub.f32 %v2268, %v2398
    %v2403 = vlaneseq
    %v2404 = vshrl.u32 %v2403, 7
    %v2405 = vsub.s32 0, %v2404
    %v2406 = vrot.slane %v2251, %v2405
    %v2407 = vlaneseq
    %v2408 = vshrl.u32 %v2407, 7
    %v2409 = vsub.s32 0, %v2408
    %v2410 = vrot.slane %v2252, %v2409
    %v2411 = vlaneseq
    %v2412 = vshrl.u32 %v2411, 7
    %v2413 = vsub.s32 0, %v2412
    %v2414 = vrot.slane %v2253, %v2413
    %v2415 = vlaneseq
    %v2416 = vshrl.u32 %v2415, 7
    %v2417 = vsub.s32 0, %v2416
    %v2418 = vrot.slane %v2254, %v2417
    %v2419 = vlaneseq
    %v2420 = vshrl.u32 %v2419, 7
    %v2421 = vsub.s32 0, %v2420
    %v2422 = vrot.slane %v2255, %v2421
    %v2423 = vlaneseq
    %v2424 = vshrl.u32 %v2423, 7
    %v2425 = vsub.s32 0, %v2424
    %v2426 = vrot.slane %v2256, %v2425
    %v2427 = vlaneseq
    %v2428 = vshrl.u32 %v2427, 7
    %v2429 = vsub.s32 0, %v2428
    %v2430 = vrot.slane %v2257, %v2429
    %v2431 = vlaneseq
    %v2432 = vshrl.u32 %v2431, 7
    %v2433 = vsub.s32 0, %v2432
    %v2434 = vrot.slane %v2258, %v2433
    %v2435 = vlaneseq
    %v2436 = vshrl.u32 %v2435, 7
    %v2437 = vsub.s32 0, %v2436
    %v2438 = vrot.slane %v2259, %v2437
    %v2439 = vlaneseq
    %v2440 = vshrl.u32 %v2439, 7
    %v2441 = vsub.s32 0, %v2440
    %v2442 = vrot.slane %v2260, %v2441
    %v2443 = vlaneseq
    %v2444 = vshrl.u32 %v2443, 7
    %v2445 = vsub.s32 0, %v2444
    %v2446 = vrot.slane %v2261, %v2445
    %v2447 = vlaneseq
    %v2448 = vshrl.u32 %v2447, 7
    %v2449 = vsub.s32 0, %v2448
    %v2450 = vrot.slane %v2262, %v2449
    %v2451 = vlaneseq
    %v2452 = vshrl.u32 %v2451, 7
    %v2453 = vsub.s32 0, %v2452
    %v2454 = vrot.slane %v2263, %v2453
    %v2455 = vlaneseq
    %v2456 = vshrl.u32 %v2455, 7
    %v2457 = vsub.s32 0, %v2456
    %v2458 = vrot.slane %v2264, %v2457
    %v2459 = vlaneseq
    %v2460 = vshrl.u32 %v2459, 7
    %v2461 = vsub.s32 0, %v2460
    %v2462 = vrot.slane %v2265, %v2461
    %v2463 = vlaneseq
    %v2464 = vshrl.u32 %v2463, 7
    %v2465 = vsub.s32 0, %v2464
    %v2466 = vrot.slane %v2266, %v2465
    %v2467 = vmul.f32 %v415, %v2406
    %v2468 = vmul.f32 %v417, %v2410
    %v2469 = vmul.f32 %v486, %v2414
    %v2470 = vmul.f32 %v488, %v2418
    %v2471 = vmul.f32 %v557, %v2422
    %v2472 = vmul.f32 %v559, %v2426
    %v2473 = vmul.f32 %v628, %v2430
    %v2474 = vmul.f32 %v630, %v2434
    %v2475 = vmul.f32 %v699, %v2438
    %v2476 = vmul.f32 %v701, %v2442
    %v2477 = vmul.f32 %v770, %v2446
    %v2478 = vmul.f32 %v772, %v2450
    %v2479 = vmul.f32 %v841, %v2454
    %v2480 = vmul.f32 %v843, %v2458
    %v2481 = vmul.f32 %v912, %v2462
    %v2482 = vmul.f32 %v914, %v2466
    %v2485 = vlaneseq
    %v2486 = vshrl.u32 %v2485, 7
    %v2487 = vsub.s32 0, %v2486
    %v2488 = vrot.slane %v2401, %v2487
    %v2489 = vlaneseq
    %v2490 = vshrl.u32 %v2489, 7
    %v2491 = vsub.s32 1, %v2490
    %v2492 = vrot.slane %v2401, %v2491
    %v2493 = vlaneseq
    %v2494 = vshrl.u32 %v2493, 7
    %v2495 = vsub.s32 2, %v2494
    %v2496 = vrot.slane %v2401, %v2495
    %v2497 = vlaneseq
    %v2498 = vshrl.u32 %v2497, 7
    %v2499 = vsub.s32 3, %v2498
    %v2500 = vrot.slane %v2401, %v2499
    %v2501 = vlaneseq
    %v2502 = vshrl.u32 %v2501, 7
    %v2503 = vsub.s32 4, %v2502
    %v2504 = vrot.slane %v2401, %v2503
    %v2505 = vlaneseq
    %v2506 = vshrl.u32 %v2505, 7
    %v2507 = vsub.s32 5, %v2506
    %v2508 = vrot.slane %v2401, %v2507
    %v2509 = vlaneseq
    %v2510 = vshrl.u32 %v2509, 7
    %v2511 = vsub.s32 6, %v2510
    %v2512 = vrot.slane %v2401, %v2511
    %v2513 = vlaneseq
    %v2514 = vshrl.u32 %v2513, 7
    %v2515 = vsub.s32 7, %v2514
    %v2516 = vrot.slane %v2401, %v2515
    %v2517 = vlaneseq
    %v2518 = vshrl.u32 %v2517, 7
    %v2519 = vsub.s32 0, %v2518
    %v2520 = vrot.slane %v2402, %v2519
    %v2521 = vlaneseq
    %v2522 = vshrl.u32 %v2521, 7
    %v2523 = vsub.s32 1, %v2522
    %v2524 = vrot.slane %v2402, %v2523
    %v2525 = vlaneseq
    %v2526 = vshrl.u32 %v2525, 7
    %v2527 = vsub.s32 2, %v2526
    %v2528 = vrot.slane %v2402, %v2527
    %v2529 = vlaneseq
    %v2530 = vshrl.u32 %v2529, 7
    %v2531 = vsub.s32 3, %v2530
    %v2532 = vrot.slane %v2402, %v2531
    %v2533 = vlaneseq
    %v2534 = vshrl.u32 %v2533, 7
    %v2535 = vsub.s32 4, %v2534
    %v2536 = vrot.slane %v2402, %v2535
    %v2537 = vlaneseq
    %v2538 = vshrl.u32 %v2537, 7
    %v2539 = vsub.s32 5, %v2538
    %v2540 = vrot.slane %v2402, %v2539
    %v2541 = vlaneseq
    %v2542 = vshrl.u32 %v2541, 7
    %v2543 = vsub.s32 6, %v2542
    %v2544 = vrot.slane %v2402, %v2543
    %v2545 = vlaneseq
    %v2546 = vshrl.u32 %v2545, 7
    %v2547 = vsub.s32 7, %v2546
    %v2548 = vrot.slane %v2402, %v2547
    %v2565 = vadd.f32 %v2467, %v2488
    %v2566 = vadd.f32 %v2468, %v2492
    %v2567 = vadd.f32 %v2469, %v2496
    %v2568 = vadd.f32 %v2470, %v2500
    %v2569 = vadd.f32 %v2471, %v2504
    %v2570 = vadd.f32 %v2472, %v2508
    %v2571 = vadd.f32 %v2473, %v2512
    %v2572 = vadd.f32 %v2474, %v2516
    %v2573 = vadd.f32 %v2475, %v2520
    %v2574 = vadd.f32 %v2476, %v2524
    %v2575 = vadd.f32 %v2477, %v2528
    %v2576 = vadd.f32 %v2478, %v2532
    %v2577 = vadd.f32 %v2479, %v2536
    %v2578 = vadd.f32 %v2480, %v2540
    %v2579 = vadd.f32 %v2481, %v2544
    %v2580 = vadd.f32 %v2482, %v2548
    %v2581 = vmax.f32 %v2565, 0.0
    %v2582 = vmax.f32 %v2566, 0.0
    %v2583 = vmax.f32 %v2567, 0.0
    %v2584 = vmax.f32 %v2568, 0.0
    %v2585 = vmax.f32 %v2569, 0.0
    %v2586 = vmax.f32 %v2570, 0.0
    %v2587 = vmax.f32 %v2571, 0.0
    %v2588 = vmax.f32 %v2572, 0.0
    %v2589 = vmax.f32 %v2573, 0.0
    %v2590 = vmax.f32 %v2574, 0.0
    %v2591 = vmax.f32 %v2575, 0.0
    %v2592 = vmax.f32 %v2576, 0.0
    %v2593 = vmax.f32 %v2577, 0.0
    %v2594 = vmax.f32 %v2578, 0.0
    %v2595 = vmax.f32 %v2579, 0.0
    %v2596 = vmax.f32 %v2580, 0.0
    %v2597 = vld [vmem:[#allocation12] sm:$0xff]
    %v2598 = vld [vmem:[#allocation12 + $0x8] sm:$0xff]
    %v2599 = vld [vmem:[#allocation12 + $0x10] sm:$0xff]
    %v2600 = vld [vmem:[#allocation12 + $0x18] sm:$0xff]
    %v2601 = vld [vmem:[#allocation12 + $0x20] sm:$0xff]
    %v2602 = vld [vmem:[#allocation12 + $0x28] sm:$0xff]
    %v2603 = vld [vmem:[#allocation12 + $0x30] sm:$0xff]
    %v2604 = vld [vmem:[#allocation12 + $0x38] sm:$0xff]
    %v2605 = vld [vmem:[#allocation12 + $0x40] sm:$0xff]
    %v2606 = vld [vmem:[#allocation12 + $0x48] sm:$0xff]
    %v2607 = vld [vmem:[#allocation12 + $0x50] sm:$0xff]
    %v2608 = vld [vmem:[#allocation12 + $0x58] sm:$0xff]
    %v2609 = vld [vmem:[#allocation12 + $0x60] sm:$0xff]
    %v2610 = vld [vmem:[#allocation12 + $0x68] sm:$0xff]
    %v2611 = vld [vmem:[#allocation12 + $0x70] sm:$0xff]
    %v2612 = vld [vmem:[#allocation12 + $0x78] sm:$0xff]
    %v2613 = vld [vmem:[%s5] sm:$0xff]
    %v2614 = vld [vmem:[%s5 + $0x8] sm:$0xff]
    %v2615 = vld [vmem:[%s5 + $0x10] sm:$0xff]
    %v2616 = vld [vmem:[%s5 + $0x18] sm:$0xff]
    %v2617 = vld [vmem:[%s5 + $0x20] sm:$0xff]
    %v2618 = vld [vmem:[%s5 + $0x28] sm:$0xff]
    %v2619 = vld [vmem:[%s5 + $0x30] sm:$0xff]
    %v2620 = vld [vmem:[%s5 + $0x38] sm:$0xff]
    %v2621 = vld [vmem:[%s5 + $0x40] sm:$0xff]
    %v2622 = vld [vmem:[%s5 + $0x48] sm:$0xff]
    %v2623 = vld [vmem:[%s5 + $0x50] sm:$0xff]
    %v2624 = vld [vmem:[%s5 + $0x58] sm:$0xff]
    %v2625 = vld [vmem:[%s5 + $0x60] sm:$0xff]
    %v2626 = vld [vmem:[%s5 + $0x68] sm:$0xff]
    %v2627 = vld [vmem:[%s5 + $0x70] sm:$0xff]
    %v2628 = vld [vmem:[%s5 + $0x78] sm:$0xff]
    %v2629 = vld [vmem:[#allocation13] sm:$0xff]
    %v2630 = vld [vmem:[#allocation13 + $0x8] sm:$0xff]
    %v2631 = vld [vmem:[#allocation13 + $0x10] sm:$0xff]
    %v2632 = vld [vmem:[#allocation13 + $0x18] sm:$0xff]
    %v2633 = vld [vmem:[#allocation15] sm:$0x1]
    %v2634 = vld [vmem:[#allocation16] sm:$0x1]
    %2635 = vmatprep.subr.mxu0 0.0
    %2636 = vmatpush1.msra.mxu0 %v2597
    %2637 = vmatprep.subr.mxu0 0.0
    %2638 = vmatpush1.msra.mxu0 %v2598
    %2639 = vmatprep.subr.mxu0 0.0
    %2640 = vmatpush1.msra.mxu0 %v2599
    %2641 = vmatprep.subr.mxu0 0.0
    %2642 = vmatpush1.msra.mxu0 %v2600
    %2643 = vmatprep.subr.mxu0 0.0
    %2644 = vmatpush1.msra.mxu0 %v2601
    %2645 = vmatprep.subr.mxu0 0.0
    %2646 = vmatpush1.msra.mxu0 %v2602
    %2647 = vmatprep.subr.mxu0 0.0
    %2648 = vmatpush1.msra.mxu0 %v2603
    %2649 = vmatprep.subr.mxu0 0.0
    %2650 = vmatpush1.msra.mxu0 %v2604
    %2651 = vmatprep.subr.mxu0 0.0
    %2652 = vmatpush1.msra.mxu0 %v2605
    %2653 = vmatprep.subr.mxu0 0.0
    %2654 = vmatpush1.msra.mxu0 %v2606
    %2655 = vmatprep.subr.mxu0 0.0
    %2656 = vmatpush1.msra.mxu0 %v2607
    %2657 = vmatprep.subr.mxu0 0.0
    %2658 = vmatpush1.msra.mxu0 %v2608
    %2659 = vmatprep.subr.mxu0 0.0
    %2660 = vmatpush1.msra.mxu0 %v2609
    %2661 = vmatprep.subr.mxu0 0.0
    %2662 = vmatpush1.msra.mxu0 %v2610
    %2663 = vmatprep.subr.mxu0 0.0
    %2664 = vmatpush1.msra.mxu0 %v2611
    %2665 = vmatprep.subr.mxu0 0.0
    %2666 = vmatpush1.msra.mxu0 %v2612
    %2667 = vmatprep.subr.mxu0 0.0
    %2668 = vmatpush1.msra.mxu0 0.0
    %2669 = vmatprep.subr.mxu0 0.0
    %2670 = vmatpush1.msra.mxu0 0.0
    %2671 = vmatprep.subr.mxu0 0.0
    %2672 = vmatpush1.msra.mxu0 0.0
    %2673 = vmatprep.subr.mxu0 0.0
    %2674 = vmatpush1.msra.mxu0 0.0
    %2675 = vmatprep.subr.mxu0 0.0
    %2676 = vmatpush1.msra.mxu0 0.0
    %2677 = vmatprep.subr.mxu0 0.0
    %2678 = vmatpush1.msra.mxu0 0.0
    %2679 = vmatprep.subr.mxu0 0.0
    %2680 = vmatpush1.msra.mxu0 0.0
    %2681 = vmatprep.subr.mxu0 0.0
    %2682 = vmatpush1.msra.mxu0 0.0
    %2683 = vmatprep.subr.mxu0 0.0
    %2684 = vmatpush1.msra.mxu0 0.0
    %2685 = vmatprep.subr.mxu0 0.0
    %2686 = vmatpush1.msra.mxu0 0.0
    %2687 = vmatprep.subr.mxu0 0.0
    %2688 = vmatpush1.msra.mxu0 0.0
    %2689 = vmatprep.subr.mxu0 0.0
    %2690 = vmatpush1.msra.mxu0 0.0
    %2691 = vmatprep.subr.mxu0 0.0
    %2692 = vmatpush1.msra.mxu0 0.0
    %2693 = vmatprep.subr.mxu0 0.0
    %2694 = vmatpush1.msra.mxu0 0.0
    %2695 = vmatprep.subr.mxu0 0.0
    %2696 = vmatpush1.msra.mxu0 0.0
    %2697 = vmatprep.subr.mxu0 0.0
    %2698 = vmatpush1.msra.mxu0 0.0
    %2699 = vmatprep.mubr.f32.mxu0 0.0
    %2700 = vmatmul.mubr.f32.gmra.mrb[0].mxu0 %v2581
    %v2701 = vpop.f32.mrb[0].mxu0
    %v2702 = vadd.f32 0.0, %v2701
    %v2703 = vpop.f32.mrb[0].mxu0
    %2704 = vmatprep.mubr.f32.mxu0 0.0
    %2705 = vmatmul.mubr.f32.gmra.mrb[0].mxu0 %v2582
    %v2706 = vpop.f32.mrb[0].mxu0
    %v2707 = vadd.f32 0.0, %v2706
    %v2708 = vpop.f32.mrb[0].mxu0
    %2709 = vmatprep.mubr.f32.mxu0 0.0
    %2710 = vmatmul.mubr.f32.gmra.mrb[0].mxu0 %v2583
    %v2711 = vpop.f32.mrb[0].mxu0
    %v2712 = vadd.f32 0.0, %v2711
    %v2713 = vpop.f32.mrb[0].mxu0
    %2714 = vmatprep.mubr.f32.mxu0 0.0
    %2715 = vmatmul.mubr.f32.gmra.mrb[0].mxu0 %v2584
    %v2716 = vpop.f32.mrb[0].mxu0
    %v2717 = vadd.f32 0.0, %v2716
    %v2718 = vpop.f32.mrb[0].mxu0
    %2719 = vmatprep.mubr.f32.mxu0 0.0
    %2720 = vmatmul.mubr.f32.gmra.mrb[0].mxu0 %v2585
    %v2721 = vpop.f32.mrb[0].mxu0
    %v2722 = vadd.f32 0.0, %v2721
    %v2723 = vpop.f32.mrb[0].mxu0
    %2724 = vmatprep.mubr.f32.mxu0 0.0
    %2725 = vmatmul.mubr.f32.gmra.mrb[0].mxu0 %v2586
    %v2726 = vpop.f32.mrb[0].mxu0
    %v2727 = vadd.f32 0.0, %v2726
    %v2728 = vpop.f32.mrb[0].mxu0
    %2729 = vmatprep.mubr.f32.mxu0 0.0
    %2730 = vmatmul.mubr.f32.gmra.mrb[0].mxu0 %v2587
    %v2731 = vpop.f32.mrb[0].mxu0
    %v2732 = vadd.f32 0.0, %v2731
    %v2733 = vpop.f32.mrb[0].mxu0
    %2734 = vmatprep.mubr.f32.mxu0 0.0
    %2735 = vmatmul.mubr.f32.gmra.mrb[0].mxu0 %v2588
    %v2736 = vpop.f32.mrb[0].mxu0
    %v2737 = vadd.f32 0.0, %v2736
    %v2738 = vpop.f32.mrb[0].mxu0
    %2739 = vmatprep.mubr.f32.mxu0 0.0
    %2740 = vmatmul.mubr.f32.gmra.mrb[0].mxu0 %v2589
    %v2741 = vpop.f32.mrb[0].mxu0
    %v2742 = vadd.f32 0.0, %v2741
    %v2743 = vpop.f32.mrb[0].mxu0
    %2744 = vmatprep.mubr.f32.mxu0 0.0
    %2745 = vmatmul.mubr.f32.gmra.mrb[0].mxu0 %v2590
    %v2746 = vpop.f32.mrb[0].mxu0
    %v2747 = vadd.f32 0.0, %v2746
    %v2748 = vpop.f32.mrb[0].mxu0
    %2749 = vmatprep.mubr.f32.mxu0 0.0
    %2750 = vmatmul.mubr.f32.gmra.mrb[0].mxu0 %v2591
    %v2751 = vpop.f32.mrb[0].mxu0
    %v2752 = vadd.f32 0.0, %v2751
    %v2753 = vpop.f32.mrb[0].mxu0
    %2754 = vmatprep.mubr.f32.mxu0 0.0
    %2755 = vmatmul.mubr.f32.gmra.mrb[0].mxu0 %v2592
    %v2756 = vpop.f32.mrb[0].mxu0
    %v2757 = vadd.f32 0.0, %v2756
    %v2758 = vpop.f32.mrb[0].mxu0
    %2759 = vmatprep.mubr.f32.mxu0 0.0
    %2760 = vmatmul.mubr.f32.gmra.mrb[0].mxu0 %v2593
    %v2761 = vpop.f32.mrb[0].mxu0
    %v2762 = vadd.f32 0.0, %v2761
    %v2763 = vpop.f32.mrb[0].mxu0
    %2764 = vmatprep.mubr.f32.mxu0 0.0
    %2765 = vmatmul.mubr.f32.gmra.mrb[0].mxu0 %v2594
    %v2766 = vpop.f32.mrb[0].mxu0
    %v2767 = vadd.f32 0.0, %v2766
    %v2768 = vpop.f32.mrb[0].mxu0
    %2769 = vmatprep.mubr.f32.mxu0 0.0
    %2770 = vmatmul.mubr.f32.gmra.mrb[0].mxu0 %v2595
    %v2771 = vpop.f32.mrb[0].mxu0
    %v2772 = vadd.f32 0.0, %v2771
    %v2773 = vpop.f32.mrb[0].mxu0
    %2774 = vmatprep.mubr.f32.mxu0 0.0
    %2775 = vmatmul.mubr.f32.gmra.mrb[0].mxu0 %v2596
    %v2776 = vpop.f32.mrb[0].mxu0
    %v2777 = vadd.f32 0.0, %v2776
    %v2778 = vpop.f32.mrb[0].mxu0
    %2779 = vdwg.mxu0
    %2780 = vmatprep.subr.mxu0 0.0
    %2781 = vmatpush1.msra.mxu0 %v2702
    %2782 = vmatprep.subr.mxu0 0.0
    %2783 = vmatpush1.msra.mxu0 %v2707
    %2784 = vmatprep.subr.mxu0 0.0
    %2785 = vmatpush1.msra.mxu0 %v2712
    %2786 = vmatprep.subr.mxu0 0.0
    %2787 = vmatpush1.msra.mxu0 %v2717
    %2788 = vmatprep.subr.mxu0 0.0
    %2789 = vmatpush1.msra.mxu0 %v2722
    %2790 = vmatprep.subr.mxu0 0.0
    %2791 = vmatpush1.msra.mxu0 %v2727
    %2792 = vmatprep.subr.mxu0 0.0
    %2793 = vmatpush1.msra.mxu0 %v2732
    %2794 = vmatprep.subr.mxu0 0.0
    %2795 = vmatpush1.msra.mxu0 %v2737
    %2796 = vmatprep.subr.mxu0 0.0
    %2797 = vmatpush1.msra.mxu0 %v2742
    %2798 = vmatprep.subr.mxu0 0.0
    %2799 = vmatpush1.msra.mxu0 %v2747
    %2800 = vmatprep.subr.mxu0 0.0
    %2801 = vmatpush1.msra.mxu0 %v2752
    %2802 = vmatprep.subr.mxu0 0.0
    %2803 = vmatpush1.msra.mxu0 %v2757
    %2804 = vmatprep.subr.mxu0 0.0
    %2805 = vmatpush1.msra.mxu0 %v2762
    %2806 = vmatprep.subr.mxu0 0.0
    %2807 = vmatpush1.msra.mxu0 %v2767
    %2808 = vmatprep.subr.mxu0 0.0
    %2809 = vmatpush1.msra.mxu0 %v2772
    %2810 = vmatprep.subr.mxu0 0.0
    %2811 = vmatpush1.msra.mxu0 %v2777
    %2812 = vmatprep.subr.mxu0 0.0
    %2813 = vmatpush1.msra.mxu0 0.0
    %2814 = vmatprep.subr.mxu0 0.0
    %2815 = vmatpush1.msra.mxu0 0.0
    %2816 = vmatprep.subr.mxu0 0.0
    %2817 = vmatpush1.msra.mxu0 0.0
    %2818 = vmatprep.subr.mxu0 0.0
    %2819 = vmatpush1.msra.mxu0 0.0
    %2820 = vmatprep.subr.mxu0 0.0
    %2821 = vmatpush1.msra.mxu0 0.0
    %2822 = vmatprep.subr.mxu0 0.0
    %2823 = vmatpush1.msra.mxu0 0.0
    %2824 = vmatprep.subr.mxu0 0.0
    %2825 = vmatpush1.msra.mxu0 0.0
    %2826 = vmatprep.subr.mxu0 0.0
    %2827 = vmatpush1.msra.mxu0 0.0
    %2828 = vmatprep.subr.mxu0 0.0
    %2829 = vmatpush1.msra.mxu0 0.0
    %2830 = vmatprep.subr.mxu0 0.0
    %2831 = vmatpush1.msra.mxu0 0.0
    %2832 = vmatprep.subr.mxu0 0.0
    %2833 = vmatpush1.msra.mxu0 0.0
    %2834 = vmatprep.subr.mxu0 0.0
    %2835 = vmatpush1.msra.mxu0 0.0
    %2836 = vmatprep.subr.mxu0 0.0
    %2837 = vmatpush1.msra.mxu0 0.0
    %2838 = vmatprep.subr.mxu0 0.0
    %2839 = vmatpush1.msra.mxu0 0.0
    %2840 = vmatprep.subr.mxu0 0.0
    %2841 = vmatpush1.msra.mxu0 0.0
    %2842 = vmatprep.subr.mxu0 0.0
    %2843 = vmatpush1.msra.mxu0 0.0
    %2844 = vmatprep.mubr.f32.mxu0 0.0
    %2845 = vmatmul.mubr.f32.gmra.mrb[0].mxu0 1.0
    %v2846 = vpop.f32.mrb[0].mxu0
    %v2847 = vadd.f32 0.0, %v2846
    %v2848 = vpop.f32.mrb[0].mxu0
    %2849 = vdwg.mxu0
    %v2850 = vmul.f32 %v2702, %v2702
    %v2851 = vmul.f32 %v2707, %v2707
    %v2852 = vmul.f32 %v2712, %v2712
    %v2853 = vmul.f32 %v2717, %v2717
    %v2854 = vmul.f32 %v2722, %v2722
    %v2855 = vmul.f32 %v2727, %v2727
    %v2856 = vmul.f32 %v2732, %v2732
    %v2857 = vmul.f32 %v2737, %v2737
    %v2858 = vmul.f32 %v2742, %v2742
    %v2859 = vmul.f32 %v2747, %v2747
    %v2860 = vmul.f32 %v2752, %v2752
    %v2861 = vmul.f32 %v2757, %v2757
    %v2862 = vmul.f32 %v2762, %v2762
    %v2863 = vmul.f32 %v2767, %v2767
    %v2864 = vmul.f32 %v2772, %v2772
    %v2865 = vmul.f32 %v2777, %v2777
    %2866 = vmatprep.subr.mxu0 0.0
    %2867 = vmatpush1.msra.mxu0 %v2850
    %2868 = vmatprep.subr.mxu0 0.0
    %2869 = vmatpush1.msra.mxu0 %v2851
    %2870 = vmatprep.subr.mxu0 0.0
    %2871 = vmatpush1.msra.mxu0 %v2852
    %2872 = vmatprep.subr.mxu0 0.0
    %2873 = vmatpush1.msra.mxu0 %v2853
    %2874 = vmatprep.subr.mxu0 0.0
    %2875 = vmatpush1.msra.mxu0 %v2854
    %2876 = vmatprep.subr.mxu0 0.0
    %2877 = vmatpush1.msra.mxu0 %v2855
    %2878 = vmatprep.subr.mxu0 0.0
    %2879 = vmatpush1.msra.mxu0 %v2856
    %2880 = vmatprep.subr.mxu0 0.0
    %2881 = vmatpush1.msra.mxu0 %v2857
    %2882 = vmatprep.subr.mxu0 0.0
    %2883 = vmatpush1.msra.mxu0 %v2858
    %2884 = vmatprep.subr.mxu0 0.0
    %2885 = vmatpush1.msra.mxu0 %v2859
    %2886 = vmatprep.subr.mxu0 0.0
    %2887 = vmatpush1.msra.mxu0 %v2860
    %2888 = vmatprep.subr.mxu0 0.0
    %2889 = vmatpush1.msra.mxu0 %v2861
    %2890 = vmatprep.subr.mxu0 0.0
    %2891 = vmatpush1.msra.mxu0 %v2862
    %2892 = vmatprep.subr.mxu0 0.0
    %2893 = vmatpush1.msra.mxu0 %v2863
    %2894 = vmatprep.subr.mxu0 0.0
    %2895 = vmatpush1.msra.mxu0 %v2864
    %2896 = vmatprep.subr.mxu0 0.0
    %2897 = vmatpush1.msra.mxu0 %v2865
    %2898 = vmatprep.subr.mxu0 0.0
    %2899 = vmatpush1.msra.mxu0 0.0
    %2900 = vmatprep.subr.mxu0 0.0
    %2901 = vmatpush1.msra.mxu0 0.0
    %2902 = vmatprep.subr.mxu0 0.0
    %2903 = vmatpush1.msra.mxu0 0.0
    %2904 = vmatprep.subr.mxu0 0.0
    %2905 = vmatpush1.msra.mxu0 0.0
    %2906 = vmatprep.subr.mxu0 0.0
    %2907 = vmatpush1.msra.mxu0 0.0
    %2908 = vmatprep.subr.mxu0 0.0
    %2909 = vmatpush1.msra.mxu0 0.0
    %2910 = vmatprep.subr.mxu0 0.0
    %2911 = vmatpush1.msra.mxu0 0.0
    %2912 = vmatprep.subr.mxu0 0.0
    %2913 = vmatpush1.msra.mxu0 0.0
    %2914 = vmatprep.subr.mxu0 0.0
    %2915 = vmatpush1.msra.mxu0 0.0
    %2916 = vmatprep.subr.mxu0 0.0
    %2917 = vmatpush1.msra.mxu0 0.0
    %2918 = vmatprep.subr.mxu0 0.0
    %2919 = vmatpush1.msra.mxu0 0.0
    %2920 = vmatprep.subr.mxu0 0.0
    %2921 = vmatpush1.msra.mxu0 0.0
    %2922 = vmatprep.subr.mxu0 0.0
    %2923 = vmatpush1.msra.mxu0 0.0
    %2924 = vmatprep.subr.mxu0 0.0
    %2925 = vmatpush1.msra.mxu0 0.0
    %2926 = vmatprep.subr.mxu0 0.0
    %2927 = vmatpush1.msra.mxu0 0.0
    %2928 = vmatprep.subr.mxu0 0.0
    %2929 = vmatpush1.msra.mxu0 0.0
    %2930 = vmatprep.mubr.f32.mxu0 0.0
    %2931 = vmatmul.mubr.f32.gmra.mrb[0].mxu0 1.0
    %v2932 = vpop.f32.mrb[0].mxu0
    %v2933 = vadd.f32 0.0, %v2932
    %v2934 = vpop.f32.mrb[0].mxu0
    %2935 = vdwg.mxu0
    %2936 = vmatprep.subr.mxu0 0.0
    %2937 = vmatpush1.msra.mxu0 %v2613
    %2938 = vmatprep.subr.mxu0 0.0
    %2939 = vmatpush1.msra.mxu0 %v2614
    %2940 = vmatprep.subr.mxu0 0.0
    %2941 = vmatpush1.msra.mxu0 %v2615
    %2942 = vmatprep.subr.mxu0 0.0
    %2943 = vmatpush1.msra.mxu0 %v2616
    %2944 = vmatprep.subr.mxu0 0.0
    %2945 = vmatpush1.msra.mxu0 %v2617
    %2946 = vmatprep.subr.mxu0 0.0
    %2947 = vmatpush1.msra.mxu0 %v2618
    %2948 = vmatprep.subr.mxu0 0.0
    %2949 = vmatpush1.msra.mxu0 %v2619
    %2950 = vmatprep.subr.mxu0 0.0
    %2951 = vmatpush1.msra.mxu0 %v2620
    %2952 = vmatprep.subr.mxu0 0.0
    %2953 = vmatpush1.msra.mxu0 %v2621
    %2954 = vmatprep.subr.mxu0 0.0
    %2955 = vmatpush1.msra.mxu0 %v2622
    %2956 = vmatprep.subr.mxu0 0.0
    %2957 = vmatpush1.msra.mxu0 %v2623
    %2958 = vmatprep.subr.mxu0 0.0
    %2959 = vmatpush1.msra.mxu0 %v2624
    %2960 = vmatprep.subr.mxu0 0.0
    %2961 = vmatpush1.msra.mxu0 %v2625
    %2962 = vmatprep.subr.mxu0 0.0
    %2963 = vmatpush1.msra.mxu0 %v2626
    %2964 = vmatprep.subr.mxu0 0.0
    %2965 = vmatpush1.msra.mxu0 %v2627
    %2966 = vmatprep.subr.mxu0 0.0
    %2967 = vmatpush1.msra.mxu0 %v2628
    %2968 = vmatprep.subr.mxu0 0.0
    %2969 = vmatpush1.msra.mxu0 0.0
    %2970 = vmatprep.subr.mxu0 0.0
    %2971 = vmatpush1.msra.mxu0 0.0
    %2972 = vmatprep.subr.mxu0 0.0
    %2973 = vmatpush1.msra.mxu0 0.0
    %2974 = vmatprep.subr.mxu0 0.0
    %2975 = vmatpush1.msra.mxu0 0.0
    %2976 = vmatprep.subr.mxu0 0.0
    %2977 = vmatpush1.msra.mxu0 0.0
    %2978 = vmatprep.subr.mxu0 0.0
    %2979 = vmatpush1.msra.mxu0 0.0
    %2980 = vmatprep.subr.mxu0 0.0
    %2981 = vmatpush1.msra.mxu0 0.0
    %2982 = vmatprep.subr.mxu0 0.0
    %2983 = vmatpush1.msra.mxu0 0.0
    %2984 = vmatprep.subr.mxu0 0.0
    %2985 = vmatpush1.msra.mxu0 0.0
    %2986 = vmatprep.subr.mxu0 0.0
    %2987 = vmatpush1.msra.mxu0 0.0
    %2988 = vmatprep.subr.mxu0 0.0
    %2989 = vmatpush1.msra.mxu0 0.0
    %2990 = vmatprep.subr.mxu0 0.0
    %2991 = vmatpush1.msra.mxu0 0.0
    %2992 = vmatprep.subr.mxu0 0.0
    %2993 = vmatpush1.msra.mxu0 0.0
    %2994 = vmatprep.subr.mxu0 0.0
    %2995 = vmatpush1.msra.mxu0 0.0
    %2996 = vmatprep.subr.mxu0 0.0
    %2997 = vmatpush1.msra.mxu0 0.0
    %2998 = vmatprep.subr.mxu0 0.0
    %2999 = vmatpush1.msra.mxu0 0.0
    %3000 = vmatprep.mubr.f32.mxu0 0.0
    %3001 = vmatmul.mubr.f32.gmra.mrb[0].mxu0 %v2847
    %v3002 = vpop.f32.mrb[0].mxu0
    %v3003 = vadd.f32 0.0, %v3002
    %v3004 = vpop.f32.mrb[0].mxu0
    %3005 = vdwg.mxu0
    %v3006 = vmul.f32 %v3003, 0.001953125
    %3007 = vmatprep.subr.mxu0 0.0
    %3008 = vmatpush1.msra.mxu0 %v2613
    %3009 = vmatprep.subr.mxu0 0.0
    %3010 = vmatpush1.msra.mxu0 %v2614
    %3011 = vmatprep.subr.mxu0 0.0
    %3012 = vmatpush1.msra.mxu0 %v2615
    %3013 = vmatprep.subr.mxu0 0.0
    %3014 = vmatpush1.msra.mxu0 %v2616
    %3015 = vmatprep.subr.mxu0 0.0
    %3016 = vmatpush1.msra.mxu0 %v2617
    %3017 = vmatprep.subr.mxu0 0.0
    %3018 = vmatpush1.msra.mxu0 %v2618
    %3019 = vmatprep.subr.mxu0 0.0
    %3020 = vmatpush1.msra.mxu0 %v2619
    %3021 = vmatprep.subr.mxu0 0.0
    %3022 = vmatpush1.msra.mxu0 %v2620
    %3023 = vmatprep.subr.mxu0 0.0
    %3024 = vmatpush1.msra.mxu0 %v2621
    %3025 = vmatprep.subr.mxu0 0.0
    %3026 = vmatpush1.msra.mxu0 %v2622
    %3027 = vmatprep.subr.mxu0 0.0
    %3028 = vmatpush1.msra.mxu0 %v2623
    %3029 = vmatprep.subr.mxu0 0.0
    %3030 = vmatpush1.msra.mxu0 %v2624
    %3031 = vmatprep.subr.mxu0 0.0
    %3032 = vmatpush1.msra.mxu0 %v2625
    %3033 = vmatprep.subr.mxu0 0.0
    %3034 = vmatpush1.msra.mxu0 %v2626
    %3035 = vmatprep.subr.mxu0 0.0
    %3036 = vmatpush1.msra.mxu0 %v2627
    %3037 = vmatprep.subr.mxu0 0.0
    %3038 = vmatpush1.msra.mxu0 %v2628
    %3039 = vmatprep.subr.mxu0 0.0
    %3040 = vmatpush1.msra.mxu0 0.0
    %3041 = vmatprep.subr.mxu0 0.0
    %3042 = vmatpush1.msra.mxu0 0.0
    %3043 = vmatprep.subr.mxu0 0.0
    %3044 = vmatpush1.msra.mxu0 0.0
    %3045 = vmatprep.subr.mxu0 0.0
    %3046 = vmatpush1.msra.mxu0 0.0
    %3047 = vmatprep.subr.mxu0 0.0
    %3048 = vmatpush1.msra.mxu0 0.0
    %3049 = vmatprep.subr.mxu0 0.0
    %3050 = vmatpush1.msra.mxu0 0.0
    %3051 = vmatprep.subr.mxu0 0.0
    %3052 = vmatpush1.msra.mxu0 0.0
    %3053 = vmatprep.subr.mxu0 0.0
    %3054 = vmatpush1.msra.mxu0 0.0
    %3055 = vmatprep.subr.mxu0 0.0
    %3056 = vmatpush1.msra.mxu0 0.0
    %3057 = vmatprep.subr.mxu0 0.0
    %3058 = vmatpush1.msra.mxu0 0.0
    %3059 = vmatprep.subr.mxu0 0.0
    %3060 = vmatpush1.msra.mxu0 0.0
    %3061 = vmatprep.subr.mxu0 0.0
    %3062 = vmatpush1.msra.mxu0 0.0
    %3063 = vmatprep.subr.mxu0 0.0
    %3064 = vmatpush1.msra.mxu0 0.0
    %3065 = vmatprep.subr.mxu0 0.0
    %3066 = vmatpush1.msra.mxu0 0.0
    %3067 = vmatprep.subr.mxu0 0.0
    %3068 = vmatpush1.msra.mxu0 0.0
    %3069 = vmatprep.subr.mxu0 0.0
    %3070 = vmatpush1.msra.mxu0 0.0
    %3071 = vmatprep.mubr.f32.mxu0 0.0
    %3072 = vmatmul.mubr.f32.gmra.mrb[0].mxu0 %v2933
    %v3073 = vpop.f32.mrb[0].mxu0
    %v3074 = vadd.f32 0.0, %v3073
    %v3075 = vpop.f32.mrb[0].mxu0
    %3076 = vdwg.mxu0
    %v3077 = vmul.f32 %v3074, 0.001953125
    %v3078 = vmul.f32 %v3006, %v3006
    %v3079 = vsub.f32 %v3077, %v3078
    %v3080 = vadd.f32 %v3079, 1e-05
    %v3081 = vrsqrt.pop %v3080
    %v3082 = vmul.f32 %v3081, %v2633
    %v3083 = vmul.f32 %v3006, %v3082
    %v3084 = vsub.f32 %v2634, %v3083
    %vm3085 = vcmask 261120
    %v3087 = vsel %vm3085, %v3082, 0
    %3089 = vmatprep.subr.mxu0 0.0
    %3090 = vmatpush1.msra.mxu0 %v2629
    %3091 = vmatprep.subr.mxu0 0.0
    %3092 = vmatpush1.msra.mxu0 %v2630
    %3093 = vmatprep.subr.mxu0 0.0
    %3094 = vmatpush1.msra.mxu0 %v2631
    %3095 = vmatprep.subr.mxu0 0.0
    %3096 = vmatpush1.msra.mxu0 %v2632
    %3097 = vmatprep.subr.mxu0 0.0
    %3098 = vmatpush1.msra.mxu0 0.0
    %3099 = vmatprep.subr.mxu0 0.0
    %3100 = vmatpush1.msra.mxu0 0.0
    %3101 = vmatprep.subr.mxu0 0.0
    %3102 = vmatpush1.msra.mxu0 0.0
    %3103 = vmatprep.subr.mxu0 0.0
    %3104 = vmatpush1.msra.mxu0 0.0
    %3105 = vmatprep.subr.mxu0 0.0
    %3106 = vmatpush1.msra.mxu0 0.0
    %3107 = vmatprep.subr.mxu0 0.0
    %3108 = vmatpush1.msra.mxu0 0.0
    %3109 = vmatprep.subr.mxu0 0.0
    %3110 = vmatpush1.msra.mxu0 0.0
    %3111 = vmatprep.subr.mxu0 0.0
    %3112 = vmatpush1.msra.mxu0 0.0
    %3113 = vmatprep.subr.mxu0 0.0
    %3114 = vmatpush1.msra.mxu0 0.0
    %3115 = vmatprep.subr.mxu0 0.0
    %3116 = vmatpush1.msra.mxu0 0.0
    %3117 = vmatprep.subr.mxu0 0.0
    %3118 = vmatpush1.msra.mxu0 0.0
    %3119 = vmatprep.subr.mxu0 0.0
    %3120 = vmatpush1.msra.mxu0 0.0
    %3121 = vmatprep.subr.mxu0 0.0
    %3122 = vmatpush1.msra.mxu0 0.0
    %3123 = vmatprep.subr.mxu0 0.0
    %3124 = vmatpush1.msra.mxu0 0.0
    %3125 = vmatprep.subr.mxu0 0.0
    %3126 = vmatpush1.msra.mxu0 0.0
    %3127 = vmatprep.subr.mxu0 0.0
    %3128 = vmatpush1.msra.mxu0 0.0
    %3129 = vmatprep.subr.mxu0 0.0
    %3130 = vmatpush1.msra.mxu0 0.0
    %3131 = vmatprep.subr.mxu0 0.0
    %3132 = vmatpush1.msra.mxu0 0.0
    %3133 = vmatprep.subr.mxu0 0.0
    %3134 = vmatpush1.msra.mxu0 0.0
    %3135 = vmatprep.subr.mxu0 0.0
    %3136 = vmatpush1.msra.mxu0 0.0
    %3137 = vmatprep.subr.mxu0 0.0
    %3138 = vmatpush1.msra.mxu0 0.0
    %3139 = vmatprep.subr.mxu0 0.0
    %3140 = vmatpush1.msra.mxu0 0.0
    %3141 = vmatprep.subr.mxu0 0.0
    %3142 = vmatpush1.msra.mxu0 0.0
    %3143 = vmatprep.subr.mxu0 0.0
    %3144 = vmatpush1.msra.mxu0 0.0
    %3145 = vmatprep.subr.mxu0 0.0
    %3146 = vmatpush1.msra.mxu0 0.0
    %3147 = vmatprep.subr.mxu0 0.0
    %3148 = vmatpush1.msra.mxu0 0.0
    %3149 = vmatprep.subr.mxu0 0.0
    %3150 = vmatpush1.msra.mxu0 0.0
    %3151 = vmatprep.subr.mxu0 0.0
    %3152 = vmatpush1.msra.mxu0 0.0
    %3153 = vmatprep.mubr.f32.mxu0 0.0
    %3154 = vmatmul.mubr.f32.gmra.mrb[0].mxu0 %v3087
    %v3155 = vpop.f32.mrb[0].mxu0
    %v3156 = vadd.f32 0.0, %v3155
    %v3157 = vpop.f32.mrb[0].mxu0
    %3158 = vdwg.mxu0
    %v3160 = vsel %vm3085, %v3084, 0
    %3162 = vmatprep.subr.mxu0 0.0
    %3163 = vmatpush1.msra.mxu0 %v2629
    %3164 = vmatprep.subr.mxu0 0.0
    %3165 = vmatpush1.msra.mxu0 %v2630
    %3166 = vmatprep.subr.mxu0 0.0
    %3167 = vmatpush1.msra.mxu0 %v2631
    %3168 = vmatprep.subr.mxu0 0.0
    %3169 = vmatpush1.msra.mxu0 %v2632
    %3170 = vmatprep.subr.mxu0 0.0
    %3171 = vmatpush1.msra.mxu0 0.0
    %3172 = vmatprep.subr.mxu0 0.0
    %3173 = vmatpush1.msra.mxu0 0.0
    %3174 = vmatprep.subr.mxu0 0.0
    %3175 = vmatpush1.msra.mxu0 0.0
    %3176 = vmatprep.subr.mxu0 0.0
    %3177 = vmatpush1.msra.mxu0 0.0
    %3178 = vmatprep.subr.mxu0 0.0
    %3179 = vmatpush1.msra.mxu0 0.0
    %3180 = vmatprep.subr.mxu0 0.0
    %3181 = vmatpush1.msra.mxu0 0.0
    %3182 = vmatprep.subr.mxu0 0.0
    %3183 = vmatpush1.msra.mxu0 0.0
    %3184 = vmatprep.subr.mxu0 0.0
    %3185 = vmatpush1.msra.mxu0 0.0
    %3186 = vmatprep.subr.mxu0 0.0
    %3187 = vmatpush1.msra.mxu0 0.0
    %3188 = vmatprep.subr.mxu0 0.0
    %3189 = vmatpush1.msra.mxu0 0.0
    %3190 = vmatprep.subr.mxu0 0.0
    %3191 = vmatpush1.msra.mxu0 0.0
    %3192 = vmatprep.subr.mxu0 0.0
    %3193 = vmatpush1.msra.mxu0 0.0
    %3194 = vmatprep.subr.mxu0 0.0
    %3195 = vmatpush1.msra.mxu0 0.0
    %3196 = vmatprep.subr.mxu0 0.0
    %3197 = vmatpush1.msra.mxu0 0.0
    %3198 = vmatprep.subr.mxu0 0.0
    %3199 = vmatpush1.msra.mxu0 0.0
    %3200 = vmatprep.subr.mxu0 0.0
    %3201 = vmatpush1.msra.mxu0 0.0
    %3202 = vmatprep.subr.mxu0 0.0
    %3203 = vmatpush1.msra.mxu0 0.0
    %3204 = vmatprep.subr.mxu0 0.0
    %3205 = vmatpush1.msra.mxu0 0.0
    %3206 = vmatprep.subr.mxu0 0.0
    %3207 = vmatpush1.msra.mxu0 0.0
    %3208 = vmatprep.subr.mxu0 0.0
    %3209 = vmatpush1.msra.mxu0 0.0
    %3210 = vmatprep.subr.mxu0 0.0
    %3211 = vmatpush1.msra.mxu0 0.0
    %3212 = vmatprep.subr.mxu0 0.0
    %3213 = vmatpush1.msra.mxu0 0.0
    %3214 = vmatprep.subr.mxu0 0.0
    %3215 = vmatpush1.msra.mxu0 0.0
    %3216 = vmatprep.subr.mxu0 0.0
    %3217 = vmatpush1.msra.mxu0 0.0
    %3218 = vmatprep.subr.mxu0 0.0
    %3219 = vmatpush1.msra.mxu0 0.0
    %3220 = vmatprep.subr.mxu0 0.0
    %3221 = vmatpush1.msra.mxu0 0.0
    %3222 = vmatprep.subr.mxu0 0.0
    %3223 = vmatpush1.msra.mxu0 0.0
    %3224 = vmatprep.subr.mxu0 0.0
    %3225 = vmatpush1.msra.mxu0 0.0
    %3226 = vmatprep.mubr.f32.mxu0 0.0
    %3227 = vmatmul.mubr.f32.gmra.mrb[0].mxu0 %v3160
    %v3228 = vpop.f32.mrb[0].mxu0
    %v3229 = vadd.f32 0.0, %v3228
    %v3230 = vpop.f32.mrb[0].mxu0
    %3231 = vdwg.mxu0
    %v3232 = vlaneseq
    %v3233 = vshrl.u32 %v3232, 7
    %v3234 = vsub.s32 0, %v3233
    %v3235 = vrot.slane %v3156, %v3234
    %v3236 = vmul.f32 %v2702, %v3235
    %v3237 = vmul.f32 %v2707, %v3235
    %v3238 = vmul.f32 %v2712, %v3235
    %v3239 = vmul.f32 %v2717, %v3235
    %v3240 = vmul.f32 %v2722, %v3235
    %v3241 = vmul.f32 %v2727, %v3235
    %v3242 = vmul.f32 %v2732, %v3235
    %v3243 = vmul.f32 %v2737, %v3235
    %v3244 = vmul.f32 %v2742, %v3235
    %v3245 = vmul.f32 %v2747, %v3235
    %v3246 = vmul.f32 %v2752, %v3235
    %v3247 = vmul.f32 %v2757, %v3235
    %v3248 = vmul.f32 %v2762, %v3235
    %v3249 = vmul.f32 %v2767, %v3235
    %v3250 = vmul.f32 %v2772, %v3235
    %v3251 = vmul.f32 %v2777, %v3235
    %v3252 = vlaneseq
    %v3253 = vshrl.u32 %v3252, 7
    %v3254 = vsub.s32 0, %v3253
    %v3255 = vrot.slane %v3229, %v3254
    %v3256 = vadd.f32 %v3236, %v3255
    %v3257 = vadd.f32 %v3237, %v3255
    %v3258 = vadd.f32 %v3238, %v3255
    %v3259 = vadd.f32 %v3239, %v3255
    %v3260 = vadd.f32 %v3240, %v3255
    %v3261 = vadd.f32 %v3241, %v3255
    %v3262 = vadd.f32 %v3242, %v3255
    %v3263 = vadd.f32 %v3243, %v3255
    %v3264 = vadd.f32 %v3244, %v3255
    %v3265 = vadd.f32 %v3245, %v3255
    %v3266 = vadd.f32 %v3246, %v3255
    %v3267 = vadd.f32 %v3247, %v3255
    %v3268 = vadd.f32 %v3248, %v3255
    %v3269 = vadd.f32 %v3249, %v3255
    %v3270 = vadd.f32 %v3250, %v3255
    %v3271 = vadd.f32 %v3251, %v3255
    %v3272 = vmax.f32 %v3256, 0.0
    %v3273 = vmax.f32 %v3257, 0.0
    %v3274 = vmax.f32 %v3258, 0.0
    %v3275 = vmax.f32 %v3259, 0.0
    %v3276 = vmax.f32 %v3260, 0.0
    %v3277 = vmax.f32 %v3261, 0.0
    %v3278 = vmax.f32 %v3262, 0.0
    %v3279 = vmax.f32 %v3263, 0.0
    %v3280 = vmax.f32 %v3264, 0.0
    %v3281 = vmax.f32 %v3265, 0.0
    %v3282 = vmax.f32 %v3266, 0.0
    %v3283 = vmax.f32 %v3267, 0.0
    %v3284 = vmax.f32 %v3268, 0.0
    %v3285 = vmax.f32 %v3269, 0.0
    %v3286 = vmax.f32 %v3270, 0.0
    %v3287 = vmax.f32 %v3271, 0.0
    %v3288 = vld [vmem:[#allocation18] sm:$0xff]
    %v3289 = vld [vmem:[#allocation18 + $0x8] sm:$0xff]
    %v3290 = vld [vmem:[#allocation18 + $0x10] sm:$0xff]
    %v3291 = vld [vmem:[#allocation18 + $0x18] sm:$0xff]
    %v3292 = vld [vmem:[#allocation18 + $0x20] sm:$0xff]
    %v3293 = vld [vmem:[#allocation18 + $0x28] sm:$0xff]
    %v3294 = vld [vmem:[#allocation18 + $0x30] sm:$0xff]
    %v3295 = vld [vmem:[#allocation18 + $0x38] sm:$0xff]
    %v3296 = vld [vmem:[#allocation18 + $0x40] sm:$0xff]
    %v3297 = vld [vmem:[#allocation18 + $0x48] sm:$0xff]
    %v3298 = vld [vmem:[#allocation18 + $0x50] sm:$0xff]
    %v3299 = vld [vmem:[#allocation18 + $0x58] sm:$0xff]
    %v3300 = vld [vmem:[#allocation18 + $0x60] sm:$0xff]
    %v3301 = vld [vmem:[#allocation18 + $0x68] sm:$0xff]
    %v3302 = vld [vmem:[#allocation18 + $0x70] sm:$0xff]
    %v3303 = vld [vmem:[#allocation18 + $0x78] sm:$0xff]
    %v3304 = vld [vmem:[#allocation18 + $0x80] sm:$0xff]
    %v3305 = vld [vmem:[#allocation18 + $0x88] sm:$0xff]
    %v3306 = vld [vmem:[#allocation18 + $0x90] sm:$0xff]
    %v3307 = vld [vmem:[#allocation18 + $0x98] sm:$0xff]
    %v3308 = vld [vmem:[#allocation18 + $0xa0] sm:$0xff]
    %v3309 = vld [vmem:[#allocation18 + $0xa8] sm:$0xff]
    %v3310 = vld [vmem:[#allocation18 + $0xb0] sm:$0xff]
    %v3311 = vld [vmem:[#allocation18 + $0xb8] sm:$0xff]
    %v3312 = vld [vmem:[#allocation18 + $0xc0] sm:$0xff]
    %v3313 = vld [vmem:[#allocation18 + $0xc8] sm:$0xff]
    %v3314 = vld [vmem:[#allocation18 + $0xd0] sm:$0xff]
    %v3315 = vld [vmem:[#allocation18 + $0xd8] sm:$0xff]
    %v3316 = vld [vmem:[#allocation18 + $0xe0] sm:$0xff]
    %v3317 = vld [vmem:[#allocation18 + $0xe8] sm:$0xff]
    %v3318 = vld [vmem:[#allocation18 + $0xf0] sm:$0xff]
    %v3319 = vld [vmem:[#allocation18 + $0xf8] sm:$0xff]
    %v3320 = vld [vmem:[%s10] sm:$0xff]
    %v3321 = vld [vmem:[%s10 + $0x8] sm:$0xff]
    %v3322 = vld [vmem:[%s10 + $0x10] sm:$0xff]
    %v3323 = vld [vmem:[%s10 + $0x18] sm:$0xff]
    %v3324 = vld [vmem:[%s10 + $0x20] sm:$0xff]
    %v3325 = vld [vmem:[%s10 + $0x28] sm:$0xff]
    %v3326 = vld [vmem:[%s10 + $0x30] sm:$0xff]
    %v3327 = vld [vmem:[%s10 + $0x38] sm:$0xff]
    %v3328 = vld [vmem:[%s10 + $0x40] sm:$0xff]
    %v3329 = vld [vmem:[%s10 + $0x48] sm:$0xff]
    %v3330 = vld [vmem:[%s10 + $0x50] sm:$0xff]
    %v3331 = vld [vmem:[%s10 + $0x58] sm:$0xff]
    %v3332 = vld [vmem:[%s10 + $0x60] sm:$0xff]
    %v3333 = vld [vmem:[%s10 + $0x68] sm:$0xff]
    %v3334 = vld [vmem:[%s10 + $0x70] sm:$0xff]
    %v3335 = vld [vmem:[%s10 + $0x78] sm:$0xff]
    %v3336 = vld [vmem:[%s10 + $0x80] sm:$0xff]
    %v3337 = vld [vmem:[%s10 + $0x88] sm:$0xff]
    %v3338 = vld [vmem:[%s10 + $0x90] sm:$0xff]
    %v3339 = vld [vmem:[%s10 + $0x98] sm:$0xff]
    %v3340 = vld [vmem:[%s10 + $0xa0] sm:$0xff]
    %v3341 = vld [vmem:[%s10 + $0xa8] sm:$0xff]
    %v3342 = vld [vmem:[%s10 + $0xb0] sm:$0xff]
    %v3343 = vld [vmem:[%s10 + $0xb8] sm:$0xff]
    %v3344 = vld [vmem:[%s10 + $0xc0] sm:$0xff]
    %v3345 = vld [vmem:[%s10 + $0xc8] sm:$0xff]
    %v3346 = vld [vmem:[%s10 + $0xd0] sm:$0xff]
    %v3347 = vld [vmem:[%s10 + $0xd8] sm:$0xff]
    %v3348 = vld [vmem:[%s10 + $0xe0] sm:$0xff]
    %v3349 = vld [vmem:[%s10 + $0xe8] sm:$0xff]
    %v3350 = vld [vmem:[%s10 + $0xf0] sm:$0xff]
    %v3351 = vld [vmem:[%s10 + $0xf8] sm:$0xff]
    %v3352 = vld [vmem:[#allocation19] sm:$0xff]
    %v3353 = vld [vmem:[#allocation19 + $0x8] sm:$0xff]
    %v3354 = vld [vmem:[#allocation19 + $0x10] sm:$0xff]
    %v3355 = vld [vmem:[#allocation19 + $0x18] sm:$0xff]
    %v3356 = vld [vmem:[#allocation21] sm:$0x1]
    %v3357 = vld [vmem:[#allocation22] sm:$0x1]
    %3358 = vmatprep.subr.mxu0 %v3289
    %3359 = vmatpush1.msra.mxu0 %v3288
    %3360 = vmatprep.subr.mxu0 %v3291
    %3361 = vmatpush1.msra.mxu0 %v3290
    %3362 = vmatprep.subr.mxu0 %v3293
    %3363 = vmatpush1.msra.mxu0 %v3292
    %3364 = vmatprep.subr.mxu0 %v3295
    %3365 = vmatpush1.msra.mxu0 %v3294
    %3366 = vmatprep.subr.mxu0 %v3297
    %3367 = vmatpush1.msra.mxu0 %v3296
    %3368 = vmatprep.subr.mxu0 %v3299
    %3369 = vmatpush1.msra.mxu0 %v3298
    %3370 = vmatprep.subr.mxu0 %v3301
    %3371 = vmatpush1.msra.mxu0 %v3300
    %3372 = vmatprep.subr.mxu0 %v3303
    %3373 = vmatpush1.msra.mxu0 %v3302
    %3374 = vmatprep.subr.mxu0 %v3305
    %3375 = vmatpush1.msra.mxu0 %v3304
    %3376 = vmatprep.subr.mxu0 %v3307
    %3377 = vmatpush1.msra.mxu0 %v3306
    %3378 = vmatprep.subr.mxu0 %v3309
    %3379 = vmatpush1.msra.mxu0 %v3308
    %3380 = vmatprep.subr.mxu0 %v3311
    %3381 = vmatpush1.msra.mxu0 %v3310
    %3382 = vmatprep.subr.mxu0 %v3313
    %3383 = vmatpush1.msra.mxu0 %v3312
    %3384 = vmatprep.subr.mxu0 %v3315
    %3385 = vmatpush1.msra.mxu0 %v3314
    %3386 = vmatprep.subr.mxu0 %v3317
    %3387 = vmatpush1.msra.mxu0 %v3316
    %3388 = vmatprep.subr.mxu0 %v3319
    %3389 = vmatpush1.msra.mxu0 %v3318
    %3390 = vmatprep.subr.mxu0 0.0
    %3391 = vmatpush1.msra.mxu0 0.0
    %3392 = vmatprep.subr.mxu0 0.0
    %3393 = vmatpush1.msra.mxu0 0.0
    %3394 = vmatprep.subr.mxu0 0.0
    %3395 = vmatpush1.msra.mxu0 0.0
    %3396 = vmatprep.subr.mxu0 0.0
    %3397 = vmatpush1.msra.mxu0 0.0
    %3398 = vmatprep.subr.mxu0 0.0
    %3399 = vmatpush1.msra.mxu0 0.0
    %3400 = vmatprep.subr.mxu0 0.0
    %3401 = vmatpush1.msra.mxu0 0.0
    %3402 = vmatprep.subr.mxu0 0.0
    %3403 = vmatpush1.msra.mxu0 0.0
    %3404 = vmatprep.subr.mxu0 0.0
    %3405 = vmatpush1.msra.mxu0 0.0
    %3406 = vmatprep.subr.mxu0 0.0
    %3407 = vmatpush1.msra.mxu0 0.0
    %3408 = vmatprep.subr.mxu0 0.0
    %3409 = vmatpush1.msra.mxu0 0.0
    %3410 = vmatprep.subr.mxu0 0.0
    %3411 = vmatpush1.msra.mxu0 0.0
    %3412 = vmatprep.subr.mxu0 0.0
    %3413 = vmatpush1.msra.mxu0 0.0
    %3414 = vmatprep.subr.mxu0 0.0
    %3415 = vmatpush1.msra.mxu0 0.0
    %3416 = vmatprep.subr.mxu0 0.0
    %3417 = vmatpush1.msra.mxu0 0.0
    %3418 = vmatprep.subr.mxu0 0.0
    %3419 = vmatpush1.msra.mxu0 0.0
    %3420 = vmatprep.subr.mxu0 0.0
    %3421 = vmatpush1.msra.mxu0 0.0
    %3422 = vmatprep.mubr.f32.mxu0 0.0
    %3423 = vmatmul.mubr.f32.gmra.mrb[0].mxu0 %v3272
    %v3424 = vpop.f32.mrb[0].mxu0
    %v3425 = vadd.f32 0.0, %v3424
    %v3426 = vpop.f32.mrb[0].mxu0
    %v3427 = vadd.f32 0.0, %v3426
    %3428 = vmatprep.mubr.f32.mxu0 0.0
    %3429 = vmatmul.mubr.f32.gmra.mrb[0].mxu0 %v3273
    %v3430 = vpop.f32.mrb[0].mxu0
    %v3431 = vadd.f32 0.0, %v3430
    %v3432 = vpop.f32.mrb[0].mxu0
    %v3433 = vadd.f32 0.0, %v3432
    %3434 = vmatprep.mubr.f32.mxu0 0.0
    %3435 = vmatmul.mubr.f32.gmra.mrb[0].mxu0 %v3274
    %v3436 = vpop.f32.mrb[0].mxu0
    %v3437 = vadd.f32 0.0, %v3436
    %v3438 = vpop.f32.mrb[0].mxu0
    %v3439 = vadd.f32 0.0, %v3438
    %3440 = vmatprep.mubr.f32.mxu0 0.0
    %3441 = vmatmul.mubr.f32.gmra.mrb[0].mxu0 %v3275
    %v3442 = vpop.f32.mrb[0].mxu0
    %v3443 = vadd.f32 0.0, %v3442
    %v3444 = vpop.f32.mrb[0].mxu0
    %v3445 = vadd.f32 0.0, %v3444
    %3446 = vmatprep.mubr.f32.mxu0 0.0
    %3447 = vmatmul.mubr.f32.gmra.mrb[0].mxu0 %v3276
    %v3448 = vpop.f32.mrb[0].mxu0
    %v3449 = vadd.f32 0.0, %v3448
    %v3450 = vpop.f32.mrb[0].mxu0
    %v3451 = vadd.f32 0.0, %v3450
    %3452 = vmatprep.mubr.f32.mxu0 0.0
    %3453 = vmatmul.mubr.f32.gmra.mrb[0].mxu0 %v3277
    %v3454 = vpop.f32.mrb[0].mxu0
    %v3455 = vadd.f32 0.0, %v3454
    %v3456 = vpop.f32.mrb[0].mxu0
    %v3457 = vadd.f32 0.0, %v3456
    %3458 = vmatprep.mubr.f32.mxu0 0.0
    %3459 = vmatmul.mubr.f32.gmra.mrb[0].mxu0 %v3278
    %v3460 = vpop.f32.mrb[0].mxu0
    %v3461 = vadd.f32 0.0, %v3460
    %v3462 = vpop.f32.mrb[0].mxu0
    %v3463 = vadd.f32 0.0, %v3462
    %3464 = vmatprep.mubr.f32.mxu0 0.0
    %3465 = vmatmul.mubr.f32.gmra.mrb[0].mxu0 %v3279
    %v3466 = vpop.f32.mrb[0].mxu0
    %v3467 = vadd.f32 0.0, %v3466
    %v3468 = vpop.f32.mrb[0].mxu0
    %v3469 = vadd.f32 0.0, %v3468
    %3470 = vmatprep.mubr.f32.mxu0 0.0
    %3471 = vmatmul.mubr.f32.gmra.mrb[0].mxu0 %v3280
    %v3472 = vpop.f32.mrb[0].mxu0
    %v3473 = vadd.f32 0.0, %v3472
    %v3474 = vpop.f32.mrb[0].mxu0
    %v3475 = vadd.f32 0.0, %v3474
    %3476 = vmatprep.mubr.f32.mxu0 0.0
    %3477 = vmatmul.mubr.f32.gmra.mrb[0].mxu0 %v3281
    %v3478 = vpop.f32.mrb[0].mxu0
    %v3479 = vadd.f32 0.0, %v3478
    %v3480 = vpop.f32.mrb[0].mxu0
    %v3481 = vadd.f32 0.0, %v3480
    %3482 = vmatprep.mubr.f32.mxu0 0.0
    %3483 = vmatmul.mubr.f32.gmra.mrb[0].mxu0 %v3282
    %v3484 = vpop.f32.mrb[0].mxu0
    %v3485 = vadd.f32 0.0, %v3484
    %v3486 = vpop.f32.mrb[0].mxu0
    %v3487 = vadd.f32 0.0, %v3486
    %3488 = vmatprep.mubr.f32.mxu0 0.0
    %3489 = vmatmul.mubr.f32.gmra.mrb[0].mxu0 %v3283
    %v3490 = vpop.f32.mrb[0].mxu0
    %v3491 = vadd.f32 0.0, %v3490
    %v3492 = vpop.f32.mrb[0].mxu0
    %v3493 = vadd.f32 0.0, %v3492
    %3494 = vmatprep.mubr.f32.mxu0 0.0
    %3495 = vmatmul.mubr.f32.gmra.mrb[0].mxu0 %v3284
    %v3496 = vpop.f32.mrb[0].mxu0
    %v3497 = vadd.f32 0.0, %v3496
    %v3498 = vpop.f32.mrb[0].mxu0
    %v3499 = vadd.f32 0.0, %v3498
    %3500 = vmatprep.mubr.f32.mxu0 0.0
    %3501 = vmatmul.mubr.f32.gmra.mrb[0].mxu0 %v3285
    %v3502 = vpop.f32.mrb[0].mxu0
    %v3503 = vadd.f32 0.0, %v3502
    %v3504 = vpop.f32.mrb[0].mxu0
    %v3505 = vadd.f32 0.0, %v3504
    %3506 = vmatprep.mubr.f32.mxu0 0.0
    %3507 = vmatmul.mubr.f32.gmra.mrb[0].mxu0 %v3286
    %v3508 = vpop.f32.mrb[0].mxu0
    %v3509 = vadd.f32 0.0, %v3508
    %v3510 = vpop.f32.mrb[0].mxu0
    %v3511 = vadd.f32 0.0, %v3510
    %3512 = vmatprep.mubr.f32.mxu0 0.0
    %3513 = vmatmul.mubr.f32.gmra.mrb[0].mxu0 %v3287
    %v3514 = vpop.f32.mrb[0].mxu0
    %v3515 = vadd.f32 0.0, %v3514
    %v3516 = vpop.f32.mrb[0].mxu0
    %v3517 = vadd.f32 0.0, %v3516
    %3518 = vdwg.mxu0
    %3519 = vmatprep.subr.mxu0 %v3427
    %3520 = vmatpush1.msra.mxu0 %v3425
    %3521 = vmatprep.subr.mxu0 %v3433
    %3522 = vmatpush1.msra.mxu0 %v3431
    %3523 = vmatprep.subr.mxu0 %v3439
    %3524 = vmatpush1.msra.mxu0 %v3437
    %3525 = vmatprep.subr.mxu0 %v3445
    %3526 = vmatpush1.msra.mxu0 %v3443
    %3527 = vmatprep.subr.mxu0 %v3451
    %3528 = vmatpush1.msra.mxu0 %v3449
    %3529 = vmatprep.subr.mxu0 %v3457
    %3530 = vmatpush1.msra.mxu0 %v3455
    %3531 = vmatprep.subr.mxu0 %v3463
    %3532 = vmatpush1.msra.mxu0 %v3461
    %3533 = vmatprep.subr.mxu0 %v3469
    %3534 = vmatpush1.msra.mxu0 %v3467
    %3535 = vmatprep.subr.mxu0 %v3475
    %3536 = vmatpush1.msra.mxu0 %v3473
    %3537 = vmatprep.subr.mxu0 %v3481
    %3538 = vmatpush1.msra.mxu0 %v3479
    %3539 = vmatprep.subr.mxu0 %v3487
    %3540 = vmatpush1.msra.mxu0 %v3485
    %3541 = vmatprep.subr.mxu0 %v3493
    %3542 = vmatpush1.msra.mxu0 %v3491
    %3543 = vmatprep.subr.mxu0 %v3499
    %3544 = vmatpush1.msra.mxu0 %v3497
    %3545 = vmatprep.subr.mxu0 %v3505
    %3546 = vmatpush1.msra.mxu0 %v3503
    %3547 = vmatprep.subr.mxu0 %v3511
    %3548 = vmatpush1.msra.mxu0 %v3509
    %3549 = vmatprep.subr.mxu0 %v3517
    %3550 = vmatpush1.msra.mxu0 %v3515
    %3551 = vmatprep.subr.mxu0 0.0
    %3552 = vmatpush1.msra.mxu0 0.0
    %3553 = vmatprep.subr.mxu0 0.0
    %3554 = vmatpush1.msra.mxu0 0.0
    %3555 = vmatprep.subr.mxu0 0.0
    %3556 = vmatpush1.msra.mxu0 0.0
    %3557 = vmatprep.subr.mxu0 0.0
    %3558 = vmatpush1.msra.mxu0 0.0
    %3559 = vmatprep.subr.mxu0 0.0
    %3560 = vmatpush1.msra.mxu0 0.0
    %3561 = vmatprep.subr.mxu0 0.0
    %3562 = vmatpush1.msra.mxu0 0.0
    %3563 = vmatprep.subr.mxu0 0.0
    %3564 = vmatpush1.msra.mxu0 0.0
    %3565 = vmatprep.subr.mxu0 0.0
    %3566 = vmatpush1.msra.mxu0 0.0
    %3567 = vmatprep.subr.mxu0 0.0
    %3568 = vmatpush1.msra.mxu0 0.0
    %3569 = vmatprep.subr.mxu0 0.0
    %3570 = vmatpush1.msra.mxu0 0.0
    %3571 = vmatprep.subr.mxu0 0.0
    %3572 = vmatpush1.msra.mxu0 0.0
    %3573 = vmatprep.subr.mxu0 0.0
    %3574 = vmatpush1.msra.mxu0 0.0
    %3575 = vmatprep.subr.mxu0 0.0
    %3576 = vmatpush1.msra.mxu0 0.0
    %3577 = vmatprep.subr.mxu0 0.0
    %3578 = vmatpush1.msra.mxu0 0.0
    %3579 = vmatprep.subr.mxu0 0.0
    %3580 = vmatpush1.msra.mxu0 0.0
    %3581 = vmatprep.subr.mxu0 0.0
    %3582 = vmatpush1.msra.mxu0 0.0
    %3583 = vmatprep.mubr.f32.mxu0 0.0
    %3584 = vmatmul.mubr.f32.gmra.mrb[0].mxu0 1.0
    %v3585 = vpop.f32.mrb[0].mxu0
    %v3586 = vadd.f32 0.0, %v3585
    %v3587 = vpop.f32.mrb[0].mxu0
    %v3588 = vadd.f32 0.0, %v3587
    %3589 = vdwg.mxu0
    %v3590 = vmul.f32 %v3425, %v3425
    %v3591 = vmul.f32 %v3427, %v3427
    %v3592 = vmul.f32 %v3431, %v3431
    %v3593 = vmul.f32 %v3433, %v3433
    %v3594 = vmul.f32 %v3437, %v3437
    %v3595 = vmul.f32 %v3439, %v3439
    %v3596 = vmul.f32 %v3443, %v3443
    %v3597 = vmul.f32 %v3445, %v3445
    %v3598 = vmul.f32 %v3449, %v3449
    %v3599 = vmul.f32 %v3451, %v3451
    %v3600 = vmul.f32 %v3455, %v3455
    %v3601 = vmul.f32 %v3457, %v3457
    %v3602 = vmul.f32 %v3461, %v3461
    %v3603 = vmul.f32 %v3463, %v3463
    %v3604 = vmul.f32 %v3467, %v3467
    %v3605 = vmul.f32 %v3469, %v3469
    %v3606 = vmul.f32 %v3473, %v3473
    %v3607 = vmul.f32 %v3475, %v3475
    %v3608 = vmul.f32 %v3479, %v3479
    %v3609 = vmul.f32 %v3481, %v3481
    %v3610 = vmul.f32 %v3485, %v3485
    %v3611 = vmul.f32 %v3487, %v3487
    %v3612 = vmul.f32 %v3491, %v3491
    %v3613 = vmul.f32 %v3493, %v3493
    %v3614 = vmul.f32 %v3497, %v3497
    %v3615 = vmul.f32 %v3499, %v3499
    %v3616 = vmul.f32 %v3503, %v3503
    %v3617 = vmul.f32 %v3505, %v3505
    %v3618 = vmul.f32 %v3509, %v3509
    %v3619 = vmul.f32 %v3511, %v3511
    %v3620 = vmul.f32 %v3515, %v3515
    %v3621 = vmul.f32 %v3517, %v3517
    %3622 = vmatprep.subr.mxu0 %v3591
    %3623 = vmatpush1.msra.mxu0 %v3590
    %3624 = vmatprep.subr.mxu0 %v3593
    %3625 = vmatpush1.msra.mxu0 %v3592
    %3626 = vmatprep.subr.mxu0 %v3595
    %3627 = vmatpush1.msra.mxu0 %v3594
    %3628 = vmatprep.subr.mxu0 %v3597
    %3629 = vmatpush1.msra.mxu0 %v3596
    %3630 = vmatprep.subr.mxu0 %v3599
    %3631 = vmatpush1.msra.mxu0 %v3598
    %3632 = vmatprep.subr.mxu0 %v3601
    %3633 = vmatpush1.msra.mxu0 %v3600
    %3634 = vmatprep.subr.mxu0 %v3603
    %3635 = vmatpush1.msra.mxu0 %v3602
    %3636 = vmatprep.subr.mxu0 %v3605
    %3637 = vmatpush1.msra.mxu0 %v3604
    %3638 = vmatprep.subr.mxu0 %v3607
    %3639 = vmatpush1.msra.mxu0 %v3606
    %3640 = vmatprep.subr.mxu0 %v3609
    %3641 = vmatpush1.msra.mxu0 %v3608
    %3642 = vmatprep.subr.mxu0 %v3611
    %3643 = vmatpush1.msra.mxu0 %v3610
    %3644 = vmatprep.subr.mxu0 %v3613
    %3645 = vmatpush1.msra.mxu0 %v3612
    %3646 = vmatprep.subr.mxu0 %v3615
    %3647 = vmatpush1.msra.mxu0 %v3614
    %3648 = vmatprep.subr.mxu0 %v3617
    %3649 = vmatpush1.msra.mxu0 %v3616
    %3650 = vmatprep.subr.mxu0 %v3619
    %3651 = vmatpush1.msra.mxu0 %v3618
    %3652 = vmatprep.subr.mxu0 %v3621
    %3653 = vmatpush1.msra.mxu0 %v3620
    %3654 = vmatprep.subr.mxu0 0.0
    %3655 = vmatpush1.msra.mxu0 0.0
    %3656 = vmatprep.subr.mxu0 0.0
    %3657 = vmatpush1.msra.mxu0 0.0
    %3658 = vmatprep.subr.mxu0 0.0
    %3659 = vmatpush1.msra.mxu0 0.0
    %3660 = vmatprep.subr.mxu0 0.0
    %3661 = vmatpush1.msra.mxu0 0.0
    %3662 = vmatprep.subr.mxu0 0.0
    %3663 = vmatpush1.msra.mxu0 0.0
    %3664 = vmatprep.subr.mxu0 0.0
    %3665 = vmatpush1.msra.mxu0 0.0
    %3666 = vmatprep.subr.mxu0 0.0
    %3667 = vmatpush1.msra.mxu0 0.0
    %3668 = vmatprep.subr.mxu0 0.0
    %3669 = vmatpush1.msra.mxu0 0.0
    %3670 = vmatprep.subr.mxu0 0.0
    %3671 = vmatpush1.msra.mxu0 0.0
    %3672 = vmatprep.subr.mxu0 0.0
    %3673 = vmatpush1.msra.mxu0 0.0
    %3674 = vmatprep.subr.mxu0 0.0
    %3675 = vmatpush1.msra.mxu0 0.0
    %3676 = vmatprep.subr.mxu0 0.0
    %3677 = vmatpush1.msra.mxu0 0.0
    %3678 = vmatprep.subr.mxu0 0.0
    %3679 = vmatpush1.msra.mxu0 0.0
    %3680 = vmatprep.subr.mxu0 0.0
    %3681 = vmatpush1.msra.mxu0 0.0
    %3682 = vmatprep.subr.mxu0 0.0
    %3683 = vmatpush1.msra.mxu0 0.0
    %3684 = vmatprep.subr.mxu0 0.0
    %3685 = vmatpush1.msra.mxu0 0.0
    %3686 = vmatprep.mubr.f32.mxu0 0.0
    %3687 = vmatmul.mubr.f32.gmra.mrb[0].mxu0 1.0
    %v3688 = vpop.f32.mrb[0].mxu0
    %v3689 = vadd.f32 0.0, %v3688
    %v3690 = vpop.f32.mrb[0].mxu0
    %v3691 = vadd.f32 0.0, %v3690
    %3692 = vdwg.mxu0
    %3693 = vmatprep.subr.mxu0 0.0
    %3694 = vmatpush1.msra.mxu0 %v3320
    %3695 = vmatprep.subr.mxu0 0.0
    %3696 = vmatpush1.msra.mxu0 %v3321
    %3697 = vmatprep.subr.mxu0 0.0
    %3698 = vmatpush1.msra.mxu0 %v3322
    %3699 = vmatprep.subr.mxu0 0.0
    %3700 = vmatpush1.msra.mxu0 %v3323
    %3701 = vmatprep.subr.mxu0 0.0
    %3702 = vmatpush1.msra.mxu0 %v3324
    %3703 = vmatprep.subr.mxu0 0.0
    %3704 = vmatpush1.msra.mxu0 %v3325
    %3705 = vmatprep.subr.mxu0 0.0
    %3706 = vmatpush1.msra.mxu0 %v3326
    %3707 = vmatprep.subr.mxu0 0.0
    %3708 = vmatpush1.msra.mxu0 %v3327
    %3709 = vmatprep.subr.mxu0 0.0
    %3710 = vmatpush1.msra.mxu0 %v3328
    %3711 = vmatprep.subr.mxu0 0.0
    %3712 = vmatpush1.msra.mxu0 %v3329
    %3713 = vmatprep.subr.mxu0 0.0
    %3714 = vmatpush1.msra.mxu0 %v3330
    %3715 = vmatprep.subr.mxu0 0.0
    %3716 = vmatpush1.msra.mxu0 %v3331
    %3717 = vmatprep.subr.mxu0 0.0
    %3718 = vmatpush1.msra.mxu0 %v3332
    %3719 = vmatprep.subr.mxu0 0.0
    %3720 = vmatpush1.msra.mxu0 %v3333
    %3721 = vmatprep.subr.mxu0 0.0
    %3722 = vmatpush1.msra.mxu0 %v3334
    %3723 = vmatprep.subr.mxu0 0.0
    %3724 = vmatpush1.msra.mxu0 %v3335
    %3725 = vmatprep.subr.mxu0 0.0
    %3726 = vmatpush1.msra.mxu0 %v3336
    %3727 = vmatprep.subr.mxu0 0.0
    %3728 = vmatpush1.msra.mxu0 %v3337
    %3729 = vmatprep.subr.mxu0 0.0
    %3730 = vmatpush1.msra.mxu0 %v3338
    %3731 = vmatprep.subr.mxu0 0.0
    %3732 = vmatpush1.msra.mxu0 %v3339
    %3733 = vmatprep.subr.mxu0 0.0
    %3734 = vmatpush1.msra.mxu0 %v3340
    %3735 = vmatprep.subr.mxu0 0.0
    %3736 = vmatpush1.msra.mxu0 %v3341
    %3737 = vmatprep.subr.mxu0 0.0
    %3738 = vmatpush1.msra.mxu0 %v3342
    %3739 = vmatprep.subr.mxu0 0.0
    %3740 = vmatpush1.msra.mxu0 %v3343
    %3741 = vmatprep.subr.mxu0 0.0
    %3742 = vmatpush1.msra.mxu0 %v3344
    %3743 = vmatprep.subr.mxu0 0.0
    %3744 = vmatpush1.msra.mxu0 %v3345
    %3745 = vmatprep.subr.mxu0 0.0
    %3746 = vmatpush1.msra.mxu0 %v3346
    %3747 = vmatprep.subr.mxu0 0.0
    %3748 = vmatpush1.msra.mxu0 %v3347
    %3749 = vmatprep.subr.mxu0 0.0
    %3750 = vmatpush1.msra.mxu0 %v3348
    %3751 = vmatprep.subr.mxu0 0.0
    %3752 = vmatpush1.msra.mxu0 %v3349
    %3753 = vmatprep.subr.mxu0 0.0
    %3754 = vmatpush1.msra.mxu0 %v3350
    %3755 = vmatprep.subr.mxu0 0.0
    %3756 = vmatpush1.msra.mxu0 %v3351
    %3757 = vmatprep.mubr.f32.mxu0 %v3588
    %3758 = vmatmul.mubr.f32.gmra.mrb[0].mxu0 %v3586
    %v3759 = vpop.f32.mrb[0].mxu0
    %v3760 = vadd.f32 0.0, %v3759
    %v3761 = vpop.f32.mrb[0].mxu0
    %3762 = vdwg.mxu0
    %v3763 = vmul.f32 %v3760, 0.00048828125
    %3764 = vmatprep.subr.mxu0 0.0
    %3765 = vmatpush1.msra.mxu0 %v3320
    %3766 = vmatprep.subr.mxu0 0.0
    %3767 = vmatpush1.msra.mxu0 %v3321
    %3768 = vmatprep.subr.mxu0 0.0
    %3769 = vmatpush1.msra.mxu0 %v3322
    %3770 = vmatprep.subr.mxu0 0.0
    %3771 = vmatpush1.msra.mxu0 %v3323
    %3772 = vmatprep.subr.mxu0 0.0
    %3773 = vmatpush1.msra.mxu0 %v3324
    %3774 = vmatprep.subr.mxu0 0.0
    %3775 = vmatpush1.msra.mxu0 %v3325
    %3776 = vmatprep.subr.mxu0 0.0
    %3777 = vmatpush1.msra.mxu0 %v3326
    %3778 = vmatprep.subr.mxu0 0.0
    %3779 = vmatpush1.msra.mxu0 %v3327
    %3780 = vmatprep.subr.mxu0 0.0
    %3781 = vmatpush1.msra.mxu0 %v3328
    %3782 = vmatprep.subr.mxu0 0.0
    %3783 = vmatpush1.msra.mxu0 %v3329
    %3784 = vmatprep.subr.mxu0 0.0
    %3785 = vmatpush1.msra.mxu0 %v3330
    %3786 = vmatprep.subr.mxu0 0.0
    %3787 = vmatpush1.msra.mxu0 %v3331
    %3788 = vmatprep.subr.mxu0 0.0
    %3789 = vmatpush1.msra.mxu0 %v3332
    %3790 = vmatprep.subr.mxu0 0.0
    %3791 = vmatpush1.msra.mxu0 %v3333
    %3792 = vmatprep.subr.mxu0 0.0
    %3793 = vmatpush1.msra.mxu0 %v3334
    %3794 = vmatprep.subr.mxu0 0.0
    %3795 = vmatpush1.msra.mxu0 %v3335
    %3796 = vmatprep.subr.mxu0 0.0
    %3797 = vmatpush1.msra.mxu0 %v3336
    %3798 = vmatprep.subr.mxu0 0.0
    %3799 = vmatpush1.msra.mxu0 %v3337
    %3800 = vmatprep.subr.mxu0 0.0
    %3801 = vmatpush1.msra.mxu0 %v3338
    %3802 = vmatprep.subr.mxu0 0.0
    %3803 = vmatpush1.msra.mxu0 %v3339
    %3804 = vmatprep.subr.mxu0 0.0
    %3805 = vmatpush1.msra.mxu0 %v3340
    %3806 = vmatprep.subr.mxu0 0.0
    %3807 = vmatpush1.msra.mxu0 %v3341
    %3808 = vmatprep.subr.mxu0 0.0
    %3809 = vmatpush1.msra.mxu0 %v3342
    %3810 = vmatprep.subr.mxu0 0.0
    %3811 = vmatpush1.msra.mxu0 %v3343
    %3812 = vmatprep.subr.mxu0 0.0
    %3813 = vmatpush1.msra.mxu0 %v3344
    %3814 = vmatprep.subr.mxu0 0.0
    %3815 = vmatpush1.msra.mxu0 %v3345
    %3816 = vmatprep.subr.mxu0 0.0
    %3817 = vmatpush1.msra.mxu0 %v3346
    %3818 = vmatprep.subr.mxu0 0.0
    %3819 = vmatpush1.msra.mxu0 %v3347
    %3820 = vmatprep.subr.mxu0 0.0
    %3821 = vmatpush1.msra.mxu0 %v3348
    %3822 = vmatprep.subr.mxu0 0.0
    %3823 = vmatpush1.msra.mxu0 %v3349
    %3824 = vmatprep.subr.mxu0 0.0
    %3825 = vmatpush1.msra.mxu0 %v3350
    %3826 = vmatprep.subr.mxu0 0.0
    %3827 = vmatpush1.msra.mxu0 %v3351
    %3828 = vmatprep.mubr.f32.mxu0 %v3691
    %3829 = vmatmul.mubr.f32.gmra.mrb[0].mxu0 %v3689
    %v3830 = vpop.f32.mrb[0].mxu0
    %v3831 = vadd.f32 0.0, %v3830
    %v3832 = vpop.f32.mrb[0].mxu0
    %3833 = vdwg.mxu0
    %v3834 = vmul.f32 %v3831, 0.00048828125
    %v3835 = vmul.f32 %v3763, %v3763
    %v3836 = vsub.f32 %v3834, %v3835
    %v3837 = vadd.f32 %v3836, 1e-05
    %v3838 = vrsqrt.pop %v3837
    %v3839 = vmul.f32 %v3838, %v3356
    %v3840 = vmul.f32 %v3763, %v3839
    %v3841 = vsub.f32 %v3357, %v3840
    %vm3842 = vcmask 130048
    %v3844 = vsel %vm3842, %v3839, 0
    %3846 = vmatprep.subr.mxu0 %v3353
    %3847 = vmatpush1.msra.mxu0 %v3352
    %3848 = vmatprep.subr.mxu0 %v3355
    %3849 = vmatpush1.msra.mxu0 %v3354
    %3850 = vmatprep.subr.mxu0 0.0
    %3851 = vmatpush1.msra.mxu0 0.0
    %3852 = vmatprep.subr.mxu0 0.0
    %3853 = vmatpush1.msra.mxu0 0.0
    %3854 = vmatprep.subr.mxu0 0.0
    %3855 = vmatpush1.msra.mxu0 0.0
    %3856 = vmatprep.subr.mxu0 0.0
    %3857 = vmatpush1.msra.mxu0 0.0
    %3858 = vmatprep.subr.mxu0 0.0
    %3859 = vmatpush1.msra.mxu0 0.0
    %3860 = vmatprep.subr.mxu0 0.0
    %3861 = vmatpush1.msra.mxu0 0.0
    %3862 = vmatprep.subr.mxu0 0.0
    %3863 = vmatpush1.msra.mxu0 0.0
    %3864 = vmatprep.subr.mxu0 0.0
    %3865 = vmatpush1.msra.mxu0 0.0
    %3866 = vmatprep.subr.mxu0 0.0
    %3867 = vmatpush1.msra.mxu0 0.0
    %3868 = vmatprep.subr.mxu0 0.0
    %3869 = vmatpush1.msra.mxu0 0.0
    %3870 = vmatprep.subr.mxu0 0.0
    %3871 = vmatpush1.msra.mxu0 0.0
    %3872 = vmatprep.subr.mxu0 0.0
    %3873 = vmatpush1.msra.mxu0 0.0
    %3874 = vmatprep.subr.mxu0 0.0
    %3875 = vmatpush1.msra.mxu0 0.0
    %3876 = vmatprep.subr.mxu0 0.0
    %3877 = vmatpush1.msra.mxu0 0.0
    %3878 = vmatprep.subr.mxu0 0.0
    %3879 = vmatpush1.msra.mxu0 0.0
    %3880 = vmatprep.subr.mxu0 0.0
    %3881 = vmatpush1.msra.mxu0 0.0
    %3882 = vmatprep.subr.mxu0 0.0
    %3883 = vmatpush1.msra.mxu0 0.0
    %3884 = vmatprep.subr.mxu0 0.0
    %3885 = vmatpush1.msra.mxu0 0.0
    %3886 = vmatprep.subr.mxu0 0.0
    %3887 = vmatpush1.msra.mxu0 0.0
    %3888 = vmatprep.subr.mxu0 0.0
    %3889 = vmatpush1.msra.mxu0 0.0
    %3890 = vmatprep.subr.mxu0 0.0
    %3891 = vmatpush1.msra.mxu0 0.0
    %3892 = vmatprep.subr.mxu0 0.0
    %3893 = vmatpush1.msra.mxu0 0.0
    %3894 = vmatprep.subr.mxu0 0.0
    %3895 = vmatpush1.msra.mxu0 0.0
    %3896 = vmatprep.subr.mxu0 0.0
    %3897 = vmatpush1.msra.mxu0 0.0
    %3898 = vmatprep.subr.mxu0 0.0
    %3899 = vmatpush1.msra.mxu0 0.0
    %3900 = vmatprep.subr.mxu0 0.0
    %3901 = vmatpush1.msra.mxu0 0.0
    %3902 = vmatprep.subr.mxu0 0.0
    %3903 = vmatpush1.msra.mxu0 0.0
    %3904 = vmatprep.subr.mxu0 0.0
    %3905 = vmatpush1.msra.mxu0 0.0
    %3906 = vmatprep.subr.mxu0 0.0
    %3907 = vmatpush1.msra.mxu0 0.0
    %3908 = vmatprep.subr.mxu0 0.0
    %3909 = vmatpush1.msra.mxu0 0.0
    %3910 = vmatprep.mubr.f32.mxu0 0.0
    %3911 = vmatmul.mubr.f32.gmra.mrb[0].mxu0 %v3844
    %v3912 = vpop.f32.mrb[0].mxu0
    %v3913 = vadd.f32 0.0, %v3912
    %v3914 = vpop.f32.mrb[0].mxu0
    %v3915 = vadd.f32 0.0, %v3914
    %3916 = vdwg.mxu0
    %v3918 = vsel %vm3842, %v3841, 0
    %3920 = vmatprep.subr.mxu0 %v3353
    %3921 = vmatpush1.msra.mxu0 %v3352
    %3922 = vmatprep.subr.mxu0 %v3355
    %3923 = vmatpush1.msra.mxu0 %v3354
    %3924 = vmatprep.subr.mxu0 0.0
    %3925 = vmatpush1.msra.mxu0 0.0
    %3926 = vmatprep.subr.mxu0 0.0
    %3927 = vmatpush1.msra.mxu0 0.0
    %3928 = vmatprep.subr.mxu0 0.0
    %3929 = vmatpush1.msra.mxu0 0.0
    %3930 = vmatprep.subr.mxu0 0.0
    %3931 = vmatpush1.msra.mxu0 0.0
    %3932 = vmatprep.subr.mxu0 0.0
    %3933 = vmatpush1.msra.mxu0 0.0
    %3934 = vmatprep.subr.mxu0 0.0
    %3935 = vmatpush1.msra.mxu0 0.0
    %3936 = vmatprep.subr.mxu0 0.0
    %3937 = vmatpush1.msra.mxu0 0.0
    %3938 = vmatprep.subr.mxu0 0.0
    %3939 = vmatpush1.msra.mxu0 0.0
    %3940 = vmatprep.subr.mxu0 0.0
    %3941 = vmatpush1.msra.mxu0 0.0
    %3942 = vmatprep.subr.mxu0 0.0
    %3943 = vmatpush1.msra.mxu0 0.0
    %3944 = vmatprep.subr.mxu0 0.0
    %3945 = vmatpush1.msra.mxu0 0.0
    %3946 = vmatprep.subr.mxu0 0.0
    %3947 = vmatpush1.msra.mxu0 0.0
    %3948 = vmatprep.subr.mxu0 0.0
    %3949 = vmatpush1.msra.mxu0 0.0
    %3950 = vmatprep.subr.mxu0 0.0
    %3951 = vmatpush1.msra.mxu0 0.0
    %3952 = vmatprep.subr.mxu0 0.0
    %3953 = vmatpush1.msra.mxu0 0.0
    %3954 = vmatprep.subr.mxu0 0.0
    %3955 = vmatpush1.msra.mxu0 0.0
    %3956 = vmatprep.subr.mxu0 0.0
    %3957 = vmatpush1.msra.mxu0 0.0
    %3958 = vmatprep.subr.mxu0 0.0
    %3959 = vmatpush1.msra.mxu0 0.0
    %3960 = vmatprep.subr.mxu0 0.0
    %3961 = vmatpush1.msra.mxu0 0.0
    %3962 = vmatprep.subr.mxu0 0.0
    %3963 = vmatpush1.msra.mxu0 0.0
    %3964 = vmatprep.subr.mxu0 0.0
    %3965 = vmatpush1.msra.mxu0 0.0
    %3966 = vmatprep.subr.mxu0 0.0
    %3967 = vmatpush1.msra.mxu0 0.0
    %3968 = vmatprep.subr.mxu0 0.0
    %3969 = vmatpush1.msra.mxu0 0.0
    %3970 = vmatprep.subr.mxu0 0.0
    %3971 = vmatpush1.msra.mxu0 0.0
    %3972 = vmatprep.subr.mxu0 0.0
    %3973 = vmatpush1.msra.mxu0 0.0
    %3974 = vmatprep.subr.mxu0 0.0
    %3975 = vmatpush1.msra.mxu0 0.0
    %3976 = vmatprep.subr.mxu0 0.0
    %3977 = vmatpush1.msra.mxu0 0.0
    %3978 = vmatprep.subr.mxu0 0.0
    %3979 = vmatpush1.msra.mxu0 0.0
    %3980 = vmatprep.subr.mxu0 0.0
    %3981 = vmatpush1.msra.mxu0 0.0
    %3982 = vmatprep.subr.mxu0 0.0
    %3983 = vmatpush1.msra.mxu0 0.0
    %3984 = vmatprep.mubr.f32.mxu0 0.0
    %3985 = vmatmul.mubr.f32.gmra.mrb[0].mxu0 %v3918
    %v3986 = vpop.f32.mrb[0].mxu0
    %v3987 = vadd.f32 0.0, %v3986
    %v3988 = vpop.f32.mrb[0].mxu0
    %v3989 = vadd.f32 0.0, %v3988
    %3990 = vdwg.mxu0
    %v3991 = vlaneseq
    %v3992 = vshrl.u32 %v3991, 7
    %v3993 = vsub.s32 0, %v3992
    %v3994 = vrot.slane %v3913, %v3993
    %v3995 = vlaneseq
    %v3996 = vshrl.u32 %v3995, 7
    %v3997 = vsub.s32 0, %v3996
    %v3998 = vrot.slane %v3915, %v3997
    %v3999 = vmul.f32 %v3425, %v3994
    %v4000 = vmul.f32 %v3427, %v3998
    %v4001 = vmul.f32 %v3431, %v3994
    %v4002 = vmul.f32 %v3433, %v3998
    %v4003 = vmul.f32 %v3437, %v3994
    %v4004 = vmul.f32 %v3439, %v3998
    %v4005 = vmul.f32 %v3443, %v3994
    %v4006 = vmul.f32 %v3445, %v3998
    %v4007 = vmul.f32 %v3449, %v3994
    %v4008 = vmul.f32 %v3451, %v3998
    %v4009 = vmul.f32 %v3455, %v3994
    %v4010 = vmul.f32 %v3457, %v3998
    %v4011 = vmul.f32 %v3461, %v3994
    %v4012 = vmul.f32 %v3463, %v3998
    %v4013 = vmul.f32 %v3467, %v3994
    %v4014 = vmul.f32 %v3469, %v3998
    %v4015 = vmul.f32 %v3473, %v3994
    %v4016 = vmul.f32 %v3475, %v3998
    %v4017 = vmul.f32 %v3479, %v3994
    %v4018 = vmul.f32 %v3481, %v3998
    %v4019 = vmul.f32 %v3485, %v3994
    %v4020 = vmul.f32 %v3487, %v3998
    %v4021 = vmul.f32 %v3491, %v3994
    %v4022 = vmul.f32 %v3493, %v3998
    %v4023 = vmul.f32 %v3497, %v3994
    %v4024 = vmul.f32 %v3499, %v3998
    %v4025 = vmul.f32 %v3503, %v3994
    %v4026 = vmul.f32 %v3505, %v3998
    %v4027 = vmul.f32 %v3509, %v3994
    %v4028 = vmul.f32 %v3511, %v3998
    %v4029 = vmul.f32 %v3515, %v3994
    %v4030 = vmul.f32 %v3517, %v3998
    %v4031 = vlaneseq
    %v4032 = vshrl.u32 %v4031, 7
    %v4033 = vsub.s32 0, %v4032
    %v4034 = vrot.slane %v3987, %v4033
    %v4035 = vlaneseq
    %v4036 = vshrl.u32 %v4035, 7
    %v4037 = vsub.s32 0, %v4036
    %v4038 = vrot.slane %v3989, %v4037
    %v4039 = vadd.f32 %v3999, %v4034
    %v4040 = vadd.f32 %v4000, %v4038
    %v4041 = vadd.f32 %v4001, %v4034
    %v4042 = vadd.f32 %v4002, %v4038
    %v4043 = vadd.f32 %v4003, %v4034
    %v4044 = vadd.f32 %v4004, %v4038
    %v4045 = vadd.f32 %v4005, %v4034
    %v4046 = vadd.f32 %v4006, %v4038
    %v4047 = vadd.f32 %v4007, %v4034
    %v4048 = vadd.f32 %v4008, %v4038
    %v4049 = vadd.f32 %v4009, %v4034
    %v4050 = vadd.f32 %v4010, %v4038
    %v4051 = vadd.f32 %v4011, %v4034
    %v4052 = vadd.f32 %v4012, %v4038
    %v4053 = vadd.f32 %v4013, %v4034
    %v4054 = vadd.f32 %v4014, %v4038
    %v4055 = vadd.f32 %v4015, %v4034
    %v4056 = vadd.f32 %v4016, %v4038
    %v4057 = vadd.f32 %v4017, %v4034
    %v4058 = vadd.f32 %v4018, %v4038
    %v4059 = vadd.f32 %v4019, %v4034
    %v4060 = vadd.f32 %v4020, %v4038
    %v4061 = vadd.f32 %v4021, %v4034
    %v4062 = vadd.f32 %v4022, %v4038
    %v4063 = vadd.f32 %v4023, %v4034
    %v4064 = vadd.f32 %v4024, %v4038
    %v4065 = vadd.f32 %v4025, %v4034
    %v4066 = vadd.f32 %v4026, %v4038
    %v4067 = vadd.f32 %v4027, %v4034
    %v4068 = vadd.f32 %v4028, %v4038
    %v4069 = vadd.f32 %v4029, %v4034
    %v4070 = vadd.f32 %v4030, %v4038
    %v4071 = vmax.f32 %v4039, 0.0
    %v4072 = vmax.f32 %v4040, 0.0
    %v4073 = vmax.f32 %v4041, 0.0
    %v4074 = vmax.f32 %v4042, 0.0
    %v4075 = vmax.f32 %v4043, 0.0
    %v4076 = vmax.f32 %v4044, 0.0
    %v4077 = vmax.f32 %v4045, 0.0
    %v4078 = vmax.f32 %v4046, 0.0
    %v4079 = vmax.f32 %v4047, 0.0
    %v4080 = vmax.f32 %v4048, 0.0
    %v4081 = vmax.f32 %v4049, 0.0
    %v4082 = vmax.f32 %v4050, 0.0
    %v4083 = vmax.f32 %v4051, 0.0
    %v4084 = vmax.f32 %v4052, 0.0
    %v4085 = vmax.f32 %v4053, 0.0
    %v4086 = vmax.f32 %v4054, 0.0
    %v4087 = vmax.f32 %v4055, 0.0
    %v4088 = vmax.f32 %v4056, 0.0
    %v4089 = vmax.f32 %v4057, 0.0
    %v4090 = vmax.f32 %v4058, 0.0
    %v4091 = vmax.f32 %v4059, 0.0
    %v4092 = vmax.f32 %v4060, 0.0
    %v4093 = vmax.f32 %v4061, 0.0
    %v4094 = vmax.f32 %v4062, 0.0
    %v4095 = vmax.f32 %v4063, 0.0
    %v4096 = vmax.f32 %v4064, 0.0
    %v4097 = vmax.f32 %v4065, 0.0
    %v4098 = vmax.f32 %v4066, 0.0
    %v4099 = vmax.f32 %v4067, 0.0
    %v4100 = vmax.f32 %v4068, 0.0
    %v4101 = vmax.f32 %v4069, 0.0
    %v4102 = vmax.f32 %v4070, 0.0
    %s4103 = smul.u32 4, 32
    %s4104 = smul.u32 %s4103, 4
    %s4105 = sshll.u32 %s4104, 4
    %4106 = dma.done [#allocation4], %s4105
    %v4107 = vld [vmem:[#allocation2] sm:$0xff]
    %v4108 = vld [vmem:[#allocation2 + $0x8] sm:$0xff]
    %v4109 = vld [vmem:[#allocation2 + $0x10] sm:$0xff]
    %v4110 = vld [vmem:[#allocation2 + $0x18] sm:$0xff]
    %v4111 = vld [vmem:[#allocation2 + $0x20] sm:$0xff]
    %v4112 = vld [vmem:[#allocation2 + $0x28] sm:$0xff]
    %v4113 = vld [vmem:[#allocation2 + $0x30] sm:$0xff]
    %v4114 = vld [vmem:[#allocation2 + $0x38] sm:$0xff]
    %v4115 = vld [vmem:[#allocation2 + $0x40] sm:$0xff]
    %v4116 = vld [vmem:[#allocation2 + $0x48] sm:$0xff]
    %v4117 = vld [vmem:[#allocation2 + $0x50] sm:$0xff]
    %v4118 = vld [vmem:[#allocation2 + $0x58] sm:$0xff]
    %v4119 = vld [vmem:[#allocation2 + $0x60] sm:$0xff]
    %v4120 = vld [vmem:[#allocation2 + $0x68] sm:$0xff]
    %v4121 = vld [vmem:[#allocation2 + $0x70] sm:$0xff]
    %v4122 = vld [vmem:[#allocation2 + $0x78] sm:$0xff]
    %v4123 = vld [vmem:[#allocation2 + $0x80] sm:$0xff]
    %v4124 = vld [vmem:[#allocation2 + $0x88] sm:$0xff]
    %v4125 = vld [vmem:[#allocation2 + $0x90] sm:$0xff]
    %v4126 = vld [vmem:[#allocation2 + $0x98] sm:$0xff]
    %v4127 = vld [vmem:[#allocation2 + $0xa0] sm:$0xff]
    %v4128 = vld [vmem:[#allocation2 + $0xa8] sm:$0xff]
    %v4129 = vld [vmem:[#allocation2 + $0xb0] sm:$0xff]
    %v4130 = vld [vmem:[#allocation2 + $0xb8] sm:$0xff]
    %v4131 = vld [vmem:[#allocation2 + $0xc0] sm:$0xff]
    %v4132 = vld [vmem:[#allocation2 + $0xc8] sm:$0xff]
    %v4133 = vld [vmem:[#allocation2 + $0xd0] sm:$0xff]
    %v4134 = vld [vmem:[#allocation2 + $0xd8] sm:$0xff]
    %v4135 = vld [vmem:[#allocation2 + $0xe0] sm:$0xff]
    %v4136 = vld [vmem:[#allocation2 + $0xe8] sm:$0xff]
    %v4137 = vld [vmem:[#allocation2 + $0xf0] sm:$0xff]
    %v4138 = vld [vmem:[#allocation2 + $0xf8] sm:$0xff]
    %v4139 = vld [vmem:[#allocation2 + $0x100] sm:$0xff]
    %v4140 = vld [vmem:[#allocation2 + $0x108] sm:$0xff]
    %v4141 = vld [vmem:[#allocation2 + $0x110] sm:$0xff]
    %v4142 = vld [vmem:[#allocation2 + $0x118] sm:$0xff]
    %v4143 = vld [vmem:[#allocation2 + $0x120] sm:$0xff]
    %v4144 = vld [vmem:[#allocation2 + $0x128] sm:$0xff]
    %v4145 = vld [vmem:[#allocation2 + $0x130] sm:$0xff]
    %v4146 = vld [vmem:[#allocation2 + $0x138] sm:$0xff]
    %v4147 = vld [vmem:[#allocation2 + $0x140] sm:$0xff]
    %v4148 = vld [vmem:[#allocation2 + $0x148] sm:$0xff]
    %v4149 = vld [vmem:[#allocation2 + $0x150] sm:$0xff]
    %v4150 = vld [vmem:[#allocation2 + $0x158] sm:$0xff]
    %v4151 = vld [vmem:[#allocation2 + $0x160] sm:$0xff]
    %v4152 = vld [vmem:[#allocation2 + $0x168] sm:$0xff]
    %v4153 = vld [vmem:[#allocation2 + $0x170] sm:$0xff]
    %v4154 = vld [vmem:[#allocation2 + $0x178] sm:$0xff]
    %v4155 = vld [vmem:[#allocation2 + $0x180] sm:$0xff]
    %v4156 = vld [vmem:[#allocation2 + $0x188] sm:$0xff]
    %v4157 = vld [vmem:[#allocation2 + $0x190] sm:$0xff]
    %v4158 = vld [vmem:[#allocation2 + $0x198] sm:$0xff]
    %v4159 = vld [vmem:[#allocation2 + $0x1a0] sm:$0xff]
    %v4160 = vld [vmem:[#allocation2 + $0x1a8] sm:$0xff]
    %v4161 = vld [vmem:[#allocation2 + $0x1b0] sm:$0xff]
    %v4162 = vld [vmem:[#allocation2 + $0x1b8] sm:$0xff]
    %v4163 = vld [vmem:[#allocation2 + $0x1c0] sm:$0xff]
    %v4164 = vld [vmem:[#allocation2 + $0x1c8] sm:$0xff]
    %v4165 = vld [vmem:[#allocation2 + $0x1d0] sm:$0xff]
    %v4166 = vld [vmem:[#allocation2 + $0x1d8] sm:$0xff]
    %v4167 = vld [vmem:[#allocation2 + $0x1e0] sm:$0xff]
    %v4168 = vld [vmem:[#allocation2 + $0x1e8] sm:$0xff]
    %v4169 = vld [vmem:[#allocation2 + $0x1f0] sm:$0xff]
    %v4170 = vld [vmem:[#allocation2 + $0x1f8] sm:$0xff]
    %v4171 = vunpack.c.l.bf16 %v4107
    %v4172 = vunpack.c.l.bf16 %v4108
    %v4173 = vunpack.c.l.bf16 %v4109
    %v4174 = vunpack.c.l.bf16 %v4110
    %v4175 = vunpack.c.h.bf16 %v4107
    %v4176 = vunpack.c.h.bf16 %v4108
    %v4177 = vunpack.c.h.bf16 %v4109
    %v4178 = vunpack.c.h.bf16 %v4110
    %v4179 = vunpack.c.l.bf16 %v4111
    %v4180 = vunpack.c.l.bf16 %v4112
    %v4181 = vunpack.c.l.bf16 %v4113
    %v4182 = vunpack.c.l.bf16 %v4114
    %v4183 = vunpack.c.h.bf16 %v4111
    %v4184 = vunpack.c.h.bf16 %v4112
    %v4185 = vunpack.c.h.bf16 %v4113
    %v4186 = vunpack.c.h.bf16 %v4114
    %v4187 = vunpack.c.l.bf16 %v4115
    %v4188 = vunpack.c.l.bf16 %v4116
    %v4189 = vunpack.c.l.bf16 %v4117
    %v4190 = vunpack.c.l.bf16 %v4118
    %v4191 = vunpack.c.h.bf16 %v4115
    %v4192 = vunpack.c.h.bf16 %v4116
    %v4193 = vunpack.c.h.bf16 %v4117
    %v4194 = vunpack.c.h.bf16 %v4118
    %v4195 = vunpack.c.l.bf16 %v4119
    %v4196 = vunpack.c.l.bf16 %v4120
    %v4197 = vunpack.c.l.bf16 %v4121
    %v4198 = vunpack.c.l.bf16 %v4122
    %v4199 = vunpack.c.h.bf16 %v4119
    %v4200 = vunpack.c.h.bf16 %v4120
    %v4201 = vunpack.c.h.bf16 %v4121
    %v4202 = vunpack.c.h.bf16 %v4122
    %v4203 = vunpack.c.l.bf16 %v4123
    %v4204 = vunpack.c.l.bf16 %v4124
    %v4205 = vunpack.c.l.bf16 %v4125
    %v4206 = vunpack.c.l.bf16 %v4126
    %v4207 = vunpack.c.h.bf16 %v4123
    %v4208 = vunpack.c.h.bf16 %v4124
    %v4209 = vunpack.c.h.bf16 %v4125
    %v4210 = vunpack.c.h.bf16 %v4126
    %v4211 = vunpack.c.l.bf16 %v4127
    %v4212 = vunpack.c.l.bf16 %v4128
    %v4213 = vunpack.c.l.bf16 %v4129
    %v4214 = vunpack.c.l.bf16 %v4130
    %v4215 = vunpack.c.h.bf16 %v4127
    %v4216 = vunpack.c.h.bf16 %v4128
    %v4217 = vunpack.c.h.bf16 %v4129
    %v4218 = vunpack.c.h.bf16 %v4130
    %v4219 = vunpack.c.l.bf16 %v4131
    %v4220 = vunpack.c.l.bf16 %v4132
    %v4221 = vunpack.c.l.bf16 %v4133
    %v4222 = vunpack.c.l.bf16 %v4134
    %v4223 = vunpack.c.h.bf16 %v4131
    %v4224 = vunpack.c.h.bf16 %v4132
    %v4225 = vunpack.c.h.bf16 %v4133
    %v4226 = vunpack.c.h.bf16 %v4134
    %v4227 = vunpack.c.l.bf16 %v4135
    %v4228 = vunpack.c.l.bf16 %v4136
    %v4229 = vunpack.c.l.bf16 %v4137
    %v4230 = vunpack.c.l.bf16 %v4138
    %v4231 = vunpack.c.h.bf16 %v4135
    %v4232 = vunpack.c.h.bf16 %v4136
    %v4233 = vunpack.c.h.bf16 %v4137
    %v4234 = vunpack.c.h.bf16 %v4138
    %v4235 = vunpack.c.l.bf16 %v4139
    %v4236 = vunpack.c.l.bf16 %v4140
    %v4237 = vunpack.c.l.bf16 %v4141
    %v4238 = vunpack.c.l.bf16 %v4142
    %v4239 = vunpack.c.h.bf16 %v4139
    %v4240 = vunpack.c.h.bf16 %v4140
    %v4241 = vunpack.c.h.bf16 %v4141
    %v4242 = vunpack.c.h.bf16 %v4142
    %v4243 = vunpack.c.l.bf16 %v4143
    %v4244 = vunpack.c.l.bf16 %v4144
    %v4245 = vunpack.c.l.bf16 %v4145
    %v4246 = vunpack.c.l.bf16 %v4146
    %v4247 = vunpack.c.h.bf16 %v4143
    %v4248 = vunpack.c.h.bf16 %v4144
    %v4249 = vunpack.c.h.bf16 %v4145
    %v4250 = vunpack.c.h.bf16 %v4146
    %v4251 = vunpack.c.l.bf16 %v4147
    %v4252 = vunpack.c.l.bf16 %v4148
    %v4253 = vunpack.c.l.bf16 %v4149
    %v4254 = vunpack.c.l.bf16 %v4150
    %v4255 = vunpack.c.h.bf16 %v4147
    %v4256 = vunpack.c.h.bf16 %v4148
    %v4257 = vunpack.c.h.bf16 %v4149
    %v4258 = vunpack.c.h.bf16 %v4150
    %v4259 = vunpack.c.l.bf16 %v4151
    %v4260 = vunpack.c.l.bf16 %v4152
    %v4261 = vunpack.c.l.bf16 %v4153
    %v4262 = vunpack.c.l.bf16 %v4154
    %v4263 = vunpack.c.h.bf16 %v4151
    %v4264 = vunpack.c.h.bf16 %v4152
    %v4265 = vunpack.c.h.bf16 %v4153
    %v4266 = vunpack.c.h.bf16 %v4154
    %v4267 = vunpack.c.l.bf16 %v4155
    %v4268 = vunpack.c.l.bf16 %v4156
    %v4269 = vunpack.c.l.bf16 %v4157
    %v4270 = vunpack.c.l.bf16 %v4158
    %v4271 = vunpack.c.h.bf16 %v4155
    %v4272 = vunpack.c.h.bf16 %v4156
    %v4273 = vunpack.c.h.bf16 %v4157
    %v4274 = vunpack.c.h.bf16 %v4158
    %v4275 = vunpack.c.l.bf16 %v4159
    %v4276 = vunpack.c.l.bf16 %v4160
    %v4277 = vunpack.c.l.bf16 %v4161
    %v4278 = vunpack.c.l.bf16 %v4162
    %v4279 = vunpack.c.h.bf16 %v4159
    %v4280 = vunpack.c.h.bf16 %v4160
    %v4281 = vunpack.c.h.bf16 %v4161
    %v4282 = vunpack.c.h.bf16 %v4162
    %v4283 = vunpack.c.l.bf16 %v4163
    %v4284 = vunpack.c.l.bf16 %v4164
    %v4285 = vunpack.c.l.bf16 %v4165
    %v4286 = vunpack.c.l.bf16 %v4166
    %v4287 = vunpack.c.h.bf16 %v4163
    %v4288 = vunpack.c.h.bf16 %v4164
    %v4289 = vunpack.c.h.bf16 %v4165
    %v4290 = vunpack.c.h.bf16 %v4166
    %v4291 = vunpack.c.l.bf16 %v4167
    %v4292 = vunpack.c.l.bf16 %v4168
    %v4293 = vunpack.c.l.bf16 %v4169
    %v4294 = vunpack.c.l.bf16 %v4170
    %v4295 = vunpack.c.h.bf16 %v4167
    %v4296 = vunpack.c.h.bf16 %v4168
    %v4297 = vunpack.c.h.bf16 %v4169
    %v4298 = vunpack.c.h.bf16 %v4170
    %v4299 = vld [vmem:[%s15] sm:$0xff]
    %v4300 = vld [vmem:[%s15 + $0x8] sm:$0xff]
    %v4301 = vld [vmem:[%s15 + $0x10] sm:$0xff]
    %v4302 = vld [vmem:[%s15 + $0x18] sm:$0xff]
    %v4303 = vld [vmem:[%s15 + $0x20] sm:$0xff]
    %v4304 = vld [vmem:[%s15 + $0x28] sm:$0xff]
    %v4305 = vld [vmem:[%s15 + $0x30] sm:$0xff]
    %v4306 = vld [vmem:[%s15 + $0x38] sm:$0xff]
    %v4307 = vld [vmem:[%s15 + $0x40] sm:$0xff]
    %v4308 = vld [vmem:[%s15 + $0x48] sm:$0xff]
    %v4309 = vld [vmem:[%s15 + $0x50] sm:$0xff]
    %v4310 = vld [vmem:[%s15 + $0x58] sm:$0xff]
    %v4311 = vld [vmem:[%s15 + $0x60] sm:$0xff]
    %v4312 = vld [vmem:[%s15 + $0x68] sm:$0xff]
    %v4313 = vld [vmem:[%s15 + $0x70] sm:$0xff]
    %v4314 = vld [vmem:[%s15 + $0x78] sm:$0xff]
    %v4315 = vld [vmem:[%s15 + $0x80] sm:$0xff]
    %v4316 = vld [vmem:[%s15 + $0x88] sm:$0xff]
    %v4317 = vld [vmem:[%s15 + $0x90] sm:$0xff]
    %v4318 = vld [vmem:[%s15 + $0x98] sm:$0xff]
    %v4319 = vld [vmem:[%s15 + $0xa0] sm:$0xff]
    %v4320 = vld [vmem:[%s15 + $0xa8] sm:$0xff]
    %v4321 = vld [vmem:[%s15 + $0xb0] sm:$0xff]
    %v4322 = vld [vmem:[%s15 + $0xb8] sm:$0xff]
    %v4323 = vld [vmem:[%s15 + $0xc0] sm:$0xff]
    %v4324 = vld [vmem:[%s15 + $0xc8] sm:$0xff]
    %v4325 = vld [vmem:[%s15 + $0xd0] sm:$0xff]
    %v4326 = vld [vmem:[%s15 + $0xd8] sm:$0xff]
    %v4327 = vld [vmem:[%s15 + $0xe0] sm:$0xff]
    %v4328 = vld [vmem:[%s15 + $0xe8] sm:$0xff]
    %v4329 = vld [vmem:[%s15 + $0xf0] sm:$0xff]
    %v4330 = vld [vmem:[%s15 + $0xf8] sm:$0xff]
    %v4331 = vld [vmem:[%s15 + $0x100] sm:$0xff]
    %v4332 = vld [vmem:[%s15 + $0x108] sm:$0xff]
    %v4333 = vld [vmem:[%s15 + $0x110] sm:$0xff]
    %v4334 = vld [vmem:[%s15 + $0x118] sm:$0xff]
    %v4335 = vld [vmem:[%s15 + $0x120] sm:$0xff]
    %v4336 = vld [vmem:[%s15 + $0x128] sm:$0xff]
    %v4337 = vld [vmem:[%s15 + $0x130] sm:$0xff]
    %v4338 = vld [vmem:[%s15 + $0x138] sm:$0xff]
    %v4339 = vld [vmem:[%s15 + $0x140] sm:$0xff]
    %v4340 = vld [vmem:[%s15 + $0x148] sm:$0xff]
    %v4341 = vld [vmem:[%s15 + $0x150] sm:$0xff]
    %v4342 = vld [vmem:[%s15 + $0x158] sm:$0xff]
    %v4343 = vld [vmem:[%s15 + $0x160] sm:$0xff]
    %v4344 = vld [vmem:[%s15 + $0x168] sm:$0xff]
    %v4345 = vld [vmem:[%s15 + $0x170] sm:$0xff]
    %v4346 = vld [vmem:[%s15 + $0x178] sm:$0xff]
    %v4347 = vld [vmem:[%s15 + $0x180] sm:$0xff]
    %v4348 = vld [vmem:[%s15 + $0x188] sm:$0xff]
    %v4349 = vld [vmem:[%s15 + $0x190] sm:$0xff]
    %v4350 = vld [vmem:[%s15 + $0x198] sm:$0xff]
    %v4351 = vld [vmem:[%s15 + $0x1a0] sm:$0xff]
    %v4352 = vld [vmem:[%s15 + $0x1a8] sm:$0xff]
    %v4353 = vld [vmem:[%s15 + $0x1b0] sm:$0xff]
    %v4354 = vld [vmem:[%s15 + $0x1b8] sm:$0xff]
    %v4355 = vld [vmem:[%s15 + $0x1c0] sm:$0xff]
    %v4356 = vld [vmem:[%s15 + $0x1c8] sm:$0xff]
    %v4357 = vld [vmem:[%s15 + $0x1d0] sm:$0xff]
    %v4358 = vld [vmem:[%s15 + $0x1d8] sm:$0xff]
    %v4359 = vld [vmem:[%s15 + $0x1e0] sm:$0xff]
    %v4360 = vld [vmem:[%s15 + $0x1e8] sm:$0xff]
    %v4361 = vld [vmem:[%s15 + $0x1f0] sm:$0xff]
    %v4362 = vld [vmem:[%s15 + $0x1f8] sm:$0xff]
    %v4363 = vld [vmem:[#allocation24] sm:$0xff]
    %v4364 = vld [vmem:[#allocation24 + $0x8] sm:$0xff]
    %v4365 = vld [vmem:[#allocation24 + $0x10] sm:$0xff]
    %v4366 = vld [vmem:[#allocation24 + $0x18] sm:$0xff]
    %v4367 = vld [vmem:[#allocation25] sm:$0x1]
    %v4368 = vld [vmem:[#allocation27] sm:$0x1]
    %4369 = vmatprep.subr.mxu0 %v4172
    %4370 = vmatpush1.msra.mxu0 %v4171
    %4371 = vmatprep.subr.mxu0 %v4176
    %4372 = vmatpush1.msra.mxu0 %v4175
    %4373 = vmatprep.subr.mxu0 %v4180
    %4374 = vmatpush1.msra.mxu0 %v4179
    %4375 = vmatprep.subr.mxu0 %v4184
    %4376 = vmatpush1.msra.mxu0 %v4183
    %4377 = vmatprep.subr.mxu0 %v4188
    %4378 = vmatpush1.msra.mxu0 %v4187
    %4379 = vmatprep.subr.mxu0 %v4192
    %4380 = vmatpush1.msra.mxu0 %v4191
    %4381 = vmatprep.subr.mxu0 %v4196
    %4382 = vmatpush1.msra.mxu0 %v4195
    %4383 = vmatprep.subr.mxu0 %v4200
    %4384 = vmatpush1.msra.mxu0 %v4199
    %4385 = vmatprep.subr.mxu0 %v4204
    %4386 = vmatpush1.msra.mxu0 %v4203
    %4387 = vmatprep.subr.mxu0 %v4208
    %4388 = vmatpush1.msra.mxu0 %v4207
    %4389 = vmatprep.subr.mxu0 %v4212
    %4390 = vmatpush1.msra.mxu0 %v4211
    %4391 = vmatprep.subr.mxu0 %v4216
    %4392 = vmatpush1.msra.mxu0 %v4215
    %4393 = vmatprep.subr.mxu0 %v4220
    %4394 = vmatpush1.msra.mxu0 %v4219
    %4395 = vmatprep.subr.mxu0 %v4224
    %4396 = vmatpush1.msra.mxu0 %v4223
    %4397 = vmatprep.subr.mxu0 %v4228
    %4398 = vmatpush1.msra.mxu0 %v4227
    %4399 = vmatprep.subr.mxu0 %v4232
    %4400 = vmatpush1.msra.mxu0 %v4231
    %4401 = vmatprep.subr.mxu0 %v4236
    %4402 = vmatpush1.msra.mxu0 %v4235
    %4403 = vmatprep.subr.mxu0 %v4240
    %4404 = vmatpush1.msra.mxu0 %v4239
    %4405 = vmatprep.subr.mxu0 %v4244
    %4406 = vmatpush1.msra.mxu0 %v4243
    %4407 = vmatprep.subr.mxu0 %v4248
    %4408 = vmatpush1.msra.mxu0 %v4247
    %4409 = vmatprep.subr.mxu0 %v4252
    %4410 = vmatpush1.msra.mxu0 %v4251
    %4411 = vmatprep.subr.mxu0 %v4256
    %4412 = vmatpush1.msra.mxu0 %v4255
    %4413 = vmatprep.subr.mxu0 %v4260
    %4414 = vmatpush1.msra.mxu0 %v4259
    %4415 = vmatprep.subr.mxu0 %v4264
    %4416 = vmatpush1.msra.mxu0 %v4263
    %4417 = vmatprep.subr.mxu0 %v4268
    %4418 = vmatpush1.msra.mxu0 %v4267
    %4419 = vmatprep.subr.mxu0 %v4272
    %4420 = vmatpush1.msra.mxu0 %v4271
    %4421 = vmatprep.subr.mxu0 %v4276
    %4422 = vmatpush1.msra.mxu0 %v4275
    %4423 = vmatprep.subr.mxu0 %v4280
    %4424 = vmatpush1.msra.mxu0 %v4279
    %4425 = vmatprep.subr.mxu0 %v4284
    %4426 = vmatpush1.msra.mxu0 %v4283
    %4427 = vmatprep.subr.mxu0 %v4288
    %4428 = vmatpush1.msra.mxu0 %v4287
    %4429 = vmatprep.subr.mxu0 %v4292
    %4430 = vmatpush1.msra.mxu0 %v4291
    %4431 = vmatprep.subr.mxu0 %v4296
    %4432 = vmatpush1.msra.mxu0 %v4295
    %4433 = vmatprep.mubr.f32.mxu0 %v4072
    %4434 = vmatmul.mubr.f32.gmra.mrb[0].mxu0 %v4071
    %v4435 = vpop.f32.mrb[0].mxu0
    %v4436 = vadd.f32 0.0, %v4435
    %v4437 = vpop.f32.mrb[0].mxu0
    %v4438 = vadd.f32 0.0, %v4437
    %4439 = vmatprep.mubr.f32.mxu0 %v4074
    %4440 = vmatmul.mubr.f32.gmra.mrb[0].mxu0 %v4073
    %v4441 = vpop.f32.mrb[0].mxu0
    %v4442 = vadd.f32 0.0, %v4441
    %v4443 = vpop.f32.mrb[0].mxu0
    %v4444 = vadd.f32 0.0, %v4443
    %4445 = vmatprep.mubr.f32.mxu0 %v4076
    %4446 = vmatmul.mubr.f32.gmra.mrb[0].mxu0 %v4075
    %v4447 = vpop.f32.mrb[0].mxu0
    %v4448 = vadd.f32 0.0, %v4447
    %v4449 = vpop.f32.mrb[0].mxu0
    %v4450 = vadd.f32 0.0, %v4449
    %4451 = vmatprep.mubr.f32.mxu0 %v4078
    %4452 = vmatmul.mubr.f32.gmra.mrb[0].mxu0 %v4077
    %v4453 = vpop.f32.mrb[0].mxu0
    %v4454 = vadd.f32 0.0, %v4453
    %v4455 = vpop.f32.mrb[0].mxu0
    %v4456 = vadd.f32 0.0, %v4455
    %4457 = vmatprep.mubr.f32.mxu0 %v4080
    %4458 = vmatmul.mubr.f32.gmra.mrb[0].mxu0 %v4079
    %v4459 = vpop.f32.mrb[0].mxu0
    %v4460 = vadd.f32 0.0, %v4459
    %v4461 = vpop.f32.mrb[0].mxu0
    %v4462 = vadd.f32 0.0, %v4461
    %4463 = vmatprep.mubr.f32.mxu0 %v4082
    %4464 = vmatmul.mubr.f32.gmra.mrb[0].mxu0 %v4081
    %v4465 = vpop.f32.mrb[0].mxu0
    %v4466 = vadd.f32 0.0, %v4465
    %v4467 = vpop.f32.mrb[0].mxu0
    %v4468 = vadd.f32 0.0, %v4467
    %4469 = vmatprep.mubr.f32.mxu0 %v4084
    %4470 = vmatmul.mubr.f32.gmra.mrb[0].mxu0 %v4083
    %v4471 = vpop.f32.mrb[0].mxu0
    %v4472 = vadd.f32 0.0, %v4471
    %v4473 = vpop.f32.mrb[0].mxu0
    %v4474 = vadd.f32 0.0, %v4473
    %4475 = vmatprep.mubr.f32.mxu0 %v4086
    %4476 = vmatmul.mubr.f32.gmra.mrb[0].mxu0 %v4085
    %v4477 = vpop.f32.mrb[0].mxu0
    %v4478 = vadd.f32 0.0, %v4477
    %v4479 = vpop.f32.mrb[0].mxu0
    %v4480 = vadd.f32 0.0, %v4479
    %4481 = vmatprep.mubr.f32.mxu0 %v4088
    %4482 = vmatmul.mubr.f32.gmra.mrb[0].mxu0 %v4087
    %v4483 = vpop.f32.mrb[0].mxu0
    %v4484 = vadd.f32 0.0, %v4483
    %v4485 = vpop.f32.mrb[0].mxu0
    %v4486 = vadd.f32 0.0, %v4485
    %4487 = vmatprep.mubr.f32.mxu0 %v4090
    %4488 = vmatmul.mubr.f32.gmra.mrb[0].mxu0 %v4089
    %v4489 = vpop.f32.mrb[0].mxu0
    %v4490 = vadd.f32 0.0, %v4489
    %v4491 = vpop.f32.mrb[0].mxu0
    %v4492 = vadd.f32 0.0, %v4491
    %4493 = vmatprep.mubr.f32.mxu0 %v4092
    %4494 = vmatmul.mubr.f32.gmra.mrb[0].mxu0 %v4091
    %v4495 = vpop.f32.mrb[0].mxu0
    %v4496 = vadd.f32 0.0, %v4495
    %v4497 = vpop.f32.mrb[0].mxu0
    %v4498 = vadd.f32 0.0, %v4497
    %4499 = vmatprep.mubr.f32.mxu0 %v4094
    %4500 = vmatmul.mubr.f32.gmra.mrb[0].mxu0 %v4093
    %v4501 = vpop.f32.mrb[0].mxu0
    %v4502 = vadd.f32 0.0, %v4501
    %v4503 = vpop.f32.mrb[0].mxu0
    %v4504 = vadd.f32 0.0, %v4503
    %4505 = vmatprep.mubr.f32.mxu0 %v4096
    %4506 = vmatmul.mubr.f32.gmra.mrb[0].mxu0 %v4095
    %v4507 = vpop.f32.mrb[0].mxu0
    %v4508 = vadd.f32 0.0, %v4507
    %v4509 = vpop.f32.mrb[0].mxu0
    %v4510 = vadd.f32 0.0, %v4509
    %4511 = vmatprep.mubr.f32.mxu0 %v4098
    %4512 = vmatmul.mubr.f32.gmra.mrb[0].mxu0 %v4097
    %v4513 = vpop.f32.mrb[0].mxu0
    %v4514 = vadd.f32 0.0, %v4513
    %v4515 = vpop.f32.mrb[0].mxu0
    %v4516 = vadd.f32 0.0, %v4515
    %4517 = vmatprep.mubr.f32.mxu0 %v4100
    %4518 = vmatmul.mubr.f32.gmra.mrb[0].mxu0 %v4099
    %v4519 = vpop.f32.mrb[0].mxu0
    %v4520 = vadd.f32 0.0, %v4519
    %v4521 = vpop.f32.mrb[0].mxu0
    %v4522 = vadd.f32 0.0, %v4521
    %4523 = vmatprep.mubr.f32.mxu0 %v4102
    %4524 = vmatmul.mubr.f32.gmra.mrb[0].mxu0 %v4101
    %v4525 = vpop.f32.mrb[0].mxu0
    %v4526 = vadd.f32 0.0, %v4525
    %v4527 = vpop.f32.mrb[0].mxu0
    %v4528 = vadd.f32 0.0, %v4527
    %4529 = vdwg.mxu0
    %4530 = vmatprep.subr.mxu0 %v4174
    %4531 = vmatpush1.msra.mxu0 %v4173
    %4532 = vmatprep.subr.mxu0 %v4178
    %4533 = vmatpush1.msra.mxu0 %v4177
    %4534 = vmatprep.subr.mxu0 %v4182
    %4535 = vmatpush1.msra.mxu0 %v4181
    %4536 = vmatprep.subr.mxu0 %v4186
    %4537 = vmatpush1.msra.mxu0 %v4185
    %4538 = vmatprep.subr.mxu0 %v4190
    %4539 = vmatpush1.msra.mxu0 %v4189
    %4540 = vmatprep.subr.mxu0 %v4194
    %4541 = vmatpush1.msra.mxu0 %v4193
    %4542 = vmatprep.subr.mxu0 %v4198
    %4543 = vmatpush1.msra.mxu0 %v4197
    %4544 = vmatprep.subr.mxu0 %v4202
    %4545 = vmatpush1.msra.mxu0 %v4201
    %4546 = vmatprep.subr.mxu0 %v4206
    %4547 = vmatpush1.msra.mxu0 %v4205
    %4548 = vmatprep.subr.mxu0 %v4210
    %4549 = vmatpush1.msra.mxu0 %v4209
    %4550 = vmatprep.subr.mxu0 %v4214
    %4551 = vmatpush1.msra.mxu0 %v4213
    %4552 = vmatprep.subr.mxu0 %v4218
    %4553 = vmatpush1.msra.mxu0 %v4217
    %4554 = vmatprep.subr.mxu0 %v4222
    %4555 = vmatpush1.msra.mxu0 %v4221
    %4556 = vmatprep.subr.mxu0 %v4226
    %4557 = vmatpush1.msra.mxu0 %v4225
    %4558 = vmatprep.subr.mxu0 %v4230
    %4559 = vmatpush1.msra.mxu0 %v4229
    %4560 = vmatprep.subr.mxu0 %v4234
    %4561 = vmatpush1.msra.mxu0 %v4233
    %4562 = vmatprep.subr.mxu0 %v4238
    %4563 = vmatpush1.msra.mxu0 %v4237
    %4564 = vmatprep.subr.mxu0 %v4242
    %4565 = vmatpush1.msra.mxu0 %v4241
    %4566 = vmatprep.subr.mxu0 %v4246
    %4567 = vmatpush1.msra.mxu0 %v4245
    %4568 = vmatprep.subr.mxu0 %v4250
    %4569 = vmatpush1.msra.mxu0 %v4249
    %4570 = vmatprep.subr.mxu0 %v4254
    %4571 = vmatpush1.msra.mxu0 %v4253
    %4572 = vmatprep.subr.mxu0 %v4258
    %4573 = vmatpush1.msra.mxu0 %v4257
    %4574 = vmatprep.subr.mxu0 %v4262
    %4575 = vmatpush1.msra.mxu0 %v4261
    %4576 = vmatprep.subr.mxu0 %v4266
    %4577 = vmatpush1.msra.mxu0 %v4265
    %4578 = vmatprep.subr.mxu0 %v4270
    %4579 = vmatpush1.msra.mxu0 %v4269
    %4580 = vmatprep.subr.mxu0 %v4274
    %4581 = vmatpush1.msra.mxu0 %v4273
    %4582 = vmatprep.subr.mxu0 %v4278
    %4583 = vmatpush1.msra.mxu0 %v4277
    %4584 = vmatprep.subr.mxu0 %v4282
    %4585 = vmatpush1.msra.mxu0 %v4281
    %4586 = vmatprep.subr.mxu0 %v4286
    %4587 = vmatpush1.msra.mxu0 %v4285
    %4588 = vmatprep.subr.mxu0 %v4290
    %4589 = vmatpush1.msra.mxu0 %v4289
    %4590 = vmatprep.subr.mxu0 %v4294
    %4591 = vmatpush1.msra.mxu0 %v4293
    %4592 = vmatprep.subr.mxu0 %v4298
    %4593 = vmatpush1.msra.mxu0 %v4297
    %4594 = vmatprep.mubr.f32.mxu0 %v4072
    %4595 = vmatmul.mubr.f32.gmra.mrb[0].mxu0 %v4071
    %v4596 = vpop.f32.mrb[0].mxu0
    %v4597 = vadd.f32 0.0, %v4596
    %v4598 = vpop.f32.mrb[0].mxu0
    %v4599 = vadd.f32 0.0, %v4598
    %4600 = vmatprep.mubr.f32.mxu0 %v4074
    %4601 = vmatmul.mubr.f32.gmra.mrb[0].mxu0 %v4073
    %v4602 = vpop.f32.mrb[0].mxu0
    %v4603 = vadd.f32 0.0, %v4602
    %v4604 = vpop.f32.mrb[0].mxu0
    %v4605 = vadd.f32 0.0, %v4604
    %4606 = vmatprep.mubr.f32.mxu0 %v4076
    %4607 = vmatmul.mubr.f32.gmra.mrb[0].mxu0 %v4075
    %v4608 = vpop.f32.mrb[0].mxu0
    %v4609 = vadd.f32 0.0, %v4608
    %v4610 = vpop.f32.mrb[0].mxu0
    %v4611 = vadd.f32 0.0, %v4610
    %4612 = vmatprep.mubr.f32.mxu0 %v4078
    %4613 = vmatmul.mubr.f32.gmra.mrb[0].mxu0 %v4077
    %v4614 = vpop.f32.mrb[0].mxu0
    %v4615 = vadd.f32 0.0, %v4614
    %v4616 = vpop.f32.mrb[0].mxu0
    %v4617 = vadd.f32 0.0, %v4616
    %4618 = vmatprep.mubr.f32.mxu0 %v4080
    %4619 = vmatmul.mubr.f32.gmra.mrb[0].mxu0 %v4079
    %v4620 = vpop.f32.mrb[0].mxu0
    %v4621 = vadd.f32 0.0, %v4620
    %v4622 = vpop.f32.mrb[0].mxu0
    %v4623 = vadd.f32 0.0, %v4622
    %4624 = vmatprep.mubr.f32.mxu0 %v4082
    %4625 = vmatmul.mubr.f32.gmra.mrb[0].mxu0 %v4081
    %v4626 = vpop.f32.mrb[0].mxu0
    %v4627 = vadd.f32 0.0, %v4626
    %v4628 = vpop.f32.mrb[0].mxu0
    %v4629 = vadd.f32 0.0, %v4628
    %4630 = vmatprep.mubr.f32.mxu0 %v4084
    %4631 = vmatmul.mubr.f32.gmra.mrb[0].mxu0 %v4083
    %v4632 = vpop.f32.mrb[0].mxu0
    %v4633 = vadd.f32 0.0, %v4632
    %v4634 = vpop.f32.mrb[0].mxu0
    %v4635 = vadd.f32 0.0, %v4634
    %4636 = vmatprep.mubr.f32.mxu0 %v4086
    %4637 = vmatmul.mubr.f32.gmra.mrb[0].mxu0 %v4085
    %v4638 = vpop.f32.mrb[0].mxu0
    %v4639 = vadd.f32 0.0, %v4638
    %v4640 = vpop.f32.mrb[0].mxu0
    %v4641 = vadd.f32 0.0, %v4640
    %4642 = vmatprep.mubr.f32.mxu0 %v4088
    %4643 = vmatmul.mubr.f32.gmra.mrb[0].mxu0 %v4087
    %v4644 = vpop.f32.mrb[0].mxu0
    %v4645 = vadd.f32 0.0, %v4644
    %v4646 = vpop.f32.mrb[0].mxu0
    %v4647 = vadd.f32 0.0, %v4646
    %4648 = vmatprep.mubr.f32.mxu0 %v4090
    %4649 = vmatmul.mubr.f32.gmra.mrb[0].mxu0 %v4089
    %v4650 = vpop.f32.mrb[0].mxu0
    %v4651 = vadd.f32 0.0, %v4650
    %v4652 = vpop.f32.mrb[0].mxu0
    %v4653 = vadd.f32 0.0, %v4652
    %4654 = vmatprep.mubr.f32.mxu0 %v4092
    %4655 = vmatmul.mubr.f32.gmra.mrb[0].mxu0 %v4091
    %v4656 = vpop.f32.mrb[0].mxu0
    %v4657 = vadd.f32 0.0, %v4656
    %v4658 = vpop.f32.mrb[0].mxu0
    %v4659 = vadd.f32 0.0, %v4658
    %4660 = vmatprep.mubr.f32.mxu0 %v4094
    %4661 = vmatmul.mubr.f32.gmra.mrb[0].mxu0 %v4093
    %v4662 = vpop.f32.mrb[0].mxu0
    %v4663 = vadd.f32 0.0, %v4662
    %v4664 = vpop.f32.mrb[0].mxu0
    %v4665 = vadd.f32 0.0, %v4664
    %4666 = vmatprep.mubr.f32.mxu0 %v4096
    %4667 = vmatmul.mubr.f32.gmra.mrb[0].mxu0 %v4095
    %v4668 = vpop.f32.mrb[0].mxu0
    %v4669 = vadd.f32 0.0, %v4668
    %v4670 = vpop.f32.mrb[0].mxu0
    %v4671 = vadd.f32 0.0, %v4670
    %4672 = vmatprep.mubr.f32.mxu0 %v4098
    %4673 = vmatmul.mubr.f32.gmra.mrb[0].mxu0 %v4097
    %v4674 = vpop.f32.mrb[0].mxu0
    %v4675 = vadd.f32 0.0, %v4674
    %v4676 = vpop.f32.mrb[0].mxu0
    %v4677 = vadd.f32 0.0, %v4676
    %4678 = vmatprep.mubr.f32.mxu0 %v4100
    %4679 = vmatmul.mubr.f32.gmra.mrb[0].mxu0 %v4099
    %v4680 = vpop.f32.mrb[0].mxu0
    %v4681 = vadd.f32 0.0, %v4680
    %v4682 = vpop.f32.mrb[0].mxu0
    %v4683 = vadd.f32 0.0, %v4682
    %4684 = vmatprep.mubr.f32.mxu0 %v4102
    %4685 = vmatmul.mubr.f32.gmra.mrb[0].mxu0 %v4101
    %v4686 = vpop.f32.mrb[0].mxu0
    %v4687 = vadd.f32 0.0, %v4686
    %v4688 = vpop.f32.mrb[0].mxu0
    %v4689 = vadd.f32 0.0, %v4688
    %4690 = vdwg.mxu0
    %4691 = vmatprep.subr.mxu0 %v4438
    %4692 = vmatpush1.msra.mxu0 %v4436
    %4693 = vmatprep.subr.mxu0 %v4444
    %4694 = vmatpush1.msra.mxu0 %v4442
    %4695 = vmatprep.subr.mxu0 %v4450
    %4696 = vmatpush1.msra.mxu0 %v4448
    %4697 = vmatprep.subr.mxu0 %v4456
    %4698 = vmatpush1.msra.mxu0 %v4454
    %4699 = vmatprep.subr.mxu0 %v4462
    %4700 = vmatpush1.msra.mxu0 %v4460
    %4701 = vmatprep.subr.mxu0 %v4468
    %4702 = vmatpush1.msra.mxu0 %v4466
    %4703 = vmatprep.subr.mxu0 %v4474
    %4704 = vmatpush1.msra.mxu0 %v4472
    %4705 = vmatprep.subr.mxu0 %v4480
    %4706 = vmatpush1.msra.mxu0 %v4478
    %4707 = vmatprep.subr.mxu0 %v4486
    %4708 = vmatpush1.msra.mxu0 %v4484
    %4709 = vmatprep.subr.mxu0 %v4492
    %4710 = vmatpush1.msra.mxu0 %v4490
    %4711 = vmatprep.subr.mxu0 %v4498
    %4712 = vmatpush1.msra.mxu0 %v4496
    %4713 = vmatprep.subr.mxu0 %v4504
    %4714 = vmatpush1.msra.mxu0 %v4502
    %4715 = vmatprep.subr.mxu0 %v4510
    %4716 = vmatpush1.msra.mxu0 %v4508
    %4717 = vmatprep.subr.mxu0 %v4516
    %4718 = vmatpush1.msra.mxu0 %v4514
    %4719 = vmatprep.subr.mxu0 %v4522
    %4720 = vmatpush1.msra.mxu0 %v4520
    %4721 = vmatprep.subr.mxu0 %v4528
    %4722 = vmatpush1.msra.mxu0 %v4526
    %4723 = vmatprep.subr.mxu0 0.0
    %4724 = vmatpush1.msra.mxu0 0.0
    %4725 = vmatprep.subr.mxu0 0.0
    %4726 = vmatpush1.msra.mxu0 0.0
    %4727 = vmatprep.subr.mxu0 0.0
    %4728 = vmatpush1.msra.mxu0 0.0
    %4729 = vmatprep.subr.mxu0 0.0
    %4730 = vmatpush1.msra.mxu0 0.0
    %4731 = vmatprep.subr.mxu0 0.0
    %4732 = vmatpush1.msra.mxu0 0.0
    %4733 = vmatprep.subr.mxu0 0.0
    %4734 = vmatpush1.msra.mxu0 0.0
    %4735 = vmatprep.subr.mxu0 0.0
    %4736 = vmatpush1.msra.mxu0 0.0
    %4737 = vmatprep.subr.mxu0 0.0
    %4738 = vmatpush1.msra.mxu0 0.0
    %4739 = vmatprep.subr.mxu0 0.0
    %4740 = vmatpush1.msra.mxu0 0.0
    %4741 = vmatprep.subr.mxu0 0.0
    %4742 = vmatpush1.msra.mxu0 0.0
    %4743 = vmatprep.subr.mxu0 0.0
    %4744 = vmatpush1.msra.mxu0 0.0
    %4745 = vmatprep.subr.mxu0 0.0
    %4746 = vmatpush1.msra.mxu0 0.0
    %4747 = vmatprep.subr.mxu0 0.0
    %4748 = vmatpush1.msra.mxu0 0.0
    %4749 = vmatprep.subr.mxu0 0.0
    %4750 = vmatpush1.msra.mxu0 0.0
    %4751 = vmatprep.subr.mxu0 0.0
    %4752 = vmatpush1.msra.mxu0 0.0
    %4753 = vmatprep.subr.mxu0 0.0
    %4754 = vmatpush1.msra.mxu0 0.0
    %4755 = vmatprep.mubr.f32.mxu0 0.0
    %4756 = vmatmul.mubr.f32.gmra.mrb[0].mxu0 1.0
    %v4757 = vpop.f32.mrb[0].mxu0
    %v4758 = vadd.f32 0.0, %v4757
    %v4759 = vpop.f32.mrb[0].mxu0
    %v4760 = vadd.f32 0.0, %v4759
    %4761 = vdwg.mxu0
    %4762 = vmatprep.subr.mxu0 %v4599
    %4763 = vmatpush1.msra.mxu0 %v4597
    %4764 = vmatprep.subr.mxu0 %v4605
    %4765 = vmatpush1.msra.mxu0 %v4603
    %4766 = vmatprep.subr.mxu0 %v4611
    %4767 = vmatpush1.msra.mxu0 %v4609
    %4768 = vmatprep.subr.mxu0 %v4617
    %4769 = vmatpush1.msra.mxu0 %v4615
    %4770 = vmatprep.subr.mxu0 %v4623
    %4771 = vmatpush1.msra.mxu0 %v4621
    %4772 = vmatprep.subr.mxu0 %v4629
    %4773 = vmatpush1.msra.mxu0 %v4627
    %4774 = vmatprep.subr.mxu0 %v4635
    %4775 = vmatpush1.msra.mxu0 %v4633
    %4776 = vmatprep.subr.mxu0 %v4641
    %4777 = vmatpush1.msra.mxu0 %v4639
    %4778 = vmatprep.subr.mxu0 %v4647
    %4779 = vmatpush1.msra.mxu0 %v4645
    %4780 = vmatprep.subr.mxu0 %v4653
    %4781 = vmatpush1.msra.mxu0 %v4651
    %4782 = vmatprep.subr.mxu0 %v4659
    %4783 = vmatpush1.msra.mxu0 %v4657
    %4784 = vmatprep.subr.mxu0 %v4665
    %4785 = vmatpush1.msra.mxu0 %v4663
    %4786 = vmatprep.subr.mxu0 %v4671
    %4787 = vmatpush1.msra.mxu0 %v4669
    %4788 = vmatprep.subr.mxu0 %v4677
    %4789 = vmatpush1.msra.mxu0 %v4675
    %4790 = vmatprep.subr.mxu0 %v4683
    %4791 = vmatpush1.msra.mxu0 %v4681
    %4792 = vmatprep.subr.mxu0 %v4689
    %4793 = vmatpush1.msra.mxu0 %v4687
    %4794 = vmatprep.subr.mxu0 0.0
    %4795 = vmatpush1.msra.mxu0 0.0
    %4796 = vmatprep.subr.mxu0 0.0
    %4797 = vmatpush1.msra.mxu0 0.0
    %4798 = vmatprep.subr.mxu0 0.0
    %4799 = vmatpush1.msra.mxu0 0.0
    %4800 = vmatprep.subr.mxu0 0.0
    %4801 = vmatpush1.msra.mxu0 0.0
    %4802 = vmatprep.subr.mxu0 0.0
    %4803 = vmatpush1.msra.mxu0 0.0
    %4804 = vmatprep.subr.mxu0 0.0
    %4805 = vmatpush1.msra.mxu0 0.0
    %4806 = vmatprep.subr.mxu0 0.0
    %4807 = vmatpush1.msra.mxu0 0.0
    %4808 = vmatprep.subr.mxu0 0.0
    %4809 = vmatpush1.msra.mxu0 0.0
    %4810 = vmatprep.subr.mxu0 0.0
    %4811 = vmatpush1.msra.mxu0 0.0
    %4812 = vmatprep.subr.mxu0 0.0
    %4813 = vmatpush1.msra.mxu0 0.0
    %4814 = vmatprep.subr.mxu0 0.0
    %4815 = vmatpush1.msra.mxu0 0.0
    %4816 = vmatprep.subr.mxu0 0.0
    %4817 = vmatpush1.msra.mxu0 0.0
    %4818 = vmatprep.subr.mxu0 0.0
    %4819 = vmatpush1.msra.mxu0 0.0
    %4820 = vmatprep.subr.mxu0 0.0
    %4821 = vmatpush1.msra.mxu0 0.0
    %4822 = vmatprep.subr.mxu0 0.0
    %4823 = vmatpush1.msra.mxu0 0.0
    %4824 = vmatprep.subr.mxu0 0.0
    %4825 = vmatpush1.msra.mxu0 0.0
    %4826 = vmatprep.mubr.f32.mxu0 0.0
    %4827 = vmatmul.mubr.f32.gmra.mrb[0].mxu0 1.0
    %v4828 = vpop.f32.mrb[0].mxu0
    %v4829 = vadd.f32 0.0, %v4828
    %v4830 = vpop.f32.mrb[0].mxu0
    %v4831 = vadd.f32 0.0, %v4830
    %4832 = vdwg.mxu0
    %v4833 = vmul.f32 %v4436, %v4436
    %v4834 = vmul.f32 %v4438, %v4438
    %v4835 = vmul.f32 %v4597, %v4597
    %v4836 = vmul.f32 %v4599, %v4599
    %v4837 = vmul.f32 %v4442, %v4442
    %v4838 = vmul.f32 %v4444, %v4444
    %v4839 = vmul.f32 %v4603, %v4603
    %v4840 = vmul.f32 %v4605, %v4605
    %v4841 = vmul.f32 %v4448, %v4448
    %v4842 = vmul.f32 %v4450, %v4450
    %v4843 = vmul.f32 %v4609, %v4609
    %v4844 = vmul.f32 %v4611, %v4611
    %v4845 = vmul.f32 %v4454, %v4454
    %v4846 = vmul.f32 %v4456, %v4456
    %v4847 = vmul.f32 %v4615, %v4615
    %v4848 = vmul.f32 %v4617, %v4617
    %v4849 = vmul.f32 %v4460, %v4460
    %v4850 = vmul.f32 %v4462, %v4462
    %v4851 = vmul.f32 %v4621, %v4621
    %v4852 = vmul.f32 %v4623, %v4623
    %v4853 = vmul.f32 %v4466, %v4466
    %v4854 = vmul.f32 %v4468, %v4468
    %v4855 = vmul.f32 %v4627, %v4627
    %v4856 = vmul.f32 %v4629, %v4629
    %v4857 = vmul.f32 %v4472, %v4472
    %v4858 = vmul.f32 %v4474, %v4474
    %v4859 = vmul.f32 %v4633, %v4633
    %v4860 = vmul.f32 %v4635, %v4635
    %v4861 = vmul.f32 %v4478, %v4478
    %v4862 = vmul.f32 %v4480, %v4480
    %v4863 = vmul.f32 %v4639, %v4639
    %v4864 = vmul.f32 %v4641, %v4641
    %v4865 = vmul.f32 %v4484, %v4484
    %v4866 = vmul.f32 %v4486, %v4486
    %v4867 = vmul.f32 %v4645, %v4645
    %v4868 = vmul.f32 %v4647, %v4647
    %v4869 = vmul.f32 %v4490, %v4490
    %v4870 = vmul.f32 %v4492, %v4492
    %v4871 = vmul.f32 %v4651, %v4651
    %v4872 = vmul.f32 %v4653, %v4653
    %v4873 = vmul.f32 %v4496, %v4496
    %v4874 = vmul.f32 %v4498, %v4498
    %v4875 = vmul.f32 %v4657, %v4657
    %v4876 = vmul.f32 %v4659, %v4659
    %v4877 = vmul.f32 %v4502, %v4502
    %v4878 = vmul.f32 %v4504, %v4504
    %v4879 = vmul.f32 %v4663, %v4663
    %v4880 = vmul.f32 %v4665, %v4665
    %v4881 = vmul.f32 %v4508, %v4508
    %v4882 = vmul.f32 %v4510, %v4510
    %v4883 = vmul.f32 %v4669, %v4669
    %v4884 = vmul.f32 %v4671, %v4671
    %v4885 = vmul.f32 %v4514, %v4514
    %v4886 = vmul.f32 %v4516, %v4516
    %v4887 = vmul.f32 %v4675, %v4675
    %v4888 = vmul.f32 %v4677, %v4677
    %v4889 = vmul.f32 %v4520, %v4520
    %v4890 = vmul.f32 %v4522, %v4522
    %v4891 = vmul.f32 %v4681, %v4681
    %v4892 = vmul.f32 %v4683, %v4683
    %v4893 = vmul.f32 %v4526, %v4526
    %v4894 = vmul.f32 %v4528, %v4528
    %v4895 = vmul.f32 %v4687, %v4687
    %v4896 = vmul.f32 %v4689, %v4689
    %4897 = vmatprep.subr.mxu0 %v4834
    %4898 = vmatpush1.msra.mxu0 %v4833
    %4899 = vmatprep.subr.mxu0 %v4838
    %4900 = vmatpush1.msra.mxu0 %v4837
    %4901 = vmatprep.subr.mxu0 %v4842
    %4902 = vmatpush1.msra.mxu0 %v4841
    %4903 = vmatprep.subr.mxu0 %v4846
    %4904 = vmatpush1.msra.mxu0 %v4845
    %4905 = vmatprep.subr.mxu0 %v4850
    %4906 = vmatpush1.msra.mxu0 %v4849
    %4907 = vmatprep.subr.mxu0 %v4854
    %4908 = vmatpush1.msra.mxu0 %v4853
    %4909 = vmatprep.subr.mxu0 %v4858
    %4910 = vmatpush1.msra.mxu0 %v4857
    %4911 = vmatprep.subr.mxu0 %v4862
    %4912 = vmatpush1.msra.mxu0 %v4861
    %4913 = vmatprep.subr.mxu0 %v4866
    %4914 = vmatpush1.msra.mxu0 %v4865
    %4915 = vmatprep.subr.mxu0 %v4870
    %4916 = vmatpush1.msra.mxu0 %v4869
    %4917 = vmatprep.subr.mxu0 %v4874
    %4918 = vmatpush1.msra.mxu0 %v4873
    %4919 = vmatprep.subr.mxu0 %v4878
    %4920 = vmatpush1.msra.mxu0 %v4877
    %4921 = vmatprep.subr.mxu0 %v4882
    %4922 = vmatpush1.msra.mxu0 %v4881
    %4923 = vmatprep.subr.mxu0 %v4886
    %4924 = vmatpush1.msra.mxu0 %v4885
    %4925 = vmatprep.subr.mxu0 %v4890
    %4926 = vmatpush1.msra.mxu0 %v4889
    %4927 = vmatprep.subr.mxu0 %v4894
    %4928 = vmatpush1.msra.mxu0 %v4893
    %4929 = vmatprep.subr.mxu0 0.0
    %4930 = vmatpush1.msra.mxu0 0.0
    %4931 = vmatprep.subr.mxu0 0.0
    %4932 = vmatpush1.msra.mxu0 0.0
    %4933 = vmatprep.subr.mxu0 0.0
    %4934 = vmatpush1.msra.mxu0 0.0
    %4935 = vmatprep.subr.mxu0 0.0
    %4936 = vmatpush1.msra.mxu0 0.0
    %4937 = vmatprep.subr.mxu0 0.0
    %4938 = vmatpush1.msra.mxu0 0.0
    %4939 = vmatprep.subr.mxu0 0.0
    %4940 = vmatpush1.msra.mxu0 0.0
    %4941 = vmatprep.subr.mxu0 0.0
    %4942 = vmatpush1.msra.mxu0 0.0
    %4943 = vmatprep.subr.mxu0 0.0
    %4944 = vmatpush1.msra.mxu0 0.0
    %4945 = vmatprep.subr.mxu0 0.0
    %4946 = vmatpush1.msra.mxu0 0.0
    %4947 = vmatprep.subr.mxu0 0.0
    %4948 = vmatpush1.msra.mxu0 0.0
    %4949 = vmatprep.subr.mxu0 0.0
    %4950 = vmatpush1.msra.mxu0 0.0
    %4951 = vmatprep.subr.mxu0 0.0
    %4952 = vmatpush1.msra.mxu0 0.0
    %4953 = vmatprep.subr.mxu0 0.0
    %4954 = vmatpush1.msra.mxu0 0.0
    %4955 = vmatprep.subr.mxu0 0.0
    %4956 = vmatpush1.msra.mxu0 0.0
    %4957 = vmatprep.subr.mxu0 0.0
    %4958 = vmatpush1.msra.mxu0 0.0
    %4959 = vmatprep.subr.mxu0 0.0
    %4960 = vmatpush1.msra.mxu0 0.0
    %4961 = vmatprep.mubr.f32.mxu0 0.0
    %4962 = vmatmul.mubr.f32.gmra.mrb[0].mxu0 1.0
    %v4963 = vpop.f32.mrb[0].mxu0
    %v4964 = vadd.f32 0.0, %v4963
    %v4965 = vpop.f32.mrb[0].mxu0
    %v4966 = vadd.f32 0.0, %v4965
    %4967 = vdwg.mxu0
    %4968 = vmatprep.subr.mxu0 %v4836
    %4969 = vmatpush1.msra.mxu0 %v4835
    %4970 = vmatprep.subr.mxu0 %v4840
    %4971 = vmatpush1.msra.mxu0 %v4839
    %4972 = vmatprep.subr.mxu0 %v4844
    %4973 = vmatpush1.msra.mxu0 %v4843
    %4974 = vmatprep.subr.mxu0 %v4848
    %4975 = vmatpush1.msra.mxu0 %v4847
    %4976 = vmatprep.subr.mxu0 %v4852
    %4977 = vmatpush1.msra.mxu0 %v4851
    %4978 = vmatprep.subr.mxu0 %v4856
    %4979 = vmatpush1.msra.mxu0 %v4855
    %4980 = vmatprep.subr.mxu0 %v4860
    %4981 = vmatpush1.msra.mxu0 %v4859
    %4982 = vmatprep.subr.mxu0 %v4864
    %4983 = vmatpush1.msra.mxu0 %v4863
    %4984 = vmatprep.subr.mxu0 %v4868
    %4985 = vmatpush1.msra.mxu0 %v4867
    %4986 = vmatprep.subr.mxu0 %v4872
    %4987 = vmatpush1.msra.mxu0 %v4871
    %4988 = vmatprep.subr.mxu0 %v4876
    %4989 = vmatpush1.msra.mxu0 %v4875
    %4990 = vmatprep.subr.mxu0 %v4880
    %4991 = vmatpush1.msra.mxu0 %v4879
    %4992 = vmatprep.subr.mxu0 %v4884
    %4993 = vmatpush1.msra.mxu0 %v4883
    %4994 = vmatprep.subr.mxu0 %v4888
    %4995 = vmatpush1.msra.mxu0 %v4887
    %4996 = vmatprep.subr.mxu0 %v4892
    %4997 = vmatpush1.msra.mxu0 %v4891
    %4998 = vmatprep.subr.mxu0 %v4896
    %4999 = vmatpush1.msra.mxu0 %v4895
    %5000 = vmatprep.subr.mxu0 0.0
    %5001 = vmatpush1.msra.mxu0 0.0
    %5002 = vmatprep.subr.mxu0 0.0
    %5003 = vmatpush1.msra.mxu0 0.0
    %5004 = vmatprep.subr.mxu0 0.0
    %5005 = vmatpush1.msra.mxu0 0.0
    %5006 = vmatprep.subr.mxu0 0.0
    %5007 = vmatpush1.msra.mxu0 0.0
    %5008 = vmatprep.subr.mxu0 0.0
    %5009 = vmatpush1.msra.mxu0 0.0
    %5010 = vmatprep.subr.mxu0 0.0
    %5011 = vmatpush1.msra.mxu0 0.0
    %5012 = vmatprep.subr.mxu0 0.0
    %5013 = vmatpush1.msra.mxu0 0.0
    %5014 = vmatprep.subr.mxu0 0.0
    %5015 = vmatpush1.msra.mxu0 0.0
    %5016 = vmatprep.subr.mxu0 0.0
    %5017 = vmatpush1.msra.mxu0 0.0
    %5018 = vmatprep.subr.mxu0 0.0
    %5019 = vmatpush1.msra.mxu0 0.0
    %5020 = vmatprep.subr.mxu0 0.0
    %5021 = vmatpush1.msra.mxu0 0.0
    %5022 = vmatprep.subr.mxu0 0.0
    %5023 = vmatpush1.msra.mxu0 0.0
    %5024 = vmatprep.subr.mxu0 0.0
    %5025 = vmatpush1.msra.mxu0 0.0
    %5026 = vmatprep.subr.mxu0 0.0
    %5027 = vmatpush1.msra.mxu0 0.0
    %5028 = vmatprep.subr.mxu0 0.0
    %5029 = vmatpush1.msra.mxu0 0.0
    %5030 = vmatprep.subr.mxu0 0.0
    %5031 = vmatpush1.msra.mxu0 0.0
    %5032 = vmatprep.mubr.f32.mxu0 0.0
    %5033 = vmatmul.mubr.f32.gmra.mrb[0].mxu0 1.0
    %v5034 = vpop.f32.mrb[0].mxu0
    %v5035 = vadd.f32 0.0, %v5034
    %v5036 = vpop.f32.mrb[0].mxu0
    %v5037 = vadd.f32 0.0, %v5036
    %5038 = vdwg.mxu0
    %5039 = vmatprep.subr.mxu0 0.0
    %5040 = vmatpush1.msra.mxu0 %v4299
    %5041 = vmatprep.subr.mxu0 0.0
    %5042 = vmatpush1.msra.mxu0 %v4300
    %5043 = vmatprep.subr.mxu0 0.0
    %5044 = vmatpush1.msra.mxu0 %v4301
    %5045 = vmatprep.subr.mxu0 0.0
    %5046 = vmatpush1.msra.mxu0 %v4302
    %5047 = vmatprep.subr.mxu0 0.0
    %5048 = vmatpush1.msra.mxu0 %v4303
    %5049 = vmatprep.subr.mxu0 0.0
    %5050 = vmatpush1.msra.mxu0 %v4304
    %5051 = vmatprep.subr.mxu0 0.0
    %5052 = vmatpush1.msra.mxu0 %v4305
    %5053 = vmatprep.subr.mxu0 0.0
    %5054 = vmatpush1.msra.mxu0 %v4306
    %5055 = vmatprep.subr.mxu0 0.0
    %5056 = vmatpush1.msra.mxu0 %v4307
    %5057 = vmatprep.subr.mxu0 0.0
    %5058 = vmatpush1.msra.mxu0 %v4308
    %5059 = vmatprep.subr.mxu0 0.0
    %5060 = vmatpush1.msra.mxu0 %v4309
    %5061 = vmatprep.subr.mxu0 0.0
    %5062 = vmatpush1.msra.mxu0 %v4310
    %5063 = vmatprep.subr.mxu0 0.0
    %5064 = vmatpush1.msra.mxu0 %v4311
    %5065 = vmatprep.subr.mxu0 0.0
    %5066 = vmatpush1.msra.mxu0 %v4312
    %5067 = vmatprep.subr.mxu0 0.0
    %5068 = vmatpush1.msra.mxu0 %v4313
    %5069 = vmatprep.subr.mxu0 0.0
    %5070 = vmatpush1.msra.mxu0 %v4314
    %5071 = vmatprep.subr.mxu0 0.0
    %5072 = vmatpush1.msra.mxu0 %v4315
    %5073 = vmatprep.subr.mxu0 0.0
    %5074 = vmatpush1.msra.mxu0 %v4316
    %5075 = vmatprep.subr.mxu0 0.0
    %5076 = vmatpush1.msra.mxu0 %v4317
    %5077 = vmatprep.subr.mxu0 0.0
    %5078 = vmatpush1.msra.mxu0 %v4318
    %5079 = vmatprep.subr.mxu0 0.0
    %5080 = vmatpush1.msra.mxu0 %v4319
    %5081 = vmatprep.subr.mxu0 0.0
    %5082 = vmatpush1.msra.mxu0 %v4320
    %5083 = vmatprep.subr.mxu0 0.0
    %5084 = vmatpush1.msra.mxu0 %v4321
    %5085 = vmatprep.subr.mxu0 0.0
    %5086 = vmatpush1.msra.mxu0 %v4322
    %5087 = vmatprep.subr.mxu0 0.0
    %5088 = vmatpush1.msra.mxu0 %v4323
    %5089 = vmatprep.subr.mxu0 0.0
    %5090 = vmatpush1.msra.mxu0 %v4324
    %5091 = vmatprep.subr.mxu0 0.0
    %5092 = vmatpush1.msra.mxu0 %v4325
    %5093 = vmatprep.subr.mxu0 0.0
    %5094 = vmatpush1.msra.mxu0 %v4326
    %5095 = vmatprep.subr.mxu0 0.0
    %5096 = vmatpush1.msra.mxu0 %v4327
    %5097 = vmatprep.subr.mxu0 0.0
    %5098 = vmatpush1.msra.mxu0 %v4328
    %5099 = vmatprep.subr.mxu0 0.0
    %5100 = vmatpush1.msra.mxu0 %v4329
    %5101 = vmatprep.subr.mxu0 0.0
    %5102 = vmatpush1.msra.mxu0 %v4330
    %5103 = vmatprep.mubr.f32.mxu0 %v4760
    %5104 = vmatmul.mubr.f32.gmra.mrb[0].mxu0 %v4758
    %v5105 = vpop.f32.mrb[0].mxu0
    %v5106 = vadd.f32 0.0, %v5105
    %v5107 = vpop.f32.mrb[0].mxu0
    %5108 = vdwg.mxu0
    %5109 = vmatprep.subr.mxu0 0.0
    %5110 = vmatpush1.msra.mxu0 %v4331
    %5111 = vmatprep.subr.mxu0 0.0
    %5112 = vmatpush1.msra.mxu0 %v4332
    %5113 = vmatprep.subr.mxu0 0.0
    %5114 = vmatpush1.msra.mxu0 %v4333
    %5115 = vmatprep.subr.mxu0 0.0
    %5116 = vmatpush1.msra.mxu0 %v4334
    %5117 = vmatprep.subr.mxu0 0.0
    %5118 = vmatpush1.msra.mxu0 %v4335
    %5119 = vmatprep.subr.mxu0 0.0
    %5120 = vmatpush1.msra.mxu0 %v4336
    %5121 = vmatprep.subr.mxu0 0.0
    %5122 = vmatpush1.msra.mxu0 %v4337
    %5123 = vmatprep.subr.mxu0 0.0
    %5124 = vmatpush1.msra.mxu0 %v4338
    %5125 = vmatprep.subr.mxu0 0.0
    %5126 = vmatpush1.msra.mxu0 %v4339
    %5127 = vmatprep.subr.mxu0 0.0
    %5128 = vmatpush1.msra.mxu0 %v4340
    %5129 = vmatprep.subr.mxu0 0.0
    %5130 = vmatpush1.msra.mxu0 %v4341
    %5131 = vmatprep.subr.mxu0 0.0
    %5132 = vmatpush1.msra.mxu0 %v4342
    %5133 = vmatprep.subr.mxu0 0.0
    %5134 = vmatpush1.msra.mxu0 %v4343
    %5135 = vmatprep.subr.mxu0 0.0
    %5136 = vmatpush1.msra.mxu0 %v4344
    %5137 = vmatprep.subr.mxu0 0.0
    %5138 = vmatpush1.msra.mxu0 %v4345
    %5139 = vmatprep.subr.mxu0 0.0
    %5140 = vmatpush1.msra.mxu0 %v4346
    %5141 = vmatprep.subr.mxu0 0.0
    %5142 = vmatpush1.msra.mxu0 %v4347
    %5143 = vmatprep.subr.mxu0 0.0
    %5144 = vmatpush1.msra.mxu0 %v4348
    %5145 = vmatprep.subr.mxu0 0.0
    %5146 = vmatpush1.msra.mxu0 %v4349
    %5147 = vmatprep.subr.mxu0 0.0
    %5148 = vmatpush1.msra.mxu0 %v4350
    %5149 = vmatprep.subr.mxu0 0.0
    %5150 = vmatpush1.msra.mxu0 %v4351
    %5151 = vmatprep.subr.mxu0 0.0
    %5152 = vmatpush1.msra.mxu0 %v4352
    %5153 = vmatprep.subr.mxu0 0.0
    %5154 = vmatpush1.msra.mxu0 %v4353
    %5155 = vmatprep.subr.mxu0 0.0
    %5156 = vmatpush1.msra.mxu0 %v4354
    %5157 = vmatprep.subr.mxu0 0.0
    %5158 = vmatpush1.msra.mxu0 %v4355
    %5159 = vmatprep.subr.mxu0 0.0
    %5160 = vmatpush1.msra.mxu0 %v4356
    %5161 = vmatprep.subr.mxu0 0.0
    %5162 = vmatpush1.msra.mxu0 %v4357
    %5163 = vmatprep.subr.mxu0 0.0
    %5164 = vmatpush1.msra.mxu0 %v4358
    %5165 = vmatprep.subr.mxu0 0.0
    %5166 = vmatpush1.msra.mxu0 %v4359
    %5167 = vmatprep.subr.mxu0 0.0
    %5168 = vmatpush1.msra.mxu0 %v4360
    %5169 = vmatprep.subr.mxu0 0.0
    %5170 = vmatpush1.msra.mxu0 %v4361
    %5171 = vmatprep.subr.mxu0 0.0
    %5172 = vmatpush1.msra.mxu0 %v4362
    %5173 = vmatprep.mubr.f32.mxu0 %v4831
    %5174 = vmatmul.mubr.f32.gmra.mrb[0].mxu0 %v4829
    %v5175 = vpop.f32.mrb[0].mxu0
    %v5176 = vadd.f32 %v5106, %v5175
    %v5177 = vpop.f32.mrb[0].mxu0
    %5178 = vdwg.mxu0
    %v5179 = vmul.f32 %v5176, 0.00012207031
    %5180 = vmatprep.subr.mxu0 0.0
    %5181 = vmatpush1.msra.mxu0 %v4299
    %5182 = vmatprep.subr.mxu0 0.0
    %5183 = vmatpush1.msra.mxu0 %v4300
    %5184 = vmatprep.subr.mxu0 0.0
    %5185 = vmatpush1.msra.mxu0 %v4301
    %5186 = vmatprep.subr.mxu0 0.0
    %5187 = vmatpush1.msra.mxu0 %v4302
    %5188 = vmatprep.subr.mxu0 0.0
    %5189 = vmatpush1.msra.mxu0 %v4303
    %5190 = vmatprep.subr.mxu0 0.0
    %5191 = vmatpush1.msra.mxu0 %v4304
    %5192 = vmatprep.subr.mxu0 0.0
    %5193 = vmatpush1.msra.mxu0 %v4305
    %5194 = vmatprep.subr.mxu0 0.0
    %5195 = vmatpush1.msra.mxu0 %v4306
    %5196 = vmatprep.subr.mxu0 0.0
    %5197 = vmatpush1.msra.mxu0 %v4307
    %5198 = vmatprep.subr.mxu0 0.0
    %5199 = vmatpush1.msra.mxu0 %v4308
    %5200 = vmatprep.subr.mxu0 0.0
    %5201 = vmatpush1.msra.mxu0 %v4309
    %5202 = vmatprep.subr.mxu0 0.0
    %5203 = vmatpush1.msra.mxu0 %v4310
    %5204 = vmatprep.subr.mxu0 0.0
    %5205 = vmatpush1.msra.mxu0 %v4311
    %5206 = vmatprep.subr.mxu0 0.0
    %5207 = vmatpush1.msra.mxu0 %v4312
    %5208 = vmatprep.subr.mxu0 0.0
    %5209 = vmatpush1.msra.mxu0 %v4313
    %5210 = vmatprep.subr.mxu0 0.0
    %5211 = vmatpush1.msra.mxu0 %v4314
    %5212 = vmatprep.subr.mxu0 0.0
    %5213 = vmatpush1.msra.mxu0 %v4315
    %5214 = vmatprep.subr.mxu0 0.0
    %5215 = vmatpush1.msra.mxu0 %v4316
    %5216 = vmatprep.subr.mxu0 0.0
    %5217 = vmatpush1.msra.mxu0 %v4317
    %5218 = vmatprep.subr.mxu0 0.0
    %5219 = vmatpush1.msra.mxu0 %v4318
    %5220 = vmatprep.subr.mxu0 0.0
    %5221 = vmatpush1.msra.mxu0 %v4319
    %5222 = vmatprep.subr.mxu0 0.0
    %5223 = vmatpush1.msra.mxu0 %v4320
    %5224 = vmatprep.subr.mxu0 0.0
    %5225 = vmatpush1.msra.mxu0 %v4321
    %5226 = vmatprep.subr.mxu0 0.0
    %5227 = vmatpush1.msra.mxu0 %v4322
    %5228 = vmatprep.subr.mxu0 0.0
    %5229 = vmatpush1.msra.mxu0 %v4323
    %5230 = vmatprep.subr.mxu0 0.0
    %5231 = vmatpush1.msra.mxu0 %v4324
    %5232 = vmatprep.subr.mxu0 0.0
    %5233 = vmatpush1.msra.mxu0 %v4325
    %5234 = vmatprep.subr.mxu0 0.0
    %5235 = vmatpush1.msra.mxu0 %v4326
    %5236 = vmatprep.subr.mxu0 0.0
    %5237 = vmatpush1.msra.mxu0 %v4327
    %5238 = vmatprep.subr.mxu0 0.0
    %5239 = vmatpush1.msra.mxu0 %v4328
    %5240 = vmatprep.subr.mxu0 0.0
    %5241 = vmatpush1.msra.mxu0 %v4329
    %5242 = vmatprep.subr.mxu0 0.0
    %5243 = vmatpush1.msra.mxu0 %v4330
    %5244 = vmatprep.mubr.f32.mxu0 %v4966
    %5245 = vmatmul.mubr.f32.gmra.mrb[0].mxu0 %v4964
    %v5246 = vpop.f32.mrb[0].mxu0
    %v5247 = vadd.f32 0.0, %v5246
    %v5248 = vpop.f32.mrb[0].mxu0
    %5249 = vdwg.mxu0
    %5250 = vmatprep.subr.mxu0 0.0
    %5251 = vmatpush1.msra.mxu0 %v4331
    %5252 = vmatprep.subr.mxu0 0.0
    %5253 = vmatpush1.msra.mxu0 %v4332
    %5254 = vmatprep.subr.mxu0 0.0
    %5255 = vmatpush1.msra.mxu0 %v4333
    %5256 = vmatprep.subr.mxu0 0.0
    %5257 = vmatpush1.msra.mxu0 %v4334
    %5258 = vmatprep.subr.mxu0 0.0
    %5259 = vmatpush1.msra.mxu0 %v4335
    %5260 = vmatprep.subr.mxu0 0.0
    %5261 = vmatpush1.msra.mxu0 %v4336
    %5262 = vmatprep.subr.mxu0 0.0
    %5263 = vmatpush1.msra.mxu0 %v4337
    %5264 = vmatprep.subr.mxu0 0.0
    %5265 = vmatpush1.msra.mxu0 %v4338
    %5266 = vmatprep.subr.mxu0 0.0
    %5267 = vmatpush1.msra.mxu0 %v4339
    %5268 = vmatprep.subr.mxu0 0.0
    %5269 = vmatpush1.msra.mxu0 %v4340
    %5270 = vmatprep.subr.mxu0 0.0
    %5271 = vmatpush1.msra.mxu0 %v4341
    %5272 = vmatprep.subr.mxu0 0.0
    %5273 = vmatpush1.msra.mxu0 %v4342
    %5274 = vmatprep.subr.mxu0 0.0
    %5275 = vmatpush1.msra.mxu0 %v4343
    %5276 = vmatprep.subr.mxu0 0.0
    %5277 = vmatpush1.msra.mxu0 %v4344
    %5278 = vmatprep.subr.mxu0 0.0
    %5279 = vmatpush1.msra.mxu0 %v4345
    %5280 = vmatprep.subr.mxu0 0.0
    %5281 = vmatpush1.msra.mxu0 %v4346
    %5282 = vmatprep.subr.mxu0 0.0
    %5283 = vmatpush1.msra.mxu0 %v4347
    %5284 = vmatprep.subr.mxu0 0.0
    %5285 = vmatpush1.msra.mxu0 %v4348
    %5286 = vmatprep.subr.mxu0 0.0
    %5287 = vmatpush1.msra.mxu0 %v4349
    %5288 = vmatprep.subr.mxu0 0.0
    %5289 = vmatpush1.msra.mxu0 %v4350
    %5290 = vmatprep.subr.mxu0 0.0
    %5291 = vmatpush1.msra.mxu0 %v4351
    %5292 = vmatprep.subr.mxu0 0.0
    %5293 = vmatpush1.msra.mxu0 %v4352
    %5294 = vmatprep.subr.mxu0 0.0
    %5295 = vmatpush1.msra.mxu0 %v4353
    %5296 = vmatprep.subr.mxu0 0.0
    %5297 = vmatpush1.msra.mxu0 %v4354
    %5298 = vmatprep.subr.mxu0 0.0
    %5299 = vmatpush1.msra.mxu0 %v4355
    %5300 = vmatprep.subr.mxu0 0.0
    %5301 = vmatpush1.msra.mxu0 %v4356
    %5302 = vmatprep.subr.mxu0 0.0
    %5303 = vmatpush1.msra.mxu0 %v4357
    %5304 = vmatprep.subr.mxu0 0.0
    %5305 = vmatpush1.msra.mxu0 %v4358
    %5306 = vmatprep.subr.mxu0 0.0
    %5307 = vmatpush1.msra.mxu0 %v4359
    %5308 = vmatprep.subr.mxu0 0.0
    %5309 = vmatpush1.msra.mxu0 %v4360
    %5310 = vmatprep.subr.mxu0 0.0
    %5311 = vmatpush1.msra.mxu0 %v4361
    %5312 = vmatprep.subr.mxu0 0.0
    %5313 = vmatpush1.msra.mxu0 %v4362
    %5314 = vmatprep.mubr.f32.mxu0 %v5037
    %5315 = vmatmul.mubr.f32.gmra.mrb[0].mxu0 %v5035
    %v5316 = vpop.f32.mrb[0].mxu0
    %v5317 = vadd.f32 %v5247, %v5316
    %v5318 = vpop.f32.mrb[0].mxu0
    %5319 = vdwg.mxu0
    %v5320 = vmul.f32 %v5317, 0.00012207031
    %v5321 = vmul.f32 %v5179, %v5179
    %v5322 = vsub.f32 %v5320, %v5321
    %v5323 = vadd.f32 %v5322, 1e-05
    %v5324 = vrsqrt.pop %v5323
    %v5325 = vmul.f32 %v5324, %v4367
    %v5326 = vmul.f32 %v5179, %v5325
    %v5327 = vsub.f32 %v4368, %v5326
    %v5329 = vsel %vm344, %v5325, 0
    %5331 = vmatprep.subr.mxu0 %v4364
    %5332 = vmatpush1.msra.mxu0 %v4363
    %5333 = vmatprep.subr.mxu0 0.0
    %5334 = vmatpush1.msra.mxu0 0.0
    %5335 = vmatprep.subr.mxu0 0.0
    %5336 = vmatpush1.msra.mxu0 0.0
    %5337 = vmatprep.subr.mxu0 0.0
    %5338 = vmatpush1.msra.mxu0 0.0
    %5339 = vmatprep.subr.mxu0 0.0
    %5340 = vmatpush1.msra.mxu0 0.0
    %5341 = vmatprep.subr.mxu0 0.0
    %5342 = vmatpush1.msra.mxu0 0.0
    %5343 = vmatprep.subr.mxu0 0.0
    %5344 = vmatpush1.msra.mxu0 0.0
    %5345 = vmatprep.subr.mxu0 0.0
    %5346 = vmatpush1.msra.mxu0 0.0
    %5347 = vmatprep.subr.mxu0 0.0
    %5348 = vmatpush1.msra.mxu0 0.0
    %5349 = vmatprep.subr.mxu0 0.0
    %5350 = vmatpush1.msra.mxu0 0.0
    %5351 = vmatprep.subr.mxu0 0.0
    %5352 = vmatpush1.msra.mxu0 0.0
    %5353 = vmatprep.subr.mxu0 0.0
    %5354 = vmatpush1.msra.mxu0 0.0
    %5355 = vmatprep.subr.mxu0 0.0
    %5356 = vmatpush1.msra.mxu0 0.0
    %5357 = vmatprep.subr.mxu0 0.0
    %5358 = vmatpush1.msra.mxu0 0.0
    %5359 = vmatprep.subr.mxu0 0.0
    %5360 = vmatpush1.msra.mxu0 0.0
    %5361 = vmatprep.subr.mxu0 0.0
    %5362 = vmatpush1.msra.mxu0 0.0
    %5363 = vmatprep.subr.mxu0 0.0
    %5364 = vmatpush1.msra.mxu0 0.0
    %5365 = vmatprep.subr.mxu0 0.0
    %5366 = vmatpush1.msra.mxu0 0.0
    %5367 = vmatprep.subr.mxu0 0.0
    %5368 = vmatpush1.msra.mxu0 0.0
    %5369 = vmatprep.subr.mxu0 0.0
    %5370 = vmatpush1.msra.mxu0 0.0
    %5371 = vmatprep.subr.mxu0 0.0
    %5372 = vmatpush1.msra.mxu0 0.0
    %5373 = vmatprep.subr.mxu0 0.0
    %5374 = vmatpush1.msra.mxu0 0.0
    %5375 = vmatprep.subr.mxu0 0.0
    %5376 = vmatpush1.msra.mxu0 0.0
    %5377 = vmatprep.subr.mxu0 0.0
    %5378 = vmatpush1.msra.mxu0 0.0
    %5379 = vmatprep.subr.mxu0 0.0
    %5380 = vmatpush1.msra.mxu0 0.0
    %5381 = vmatprep.subr.mxu0 0.0
    %5382 = vmatpush1.msra.mxu0 0.0
    %5383 = vmatprep.subr.mxu0 0.0
    %5384 = vmatpush1.msra.mxu0 0.0
    %5385 = vmatprep.subr.mxu0 0.0
    %5386 = vmatpush1.msra.mxu0 0.0
    %5387 = vmatprep.subr.mxu0 0.0
    %5388 = vmatpush1.msra.mxu0 0.0
    %5389 = vmatprep.subr.mxu0 0.0
    %5390 = vmatpush1.msra.mxu0 0.0
    %5391 = vmatprep.subr.mxu0 0.0
    %5392 = vmatpush1.msra.mxu0 0.0
    %5393 = vmatprep.subr.mxu0 0.0
    %5394 = vmatpush1.msra.mxu0 0.0
    %5395 = vmatprep.mubr.f32.mxu0 0.0
    %5396 = vmatmul.mubr.f32.gmra.mrb[0].mxu0 %v5329
    %v5397 = vpop.f32.mrb[0].mxu0
    %v5398 = vadd.f32 0.0, %v5397
    %v5399 = vpop.f32.mrb[0].mxu0
    %v5400 = vadd.f32 0.0, %v5399
    %5401 = vdwg.mxu0
    %5402 = vmatprep.subr.mxu0 %v4366
    %5403 = vmatpush1.msra.mxu0 %v4365
    %5404 = vmatprep.subr.mxu0 0.0
    %5405 = vmatpush1.msra.mxu0 0.0
    %5406 = vmatprep.subr.mxu0 0.0
    %5407 = vmatpush1.msra.mxu0 0.0
    %5408 = vmatprep.subr.mxu0 0.0
    %5409 = vmatpush1.msra.mxu0 0.0
    %5410 = vmatprep.subr.mxu0 0.0
    %5411 = vmatpush1.msra.mxu0 0.0
    %5412 = vmatprep.subr.mxu0 0.0
    %5413 = vmatpush1.msra.mxu0 0.0
    %5414 = vmatprep.subr.mxu0 0.0
    %5415 = vmatpush1.msra.mxu0 0.0
    %5416 = vmatprep.subr.mxu0 0.0
    %5417 = vmatpush1.msra.mxu0 0.0
    %5418 = vmatprep.subr.mxu0 0.0
    %5419 = vmatpush1.msra.mxu0 0.0
    %5420 = vmatprep.subr.mxu0 0.0
    %5421 = vmatpush1.msra.mxu0 0.0
    %5422 = vmatprep.subr.mxu0 0.0
    %5423 = vmatpush1.msra.mxu0 0.0
    %5424 = vmatprep.subr.mxu0 0.0
    %5425 = vmatpush1.msra.mxu0 0.0
    %5426 = vmatprep.subr.mxu0 0.0
    %5427 = vmatpush1.msra.mxu0 0.0
    %5428 = vmatprep.subr.mxu0 0.0
    %5429 = vmatpush1.msra.mxu0 0.0
    %5430 = vmatprep.subr.mxu0 0.0
    %5431 = vmatpush1.msra.mxu0 0.0
    %5432 = vmatprep.subr.mxu0 0.0
    %5433 = vmatpush1.msra.mxu0 0.0
    %5434 = vmatprep.subr.mxu0 0.0
    %5435 = vmatpush1.msra.mxu0 0.0
    %5436 = vmatprep.subr.mxu0 0.0
    %5437 = vmatpush1.msra.mxu0 0.0
    %5438 = vmatprep.subr.mxu0 0.0
    %5439 = vmatpush1.msra.mxu0 0.0
    %5440 = vmatprep.subr.mxu0 0.0
    %5441 = vmatpush1.msra.mxu0 0.0
    %5442 = vmatprep.subr.mxu0 0.0
    %5443 = vmatpush1.msra.mxu0 0.0
    %5444 = vmatprep.subr.mxu0 0.0
    %5445 = vmatpush1.msra.mxu0 0.0
    %5446 = vmatprep.subr.mxu0 0.0
    %5447 = vmatpush1.msra.mxu0 0.0
    %5448 = vmatprep.subr.mxu0 0.0
    %5449 = vmatpush1.msra.mxu0 0.0
    %5450 = vmatprep.subr.mxu0 0.0
    %5451 = vmatpush1.msra.mxu0 0.0
    %5452 = vmatprep.subr.mxu0 0.0
    %5453 = vmatpush1.msra.mxu0 0.0
    %5454 = vmatprep.subr.mxu0 0.0
    %5455 = vmatpush1.msra.mxu0 0.0
    %5456 = vmatprep.subr.mxu0 0.0
    %5457 = vmatpush1.msra.mxu0 0.0
    %5458 = vmatprep.subr.mxu0 0.0
    %5459 = vmatpush1.msra.mxu0 0.0
    %5460 = vmatprep.subr.mxu0 0.0
    %5461 = vmatpush1.msra.mxu0 0.0
    %5462 = vmatprep.subr.mxu0 0.0
    %5463 = vmatpush1.msra.mxu0 0.0
    %5464 = vmatprep.subr.mxu0 0.0
    %5465 = vmatpush1.msra.mxu0 0.0
    %5466 = vmatprep.mubr.f32.mxu0 0.0
    %5467 = vmatmul.mubr.f32.gmra.mrb[0].mxu0 %v5329
    %v5468 = vpop.f32.mrb[0].mxu0
    %v5469 = vadd.f32 0.0, %v5468
    %v5470 = vpop.f32.mrb[0].mxu0
    %v5471 = vadd.f32 0.0, %v5470
    %5472 = vdwg.mxu0
    %v5474 = vsel %vm344, %v5327, 0
    %5476 = vmatprep.subr.mxu0 %v4364
    %5477 = vmatpush1.msra.mxu0 %v4363
    %5478 = vmatprep.subr.mxu0 0.0
    %5479 = vmatpush1.msra.mxu0 0.0
    %5480 = vmatprep.subr.mxu0 0.0
    %5481 = vmatpush1.msra.mxu0 0.0
    %5482 = vmatprep.subr.mxu0 0.0
    %5483 = vmatpush1.msra.mxu0 0.0
    %5484 = vmatprep.subr.mxu0 0.0
    %5485 = vmatpush1.msra.mxu0 0.0
    %5486 = vmatprep.subr.mxu0 0.0
    %5487 = vmatpush1.msra.mxu0 0.0
    %5488 = vmatprep.subr.mxu0 0.0
    %5489 = vmatpush1.msra.mxu0 0.0
    %5490 = vmatprep.subr.mxu0 0.0
    %5491 = vmatpush1.msra.mxu0 0.0
    %5492 = vmatprep.subr.mxu0 0.0
    %5493 = vmatpush1.msra.mxu0 0.0
    %5494 = vmatprep.subr.mxu0 0.0
    %5495 = vmatpush1.msra.mxu0 0.0
    %5496 = vmatprep.subr.mxu0 0.0
    %5497 = vmatpush1.msra.mxu0 0.0
    %5498 = vmatprep.subr.mxu0 0.0
    %5499 = vmatpush1.msra.mxu0 0.0
    %5500 = vmatprep.subr.mxu0 0.0
    %5501 = vmatpush1.msra.mxu0 0.0
    %5502 = vmatprep.subr.mxu0 0.0
    %5503 = vmatpush1.msra.mxu0 0.0
    %5504 = vmatprep.subr.mxu0 0.0
    %5505 = vmatpush1.msra.mxu0 0.0
    %5506 = vmatprep.subr.mxu0 0.0
    %5507 = vmatpush1.msra.mxu0 0.0
    %5508 = vmatprep.subr.mxu0 0.0
    %5509 = vmatpush1.msra.mxu0 0.0
    %5510 = vmatprep.subr.mxu0 0.0
    %5511 = vmatpush1.msra.mxu0 0.0
    %5512 = vmatprep.subr.mxu0 0.0
    %5513 = vmatpush1.msra.mxu0 0.0
    %5514 = vmatprep.subr.mxu0 0.0
    %5515 = vmatpush1.msra.mxu0 0.0
    %5516 = vmatprep.subr.mxu0 0.0
    %5517 = vmatpush1.msra.mxu0 0.0
    %5518 = vmatprep.subr.mxu0 0.0
    %5519 = vmatpush1.msra.mxu0 0.0
    %5520 = vmatprep.subr.mxu0 0.0
    %5521 = vmatpush1.msra.mxu0 0.0
    %5522 = vmatprep.subr.mxu0 0.0
    %5523 = vmatpush1.msra.mxu0 0.0
    %5524 = vmatprep.subr.mxu0 0.0
    %5525 = vmatpush1.msra.mxu0 0.0
    %5526 = vmatprep.subr.mxu0 0.0
    %5527 = vmatpush1.msra.mxu0 0.0
    %5528 = vmatprep.subr.mxu0 0.0
    %5529 = vmatpush1.msra.mxu0 0.0
    %5530 = vmatprep.subr.mxu0 0.0
    %5531 = vmatpush1.msra.mxu0 0.0
    %5532 = vmatprep.subr.mxu0 0.0
    %5533 = vmatpush1.msra.mxu0 0.0
    %5534 = vmatprep.subr.mxu0 0.0
    %5535 = vmatpush1.msra.mxu0 0.0
    %5536 = vmatprep.subr.mxu0 0.0
    %5537 = vmatpush1.msra.mxu0 0.0
    %5538 = vmatprep.subr.mxu0 0.0
    %5539 = vmatpush1.msra.mxu0 0.0
    %5540 = vmatprep.mubr.f32.mxu0 0.0
    %5541 = vmatmul.mubr.f32.gmra.mrb[0].mxu0 %v5474
    %v5542 = vpop.f32.mrb[0].mxu0
    %v5543 = vadd.f32 0.0, %v5542
    %v5544 = vpop.f32.mrb[0].mxu0
    %v5545 = vadd.f32 0.0, %v5544
    %5546 = vdwg.mxu0
    %5547 = vmatprep.subr.mxu0 %v4366
    %5548 = vmatpush1.msra.mxu0 %v4365
    %5549 = vmatprep.subr.mxu0 0.0
    %5550 = vmatpush1.msra.mxu0 0.0
    %5551 = vmatprep.subr.mxu0 0.0
    %5552 = vmatpush1.msra.mxu0 0.0
    %5553 = vmatprep.subr.mxu0 0.0
    %5554 = vmatpush1.msra.mxu0 0.0
    %5555 = vmatprep.subr.mxu0 0.0
    %5556 = vmatpush1.msra.mxu0 0.0
    %5557 = vmatprep.subr.mxu0 0.0
    %5558 = vmatpush1.msra.mxu0 0.0
    %5559 = vmatprep.subr.mxu0 0.0
    %5560 = vmatpush1.msra.mxu0 0.0
    %5561 = vmatprep.subr.mxu0 0.0
    %5562 = vmatpush1.msra.mxu0 0.0
    %5563 = vmatprep.subr.mxu0 0.0
    %5564 = vmatpush1.msra.mxu0 0.0
    %5565 = vmatprep.subr.mxu0 0.0
    %5566 = vmatpush1.msra.mxu0 0.0
    %5567 = vmatprep.subr.mxu0 0.0
    %5568 = vmatpush1.msra.mxu0 0.0
    %5569 = vmatprep.subr.mxu0 0.0
    %5570 = vmatpush1.msra.mxu0 0.0
    %5571 = vmatprep.subr.mxu0 0.0
    %5572 = vmatpush1.msra.mxu0 0.0
    %5573 = vmatprep.subr.mxu0 0.0
    %5574 = vmatpush1.msra.mxu0 0.0
    %5575 = vmatprep.subr.mxu0 0.0
    %5576 = vmatpush1.msra.mxu0 0.0
    %5577 = vmatprep.subr.mxu0 0.0
    %5578 = vmatpush1.msra.mxu0 0.0
    %5579 = vmatprep.subr.mxu0 0.0
    %5580 = vmatpush1.msra.mxu0 0.0
    %5581 = vmatprep.subr.mxu0 0.0
    %5582 = vmatpush1.msra.mxu0 0.0
    %5583 = vmatprep.subr.mxu0 0.0
    %5584 = vmatpush1.msra.mxu0 0.0
    %5585 = vmatprep.subr.mxu0 0.0
    %5586 = vmatpush1.msra.mxu0 0.0
    %5587 = vmatprep.subr.mxu0 0.0
    %5588 = vmatpush1.msra.mxu0 0.0
    %5589 = vmatprep.subr.mxu0 0.0
    %5590 = vmatpush1.msra.mxu0 0.0
    %5591 = vmatprep.subr.mxu0 0.0
    %5592 = vmatpush1.msra.mxu0 0.0
    %5593 = vmatprep.subr.mxu0 0.0
    %5594 = vmatpush1.msra.mxu0 0.0
    %5595 = vmatprep.subr.mxu0 0.0
    %5596 = vmatpush1.msra.mxu0 0.0
    %5597 = vmatprep.subr.mxu0 0.0
    %5598 = vmatpush1.msra.mxu0 0.0
    %5599 = vmatprep.subr.mxu0 0.0
    %5600 = vmatpush1.msra.mxu0 0.0
    %5601 = vmatprep.subr.mxu0 0.0
    %5602 = vmatpush1.msra.mxu0 0.0
    %5603 = vmatprep.subr.mxu0 0.0
    %5604 = vmatpush1.msra.mxu0 0.0
    %5605 = vmatprep.subr.mxu0 0.0
    %5606 = vmatpush1.msra.mxu0 0.0
    %5607 = vmatprep.subr.mxu0 0.0
    %5608 = vmatpush1.msra.mxu0 0.0
    %5609 = vmatprep.subr.mxu0 0.0
    %5610 = vmatpush1.msra.mxu0 0.0
    %5611 = vmatprep.mubr.f32.mxu0 0.0
    %5612 = vmatmul.mubr.f32.gmra.mrb[0].mxu0 %v5474
    %v5613 = vpop.f32.mrb[0].mxu0
    %v5614 = vadd.f32 0.0, %v5613
    %v5615 = vpop.f32.mrb[0].mxu0
    %v5616 = vadd.f32 0.0, %v5615
    %5617 = vdwg.mxu0
    %v5618 = vlaneseq
    %v5619 = vshrl.u32 %v5618, 7
    %v5620 = vsub.s32 0, %v5619
    %v5621 = vrot.slane %v5398, %v5620
    %v5622 = vlaneseq
    %v5623 = vshrl.u32 %v5622, 7
    %v5624 = vsub.s32 0, %v5623
    %v5625 = vrot.slane %v5400, %v5624
    %v5626 = vlaneseq
    %v5627 = vshrl.u32 %v5626, 7
    %v5628 = vsub.s32 0, %v5627
    %v5629 = vrot.slane %v5469, %v5628
    %v5630 = vlaneseq
    %v5631 = vshrl.u32 %v5630, 7
    %v5632 = vsub.s32 0, %v5631
    %v5633 = vrot.slane %v5471, %v5632
    %v5634 = vmul.f32 %v4436, %v5621
    %v5635 = vmul.f32 %v4438, %v5625
    %v5636 = vmul.f32 %v4597, %v5629
    %v5637 = vmul.f32 %v4599, %v5633
    %v5638 = vmul.f32 %v4442, %v5621
    %v5639 = vmul.f32 %v4444, %v5625
    %v5640 = vmul.f32 %v4603, %v5629
    %v5641 = vmul.f32 %v4605, %v5633
    %v5642 = vmul.f32 %v4448, %v5621
    %v5643 = vmul.f32 %v4450, %v5625
    %v5644 = vmul.f32 %v4609, %v5629
    %v5645 = vmul.f32 %v4611, %v5633
    %v5646 = vmul.f32 %v4454, %v5621
    %v5647 = vmul.f32 %v4456, %v5625
    %v5648 = vmul.f32 %v4615, %v5629
    %v5649 = vmul.f32 %v4617, %v5633
    %v5650 = vmul.f32 %v4460, %v5621
    %v5651 = vmul.f32 %v4462, %v5625
    %v5652 = vmul.f32 %v4621, %v5629
    %v5653 = vmul.f32 %v4623, %v5633
    %v5654 = vmul.f32 %v4466, %v5621
    %v5655 = vmul.f32 %v4468, %v5625
    %v5656 = vmul.f32 %v4627, %v5629
    %v5657 = vmul.f32 %v4629, %v5633
    %v5658 = vmul.f32 %v4472, %v5621
    %v5659 = vmul.f32 %v4474, %v5625
    %v5660 = vmul.f32 %v4633, %v5629
    %v5661 = vmul.f32 %v4635, %v5633
    %v5662 = vmul.f32 %v4478, %v5621
    %v5663 = vmul.f32 %v4480, %v5625
    %v5664 = vmul.f32 %v4639, %v5629
    %v5665 = vmul.f32 %v4641, %v5633
    %v5666 = vmul.f32 %v4484, %v5621
    %v5667 = vmul.f32 %v4486, %v5625
    %v5668 = vmul.f32 %v4645, %v5629
    %v5669 = vmul.f32 %v4647, %v5633
    %v5670 = vmul.f32 %v4490, %v5621
    %v5671 = vmul.f32 %v4492, %v5625
    %v5672 = vmul.f32 %v4651, %v5629
    %v5673 = vmul.f32 %v4653, %v5633
    %v5674 = vmul.f32 %v4496, %v5621
    %v5675 = vmul.f32 %v4498, %v5625
    %v5676 = vmul.f32 %v4657, %v5629
    %v5677 = vmul.f32 %v4659, %v5633
    %v5678 = vmul.f32 %v4502, %v5621
    %v5679 = vmul.f32 %v4504, %v5625
    %v5680 = vmul.f32 %v4663, %v5629
    %v5681 = vmul.f32 %v4665, %v5633
    %v5682 = vmul.f32 %v4508, %v5621
    %v5683 = vmul.f32 %v4510, %v5625
    %v5684 = vmul.f32 %v4669, %v5629
    %v5685 = vmul.f32 %v4671, %v5633
    %v5686 = vmul.f32 %v4514, %v5621
    %v5687 = vmul.f32 %v4516, %v5625
    %v5688 = vmul.f32 %v4675, %v5629
    %v5689 = vmul.f32 %v4677, %v5633
    %v5690 = vmul.f32 %v4520, %v5621
    %v5691 = vmul.f32 %v4522, %v5625
    %v5692 = vmul.f32 %v4681, %v5629
    %v5693 = vmul.f32 %v4683, %v5633
    %v5694 = vmul.f32 %v4526, %v5621
    %v5695 = vmul.f32 %v4528, %v5625
    %v5696 = vmul.f32 %v4687, %v5629
    %v5697 = vmul.f32 %v4689, %v5633
    %v5698 = vlaneseq
    %v5699 = vshrl.u32 %v5698, 7
    %v5700 = vsub.s32 0, %v5699
    %v5701 = vrot.slane %v5543, %v5700
    %v5702 = vlaneseq
    %v5703 = vshrl.u32 %v5702, 7
    %v5704 = vsub.s32 0, %v5703
    %v5705 = vrot.slane %v5545, %v5704
    %v5706 = vlaneseq
    %v5707 = vshrl.u32 %v5706, 7
    %v5708 = vsub.s32 0, %v5707
    %v5709 = vrot.slane %v5614, %v5708
    %v5710 = vlaneseq
    %v5711 = vshrl.u32 %v5710, 7
    %v5712 = vsub.s32 0, %v5711
    %v5713 = vrot.slane %v5616, %v5712
    %v5714 = vadd.f32 %v5634, %v5701
    %v5715 = vadd.f32 %v5635, %v5705
    %v5716 = vadd.f32 %v5636, %v5709
    %v5717 = vadd.f32 %v5637, %v5713
    %v5718 = vadd.f32 %v5638, %v5701
    %v5719 = vadd.f32 %v5639, %v5705
    %v5720 = vadd.f32 %v5640, %v5709
    %v5721 = vadd.f32 %v5641, %v5713
    %v5722 = vadd.f32 %v5642, %v5701
    %v5723 = vadd.f32 %v5643, %v5705
    %v5724 = vadd.f32 %v5644, %v5709
    %v5725 = vadd.f32 %v5645, %v5713
    %v5726 = vadd.f32 %v5646, %v5701
    %v5727 = vadd.f32 %v5647, %v5705
    %v5728 = vadd.f32 %v5648, %v5709
    %v5729 = vadd.f32 %v5649, %v5713
    %v5730 = vadd.f32 %v5650, %v5701
    %v5731 = vadd.f32 %v5651, %v5705
    %v5732 = vadd.f32 %v5652, %v5709
    %v5733 = vadd.f32 %v5653, %v5713
    %v5734 = vadd.f32 %v5654, %v5701
    %v5735 = vadd.f32 %v5655, %v5705
    %v5736 = vadd.f32 %v5656, %v5709
    %v5737 = vadd.f32 %v5657, %v5713
    %v5738 = vadd.f32 %v5658, %v5701
    %v5739 = vadd.f32 %v5659, %v5705
    %v5740 = vadd.f32 %v5660, %v5709
    %v5741 = vadd.f32 %v5661, %v5713
    %v5742 = vadd.f32 %v5662, %v5701
    %v5743 = vadd.f32 %v5663, %v5705
    %v5744 = vadd.f32 %v5664, %v5709
    %v5745 = vadd.f32 %v5665, %v5713
    %v5746 = vadd.f32 %v5666, %v5701
    %v5747 = vadd.f32 %v5667, %v5705
    %v5748 = vadd.f32 %v5668, %v5709
    %v5749 = vadd.f32 %v5669, %v5713
    %v5750 = vadd.f32 %v5670, %v5701
    %v5751 = vadd.f32 %v5671, %v5705
    %v5752 = vadd.f32 %v5672, %v5709
    %v5753 = vadd.f32 %v5673, %v5713
    %v5754 = vadd.f32 %v5674, %v5701
    %v5755 = vadd.f32 %v5675, %v5705
    %v5756 = vadd.f32 %v5676, %v5709
    %v5757 = vadd.f32 %v5677, %v5713
    %v5758 = vadd.f32 %v5678, %v5701
    %v5759 = vadd.f32 %v5679, %v5705
    %v5760 = vadd.f32 %v5680, %v5709
    %v5761 = vadd.f32 %v5681, %v5713
    %v5762 = vadd.f32 %v5682, %v5701
    %v5763 = vadd.f32 %v5683, %v5705
    %v5764 = vadd.f32 %v5684, %v5709
    %v5765 = vadd.f32 %v5685, %v5713
    %v5766 = vadd.f32 %v5686, %v5701
    %v5767 = vadd.f32 %v5687, %v5705
    %v5768 = vadd.f32 %v5688, %v5709
    %v5769 = vadd.f32 %v5689, %v5713
    %v5770 = vadd.f32 %v5690, %v5701
    %v5771 = vadd.f32 %v5691, %v5705
    %v5772 = vadd.f32 %v5692, %v5709
    %v5773 = vadd.f32 %v5693, %v5713
    %v5774 = vadd.f32 %v5694, %v5701
    %v5775 = vadd.f32 %v5695, %v5705
    %v5776 = vadd.f32 %v5696, %v5709
    %v5777 = vadd.f32 %v5697, %v5713
    %v5778 = vmax.f32 %v5714, 0.0
    %v5779 = vmax.f32 %v5715, 0.0
    %v5780 = vmax.f32 %v5716, 0.0
    %v5781 = vmax.f32 %v5717, 0.0
    %v5782 = vmax.f32 %v5718, 0.0
    %v5783 = vmax.f32 %v5719, 0.0
    %v5784 = vmax.f32 %v5720, 0.0
    %v5785 = vmax.f32 %v5721, 0.0
    %v5786 = vmax.f32 %v5722, 0.0
    %v5787 = vmax.f32 %v5723, 0.0
    %v5788 = vmax.f32 %v5724, 0.0
    %v5789 = vmax.f32 %v5725, 0.0
    %v5790 = vmax.f32 %v5726, 0.0
    %v5791 = vmax.f32 %v5727, 0.0
    %v5792 = vmax.f32 %v5728, 0.0
    %v5793 = vmax.f32 %v5729, 0.0
    %v5794 = vmax.f32 %v5730, 0.0
    %v5795 = vmax.f32 %v5731, 0.0
    %v5796 = vmax.f32 %v5732, 0.0
    %v5797 = vmax.f32 %v5733, 0.0
    %v5798 = vmax.f32 %v5734, 0.0
    %v5799 = vmax.f32 %v5735, 0.0
    %v5800 = vmax.f32 %v5736, 0.0
    %v5801 = vmax.f32 %v5737, 0.0
    %v5802 = vmax.f32 %v5738, 0.0
    %v5803 = vmax.f32 %v5739, 0.0
    %v5804 = vmax.f32 %v5740, 0.0
    %v5805 = vmax.f32 %v5741, 0.0
    %v5806 = vmax.f32 %v5742, 0.0
    %v5807 = vmax.f32 %v5743, 0.0
    %v5808 = vmax.f32 %v5744, 0.0
    %v5809 = vmax.f32 %v5745, 0.0
    %v5810 = vmax.f32 %v5746, 0.0
    %v5811 = vmax.f32 %v5747, 0.0
    %v5812 = vmax.f32 %v5748, 0.0
    %v5813 = vmax.f32 %v5749, 0.0
    %v5814 = vmax.f32 %v5750, 0.0
    %v5815 = vmax.f32 %v5751, 0.0
    %v5816 = vmax.f32 %v5752, 0.0
    %v5817 = vmax.f32 %v5753, 0.0
    %v5818 = vmax.f32 %v5754, 0.0
    %v5819 = vmax.f32 %v5755, 0.0
    %v5820 = vmax.f32 %v5756, 0.0
    %v5821 = vmax.f32 %v5757, 0.0
    %v5822 = vmax.f32 %v5758, 0.0
    %v5823 = vmax.f32 %v5759, 0.0
    %v5824 = vmax.f32 %v5760, 0.0
    %v5825 = vmax.f32 %v5761, 0.0
    %v5826 = vmax.f32 %v5762, 0.0
    %v5827 = vmax.f32 %v5763, 0.0
    %v5828 = vmax.f32 %v5764, 0.0
    %v5829 = vmax.f32 %v5765, 0.0
    %v5830 = vmax.f32 %v5766, 0.0
    %v5831 = vmax.f32 %v5767, 0.0
    %v5832 = vmax.f32 %v5768, 0.0
    %v5833 = vmax.f32 %v5769, 0.0
    %v5834 = vmax.f32 %v5770, 0.0
    %v5835 = vmax.f32 %v5771, 0.0
    %v5836 = vmax.f32 %v5772, 0.0
    %v5837 = vmax.f32 %v5773, 0.0
    %v5838 = vmax.f32 %v5774, 0.0
    %v5839 = vmax.f32 %v5775, 0.0
    %v5840 = vmax.f32 %v5776, 0.0
    %v5841 = vmax.f32 %v5777, 0.0
    %s5842 = smul.u32 4, 64
    %s5843 = smul.u32 %s5842, 6
    %s5844 = sshll.u32 %s5843, 4
    %5845 = dma.done %s292, %s5844
    %v5846 = vld [vmem:[#allocation3] sm:$0xff]
    %v5847 = vld [vmem:[#allocation3 + $0x8] sm:$0xff]
    %v5848 = vld [vmem:[#allocation3 + $0x10] sm:$0xff]
    %v5849 = vld [vmem:[#allocation3 + $0x18] sm:$0xff]
    %v5850 = vld [vmem:[#allocation3 + $0x20] sm:$0xff]
    %v5851 = vld [vmem:[#allocation3 + $0x28] sm:$0xff]
    %v5852 = vld [vmem:[#allocation3 + $0x30] sm:$0xff]
    %v5853 = vld [vmem:[#allocation3 + $0x38] sm:$0xff]
    %v5854 = vld [vmem:[#allocation3 + $0x40] sm:$0xff]
    %v5855 = vld [vmem:[#allocation3 + $0x48] sm:$0xff]
    %v5856 = vld [vmem:[#allocation3 + $0x50] sm:$0xff]
    %v5857 = vld [vmem:[#allocation3 + $0x58] sm:$0xff]
    %v5858 = vld [vmem:[#allocation3 + $0x60] sm:$0xff]
    %v5859 = vld [vmem:[#allocation3 + $0x68] sm:$0xff]
    %v5860 = vld [vmem:[#allocation3 + $0x70] sm:$0xff]
    %v5861 = vld [vmem:[#allocation3 + $0x78] sm:$0xff]
    %v5862 = vld [vmem:[#allocation3 + $0x80] sm:$0xff]
    %v5863 = vld [vmem:[#allocation3 + $0x88] sm:$0xff]
    %v5864 = vld [vmem:[#allocation3 + $0x90] sm:$0xff]
    %v5865 = vld [vmem:[#allocation3 + $0x98] sm:$0xff]
    %v5866 = vld [vmem:[#allocation3 + $0xa0] sm:$0xff]
    %v5867 = vld [vmem:[#allocation3 + $0xa8] sm:$0xff]
    %v5868 = vld [vmem:[#allocation3 + $0xb0] sm:$0xff]
    %v5869 = vld [vmem:[#allocation3 + $0xb8] sm:$0xff]
    %v5870 = vld [vmem:[#allocation3 + $0xc0] sm:$0xff]
    %v5871 = vld [vmem:[#allocation3 + $0xc8] sm:$0xff]
    %v5872 = vld [vmem:[#allocation3 + $0xd0] sm:$0xff]
    %v5873 = vld [vmem:[#allocation3 + $0xd8] sm:$0xff]
    %v5874 = vld [vmem:[#allocation3 + $0xe0] sm:$0xff]
    %v5875 = vld [vmem:[#allocation3 + $0xe8] sm:$0xff]
    %v5876 = vld [vmem:[#allocation3 + $0xf0] sm:$0xff]
    %v5877 = vld [vmem:[#allocation3 + $0xf8] sm:$0xff]
    %v5878 = vld [vmem:[#allocation3 + $0x100] sm:$0xff]
    %v5879 = vld [vmem:[#allocation3 + $0x108] sm:$0xff]
    %v5880 = vld [vmem:[#allocation3 + $0x110] sm:$0xff]
    %v5881 = vld [vmem:[#allocation3 + $0x118] sm:$0xff]
    %v5882 = vld [vmem:[#allocation3 + $0x120] sm:$0xff]
    %v5883 = vld [vmem:[#allocation3 + $0x128] sm:$0xff]
    %v5884 = vld [vmem:[#allocation3 + $0x130] sm:$0xff]
    %v5885 = vld [vmem:[#allocation3 + $0x138] sm:$0xff]
    %v5886 = vld [vmem:[#allocation3 + $0x140] sm:$0xff]
    %v5887 = vld [vmem:[#allocation3 + $0x148] sm:$0xff]
    %v5888 = vld [vmem:[#allocation3 + $0x150] sm:$0xff]
    %v5889 = vld [vmem:[#allocation3 + $0x158] sm:$0xff]
    %v5890 = vld [vmem:[#allocation3 + $0x160] sm:$0xff]
    %v5891 = vld [vmem:[#allocation3 + $0x168] sm:$0xff]
    %v5892 = vld [vmem:[#allocation3 + $0x170] sm:$0xff]
    %v5893 = vld [vmem:[#allocation3 + $0x178] sm:$0xff]
    %v5894 = vld [vmem:[#allocation3 + $0x180] sm:$0xff]
    %v5895 = vld [vmem:[#allocation3 + $0x188] sm:$0xff]
    %v5896 = vld [vmem:[#allocation3 + $0x190] sm:$0xff]
    %v5897 = vld [vmem:[#allocation3 + $0x198] sm:$0xff]
    %v5898 = vld [vmem:[#allocation3 + $0x1a0] sm:$0xff]
    %v5899 = vld [vmem:[#allocation3 + $0x1a8] sm:$0xff]
    %v5900 = vld [vmem:[#allocation3 + $0x1b0] sm:$0xff]
    %v5901 = vld [vmem:[#allocation3 + $0x1b8] sm:$0xff]
    %v5902 = vld [vmem:[#allocation3 + $0x1c0] sm:$0xff]
    %v5903 = vld [vmem:[#allocation3 + $0x1c8] sm:$0xff]
    %v5904 = vld [vmem:[#allocation3 + $0x1d0] sm:$0xff]
    %v5905 = vld [vmem:[#allocation3 + $0x1d8] sm:$0xff]
    %v5906 = vld [vmem:[#allocation3 + $0x1e0] sm:$0xff]
    %v5907 = vld [vmem:[#allocation3 + $0x1e8] sm:$0xff]
    %v5908 = vld [vmem:[#allocation3 + $0x1f0] sm:$0xff]
    %v5909 = vld [vmem:[#allocation3 + $0x1f8] sm:$0xff]
    %v5910 = vld [vmem:[#allocation3 + $0x200] sm:$0xff]
    %v5911 = vld [vmem:[#allocation3 + $0x208] sm:$0xff]
    %v5912 = vld [vmem:[#allocation3 + $0x210] sm:$0xff]
    %v5913 = vld [vmem:[#allocation3 + $0x218] sm:$0xff]
    %v5914 = vld [vmem:[#allocation3 + $0x220] sm:$0xff]
    %v5915 = vld [vmem:[#allocation3 + $0x228] sm:$0xff]
    %v5916 = vld [vmem:[#allocation3 + $0x230] sm:$0xff]
    %v5917 = vld [vmem:[#allocation3 + $0x238] sm:$0xff]
    %v5918 = vld [vmem:[#allocation3 + $0x240] sm:$0xff]
    %v5919 = vld [vmem:[#allocation3 + $0x248] sm:$0xff]
    %v5920 = vld [vmem:[#allocation3 + $0x250] sm:$0xff]
    %v5921 = vld [vmem:[#allocation3 + $0x258] sm:$0xff]
    %v5922 = vld [vmem:[#allocation3 + $0x260] sm:$0xff]
    %v5923 = vld [vmem:[#allocation3 + $0x268] sm:$0xff]
    %v5924 = vld [vmem:[#allocation3 + $0x270] sm:$0xff]
    %v5925 = vld [vmem:[#allocation3 + $0x278] sm:$0xff]
    %v5926 = vld [vmem:[#allocation3 + $0x280] sm:$0xff]
    %v5927 = vld [vmem:[#allocation3 + $0x288] sm:$0xff]
    %v5928 = vld [vmem:[#allocation3 + $0x290] sm:$0xff]
    %v5929 = vld [vmem:[#allocation3 + $0x298] sm:$0xff]
    %v5930 = vld [vmem:[#allocation3 + $0x2a0] sm:$0xff]
    %v5931 = vld [vmem:[#allocation3 + $0x2a8] sm:$0xff]
    %v5932 = vld [vmem:[#allocation3 + $0x2b0] sm:$0xff]
    %v5933 = vld [vmem:[#allocation3 + $0x2b8] sm:$0xff]
    %v5934 = vld [vmem:[#allocation3 + $0x2c0] sm:$0xff]
    %v5935 = vld [vmem:[#allocation3 + $0x2c8] sm:$0xff]
    %v5936 = vld [vmem:[#allocation3 + $0x2d0] sm:$0xff]
    %v5937 = vld [vmem:[#allocation3 + $0x2d8] sm:$0xff]
    %v5938 = vld [vmem:[#allocation3 + $0x2e0] sm:$0xff]
    %v5939 = vld [vmem:[#allocation3 + $0x2e8] sm:$0xff]
    %v5940 = vld [vmem:[#allocation3 + $0x2f0] sm:$0xff]
    %v5941 = vld [vmem:[#allocation3 + $0x2f8] sm:$0xff]
    %v5942 = vld [vmem:[#allocation3 + $0x300] sm:$0xff]
    %v5943 = vld [vmem:[#allocation3 + $0x308] sm:$0xff]
    %v5944 = vld [vmem:[#allocation3 + $0x310] sm:$0xff]
    %v5945 = vld [vmem:[#allocation3 + $0x318] sm:$0xff]
    %v5946 = vld [vmem:[#allocation3 + $0x320] sm:$0xff]
    %v5947 = vld [vmem:[#allocation3 + $0x328] sm:$0xff]
    %v5948 = vld [vmem:[#allocation3 + $0x330] sm:$0xff]
    %v5949 = vld [vmem:[#allocation3 + $0x338] sm:$0xff]
    %v5950 = vld [vmem:[#allocation3 + $0x340] sm:$0xff]
    %v5951 = vld [vmem:[#allocation3 + $0x348] sm:$0xff]
    %v5952 = vld [vmem:[#allocation3 + $0x350] sm:$0xff]
    %v5953 = vld [vmem:[#allocation3 + $0x358] sm:$0xff]
    %v5954 = vld [vmem:[#allocation3 + $0x360] sm:$0xff]
    %v5955 = vld [vmem:[#allocation3 + $0x368] sm:$0xff]
    %v5956 = vld [vmem:[#allocation3 + $0x370] sm:$0xff]
    %v5957 = vld [vmem:[#allocation3 + $0x378] sm:$0xff]
    %v5958 = vld [vmem:[#allocation3 + $0x380] sm:$0xff]
    %v5959 = vld [vmem:[#allocation3 + $0x388] sm:$0xff]
    %v5960 = vld [vmem:[#allocation3 + $0x390] sm:$0xff]
    %v5961 = vld [vmem:[#allocation3 + $0x398] sm:$0xff]
    %v5962 = vld [vmem:[#allocation3 + $0x3a0] sm:$0xff]
    %v5963 = vld [vmem:[#allocation3 + $0x3a8] sm:$0xff]
    %v5964 = vld [vmem:[#allocation3 + $0x3b0] sm:$0xff]
    %v5965 = vld [vmem:[#allocation3 + $0x3b8] sm:$0xff]
    %v5966 = vld [vmem:[#allocation3 + $0x3c0] sm:$0xff]
    %v5967 = vld [vmem:[#allocation3 + $0x3c8] sm:$0xff]
    %v5968 = vld [vmem:[#allocation3 + $0x3d0] sm:$0xff]
    %v5969 = vld [vmem:[#allocation3 + $0x3d8] sm:$0xff]
    %v5970 = vld [vmem:[#allocation3 + $0x3e0] sm:$0xff]
    %v5971 = vld [vmem:[#allocation3 + $0x3e8] sm:$0xff]
    %v5972 = vld [vmem:[#allocation3 + $0x3f0] sm:$0xff]
    %v5973 = vld [vmem:[#allocation3 + $0x3f8] sm:$0xff]
    %v5974 = vld [vmem:[#allocation3 + $0x400] sm:$0xff]
    %v5975 = vld [vmem:[#allocation3 + $0x408] sm:$0xff]
    %v5976 = vld [vmem:[#allocation3 + $0x410] sm:$0xff]
    %v5977 = vld [vmem:[#allocation3 + $0x418] sm:$0xff]
    %v5978 = vld [vmem:[#allocation3 + $0x420] sm:$0xff]
    %v5979 = vld [vmem:[#allocation3 + $0x428] sm:$0xff]
    %v5980 = vld [vmem:[#allocation3 + $0x430] sm:$0xff]
    %v5981 = vld [vmem:[#allocation3 + $0x438] sm:$0xff]
    %v5982 = vld [vmem:[#allocation3 + $0x440] sm:$0xff]
    %v5983 = vld [vmem:[#allocation3 + $0x448] sm:$0xff]
    %v5984 = vld [vmem:[#allocation3 + $0x450] sm:$0xff]
    %v5985 = vld [vmem:[#allocation3 + $0x458] sm:$0xff]
    %v5986 = vld [vmem:[#allocation3 + $0x460] sm:$0xff]
    %v5987 = vld [vmem:[#allocation3 + $0x468] sm:$0xff]
    %v5988 = vld [vmem:[#allocation3 + $0x470] sm:$0xff]
    %v5989 = vld [vmem:[#allocation3 + $0x478] sm:$0xff]
    %v5990 = vld [vmem:[#allocation3 + $0x480] sm:$0xff]
    %v5991 = vld [vmem:[#allocation3 + $0x488] sm:$0xff]
    %v5992 = vld [vmem:[#allocation3 + $0x490] sm:$0xff]
    %v5993 = vld [vmem:[#allocation3 + $0x498] sm:$0xff]
    %v5994 = vld [vmem:[#allocation3 + $0x4a0] sm:$0xff]
    %v5995 = vld [vmem:[#allocation3 + $0x4a8] sm:$0xff]
    %v5996 = vld [vmem:[#allocation3 + $0x4b0] sm:$0xff]
    %v5997 = vld [vmem:[#allocation3 + $0x4b8] sm:$0xff]
    %v5998 = vld [vmem:[#allocation3 + $0x4c0] sm:$0xff]
    %v5999 = vld [vmem:[#allocation3 + $0x4c8] sm:$0xff]
    %v6000 = vld [vmem:[#allocation3 + $0x4d0] sm:$0xff]
    %v6001 = vld [vmem:[#allocation3 + $0x4d8] sm:$0xff]
    %v6002 = vld [vmem:[#allocation3 + $0x4e0] sm:$0xff]
    %v6003 = vld [vmem:[#allocation3 + $0x4e8] sm:$0xff]
    %v6004 = vld [vmem:[#allocation3 + $0x4f0] sm:$0xff]
    %v6005 = vld [vmem:[#allocation3 + $0x4f8] sm:$0xff]
    %v6006 = vld [vmem:[#allocation3 + $0x500] sm:$0xff]
    %v6007 = vld [vmem:[#allocation3 + $0x508] sm:$0xff]
    %v6008 = vld [vmem:[#allocation3 + $0x510] sm:$0xff]
    %v6009 = vld [vmem:[#allocation3 + $0x518] sm:$0xff]
    %v6010 = vld [vmem:[#allocation3 + $0x520] sm:$0xff]
    %v6011 = vld [vmem:[#allocation3 + $0x528] sm:$0xff]
    %v6012 = vld [vmem:[#allocation3 + $0x530] sm:$0xff]
    %v6013 = vld [vmem:[#allocation3 + $0x538] sm:$0xff]
    %v6014 = vld [vmem:[#allocation3 + $0x540] sm:$0xff]
    %v6015 = vld [vmem:[#allocation3 + $0x548] sm:$0xff]
    %v6016 = vld [vmem:[#allocation3 + $0x550] sm:$0xff]
    %v6017 = vld [vmem:[#allocation3 + $0x558] sm:$0xff]
    %v6018 = vld [vmem:[#allocation3 + $0x560] sm:$0xff]
    %v6019 = vld [vmem:[#allocation3 + $0x568] sm:$0xff]
    %v6020 = vld [vmem:[#allocation3 + $0x570] sm:$0xff]
    %v6021 = vld [vmem:[#allocation3 + $0x578] sm:$0xff]
    %v6022 = vld [vmem:[#allocation3 + $0x580] sm:$0xff]
    %v6023 = vld [vmem:[#allocation3 + $0x588] sm:$0xff]
    %v6024 = vld [vmem:[#allocation3 + $0x590] sm:$0xff]
    %v6025 = vld [vmem:[#allocation3 + $0x598] sm:$0xff]
    %v6026 = vld [vmem:[#allocation3 + $0x5a0] sm:$0xff]
    %v6027 = vld [vmem:[#allocation3 + $0x5a8] sm:$0xff]
    %v6028 = vld [vmem:[#allocation3 + $0x5b0] sm:$0xff]
    %v6029 = vld [vmem:[#allocation3 + $0x5b8] sm:$0xff]
    %v6030 = vld [vmem:[#allocation3 + $0x5c0] sm:$0xff]
    %v6031 = vld [vmem:[#allocation3 + $0x5c8] sm:$0xff]
    %v6032 = vld [vmem:[#allocation3 + $0x5d0] sm:$0xff]
    %v6033 = vld [vmem:[#allocation3 + $0x5d8] sm:$0xff]
    %v6034 = vld [vmem:[#allocation3 + $0x5e0] sm:$0xff]
    %v6035 = vld [vmem:[#allocation3 + $0x5e8] sm:$0xff]
    %v6036 = vld [vmem:[#allocation3 + $0x5f0] sm:$0xff]
    %v6037 = vld [vmem:[#allocation3 + $0x5f8] sm:$0xff]
    %v6038 = vunpack.c.l.bf16 %v5846
    %v6039 = vunpack.c.l.bf16 %v5847
    %v6040 = vunpack.c.l.bf16 %v5848
    %v6041 = vunpack.c.l.bf16 %v5849
    %v6042 = vunpack.c.l.bf16 %v5850
    %v6043 = vunpack.c.l.bf16 %v5851
    %v6044 = vunpack.c.h.bf16 %v5846
    %v6045 = vunpack.c.h.bf16 %v5847
    %v6046 = vunpack.c.h.bf16 %v5848
    %v6047 = vunpack.c.h.bf16 %v5849
    %v6048 = vunpack.c.h.bf16 %v5850
    %v6049 = vunpack.c.h.bf16 %v5851
    %v6050 = vunpack.c.l.bf16 %v5852
    %v6051 = vunpack.c.l.bf16 %v5853
    %v6052 = vunpack.c.l.bf16 %v5854
    %v6053 = vunpack.c.l.bf16 %v5855
    %v6054 = vunpack.c.l.bf16 %v5856
    %v6055 = vunpack.c.l.bf16 %v5857
    %v6056 = vunpack.c.h.bf16 %v5852
    %v6057 = vunpack.c.h.bf16 %v5853
    %v6058 = vunpack.c.h.bf16 %v5854
    %v6059 = vunpack.c.h.bf16 %v5855
    %v6060 = vunpack.c.h.bf16 %v5856
    %v6061 = vunpack.c.h.bf16 %v5857
    %v6062 = vunpack.c.l.bf16 %v5858
    %v6063 = vunpack.c.l.bf16 %v5859
    %v6064 = vunpack.c.l.bf16 %v5860
    %v6065 = vunpack.c.l.bf16 %v5861
    %v6066 = vunpack.c.l.bf16 %v5862
    %v6067 = vunpack.c.l.bf16 %v5863
    %v6068 = vunpack.c.h.bf16 %v5858
    %v6069 = vunpack.c.h.bf16 %v5859
    %v6070 = vunpack.c.h.bf16 %v5860
    %v6071 = vunpack.c.h.bf16 %v5861
    %v6072 = vunpack.c.h.bf16 %v5862
    %v6073 = vunpack.c.h.bf16 %v5863
    %v6074 = vunpack.c.l.bf16 %v5864
    %v6075 = vunpack.c.l.bf16 %v5865
    %v6076 = vunpack.c.l.bf16 %v5866
    %v6077 = vunpack.c.l.bf16 %v5867
    %v6078 = vunpack.c.l.bf16 %v5868
    %v6079 = vunpack.c.l.bf16 %v5869
    %v6080 = vunpack.c.h.bf16 %v5864
    %v6081 = vunpack.c.h.bf16 %v5865
    %v6082 = vunpack.c.h.bf16 %v5866
    %v6083 = vunpack.c.h.bf16 %v5867
    %v6084 = vunpack.c.h.bf16 %v5868
    %v6085 = vunpack.c.h.bf16 %v5869
    %v6086 = vunpack.c.l.bf16 %v5870
    %v6087 = vunpack.c.l.bf16 %v5871
    %v6088 = vunpack.c.l.bf16 %v5872
    %v6089 = vunpack.c.l.bf16 %v5873
    %v6090 = vunpack.c.l.bf16 %v5874
    %v6091 = vunpack.c.l.bf16 %v5875
    %v6092 = vunpack.c.h.bf16 %v5870
    %v6093 = vunpack.c.h.bf16 %v5871
    %v6094 = vunpack.c.h.bf16 %v5872
    %v6095 = vunpack.c.h.bf16 %v5873
    %v6096 = vunpack.c.h.bf16 %v5874
    %v6097 = vunpack.c.h.bf16 %v5875
    %v6098 = vunpack.c.l.bf16 %v5876
    %v6099 = vunpack.c.l.bf16 %v5877
    %v6100 = vunpack.c.l.bf16 %v5878
    %v6101 = vunpack.c.l.bf16 %v5879
    %v6102 = vunpack.c.l.bf16 %v5880
    %v6103 = vunpack.c.l.bf16 %v5881
    %v6104 = vunpack.c.h.bf16 %v5876
    %v6105 = vunpack.c.h.bf16 %v5877
    %v6106 = vunpack.c.h.bf16 %v5878
    %v6107 = vunpack.c.h.bf16 %v5879
    %v6108 = vunpack.c.h.bf16 %v5880
    %v6109 = vunpack.c.h.bf16 %v5881
    %v6110 = vunpack.c.l.bf16 %v5882
    %v6111 = vunpack.c.l.bf16 %v5883
    %v6112 = vunpack.c.l.bf16 %v5884
    %v6113 = vunpack.c.l.bf16 %v5885
    %v6114 = vunpack.c.l.bf16 %v5886
    %v6115 = vunpack.c.l.bf16 %v5887
    %v6116 = vunpack.c.h.bf16 %v5882
    %v6117 = vunpack.c.h.bf16 %v5883
    %v6118 = vunpack.c.h.bf16 %v5884
    %v6119 = vunpack.c.h.bf16 %v5885
    %v6120 = vunpack.c.h.bf16 %v5886
    %v6121 = vunpack.c.h.bf16 %v5887
    %v6122 = vunpack.c.l.bf16 %v5888
    %v6123 = vunpack.c.l.bf16 %v5889
    %v6124 = vunpack.c.l.bf16 %v5890
    %v6125 = vunpack.c.l.bf16 %v5891
    %v6126 = vunpack.c.l.bf16 %v5892
    %v6127 = vunpack.c.l.bf16 %v5893
    %v6128 = vunpack.c.h.bf16 %v5888
    %v6129 = vunpack.c.h.bf16 %v5889
    %v6130 = vunpack.c.h.bf16 %v5890
    %v6131 = vunpack.c.h.bf16 %v5891
    %v6132 = vunpack.c.h.bf16 %v5892
    %v6133 = vunpack.c.h.bf16 %v5893
    %v6134 = vunpack.c.l.bf16 %v5894
    %v6135 = vunpack.c.l.bf16 %v5895
    %v6136 = vunpack.c.l.bf16 %v5896
    %v6137 = vunpack.c.l.bf16 %v5897
    %v6138 = vunpack.c.l.bf16 %v5898
    %v6139 = vunpack.c.l.bf16 %v5899
    %v6140 = vunpack.c.h.bf16 %v5894
    %v6141 = vunpack.c.h.bf16 %v5895
    %v6142 = vunpack.c.h.bf16 %v5896
    %v6143 = vunpack.c.h.bf16 %v5897
    %v6144 = vunpack.c.h.bf16 %v5898
    %v6145 = vunpack.c.h.bf16 %v5899
    %v6146 = vunpack.c.l.bf16 %v5900
    %v6147 = vunpack.c.l.bf16 %v5901
    %v6148 = vunpack.c.l.bf16 %v5902
    %v6149 = vunpack.c.l.bf16 %v5903
    %v6150 = vunpack.c.l.bf16 %v5904
    %v6151 = vunpack.c.l.bf16 %v5905
    %v6152 = vunpack.c.h.bf16 %v5900
    %v6153 = vunpack.c.h.bf16 %v5901
    %v6154 = vunpack.c.h.bf16 %v5902
    %v6155 = vunpack.c.h.bf16 %v5903
    %v6156 = vunpack.c.h.bf16 %v5904
    %v6157 = vunpack.c.h.bf16 %v5905
    %v6158 = vunpack.c.l.bf16 %v5906
    %v6159 = vunpack.c.l.bf16 %v5907
    %v6160 = vunpack.c.l.bf16 %v5908
    %v6161 = vunpack.c.l.bf16 %v5909
    %v6162 = vunpack.c.l.bf16 %v5910
    %v6163 = vunpack.c.l.bf16 %v5911
    %v6164 = vunpack.c.h.bf16 %v5906
    %v6165 = vunpack.c.h.bf16 %v5907
    %v6166 = vunpack.c.h.bf16 %v5908
    %v6167 = vunpack.c.h.bf16 %v5909
    %v6168 = vunpack.c.h.bf16 %v5910
    %v6169 = vunpack.c.h.bf16 %v5911
    %v6170 = vunpack.c.l.bf16 %v5912
    %v6171 = vunpack.c.l.bf16 %v5913
    %v6172 = vunpack.c.l.bf16 %v5914
    %v6173 = vunpack.c.l.bf16 %v5915
    %v6174 = vunpack.c.l.bf16 %v5916
    %v6175 = vunpack.c.l.bf16 %v5917
    %v6176 = vunpack.c.h.bf16 %v5912
    %v6177 = vunpack.c.h.bf16 %v5913
    %v6178 = vunpack.c.h.bf16 %v5914
    %v6179 = vunpack.c.h.bf16 %v5915
    %v6180 = vunpack.c.h.bf16 %v5916
    %v6181 = vunpack.c.h.bf16 %v5917
    %v6182 = vunpack.c.l.bf16 %v5918
    %v6183 = vunpack.c.l.bf16 %v5919
    %v6184 = vunpack.c.l.bf16 %v5920
    %v6185 = vunpack.c.l.bf16 %v5921
    %v6186 = vunpack.c.l.bf16 %v5922
    %v6187 = vunpack.c.l.bf16 %v5923
    %v6188 = vunpack.c.h.bf16 %v5918
    %v6189 = vunpack.c.h.bf16 %v5919
    %v6190 = vunpack.c.h.bf16 %v5920
    %v6191 = vunpack.c.h.bf16 %v5921
    %v6192 = vunpack.c.h.bf16 %v5922
    %v6193 = vunpack.c.h.bf16 %v5923
    %v6194 = vunpack.c.l.bf16 %v5924
    %v6195 = vunpack.c.l.bf16 %v5925
    %v6196 = vunpack.c.l.bf16 %v5926
    %v6197 = vunpack.c.l.bf16 %v5927
    %v6198 = vunpack.c.l.bf16 %v5928
    %v6199 = vunpack.c.l.bf16 %v5929
    %v6200 = vunpack.c.h.bf16 %v5924
    %v6201 = vunpack.c.h.bf16 %v5925
    %v6202 = vunpack.c.h.bf16 %v5926
    %v6203 = vunpack.c.h.bf16 %v5927
    %v6204 = vunpack.c.h.bf16 %v5928
    %v6205 = vunpack.c.h.bf16 %v5929
    %v6206 = vunpack.c.l.bf16 %v5930
    %v6207 = vunpack.c.l.bf16 %v5931
    %v6208 = vunpack.c.l.bf16 %v5932
    %v6209 = vunpack.c.l.bf16 %v5933
    %v6210 = vunpack.c.l.bf16 %v5934
    %v6211 = vunpack.c.l.bf16 %v5935
    %v6212 = vunpack.c.h.bf16 %v5930
    %v6213 = vunpack.c.h.bf16 %v5931
    %v6214 = vunpack.c.h.bf16 %v5932
    %v6215 = vunpack.c.h.bf16 %v5933
    %v6216 = vunpack.c.h.bf16 %v5934
    %v6217 = vunpack.c.h.bf16 %v5935
    %v6218 = vunpack.c.l.bf16 %v5936
    %v6219 = vunpack.c.l.bf16 %v5937
    %v6220 = vunpack.c.l.bf16 %v5938
    %v6221 = vunpack.c.l.bf16 %v5939
    %v6222 = vunpack.c.l.bf16 %v5940
    %v6223 = vunpack.c.l.bf16 %v5941
    %v6224 = vunpack.c.h.bf16 %v5936
    %v6225 = vunpack.c.h.bf16 %v5937
    %v6226 = vunpack.c.h.bf16 %v5938
    %v6227 = vunpack.c.h.bf16 %v5939
    %v6228 = vunpack.c.h.bf16 %v5940
    %v6229 = vunpack.c.h.bf16 %v5941
    %v6230 = vunpack.c.l.bf16 %v5942
    %v6231 = vunpack.c.l.bf16 %v5943
    %v6232 = vunpack.c.l.bf16 %v5944
    %v6233 = vunpack.c.l.bf16 %v5945
    %v6234 = vunpack.c.l.bf16 %v5946
    %v6235 = vunpack.c.l.bf16 %v5947
    %v6236 = vunpack.c.h.bf16 %v5942
    %v6237 = vunpack.c.h.bf16 %v5943
    %v6238 = vunpack.c.h.bf16 %v5944
    %v6239 = vunpack.c.h.bf16 %v5945
    %v6240 = vunpack.c.h.bf16 %v5946
    %v6241 = vunpack.c.h.bf16 %v5947
    %v6242 = vunpack.c.l.bf16 %v5948
    %v6243 = vunpack.c.l.bf16 %v5949
    %v6244 = vunpack.c.l.bf16 %v5950
    %v6245 = vunpack.c.l.bf16 %v5951
    %v6246 = vunpack.c.l.bf16 %v5952
    %v6247 = vunpack.c.l.bf16 %v5953
    %v6248 = vunpack.c.h.bf16 %v5948
    %v6249 = vunpack.c.h.bf16 %v5949
    %v6250 = vunpack.c.h.bf16 %v5950
    %v6251 = vunpack.c.h.bf16 %v5951
    %v6252 = vunpack.c.h.bf16 %v5952
    %v6253 = vunpack.c.h.bf16 %v5953
    %v6254 = vunpack.c.l.bf16 %v5954
    %v6255 = vunpack.c.l.bf16 %v5955
    %v6256 = vunpack.c.l.bf16 %v5956
    %v6257 = vunpack.c.l.bf16 %v5957
    %v6258 = vunpack.c.l.bf16 %v5958
    %v6259 = vunpack.c.l.bf16 %v5959
    %v6260 = vunpack.c.h.bf16 %v5954
    %v6261 = vunpack.c.h.bf16 %v5955
    %v6262 = vunpack.c.h.bf16 %v5956
    %v6263 = vunpack.c.h.bf16 %v5957
    %v6264 = vunpack.c.h.bf16 %v5958
    %v6265 = vunpack.c.h.bf16 %v5959
    %v6266 = vunpack.c.l.bf16 %v5960
    %v6267 = vunpack.c.l.bf16 %v5961
    %v6268 = vunpack.c.l.bf16 %v5962
    %v6269 = vunpack.c.l.bf16 %v5963
    %v6270 = vunpack.c.l.bf16 %v5964
    %v6271 = vunpack.c.l.bf16 %v5965
    %v6272 = vunpack.c.h.bf16 %v5960
    %v6273 = vunpack.c.h.bf16 %v5961
    %v6274 = vunpack.c.h.bf16 %v5962
    %v6275 = vunpack.c.h.bf16 %v5963
    %v6276 = vunpack.c.h.bf16 %v5964
    %v6277 = vunpack.c.h.bf16 %v5965
    %v6278 = vunpack.c.l.bf16 %v5966
    %v6279 = vunpack.c.l.bf16 %v5967
    %v6280 = vunpack.c.l.bf16 %v5968
    %v6281 = vunpack.c.l.bf16 %v5969
    %v6282 = vunpack.c.l.bf16 %v5970
    %v6283 = vunpack.c.l.bf16 %v5971
    %v6284 = vunpack.c.h.bf16 %v5966
    %v6285 = vunpack.c.h.bf16 %v5967
    %v6286 = vunpack.c.h.bf16 %v5968
    %v6287 = vunpack.c.h.bf16 %v5969
    %v6288 = vunpack.c.h.bf16 %v5970
    %v6289 = vunpack.c.h.bf16 %v5971
    %v6290 = vunpack.c.l.bf16 %v5972
    %v6291 = vunpack.c.l.bf16 %v5973
    %v6292 = vunpack.c.l.bf16 %v5974
    %v6293 = vunpack.c.l.bf16 %v5975
    %v6294 = vunpack.c.l.bf16 %v5976
    %v6295 = vunpack.c.l.bf16 %v5977
    %v6296 = vunpack.c.h.bf16 %v5972
    %v6297 = vunpack.c.h.bf16 %v5973
    %v6298 = vunpack.c.h.bf16 %v5974
    %v6299 = vunpack.c.h.bf16 %v5975
    %v6300 = vunpack.c.h.bf16 %v5976
    %v6301 = vunpack.c.h.bf16 %v5977
    %v6302 = vunpack.c.l.bf16 %v5978
    %v6303 = vunpack.c.l.bf16 %v5979
    %v6304 = vunpack.c.l.bf16 %v5980
    %v6305 = vunpack.c.l.bf16 %v5981
    %v6306 = vunpack.c.l.bf16 %v5982
    %v6307 = vunpack.c.l.bf16 %v5983
    %v6308 = vunpack.c.h.bf16 %v5978
    %v6309 = vunpack.c.h.bf16 %v5979
    %v6310 = vunpack.c.h.bf16 %v5980
    %v6311 = vunpack.c.h.bf16 %v5981
    %v6312 = vunpack.c.h.bf16 %v5982
    %v6313 = vunpack.c.h.bf16 %v5983
    %v6314 = vunpack.c.l.bf16 %v5984
    %v6315 = vunpack.c.l.bf16 %v5985
    %v6316 = vunpack.c.l.bf16 %v5986
    %v6317 = vunpack.c.l.bf16 %v5987
    %v6318 = vunpack.c.l.bf16 %v5988
    %v6319 = vunpack.c.l.bf16 %v5989
    %v6320 = vunpack.c.h.bf16 %v5984
    %v6321 = vunpack.c.h.bf16 %v5985
    %v6322 = vunpack.c.h.bf16 %v5986
    %v6323 = vunpack.c.h.bf16 %v5987
    %v6324 = vunpack.c.h.bf16 %v5988
    %v6325 = vunpack.c.h.bf16 %v5989
    %v6326 = vunpack.c.l.bf16 %v5990
    %v6327 = vunpack.c.l.bf16 %v5991
    %v6328 = vunpack.c.l.bf16 %v5992
    %v6329 = vunpack.c.l.bf16 %v5993
    %v6330 = vunpack.c.l.bf16 %v5994
    %v6331 = vunpack.c.l.bf16 %v5995
    %v6332 = vunpack.c.h.bf16 %v5990
    %v6333 = vunpack.c.h.bf16 %v5991
    %v6334 = vunpack.c.h.bf16 %v5992
    %v6335 = vunpack.c.h.bf16 %v5993
    %v6336 = vunpack.c.h.bf16 %v5994
    %v6337 = vunpack.c.h.bf16 %v5995
    %v6338 = vunpack.c.l.bf16 %v5996
    %v6339 = vunpack.c.l.bf16 %v5997
    %v6340 = vunpack.c.l.bf16 %v5998
    %v6341 = vunpack.c.l.bf16 %v5999
    %v6342 = vunpack.c.l.bf16 %v6000
    %v6343 = vunpack.c.l.bf16 %v6001
    %v6344 = vunpack.c.h.bf16 %v5996
    %v6345 = vunpack.c.h.bf16 %v5997
    %v6346 = vunpack.c.h.bf16 %v5998
    %v6347 = vunpack.c.h.bf16 %v5999
    %v6348 = vunpack.c.h.bf16 %v6000
    %v6349 = vunpack.c.h.bf16 %v6001
    %v6350 = vunpack.c.l.bf16 %v6002
    %v6351 = vunpack.c.l.bf16 %v6003
    %v6352 = vunpack.c.l.bf16 %v6004
    %v6353 = vunpack.c.l.bf16 %v6005
    %v6354 = vunpack.c.l.bf16 %v6006
    %v6355 = vunpack.c.l.bf16 %v6007
    %v6356 = vunpack.c.h.bf16 %v6002
    %v6357 = vunpack.c.h.bf16 %v6003
    %v6358 = vunpack.c.h.bf16 %v6004
    %v6359 = vunpack.c.h.bf16 %v6005
    %v6360 = vunpack.c.h.bf16 %v6006
    %v6361 = vunpack.c.h.bf16 %v6007
    %v6362 = vunpack.c.l.bf16 %v6008
    %v6363 = vunpack.c.l.bf16 %v6009
    %v6364 = vunpack.c.l.bf16 %v6010
    %v6365 = vunpack.c.l.bf16 %v6011
    %v6366 = vunpack.c.l.bf16 %v6012
    %v6367 = vunpack.c.l.bf16 %v6013
    %v6368 = vunpack.c.h.bf16 %v6008
    %v6369 = vunpack.c.h.bf16 %v6009
    %v6370 = vunpack.c.h.bf16 %v6010
    %v6371 = vunpack.c.h.bf16 %v6011
    %v6372 = vunpack.c.h.bf16 %v6012
    %v6373 = vunpack.c.h.bf16 %v6013
    %v6374 = vunpack.c.l.bf16 %v6014
    %v6375 = vunpack.c.l.bf16 %v6015
    %v6376 = vunpack.c.l.bf16 %v6016
    %v6377 = vunpack.c.l.bf16 %v6017
    %v6378 = vunpack.c.l.bf16 %v6018
    %v6379 = vunpack.c.l.bf16 %v6019
    %v6380 = vunpack.c.h.bf16 %v6014
    %v6381 = vunpack.c.h.bf16 %v6015
    %v6382 = vunpack.c.h.bf16 %v6016
    %v6383 = vunpack.c.h.bf16 %v6017
    %v6384 = vunpack.c.h.bf16 %v6018
    %v6385 = vunpack.c.h.bf16 %v6019
    %v6386 = vunpack.c.l.bf16 %v6020
    %v6387 = vunpack.c.l.bf16 %v6021
    %v6388 = vunpack.c.l.bf16 %v6022
    %v6389 = vunpack.c.l.bf16 %v6023
    %v6390 = vunpack.c.l.bf16 %v6024
    %v6391 = vunpack.c.l.bf16 %v6025
    %v6392 = vunpack.c.h.bf16 %v6020
    %v6393 = vunpack.c.h.bf16 %v6021
    %v6394 = vunpack.c.h.bf16 %v6022
    %v6395 = vunpack.c.h.bf16 %v6023
    %v6396 = vunpack.c.h.bf16 %v6024
    %v6397 = vunpack.c.h.bf16 %v6025
    %v6398 = vunpack.c.l.bf16 %v6026
    %v6399 = vunpack.c.l.bf16 %v6027
    %v6400 = vunpack.c.l.bf16 %v6028
    %v6401 = vunpack.c.l.bf16 %v6029
    %v6402 = vunpack.c.l.bf16 %v6030
    %v6403 = vunpack.c.l.bf16 %v6031
    %v6404 = vunpack.c.h.bf16 %v6026
    %v6405 = vunpack.c.h.bf16 %v6027
    %v6406 = vunpack.c.h.bf16 %v6028
    %v6407 = vunpack.c.h.bf16 %v6029
    %v6408 = vunpack.c.h.bf16 %v6030
    %v6409 = vunpack.c.h.bf16 %v6031
    %v6410 = vunpack.c.l.bf16 %v6032
    %v6411 = vunpack.c.l.bf16 %v6033
    %v6412 = vunpack.c.l.bf16 %v6034
    %v6413 = vunpack.c.l.bf16 %v6035
    %v6414 = vunpack.c.l.bf16 %v6036
    %v6415 = vunpack.c.l.bf16 %v6037
    %v6416 = vunpack.c.h.bf16 %v6032
    %v6417 = vunpack.c.h.bf16 %v6033
    %v6418 = vunpack.c.h.bf16 %v6034
    %v6419 = vunpack.c.h.bf16 %v6035
    %v6420 = vunpack.c.h.bf16 %v6036
    %v6421 = vunpack.c.h.bf16 %v6037
    %v6422 = vld [vmem:[#allocation28] sm:$0x3f]
    %v6424 = vlaneseq
    %v6425 = vshrl.u32 %v6424, 7
    %v6426 = vsub.s32 0, %v6425
    %v6427 = vrot.slane %v6422, %v6426
    %v6428 = vlaneseq
    %v6429 = vshrl.u32 %v6428, 7
    %v6430 = vsub.s32 1, %v6429
    %v6431 = vrot.slane %v6422, %v6430
    %v6432 = vlaneseq
    %v6433 = vshrl.u32 %v6432, 7
    %v6434 = vsub.s32 2, %v6433
    %v6435 = vrot.slane %v6422, %v6434
    %v6436 = vlaneseq
    %v6437 = vshrl.u32 %v6436, 7
    %v6438 = vsub.s32 3, %v6437
    %v6439 = vrot.slane %v6422, %v6438
    %v6440 = vlaneseq
    %v6441 = vshrl.u32 %v6440, 7
    %v6442 = vsub.s32 4, %v6441
    %v6443 = vrot.slane %v6422, %v6442
    %v6444 = vlaneseq
    %v6445 = vshrl.u32 %v6444, 7
    %v6446 = vsub.s32 5, %v6445
    %v6447 = vrot.slane %v6422, %v6446
    %6454 = vmatprep.subr.mxu0 %v6039
    %6455 = vmatpush1.msra.mxu0 %v6038
    %6456 = vmatprep.subr.mxu0 %v6045
    %6457 = vmatpush1.msra.mxu0 %v6044
    %6458 = vmatprep.subr.mxu0 %v6051
    %6459 = vmatpush1.msra.mxu0 %v6050
    %6460 = vmatprep.subr.mxu0 %v6057
    %6461 = vmatpush1.msra.mxu0 %v6056
    %6462 = vmatprep.subr.mxu0 %v6063
    %6463 = vmatpush1.msra.mxu0 %v6062
    %6464 = vmatprep.subr.mxu0 %v6069
    %6465 = vmatpush1.msra.mxu0 %v6068
    %6466 = vmatprep.subr.mxu0 %v6075
    %6467 = vmatpush1.msra.mxu0 %v6074
    %6468 = vmatprep.subr.mxu0 %v6081
    %6469 = vmatpush1.msra.mxu0 %v6080
    %6470 = vmatprep.subr.mxu0 %v6087
    %6471 = vmatpush1.msra.mxu0 %v6086
    %6472 = vmatprep.subr.mxu0 %v6093
    %6473 = vmatpush1.msra.mxu0 %v6092
    %6474 = vmatprep.subr.mxu0 %v6099
    %6475 = vmatpush1.msra.mxu0 %v6098
    %6476 = vmatprep.subr.mxu0 %v6105
    %6477 = vmatpush1.msra.mxu0 %v6104
    %6478 = vmatprep.subr.mxu0 %v6111
    %6479 = vmatpush1.msra.mxu0 %v6110
    %6480 = vmatprep.subr.mxu0 %v6117
    %6481 = vmatpush1.msra.mxu0 %v6116
    %6482 = vmatprep.subr.mxu0 %v6123
    %6483 = vmatpush1.msra.mxu0 %v6122
    %6484 = vmatprep.subr.mxu0 %v6129
    %6485 = vmatpush1.msra.mxu0 %v6128
    %6486 = vmatprep.subr.mxu0 %v6135
    %6487 = vmatpush1.msra.mxu0 %v6134
    %6488 = vmatprep.subr.mxu0 %v6141
    %6489 = vmatpush1.msra.mxu0 %v6140
    %6490 = vmatprep.subr.mxu0 %v6147
    %6491 = vmatpush1.msra.mxu0 %v6146
    %6492 = vmatprep.subr.mxu0 %v6153
    %6493 = vmatpush1.msra.mxu0 %v6152
    %6494 = vmatprep.subr.mxu0 %v6159
    %6495 = vmatpush1.msra.mxu0 %v6158
    %6496 = vmatprep.subr.mxu0 %v6165
    %6497 = vmatpush1.msra.mxu0 %v6164
    %6498 = vmatprep.subr.mxu0 %v6171
    %6499 = vmatpush1.msra.mxu0 %v6170
    %6500 = vmatprep.subr.mxu0 %v6177
    %6501 = vmatpush1.msra.mxu0 %v6176
    %6502 = vmatprep.subr.mxu0 %v6183
    %6503 = vmatpush1.msra.mxu0 %v6182
    %6504 = vmatprep.subr.mxu0 %v6189
    %6505 = vmatpush1.msra.mxu0 %v6188
    %6506 = vmatprep.subr.mxu0 %v6195
    %6507 = vmatpush1.msra.mxu0 %v6194
    %6508 = vmatprep.subr.mxu0 %v6201
    %6509 = vmatpush1.msra.mxu0 %v6200
    %6510 = vmatprep.subr.mxu0 %v6207
    %6511 = vmatpush1.msra.mxu0 %v6206
    %6512 = vmatprep.subr.mxu0 %v6213
    %6513 = vmatpush1.msra.mxu0 %v6212
    %6514 = vmatprep.subr.mxu0 %v6219
    %6515 = vmatpush1.msra.mxu0 %v6218
    %6516 = vmatprep.subr.mxu0 %v6225
    %6517 = vmatpush1.msra.mxu0 %v6224
    %6518 = vmatprep.mubr.f32.mxu0 %v5779
    %6519 = vmatmul.mubr.f32.gmra.mrb[0].mxu0 %v5778
    %v6520 = vpop.f32.mrb[0].mxu0
    %v6521 = vadd.f32 %v6427, %v6520
    %v6522 = vpop.f32.mrb[0].mxu0
    %v6523 = vadd.f32 %v6431, %v6522
    %6524 = vmatprep.mubr.f32.mxu0 %v5783
    %6525 = vmatmul.mubr.f32.gmra.mrb[0].mxu0 %v5782
    %v6526 = vpop.f32.mrb[0].mxu0
    %v6527 = vadd.f32 %v6427, %v6526
    %v6528 = vpop.f32.mrb[0].mxu0
    %v6529 = vadd.f32 %v6431, %v6528
    %6530 = vmatprep.mubr.f32.mxu0 %v5787
    %6531 = vmatmul.mubr.f32.gmra.mrb[0].mxu0 %v5786
    %v6532 = vpop.f32.mrb[0].mxu0
    %v6533 = vadd.f32 %v6427, %v6532
    %v6534 = vpop.f32.mrb[0].mxu0
    %v6535 = vadd.f32 %v6431, %v6534
    %6536 = vmatprep.mubr.f32.mxu0 %v5791
    %6537 = vmatmul.mubr.f32.gmra.mrb[0].mxu0 %v5790
    %v6538 = vpop.f32.mrb[0].mxu0
    %v6539 = vadd.f32 %v6427, %v6538
    %v6540 = vpop.f32.mrb[0].mxu0
    %v6541 = vadd.f32 %v6431, %v6540
    %6542 = vmatprep.mubr.f32.mxu0 %v5795
    %6543 = vmatmul.mubr.f32.gmra.mrb[0].mxu0 %v5794
    %v6544 = vpop.f32.mrb[0].mxu0
    %v6545 = vadd.f32 %v6427, %v6544
    %v6546 = vpop.f32.mrb[0].mxu0
    %v6547 = vadd.f32 %v6431, %v6546
    %6548 = vmatprep.mubr.f32.mxu0 %v5799
    %6549 = vmatmul.mubr.f32.gmra.mrb[0].mxu0 %v5798
    %v6550 = vpop.f32.mrb[0].mxu0
    %v6551 = vadd.f32 %v6427, %v6550
    %v6552 = vpop.f32.mrb[0].mxu0
    %v6553 = vadd.f32 %v6431, %v6552
    %6554 = vmatprep.mubr.f32.mxu0 %v5803
    %6555 = vmatmul.mubr.f32.gmra.mrb[0].mxu0 %v5802
    %v6556 = vpop.f32.mrb[0].mxu0
    %v6557 = vadd.f32 %v6427, %v6556
    %v6558 = vpop.f32.mrb[0].mxu0
    %v6559 = vadd.f32 %v6431, %v6558
    %6560 = vmatprep.mubr.f32.mxu0 %v5807
    %6561 = vmatmul.mubr.f32.gmra.mrb[0].mxu0 %v5806
    %v6562 = vpop.f32.mrb[0].mxu0
    %v6563 = vadd.f32 %v6427, %v6562
    %v6564 = vpop.f32.mrb[0].mxu0
    %v6565 = vadd.f32 %v6431, %v6564
    %6566 = vmatprep.mubr.f32.mxu0 %v5811
    %6567 = vmatmul.mubr.f32.gmra.mrb[0].mxu0 %v5810
    %v6568 = vpop.f32.mrb[0].mxu0
    %v6569 = vadd.f32 %v6427, %v6568
    %v6570 = vpop.f32.mrb[0].mxu0
    %v6571 = vadd.f32 %v6431, %v6570
    %6572 = vmatprep.mubr.f32.mxu0 %v5815
    %6573 = vmatmul.mubr.f32.gmra.mrb[0].mxu0 %v5814
    %v6574 = vpop.f32.mrb[0].mxu0
    %v6575 = vadd.f32 %v6427, %v6574
    %v6576 = vpop.f32.mrb[0].mxu0
    %v6577 = vadd.f32 %v6431, %v6576
    %6578 = vmatprep.mubr.f32.mxu0 %v5819
    %6579 = vmatmul.mubr.f32.gmra.mrb[0].mxu0 %v5818
    %v6580 = vpop.f32.mrb[0].mxu0
    %v6581 = vadd.f32 %v6427, %v6580
    %v6582 = vpop.f32.mrb[0].mxu0
    %v6583 = vadd.f32 %v6431, %v6582
    %6584 = vmatprep.mubr.f32.mxu0 %v5823
    %6585 = vmatmul.mubr.f32.gmra.mrb[0].mxu0 %v5822
    %v6586 = vpop.f32.mrb[0].mxu0
    %v6587 = vadd.f32 %v6427, %v6586
    %v6588 = vpop.f32.mrb[0].mxu0
    %v6589 = vadd.f32 %v6431, %v6588
    %6590 = vmatprep.mubr.f32.mxu0 %v5827
    %6591 = vmatmul.mubr.f32.gmra.mrb[0].mxu0 %v5826
    %v6592 = vpop.f32.mrb[0].mxu0
    %v6593 = vadd.f32 %v6427, %v6592
    %v6594 = vpop.f32.mrb[0].mxu0
    %v6595 = vadd.f32 %v6431, %v6594
    %6596 = vmatprep.mubr.f32.mxu0 %v5831
    %6597 = vmatmul.mubr.f32.gmra.mrb[0].mxu0 %v5830
    %v6598 = vpop.f32.mrb[0].mxu0
    %v6599 = vadd.f32 %v6427, %v6598
    %v6600 = vpop.f32.mrb[0].mxu0
    %v6601 = vadd.f32 %v6431, %v6600
    %6602 = vmatprep.mubr.f32.mxu0 %v5835
    %6603 = vmatmul.mubr.f32.gmra.mrb[0].mxu0 %v5834
    %v6604 = vpop.f32.mrb[0].mxu0
    %v6605 = vadd.f32 %v6427, %v6604
    %v6606 = vpop.f32.mrb[0].mxu0
    %v6607 = vadd.f32 %v6431, %v6606
    %6608 = vmatprep.mubr.f32.mxu0 %v5839
    %6609 = vmatmul.mubr.f32.gmra.mrb[0].mxu0 %v5838
    %v6610 = vpop.f32.mrb[0].mxu0
    %v6611 = vadd.f32 %v6427, %v6610
    %v6612 = vpop.f32.mrb[0].mxu0
    %v6613 = vadd.f32 %v6431, %v6612
    %6614 = vdwg.mxu0
    %6615 = vmatprep.subr.mxu0 %v6231
    %6616 = vmatpush1.msra.mxu0 %v6230
    %6617 = vmatprep.subr.mxu0 %v6237
    %6618 = vmatpush1.msra.mxu0 %v6236
    %6619 = vmatprep.subr.mxu0 %v6243
    %6620 = vmatpush1.msra.mxu0 %v6242
    %6621 = vmatprep.subr.mxu0 %v6249
    %6622 = vmatpush1.msra.mxu0 %v6248
    %6623 = vmatprep.subr.mxu0 %v6255
    %6624 = vmatpush1.msra.mxu0 %v6254
    %6625 = vmatprep.subr.mxu0 %v6261
    %6626 = vmatpush1.msra.mxu0 %v6260
    %6627 = vmatprep.subr.mxu0 %v6267
    %6628 = vmatpush1.msra.mxu0 %v6266
    %6629 = vmatprep.subr.mxu0 %v6273
    %6630 = vmatpush1.msra.mxu0 %v6272
    %6631 = vmatprep.subr.mxu0 %v6279
    %6632 = vmatpush1.msra.mxu0 %v6278
    %6633 = vmatprep.subr.mxu0 %v6285
    %6634 = vmatpush1.msra.mxu0 %v6284
    %6635 = vmatprep.subr.mxu0 %v6291
    %6636 = vmatpush1.msra.mxu0 %v6290
    %6637 = vmatprep.subr.mxu0 %v6297
    %6638 = vmatpush1.msra.mxu0 %v6296
    %6639 = vmatprep.subr.mxu0 %v6303
    %6640 = vmatpush1.msra.mxu0 %v6302
    %6641 = vmatprep.subr.mxu0 %v6309
    %6642 = vmatpush1.msra.mxu0 %v6308
    %6643 = vmatprep.subr.mxu0 %v6315
    %6644 = vmatpush1.msra.mxu0 %v6314
    %6645 = vmatprep.subr.mxu0 %v6321
    %6646 = vmatpush1.msra.mxu0 %v6320
    %6647 = vmatprep.subr.mxu0 %v6327
    %6648 = vmatpush1.msra.mxu0 %v6326
    %6649 = vmatprep.subr.mxu0 %v6333
    %6650 = vmatpush1.msra.mxu0 %v6332
    %6651 = vmatprep.subr.mxu0 %v6339
    %6652 = vmatpush1.msra.mxu0 %v6338
    %6653 = vmatprep.subr.mxu0 %v6345
    %6654 = vmatpush1.msra.mxu0 %v6344
    %6655 = vmatprep.subr.mxu0 %v6351
    %6656 = vmatpush1.msra.mxu0 %v6350
    %6657 = vmatprep.subr.mxu0 %v6357
    %6658 = vmatpush1.msra.mxu0 %v6356
    %6659 = vmatprep.subr.mxu0 %v6363
    %6660 = vmatpush1.msra.mxu0 %v6362
    %6661 = vmatprep.subr.mxu0 %v6369
    %6662 = vmatpush1.msra.mxu0 %v6368
    %6663 = vmatprep.subr.mxu0 %v6375
    %6664 = vmatpush1.msra.mxu0 %v6374
    %6665 = vmatprep.subr.mxu0 %v6381
    %6666 = vmatpush1.msra.mxu0 %v6380
    %6667 = vmatprep.subr.mxu0 %v6387
    %6668 = vmatpush1.msra.mxu0 %v6386
    %6669 = vmatprep.subr.mxu0 %v6393
    %6670 = vmatpush1.msra.mxu0 %v6392
    %6671 = vmatprep.subr.mxu0 %v6399
    %6672 = vmatpush1.msra.mxu0 %v6398
    %6673 = vmatprep.subr.mxu0 %v6405
    %6674 = vmatpush1.msra.mxu0 %v6404
    %6675 = vmatprep.subr.mxu0 %v6411
    %6676 = vmatpush1.msra.mxu0 %v6410
    %6677 = vmatprep.subr.mxu0 %v6417
    %6678 = vmatpush1.msra.mxu0 %v6416
    %6679 = vmatprep.mubr.f32.mxu0 %v5781
    %6680 = vmatmul.mubr.f32.gmra.mrb[0].mxu0 %v5780
    %v6681 = vpop.f32.mrb[0].mxu0
    %v6682 = vadd.f32 %v6521, %v6681
    %v6683 = vpop.f32.mrb[0].mxu0
    %v6684 = vadd.f32 %v6523, %v6683
    %6685 = vmatprep.mubr.f32.mxu0 %v5785
    %6686 = vmatmul.mubr.f32.gmra.mrb[0].mxu0 %v5784
    %v6687 = vpop.f32.mrb[0].mxu0
    %v6688 = vadd.f32 %v6527, %v6687
    %v6689 = vpop.f32.mrb[0].mxu0
    %v6690 = vadd.f32 %v6529, %v6689
    %6691 = vmatprep.mubr.f32.mxu0 %v5789
    %6692 = vmatmul.mubr.f32.gmra.mrb[0].mxu0 %v5788
    %v6693 = vpop.f32.mrb[0].mxu0
    %v6694 = vadd.f32 %v6533, %v6693
    %v6695 = vpop.f32.mrb[0].mxu0
    %v6696 = vadd.f32 %v6535, %v6695
    %6697 = vmatprep.mubr.f32.mxu0 %v5793
    %6698 = vmatmul.mubr.f32.gmra.mrb[0].mxu0 %v5792
    %v6699 = vpop.f32.mrb[0].mxu0
    %v6700 = vadd.f32 %v6539, %v6699
    %v6701 = vpop.f32.mrb[0].mxu0
    %v6702 = vadd.f32 %v6541, %v6701
    %6703 = vmatprep.mubr.f32.mxu0 %v5797
    %6704 = vmatmul.mubr.f32.gmra.mrb[0].mxu0 %v5796
    %v6705 = vpop.f32.mrb[0].mxu0
    %v6706 = vadd.f32 %v6545, %v6705
    %v6707 = vpop.f32.mrb[0].mxu0
    %v6708 = vadd.f32 %v6547, %v6707
    %6709 = vmatprep.mubr.f32.mxu0 %v5801
    %6710 = vmatmul.mubr.f32.gmra.mrb[0].mxu0 %v5800
    %v6711 = vpop.f32.mrb[0].mxu0
    %v6712 = vadd.f32 %v6551, %v6711
    %v6713 = vpop.f32.mrb[0].mxu0
    %v6714 = vadd.f32 %v6553, %v6713
    %6715 = vmatprep.mubr.f32.mxu0 %v5805
    %6716 = vmatmul.mubr.f32.gmra.mrb[0].mxu0 %v5804
    %v6717 = vpop.f32.mrb[0].mxu0
    %v6718 = vadd.f32 %v6557, %v6717
    %v6719 = vpop.f32.mrb[0].mxu0
    %v6720 = vadd.f32 %v6559, %v6719
    %6721 = vmatprep.mubr.f32.mxu0 %v5809
    %6722 = vmatmul.mubr.f32.gmra.mrb[0].mxu0 %v5808
    %v6723 = vpop.f32.mrb[0].mxu0
    %v6724 = vadd.f32 %v6563, %v6723
    %v6725 = vpop.f32.mrb[0].mxu0
    %v6726 = vadd.f32 %v6565, %v6725
    %6727 = vmatprep.mubr.f32.mxu0 %v5813
    %6728 = vmatmul.mubr.f32.gmra.mrb[0].mxu0 %v5812
    %v6729 = vpop.f32.mrb[0].mxu0
    %v6730 = vadd.f32 %v6569, %v6729
    %v6731 = vpop.f32.mrb[0].mxu0
    %v6732 = vadd.f32 %v6571, %v6731
    %6733 = vmatprep.mubr.f32.mxu0 %v5817
    %6734 = vmatmul.mubr.f32.gmra.mrb[0].mxu0 %v5816
    %v6735 = vpop.f32.mrb[0].mxu0
    %v6736 = vadd.f32 %v6575, %v6735
    %v6737 = vpop.f32.mrb[0].mxu0
    %v6738 = vadd.f32 %v6577, %v6737
    %6739 = vmatprep.mubr.f32.mxu0 %v5821
    %6740 = vmatmul.mubr.f32.gmra.mrb[0].mxu0 %v5820
    %v6741 = vpop.f32.mrb[0].mxu0
    %v6742 = vadd.f32 %v6581, %v6741
    %v6743 = vpop.f32.mrb[0].mxu0
    %v6744 = vadd.f32 %v6583, %v6743
    %6745 = vmatprep.mubr.f32.mxu0 %v5825
    %6746 = vmatmul.mubr.f32.gmra.mrb[0].mxu0 %v5824
    %v6747 = vpop.f32.mrb[0].mxu0
    %v6748 = vadd.f32 %v6587, %v6747
    %v6749 = vpop.f32.mrb[0].mxu0
    %v6750 = vadd.f32 %v6589, %v6749
    %6751 = vmatprep.mubr.f32.mxu0 %v5829
    %6752 = vmatmul.mubr.f32.gmra.mrb[0].mxu0 %v5828
    %v6753 = vpop.f32.mrb[0].mxu0
    %v6754 = vadd.f32 %v6593, %v6753
    %v6755 = vpop.f32.mrb[0].mxu0
    %v6756 = vadd.f32 %v6595, %v6755
    %6757 = vmatprep.mubr.f32.mxu0 %v5833
    %6758 = vmatmul.mubr.f32.gmra.mrb[0].mxu0 %v5832
    %v6759 = vpop.f32.mrb[0].mxu0
    %v6760 = vadd.f32 %v6599, %v6759
    %v6761 = vpop.f32.mrb[0].mxu0
    %v6762 = vadd.f32 %v6601, %v6761
    %6763 = vmatprep.mubr.f32.mxu0 %v5837
    %6764 = vmatmul.mubr.f32.gmra.mrb[0].mxu0 %v5836
    %v6765 = vpop.f32.mrb[0].mxu0
    %v6766 = vadd.f32 %v6605, %v6765
    %v6767 = vpop.f32.mrb[0].mxu0
    %v6768 = vadd.f32 %v6607, %v6767
    %6769 = vmatprep.mubr.f32.mxu0 %v5841
    %6770 = vmatmul.mubr.f32.gmra.mrb[0].mxu0 %v5840
    %v6771 = vpop.f32.mrb[0].mxu0
    %v6772 = vadd.f32 %v6611, %v6771
    %v6773 = vpop.f32.mrb[0].mxu0
    %v6774 = vadd.f32 %v6613, %v6773
    %6775 = vdwg.mxu0
    %6776 = vmatprep.subr.mxu0 %v6041
    %6777 = vmatpush1.msra.mxu0 %v6040
    %6778 = vmatprep.subr.mxu0 %v6047
    %6779 = vmatpush1.msra.mxu0 %v6046
    %6780 = vmatprep.subr.mxu0 %v6053
    %6781 = vmatpush1.msra.mxu0 %v6052
    %6782 = vmatprep.subr.mxu0 %v6059
    %6783 = vmatpush1.msra.mxu0 %v6058
    %6784 = vmatprep.subr.mxu0 %v6065
    %6785 = vmatpush1.msra.mxu0 %v6064
    %6786 = vmatprep.subr.mxu0 %v6071
    %6787 = vmatpush1.msra.mxu0 %v6070
    %6788 = vmatprep.subr.mxu0 %v6077
    %6789 = vmatpush1.msra.mxu0 %v6076
    %6790 = vmatprep.subr.mxu0 %v6083
    %6791 = vmatpush1.msra.mxu0 %v6082
    %6792 = vmatprep.subr.mxu0 %v6089
    %6793 = vmatpush1.msra.mxu0 %v6088
    %6794 = vmatprep.subr.mxu0 %v6095
    %6795 = vmatpush1.msra.mxu0 %v6094
    %6796 = vmatprep.subr.mxu0 %v6101
    %6797 = vmatpush1.msra.mxu0 %v6100
    %6798 = vmatprep.subr.mxu0 %v6107
    %6799 = vmatpush1.msra.mxu0 %v6106
    %6800 = vmatprep.subr.mxu0 %v6113
    %6801 = vmatpush1.msra.mxu0 %v6112
    %6802 = vmatprep.subr.mxu0 %v6119
    %6803 = vmatpush1.msra.mxu0 %v6118
    %6804 = vmatprep.subr.mxu0 %v6125
    %6805 = vmatpush1.msra.mxu0 %v6124
    %6806 = vmatprep.subr.mxu0 %v6131
    %6807 = vmatpush1.msra.mxu0 %v6130
    %6808 = vmatprep.subr.mxu0 %v6137
    %6809 = vmatpush1.msra.mxu0 %v6136
    %6810 = vmatprep.subr.mxu0 %v6143
    %6811 = vmatpush1.msra.mxu0 %v6142
    %6812 = vmatprep.subr.mxu0 %v6149
    %6813 = vmatpush1.msra.mxu0 %v6148
    %6814 = vmatprep.subr.mxu0 %v6155
    %6815 = vmatpush1.msra.mxu0 %v6154
    %6816 = vmatprep.subr.mxu0 %v6161
    %6817 = vmatpush1.msra.mxu0 %v6160
    %6818 = vmatprep.subr.mxu0 %v6167
    %6819 = vmatpush1.msra.mxu0 %v6166
    %6820 = vmatprep.subr.mxu0 %v6173
    %6821 = vmatpush1.msra.mxu0 %v6172
    %6822 = vmatprep.subr.mxu0 %v6179
    %6823 = vmatpush1.msra.mxu0 %v6178
    %6824 = vmatprep.subr.mxu0 %v6185
    %6825 = vmatpush1.msra.mxu0 %v6184
    %6826 = vmatprep.subr.mxu0 %v6191
    %6827 = vmatpush1.msra.mxu0 %v6190
    %6828 = vmatprep.subr.mxu0 %v6197
    %6829 = vmatpush1.msra.mxu0 %v6196
    %6830 = vmatprep.subr.mxu0 %v6203
    %6831 = vmatpush1.msra.mxu0 %v6202
    %6832 = vmatprep.subr.mxu0 %v6209
    %6833 = vmatpush1.msra.mxu0 %v6208
    %6834 = vmatprep.subr.mxu0 %v6215
    %6835 = vmatpush1.msra.mxu0 %v6214
    %6836 = vmatprep.subr.mxu0 %v6221
    %6837 = vmatpush1.msra.mxu0 %v6220
    %6838 = vmatprep.subr.mxu0 %v6227
    %6839 = vmatpush1.msra.mxu0 %v6226
    %6840 = vmatprep.mubr.f32.mxu0 %v5779
    %6841 = vmatmul.mubr.f32.gmra.mrb[0].mxu0 %v5778
    %v6842 = vpop.f32.mrb[0].mxu0
    %v6843 = vadd.f32 %v6435, %v6842
    %v6844 = vpop.f32.mrb[0].mxu0
    %v6845 = vadd.f32 %v6439, %v6844
    %6846 = vmatprep.mubr.f32.mxu0 %v5783
    %6847 = vmatmul.mubr.f32.gmra.mrb[0].mxu0 %v5782
    %v6848 = vpop.f32.mrb[0].mxu0
    %v6849 = vadd.f32 %v6435, %v6848
    %v6850 = vpop.f32.mrb[0].mxu0
    %v6851 = vadd.f32 %v6439, %v6850
    %6852 = vmatprep.mubr.f32.mxu0 %v5787
    %6853 = vmatmul.mubr.f32.gmra.mrb[0].mxu0 %v5786
    %v6854 = vpop.f32.mrb[0].mxu0
    %v6855 = vadd.f32 %v6435, %v6854
    %v6856 = vpop.f32.mrb[0].mxu0
    %v6857 = vadd.f32 %v6439, %v6856
    %6858 = vmatprep.mubr.f32.mxu0 %v5791
    %6859 = vmatmul.mubr.f32.gmra.mrb[0].mxu0 %v5790
    %v6860 = vpop.f32.mrb[0].mxu0
    %v6861 = vadd.f32 %v6435, %v6860
    %v6862 = vpop.f32.mrb[0].mxu0
    %v6863 = vadd.f32 %v6439, %v6862
    %6864 = vmatprep.mubr.f32.mxu0 %v5795
    %6865 = vmatmul.mubr.f32.gmra.mrb[0].mxu0 %v5794
    %v6866 = vpop.f32.mrb[0].mxu0
    %v6867 = vadd.f32 %v6435, %v6866
    %v6868 = vpop.f32.mrb[0].mxu0
    %v6869 = vadd.f32 %v6439, %v6868
    %6870 = vmatprep.mubr.f32.mxu0 %v5799
    %6871 = vmatmul.mubr.f32.gmra.mrb[0].mxu0 %v5798
    %v6872 = vpop.f32.mrb[0].mxu0
    %v6873 = vadd.f32 %v6435, %v6872
    %v6874 = vpop.f32.mrb[0].mxu0
    %v6875 = vadd.f32 %v6439, %v6874
    %6876 = vmatprep.mubr.f32.mxu0 %v5803
    %6877 = vmatmul.mubr.f32.gmra.mrb[0].mxu0 %v5802
    %v6878 = vpop.f32.mrb[0].mxu0
    %v6879 = vadd.f32 %v6435, %v6878
    %v6880 = vpop.f32.mrb[0].mxu0
    %v6881 = vadd.f32 %v6439, %v6880
    %6882 = vmatprep.mubr.f32.mxu0 %v5807
    %6883 = vmatmul.mubr.f32.gmra.mrb[0].mxu0 %v5806
    %v6884 = vpop.f32.mrb[0].mxu0
    %v6885 = vadd.f32 %v6435, %v6884
    %v6886 = vpop.f32.mrb[0].mxu0
    %v6887 = vadd.f32 %v6439, %v6886
    %6888 = vmatprep.mubr.f32.mxu0 %v5811
    %6889 = vmatmul.mubr.f32.gmra.mrb[0].mxu0 %v5810
    %v6890 = vpop.f32.mrb[0].mxu0
    %v6891 = vadd.f32 %v6435, %v6890
    %v6892 = vpop.f32.mrb[0].mxu0
    %v6893 = vadd.f32 %v6439, %v6892
    %6894 = vmatprep.mubr.f32.mxu0 %v5815
    %6895 = vmatmul.mubr.f32.gmra.mrb[0].mxu0 %v5814
    %v6896 = vpop.f32.mrb[0].mxu0
    %v6897 = vadd.f32 %v6435, %v6896
    %v6898 = vpop.f32.mrb[0].mxu0
    %v6899 = vadd.f32 %v6439, %v6898
    %6900 = vmatprep.mubr.f32.mxu0 %v5819
    %6901 = vmatmul.mubr.f32.gmra.mrb[0].mxu0 %v5818
    %v6902 = vpop.f32.mrb[0].mxu0
    %v6903 = vadd.f32 %v6435, %v6902
    %v6904 = vpop.f32.mrb[0].mxu0
    %v6905 = vadd.f32 %v6439, %v6904
    %6906 = vmatprep.mubr.f32.mxu0 %v5823
    %6907 = vmatmul.mubr.f32.gmra.mrb[0].mxu0 %v5822
    %v6908 = vpop.f32.mrb[0].mxu0
    %v6909 = vadd.f32 %v6435, %v6908
    %v6910 = vpop.f32.mrb[0].mxu0
    %v6911 = vadd.f32 %v6439, %v6910
    %6912 = vmatprep.mubr.f32.mxu0 %v5827
    %6913 = vmatmul.mubr.f32.gmra.mrb[0].mxu0 %v5826
    %v6914 = vpop.f32.mrb[0].mxu0
    %v6915 = vadd.f32 %v6435, %v6914
    %v6916 = vpop.f32.mrb[0].mxu0
    %v6917 = vadd.f32 %v6439, %v6916
    %6918 = vmatprep.mubr.f32.mxu0 %v5831
    %6919 = vmatmul.mubr.f32.gmra.mrb[0].mxu0 %v5830
    %v6920 = vpop.f32.mrb[0].mxu0
    %v6921 = vadd.f32 %v6435, %v6920
    %v6922 = vpop.f32.mrb[0].mxu0
    %v6923 = vadd.f32 %v6439, %v6922
    %6924 = vmatprep.mubr.f32.mxu0 %v5835
    %6925 = vmatmul.mubr.f32.gmra.mrb[0].mxu0 %v5834
    %v6926 = vpop.f32.mrb[0].mxu0
    %v6927 = vadd.f32 %v6435, %v6926
    %v6928 = vpop.f32.mrb[0].mxu0
    %v6929 = vadd.f32 %v6439, %v6928
    %6930 = vmatprep.mubr.f32.mxu0 %v5839
    %6931 = vmatmul.mubr.f32.gmra.mrb[0].mxu0 %v5838
    %v6932 = vpop.f32.mrb[0].mxu0
    %v6933 = vadd.f32 %v6435, %v6932
    %v6934 = vpop.f32.mrb[0].mxu0
    %v6935 = vadd.f32 %v6439, %v6934
    %6936 = vdwg.mxu0
    %6937 = vmatprep.subr.mxu0 %v6233
    %6938 = vmatpush1.msra.mxu0 %v6232
    %6939 = vmatprep.subr.mxu0 %v6239
    %6940 = vmatpush1.msra.mxu0 %v6238
    %6941 = vmatprep.subr.mxu0 %v6245
    %6942 = vmatpush1.msra.mxu0 %v6244
    %6943 = vmatprep.subr.mxu0 %v6251
    %6944 = vmatpush1.msra.mxu0 %v6250
    %6945 = vmatprep.subr.mxu0 %v6257
    %6946 = vmatpush1.msra.mxu0 %v6256
    %6947 = vmatprep.subr.mxu0 %v6263
    %6948 = vmatpush1.msra.mxu0 %v6262
    %6949 = vmatprep.subr.mxu0 %v6269
    %6950 = vmatpush1.msra.mxu0 %v6268
    %6951 = vmatprep.subr.mxu0 %v6275
    %6952 = vmatpush1.msra.mxu0 %v6274
    %6953 = vmatprep.subr.mxu0 %v6281
    %6954 = vmatpush1.msra.mxu0 %v6280
    %6955 = vmatprep.subr.mxu0 %v6287
    %6956 = vmatpush1.msra.mxu0 %v6286
    %6957 = vmatprep.subr.mxu0 %v6293
    %6958 = vmatpush1.msra.mxu0 %v6292
    %6959 = vmatprep.subr.mxu0 %v6299
    %6960 = vmatpush1.msra.mxu0 %v6298
    %6961 = vmatprep.subr.mxu0 %v6305
    %6962 = vmatpush1.msra.mxu0 %v6304
    %6963 = vmatprep.subr.mxu0 %v6311
    %6964 = vmatpush1.msra.mxu0 %v6310
    %6965 = vmatprep.subr.mxu0 %v6317
    %6966 = vmatpush1.msra.mxu0 %v6316
    %6967 = vmatprep.subr.mxu0 %v6323
    %6968 = vmatpush1.msra.mxu0 %v6322
    %6969 = vmatprep.subr.mxu0 %v6329
    %6970 = vmatpush1.msra.mxu0 %v6328
    %6971 = vmatprep.subr.mxu0 %v6335
    %6972 = vmatpush1.msra.mxu0 %v6334
    %6973 = vmatprep.subr.mxu0 %v6341
    %6974 = vmatpush1.msra.mxu0 %v6340
    %6975 = vmatprep.subr.mxu0 %v6347
    %6976 = vmatpush1.msra.mxu0 %v6346
    %6977 = vmatprep.subr.mxu0 %v6353
    %6978 = vmatpush1.msra.mxu0 %v6352
    %6979 = vmatprep.subr.mxu0 %v6359
    %6980 = vmatpush1.msra.mxu0 %v6358
    %6981 = vmatprep.subr.mxu0 %v6365
    %6982 = vmatpush1.msra.mxu0 %v6364
    %6983 = vmatprep.subr.mxu0 %v6371
    %6984 = vmatpush1.msra.mxu0 %v6370
    %6985 = vmatprep.subr.mxu0 %v6377
    %6986 = vmatpush1.msra.mxu0 %v6376
    %6987 = vmatprep.subr.mxu0 %v6383
    %6988 = vmatpush1.msra.mxu0 %v6382
    %6989 = vmatprep.subr.mxu0 %v6389
    %6990 = vmatpush1.msra.mxu0 %v6388
    %6991 = vmatprep.subr.mxu0 %v6395
    %6992 = vmatpush1.msra.mxu0 %v6394
    %6993 = vmatprep.subr.mxu0 %v6401
    %6994 = vmatpush1.msra.mxu0 %v6400
    %6995 = vmatprep.subr.mxu0 %v6407
    %6996 = vmatpush1.msra.mxu0 %v6406
    %6997 = vmatprep.subr.mxu0 %v6413
    %6998 = vmatpush1.msra.mxu0 %v6412
    %6999 = vmatprep.subr.mxu0 %v6419
    %7000 = vmatpush1.msra.mxu0 %v6418
    %7001 = vmatprep.mubr.f32.mxu0 %v5781
    %7002 = vmatmul.mubr.f32.gmra.mrb[0].mxu0 %v5780
    %v7003 = vpop.f32.mrb[0].mxu0
    %v7004 = vadd.f32 %v6843, %v7003
    %v7005 = vpop.f32.mrb[0].mxu0
    %v7006 = vadd.f32 %v6845, %v7005
    %7007 = vmatprep.mubr.f32.mxu0 %v5785
    %7008 = vmatmul.mubr.f32.gmra.mrb[0].mxu0 %v5784
    %v7009 = vpop.f32.mrb[0].mxu0
    %v7010 = vadd.f32 %v6849, %v7009
    %v7011 = vpop.f32.mrb[0].mxu0
    %v7012 = vadd.f32 %v6851, %v7011
    %7013 = vmatprep.mubr.f32.mxu0 %v5789
    %7014 = vmatmul.mubr.f32.gmra.mrb[0].mxu0 %v5788
    %v7015 = vpop.f32.mrb[0].mxu0
    %v7016 = vadd.f32 %v6855, %v7015
    %v7017 = vpop.f32.mrb[0].mxu0
    %v7018 = vadd.f32 %v6857, %v7017
    %7019 = vmatprep.mubr.f32.mxu0 %v5793
    %7020 = vmatmul.mubr.f32.gmra.mrb[0].mxu0 %v5792
    %v7021 = vpop.f32.mrb[0].mxu0
    %v7022 = vadd.f32 %v6861, %v7021
    %v7023 = vpop.f32.mrb[0].mxu0
    %v7024 = vadd.f32 %v6863, %v7023
    %7025 = vmatprep.mubr.f32.mxu0 %v5797
    %7026 = vmatmul.mubr.f32.gmra.mrb[0].mxu0 %v5796
    %v7027 = vpop.f32.mrb[0].mxu0
    %v7028 = vadd.f32 %v6867, %v7027
    %v7029 = vpop.f32.mrb[0].mxu0
    %v7030 = vadd.f32 %v6869, %v7029
    %7031 = vmatprep.mubr.f32.mxu0 %v5801
    %7032 = vmatmul.mubr.f32.gmra.mrb[0].mxu0 %v5800
    %v7033 = vpop.f32.mrb[0].mxu0
    %v7034 = vadd.f32 %v6873, %v7033
    %v7035 = vpop.f32.mrb[0].mxu0
    %v7036 = vadd.f32 %v6875, %v7035
    %7037 = vmatprep.mubr.f32.mxu0 %v5805
    %7038 = vmatmul.mubr.f32.gmra.mrb[0].mxu0 %v5804
    %v7039 = vpop.f32.mrb[0].mxu0
    %v7040 = vadd.f32 %v6879, %v7039
    %v7041 = vpop.f32.mrb[0].mxu0
    %v7042 = vadd.f32 %v6881, %v7041
    %7043 = vmatprep.mubr.f32.mxu0 %v5809
    %7044 = vmatmul.mubr.f32.gmra.mrb[0].mxu0 %v5808
    %v7045 = vpop.f32.mrb[0].mxu0
    %v7046 = vadd.f32 %v6885, %v7045
    %v7047 = vpop.f32.mrb[0].mxu0
    %v7048 = vadd.f32 %v6887, %v7047
    %7049 = vmatprep.mubr.f32.mxu0 %v5813
    %7050 = vmatmul.mubr.f32.gmra.mrb[0].mxu0 %v5812
    %v7051 = vpop.f32.mrb[0].mxu0
    %v7052 = vadd.f32 %v6891, %v7051
    %v7053 = vpop.f32.mrb[0].mxu0
    %v7054 = vadd.f32 %v6893, %v7053
    %7055 = vmatprep.mubr.f32.mxu0 %v5817
    %7056 = vmatmul.mubr.f32.gmra.mrb[0].mxu0 %v5816
    %v7057 = vpop.f32.mrb[0].mxu0
    %v7058 = vadd.f32 %v6897, %v7057
    %v7059 = vpop.f32.mrb[0].mxu0
    %v7060 = vadd.f32 %v6899, %v7059
    %7061 = vmatprep.mubr.f32.mxu0 %v5821
    %7062 = vmatmul.mubr.f32.gmra.mrb[0].mxu0 %v5820
    %v7063 = vpop.f32.mrb[0].mxu0
    %v7064 = vadd.f32 %v6903, %v7063
    %v7065 = vpop.f32.mrb[0].mxu0
    %v7066 = vadd.f32 %v6905, %v7065
    %7067 = vmatprep.mubr.f32.mxu0 %v5825
    %7068 = vmatmul.mubr.f32.gmra.mrb[0].mxu0 %v5824
    %v7069 = vpop.f32.mrb[0].mxu0
    %v7070 = vadd.f32 %v6909, %v7069
    %v7071 = vpop.f32.mrb[0].mxu0
    %v7072 = vadd.f32 %v6911, %v7071
    %7073 = vmatprep.mubr.f32.mxu0 %v5829
    %7074 = vmatmul.mubr.f32.gmra.mrb[0].mxu0 %v5828
    %v7075 = vpop.f32.mrb[0].mxu0
    %v7076 = vadd.f32 %v6915, %v7075
    %v7077 = vpop.f32.mrb[0].mxu0
    %v7078 = vadd.f32 %v6917, %v7077
    %7079 = vmatprep.mubr.f32.mxu0 %v5833
    %7080 = vmatmul.mubr.f32.gmra.mrb[0].mxu0 %v5832
    %v7081 = vpop.f32.mrb[0].mxu0
    %v7082 = vadd.f32 %v6921, %v7081
    %v7083 = vpop.f32.mrb[0].mxu0
    %v7084 = vadd.f32 %v6923, %v7083
    %7085 = vmatprep.mubr.f32.mxu0 %v5837
    %7086 = vmatmul.mubr.f32.gmra.mrb[0].mxu0 %v5836
    %v7087 = vpop.f32.mrb[0].mxu0
    %v7088 = vadd.f32 %v6927, %v7087
    %v7089 = vpop.f32.mrb[0].mxu0
    %v7090 = vadd.f32 %v6929, %v7089
    %7091 = vmatprep.mubr.f32.mxu0 %v5841
    %7092 = vmatmul.mubr.f32.gmra.mrb[0].mxu0 %v5840
    %v7093 = vpop.f32.mrb[0].mxu0
    %v7094 = vadd.f32 %v6933, %v7093
    %v7095 = vpop.f32.mrb[0].mxu0
    %v7096 = vadd.f32 %v6935, %v7095
    %7097 = vdwg.mxu0
    %7098 = vmatprep.subr.mxu0 %v6043
    %7099 = vmatpush1.msra.mxu0 %v6042
    %7100 = vmatprep.subr.mxu0 %v6049
    %7101 = vmatpush1.msra.mxu0 %v6048
    %7102 = vmatprep.subr.mxu0 %v6055
    %7103 = vmatpush1.msra.mxu0 %v6054
    %7104 = vmatprep.subr.mxu0 %v6061
    %7105 = vmatpush1.msra.mxu0 %v6060
    %7106 = vmatprep.subr.mxu0 %v6067
    %7107 = vmatpush1.msra.mxu0 %v6066
    %7108 = vmatprep.subr.mxu0 %v6073
    %7109 = vmatpush1.msra.mxu0 %v6072
    %7110 = vmatprep.subr.mxu0 %v6079
    %7111 = vmatpush1.msra.mxu0 %v6078
    %7112 = vmatprep.subr.mxu0 %v6085
    %7113 = vmatpush1.msra.mxu0 %v6084
    %7114 = vmatprep.subr.mxu0 %v6091
    %7115 = vmatpush1.msra.mxu0 %v6090
    %7116 = vmatprep.subr.mxu0 %v6097
    %7117 = vmatpush1.msra.mxu0 %v6096
    %7118 = vmatprep.subr.mxu0 %v6103
    %7119 = vmatpush1.msra.mxu0 %v6102
    %7120 = vmatprep.subr.mxu0 %v6109
    %7121 = vmatpush1.msra.mxu0 %v6108
    %7122 = vmatprep.subr.mxu0 %v6115
    %7123 = vmatpush1.msra.mxu0 %v6114
    %7124 = vmatprep.subr.mxu0 %v6121
    %7125 = vmatpush1.msra.mxu0 %v6120
    %7126 = vmatprep.subr.mxu0 %v6127
    %7127 = vmatpush1.msra.mxu0 %v6126
    %7128 = vmatprep.subr.mxu0 %v6133
    %7129 = vmatpush1.msra.mxu0 %v6132
    %7130 = vmatprep.subr.mxu0 %v6139
    %7131 = vmatpush1.msra.mxu0 %v6138
    %7132 = vmatprep.subr.mxu0 %v6145
    %7133 = vmatpush1.msra.mxu0 %v6144
    %7134 = vmatprep.subr.mxu0 %v6151
    %7135 = vmatpush1.msra.mxu0 %v6150
    %7136 = vmatprep.subr.mxu0 %v6157
    %7137 = vmatpush1.msra.mxu0 %v6156
    %7138 = vmatprep.subr.mxu0 %v6163
    %7139 = vmatpush1.msra.mxu0 %v6162
    %7140 = vmatprep.subr.mxu0 %v6169
    %7141 = vmatpush1.msra.mxu0 %v6168
    %7142 = vmatprep.subr.mxu0 %v6175
    %7143 = vmatpush1.msra.mxu0 %v6174
    %7144 = vmatprep.subr.mxu0 %v6181
    %7145 = vmatpush1.msra.mxu0 %v6180
    %7146 = vmatprep.subr.mxu0 %v6187
    %7147 = vmatpush1.msra.mxu0 %v6186
    %7148 = vmatprep.subr.mxu0 %v6193
    %7149 = vmatpush1.msra.mxu0 %v6192
    %7150 = vmatprep.subr.mxu0 %v6199
    %7151 = vmatpush1.msra.mxu0 %v6198
    %7152 = vmatprep.subr.mxu0 %v6205
    %7153 = vmatpush1.msra.mxu0 %v6204
    %7154 = vmatprep.subr.mxu0 %v6211
    %7155 = vmatpush1.msra.mxu0 %v6210
    %7156 = vmatprep.subr.mxu0 %v6217
    %7157 = vmatpush1.msra.mxu0 %v6216
    %7158 = vmatprep.subr.mxu0 %v6223
    %7159 = vmatpush1.msra.mxu0 %v6222
    %7160 = vmatprep.subr.mxu0 %v6229
    %7161 = vmatpush1.msra.mxu0 %v6228
    %7162 = vmatprep.mubr.f32.mxu0 %v5779
    %7163 = vmatmul.mubr.f32.gmra.mrb[0].mxu0 %v5778
    %v7164 = vpop.f32.mrb[0].mxu0
    %v7165 = vadd.f32 %v6443, %v7164
    %v7166 = vpop.f32.mrb[0].mxu0
    %v7167 = vadd.f32 %v6447, %v7166
    %7168 = vmatprep.mubr.f32.mxu0 %v5783
    %7169 = vmatmul.mubr.f32.gmra.mrb[0].mxu0 %v5782
    %v7170 = vpop.f32.mrb[0].mxu0
    %v7171 = vadd.f32 %v6443, %v7170
    %v7172 = vpop.f32.mrb[0].mxu0
    %v7173 = vadd.f32 %v6447, %v7172
    %7174 = vmatprep.mubr.f32.mxu0 %v5787
    %7175 = vmatmul.mubr.f32.gmra.mrb[0].mxu0 %v5786
    %v7176 = vpop.f32.mrb[0].mxu0
    %v7177 = vadd.f32 %v6443, %v7176
    %v7178 = vpop.f32.mrb[0].mxu0
    %v7179 = vadd.f32 %v6447, %v7178
    %7180 = vmatprep.mubr.f32.mxu0 %v5791
    %7181 = vmatmul.mubr.f32.gmra.mrb[0].mxu0 %v5790
    %v7182 = vpop.f32.mrb[0].mxu0
    %v7183 = vadd.f32 %v6443, %v7182
    %v7184 = vpop.f32.mrb[0].mxu0
    %v7185 = vadd.f32 %v6447, %v7184
    %7186 = vmatprep.mubr.f32.mxu0 %v5795
    %7187 = vmatmul.mubr.f32.gmra.mrb[0].mxu0 %v5794
    %v7188 = vpop.f32.mrb[0].mxu0
    %v7189 = vadd.f32 %v6443, %v7188
    %v7190 = vpop.f32.mrb[0].mxu0
    %v7191 = vadd.f32 %v6447, %v7190
    %7192 = vmatprep.mubr.f32.mxu0 %v5799
    %7193 = vmatmul.mubr.f32.gmra.mrb[0].mxu0 %v5798
    %v7194 = vpop.f32.mrb[0].mxu0
    %v7195 = vadd.f32 %v6443, %v7194
    %v7196 = vpop.f32.mrb[0].mxu0
    %v7197 = vadd.f32 %v6447, %v7196
    %7198 = vmatprep.mubr.f32.mxu0 %v5803
    %7199 = vmatmul.mubr.f32.gmra.mrb[0].mxu0 %v5802
    %v7200 = vpop.f32.mrb[0].mxu0
    %v7201 = vadd.f32 %v6443, %v7200
    %v7202 = vpop.f32.mrb[0].mxu0
    %v7203 = vadd.f32 %v6447, %v7202
    %7204 = vmatprep.mubr.f32.mxu0 %v5807
    %7205 = vmatmul.mubr.f32.gmra.mrb[0].mxu0 %v5806
    %v7206 = vpop.f32.mrb[0].mxu0
    %v7207 = vadd.f32 %v6443, %v7206
    %v7208 = vpop.f32.mrb[0].mxu0
    %v7209 = vadd.f32 %v6447, %v7208
    %7210 = vmatprep.mubr.f32.mxu0 %v5811
    %7211 = vmatmul.mubr.f32.gmra.mrb[0].mxu0 %v5810
    %v7212 = vpop.f32.mrb[0].mxu0
    %v7213 = vadd.f32 %v6443, %v7212
    %v7214 = vpop.f32.mrb[0].mxu0
    %v7215 = vadd.f32 %v6447, %v7214
    %7216 = vmatprep.mubr.f32.mxu0 %v5815
    %7217 = vmatmul.mubr.f32.gmra.mrb[0].mxu0 %v5814
    %v7218 = vpop.f32.mrb[0].mxu0
    %v7219 = vadd.f32 %v6443, %v7218
    %v7220 = vpop.f32.mrb[0].mxu0
    %v7221 = vadd.f32 %v6447, %v7220
    %7222 = vmatprep.mubr.f32.mxu0 %v5819
    %7223 = vmatmul.mubr.f32.gmra.mrb[0].mxu0 %v5818
    %v7224 = vpop.f32.mrb[0].mxu0
    %v7225 = vadd.f32 %v6443, %v7224
    %v7226 = vpop.f32.mrb[0].mxu0
    %v7227 = vadd.f32 %v6447, %v7226
    %7228 = vmatprep.mubr.f32.mxu0 %v5823
    %7229 = vmatmul.mubr.f32.gmra.mrb[0].mxu0 %v5822
    %v7230 = vpop.f32.mrb[0].mxu0
    %v7231 = vadd.f32 %v6443, %v7230
    %v7232 = vpop.f32.mrb[0].mxu0
    %v7233 = vadd.f32 %v6447, %v7232
    %7234 = vmatprep.mubr.f32.mxu0 %v5827
    %7235 = vmatmul.mubr.f32.gmra.mrb[0].mxu0 %v5826
    %v7236 = vpop.f32.mrb[0].mxu0
    %v7237 = vadd.f32 %v6443, %v7236
    %v7238 = vpop.f32.mrb[0].mxu0
    %v7239 = vadd.f32 %v6447, %v7238
    %7240 = vmatprep.mubr.f32.mxu0 %v5831
    %7241 = vmatmul.mubr.f32.gmra.mrb[0].mxu0 %v5830
    %v7242 = vpop.f32.mrb[0].mxu0
    %v7243 = vadd.f32 %v6443, %v7242
    %v7244 = vpop.f32.mrb[0].mxu0
    %v7245 = vadd.f32 %v6447, %v7244
    %7246 = vmatprep.mubr.f32.mxu0 %v5835
    %7247 = vmatmul.mubr.f32.gmra.mrb[0].mxu0 %v5834
    %v7248 = vpop.f32.mrb[0].mxu0
    %v7249 = vadd.f32 %v6443, %v7248
    %v7250 = vpop.f32.mrb[0].mxu0
    %v7251 = vadd.f32 %v6447, %v7250
    %7252 = vmatprep.mubr.f32.mxu0 %v5839
    %7253 = vmatmul.mubr.f32.gmra.mrb[0].mxu0 %v5838
    %v7254 = vpop.f32.mrb[0].mxu0
    %v7255 = vadd.f32 %v6443, %v7254
    %v7256 = vpop.f32.mrb[0].mxu0
    %v7257 = vadd.f32 %v6447, %v7256
    %7258 = vdwg.mxu0
    %7259 = vmatprep.subr.mxu0 %v6235
    %7260 = vmatpush1.msra.mxu0 %v6234
    %7261 = vmatprep.subr.mxu0 %v6241
    %7262 = vmatpush1.msra.mxu0 %v6240
    %7263 = vmatprep.subr.mxu0 %v6247
    %7264 = vmatpush1.msra.mxu0 %v6246
    %7265 = vmatprep.subr.mxu0 %v6253
    %7266 = vmatpush1.msra.mxu0 %v6252
    %7267 = vmatprep.subr.mxu0 %v6259
    %7268 = vmatpush1.msra.mxu0 %v6258
    %7269 = vmatprep.subr.mxu0 %v6265
    %7270 = vmatpush1.msra.mxu0 %v6264
    %7271 = vmatprep.subr.mxu0 %v6271
    %7272 = vmatpush1.msra.mxu0 %v6270
    %7273 = vmatprep.subr.mxu0 %v6277
    %7274 = vmatpush1.msra.mxu0 %v6276
    %7275 = vmatprep.subr.mxu0 %v6283
    %7276 = vmatpush1.msra.mxu0 %v6282
    %7277 = vmatprep.subr.mxu0 %v6289
    %7278 = vmatpush1.msra.mxu0 %v6288
    %7279 = vmatprep.subr.mxu0 %v6295
    %7280 = vmatpush1.msra.mxu0 %v6294
    %7281 = vmatprep.subr.mxu0 %v6301
    %7282 = vmatpush1.msra.mxu0 %v6300
    %7283 = vmatprep.subr.mxu0 %v6307
    %7284 = vmatpush1.msra.mxu0 %v6306
    %7285 = vmatprep.subr.mxu0 %v6313
    %7286 = vmatpush1.msra.mxu0 %v6312
    %7287 = vmatprep.subr.mxu0 %v6319
    %7288 = vmatpush1.msra.mxu0 %v6318
    %7289 = vmatprep.subr.mxu0 %v6325
    %7290 = vmatpush1.msra.mxu0 %v6324
    %7291 = vmatprep.subr.mxu0 %v6331
    %7292 = vmatpush1.msra.mxu0 %v6330
    %7293 = vmatprep.subr.mxu0 %v6337
    %7294 = vmatpush1.msra.mxu0 %v6336
    %7295 = vmatprep.subr.mxu0 %v6343
    %7296 = vmatpush1.msra.mxu0 %v6342
    %7297 = vmatprep.subr.mxu0 %v6349
    %7298 = vmatpush1.msra.mxu0 %v6348
    %7299 = vmatprep.subr.mxu0 %v6355
    %7300 = vmatpush1.msra.mxu0 %v6354
    %7301 = vmatprep.subr.mxu0 %v6361
    %7302 = vmatpush1.msra.mxu0 %v6360
    %7303 = vmatprep.subr.mxu0 %v6367
    %7304 = vmatpush1.msra.mxu0 %v6366
    %7305 = vmatprep.subr.mxu0 %v6373
    %7306 = vmatpush1.msra.mxu0 %v6372
    %7307 = vmatprep.subr.mxu0 %v6379
    %7308 = vmatpush1.msra.mxu0 %v6378
    %7309 = vmatprep.subr.mxu0 %v6385
    %7310 = vmatpush1.msra.mxu0 %v6384
    %7311 = vmatprep.subr.mxu0 %v6391
    %7312 = vmatpush1.msra.mxu0 %v6390
    %7313 = vmatprep.subr.mxu0 %v6397
    %7314 = vmatpush1.msra.mxu0 %v6396
    %7315 = vmatprep.subr.mxu0 %v6403
    %7316 = vmatpush1.msra.mxu0 %v6402
    %7317 = vmatprep.subr.mxu0 %v6409
    %7318 = vmatpush1.msra.mxu0 %v6408
    %7319 = vmatprep.subr.mxu0 %v6415
    %7320 = vmatpush1.msra.mxu0 %v6414
    %7321 = vmatprep.subr.mxu0 %v6421
    %7322 = vmatpush1.msra.mxu0 %v6420
    %7323 = vmatprep.mubr.f32.mxu0 %v5781
    %7324 = vmatmul.mubr.f32.gmra.mrb[0].mxu0 %v5780
    %v7325 = vpop.f32.mrb[0].mxu0
    %v7326 = vadd.f32 %v7165, %v7325
    %v7327 = vpop.f32.mrb[0].mxu0
    %v7328 = vadd.f32 %v7167, %v7327
    %7329 = vmatprep.mubr.f32.mxu0 %v5785
    %7330 = vmatmul.mubr.f32.gmra.mrb[0].mxu0 %v5784
    %v7331 = vpop.f32.mrb[0].mxu0
    %v7332 = vadd.f32 %v7171, %v7331
    %v7333 = vpop.f32.mrb[0].mxu0
    %v7334 = vadd.f32 %v7173, %v7333
    %7335 = vmatprep.mubr.f32.mxu0 %v5789
    %7336 = vmatmul.mubr.f32.gmra.mrb[0].mxu0 %v5788
    %v7337 = vpop.f32.mrb[0].mxu0
    %v7338 = vadd.f32 %v7177, %v7337
    %v7339 = vpop.f32.mrb[0].mxu0
    %v7340 = vadd.f32 %v7179, %v7339
    %7341 = vmatprep.mubr.f32.mxu0 %v5793
    %7342 = vmatmul.mubr.f32.gmra.mrb[0].mxu0 %v5792
    %v7343 = vpop.f32.mrb[0].mxu0
    %v7344 = vadd.f32 %v7183, %v7343
    %v7345 = vpop.f32.mrb[0].mxu0
    %v7346 = vadd.f32 %v7185, %v7345
    %7347 = vmatprep.mubr.f32.mxu0 %v5797
    %7348 = vmatmul.mubr.f32.gmra.mrb[0].mxu0 %v5796
    %v7349 = vpop.f32.mrb[0].mxu0
    %v7350 = vadd.f32 %v7189, %v7349
    %v7351 = vpop.f32.mrb[0].mxu0
    %v7352 = vadd.f32 %v7191, %v7351
    %7353 = vmatprep.mubr.f32.mxu0 %v5801
    %7354 = vmatmul.mubr.f32.gmra.mrb[0].mxu0 %v5800
    %v7355 = vpop.f32.mrb[0].mxu0
    %v7356 = vadd.f32 %v7195, %v7355
    %v7357 = vpop.f32.mrb[0].mxu0
    %v7358 = vadd.f32 %v7197, %v7357
    %7359 = vmatprep.mubr.f32.mxu0 %v5805
    %7360 = vmatmul.mubr.f32.gmra.mrb[0].mxu0 %v5804
    %v7361 = vpop.f32.mrb[0].mxu0
    %v7362 = vadd.f32 %v7201, %v7361
    %v7363 = vpop.f32.mrb[0].mxu0
    %v7364 = vadd.f32 %v7203, %v7363
    %7365 = vmatprep.mubr.f32.mxu0 %v5809
    %7366 = vmatmul.mubr.f32.gmra.mrb[0].mxu0 %v5808
    %v7367 = vpop.f32.mrb[0].mxu0
    %v7368 = vadd.f32 %v7207, %v7367
    %v7369 = vpop.f32.mrb[0].mxu0
    %v7370 = vadd.f32 %v7209, %v7369
    %7371 = vmatprep.mubr.f32.mxu0 %v5813
    %7372 = vmatmul.mubr.f32.gmra.mrb[0].mxu0 %v5812
    %v7373 = vpop.f32.mrb[0].mxu0
    %v7374 = vadd.f32 %v7213, %v7373
    %v7375 = vpop.f32.mrb[0].mxu0
    %v7376 = vadd.f32 %v7215, %v7375
    %7377 = vmatprep.mubr.f32.mxu0 %v5817
    %7378 = vmatmul.mubr.f32.gmra.mrb[0].mxu0 %v5816
    %v7379 = vpop.f32.mrb[0].mxu0
    %v7380 = vadd.f32 %v7219, %v7379
    %v7381 = vpop.f32.mrb[0].mxu0
    %v7382 = vadd.f32 %v7221, %v7381
    %7383 = vmatprep.mubr.f32.mxu0 %v5821
    %7384 = vmatmul.mubr.f32.gmra.mrb[0].mxu0 %v5820
    %v7385 = vpop.f32.mrb[0].mxu0
    %v7386 = vadd.f32 %v7225, %v7385
    %v7387 = vpop.f32.mrb[0].mxu0
    %v7388 = vadd.f32 %v7227, %v7387
    %7389 = vmatprep.mubr.f32.mxu0 %v5825
    %7390 = vmatmul.mubr.f32.gmra.mrb[0].mxu0 %v5824
    %v7391 = vpop.f32.mrb[0].mxu0
    %v7392 = vadd.f32 %v7231, %v7391
    %v7393 = vpop.f32.mrb[0].mxu0
    %v7394 = vadd.f32 %v7233, %v7393
    %7395 = vmatprep.mubr.f32.mxu0 %v5829
    %7396 = vmatmul.mubr.f32.gmra.mrb[0].mxu0 %v5828
    %v7397 = vpop.f32.mrb[0].mxu0
    %v7398 = vadd.f32 %v7237, %v7397
    %v7399 = vpop.f32.mrb[0].mxu0
    %v7400 = vadd.f32 %v7239, %v7399
    %7401 = vmatprep.mubr.f32.mxu0 %v5833
    %7402 = vmatmul.mubr.f32.gmra.mrb[0].mxu0 %v5832
    %v7403 = vpop.f32.mrb[0].mxu0
    %v7404 = vadd.f32 %v7243, %v7403
    %v7405 = vpop.f32.mrb[0].mxu0
    %v7406 = vadd.f32 %v7245, %v7405
    %7407 = vmatprep.mubr.f32.mxu0 %v5837
    %7408 = vmatmul.mubr.f32.gmra.mrb[0].mxu0 %v5836
    %v7409 = vpop.f32.mrb[0].mxu0
    %v7410 = vadd.f32 %v7249, %v7409
    %v7411 = vpop.f32.mrb[0].mxu0
    %v7412 = vadd.f32 %v7251, %v7411
    %7413 = vmatprep.mubr.f32.mxu0 %v5841
    %7414 = vmatmul.mubr.f32.gmra.mrb[0].mxu0 %v5840
    %v7415 = vpop.f32.mrb[0].mxu0
    %v7416 = vadd.f32 %v7255, %v7415
    %v7417 = vpop.f32.mrb[0].mxu0
    %v7418 = vadd.f32 %v7257, %v7417
    %7419 = vdwg.mxu0
    %v7420 = vtanh.pop %v6682
    %v7421 = vtanh.pop %v6684
    %v7422 = vtanh.pop %v7004
    %v7423 = vtanh.pop %v7006
    %v7424 = vtanh.pop %v7326
    %v7425 = vtanh.pop %v7328
    %v7426 = vtanh.pop %v6688
    %v7427 = vtanh.pop %v6690
    %v7428 = vtanh.pop %v7010
    %v7429 = vtanh.pop %v7012
    %v7430 = vtanh.pop %v7332
    %v7431 = vtanh.pop %v7334
    %v7432 = vtanh.pop %v6694
    %v7433 = vtanh.pop %v6696
    %v7434 = vtanh.pop %v7016
    %v7435 = vtanh.pop %v7018
    %v7436 = vtanh.pop %v7338
    %v7437 = vtanh.pop %v7340
    %v7438 = vtanh.pop %v6700
    %v7439 = vtanh.pop %v6702
    %v7440 = vtanh.pop %v7022
    %v7441 = vtanh.pop %v7024
    %v7442 = vtanh.pop %v7344
    %v7443 = vtanh.pop %v7346
    %v7444 = vtanh.pop %v6706
    %v7445 = vtanh.pop %v6708
    %v7446 = vtanh.pop %v7028
    %v7447 = vtanh.pop %v7030
    %v7448 = vtanh.pop %v7350
    %v7449 = vtanh.pop %v7352
    %v7450 = vtanh.pop %v6712
    %v7451 = vtanh.pop %v6714
    %v7452 = vtanh.pop %v7034
    %v7453 = vtanh.pop %v7036
    %v7454 = vtanh.pop %v7356
    %v7455 = vtanh.pop %v7358
    %v7456 = vtanh.pop %v6718
    %v7457 = vtanh.pop %v6720
    %v7458 = vtanh.pop %v7040
    %v7459 = vtanh.pop %v7042
    %v7460 = vtanh.pop %v7362
    %v7461 = vtanh.pop %v7364
    %v7462 = vtanh.pop %v6724
    %v7463 = vtanh.pop %v6726
    %v7464 = vtanh.pop %v7046
    %v7465 = vtanh.pop %v7048
    %v7466 = vtanh.pop %v7368
    %v7467 = vtanh.pop %v7370
    %v7468 = vtanh.pop %v6730
    %v7469 = vtanh.pop %v6732
    %v7470 = vtanh.pop %v7052
    %v7471 = vtanh.pop %v7054
    %v7472 = vtanh.pop %v7374
    %v7473 = vtanh.pop %v7376
    %v7474 = vtanh.pop %v6736
    %v7475 = vtanh.pop %v6738
    %v7476 = vtanh.pop %v7058
    %v7477 = vtanh.pop %v7060
    %v7478 = vtanh.pop %v7380
    %v7479 = vtanh.pop %v7382
    %v7480 = vtanh.pop %v6742
    %v7481 = vtanh.pop %v6744
    %v7482 = vtanh.pop %v7064
    %v7483 = vtanh.pop %v7066
    %v7484 = vtanh.pop %v7386
    %v7485 = vtanh.pop %v7388
    %v7486 = vtanh.pop %v6748
    %v7487 = vtanh.pop %v6750
    %v7488 = vtanh.pop %v7070
    %v7489 = vtanh.pop %v7072
    %v7490 = vtanh.pop %v7392
    %v7491 = vtanh.pop %v7394
    %v7492 = vtanh.pop %v6754
    %v7493 = vtanh.pop %v6756
    %v7494 = vtanh.pop %v7076
    %v7495 = vtanh.pop %v7078
    %v7496 = vtanh.pop %v7398
    %v7497 = vtanh.pop %v7400
    %v7498 = vtanh.pop %v6760
    %v7499 = vtanh.pop %v6762
    %v7500 = vtanh.pop %v7082
    %v7501 = vtanh.pop %v7084
    %v7502 = vtanh.pop %v7404
    %v7503 = vtanh.pop %v7406
    %v7504 = vtanh.pop %v6766
    %v7505 = vtanh.pop %v6768
    %v7506 = vtanh.pop %v7088
    %v7507 = vtanh.pop %v7090
    %v7508 = vtanh.pop %v7410
    %v7509 = vtanh.pop %v7412
    %v7510 = vtanh.pop %v6772
    %v7511 = vtanh.pop %v6774
    %v7512 = vtanh.pop %v7094
    %v7513 = vtanh.pop %v7096
    %v7514 = vtanh.pop %v7416
    %v7515 = vtanh.pop %v7418
    %7516 = vst [vmem:[%s21] sm:$0xff] %v7420
    %7517 = vst [vmem:[%s21 + $0x8] sm:$0xff] %v7421
    %7518 = vst [vmem:[%s21 + $0x10] sm:$0xff] %v7422
    %7519 = vst [vmem:[%s21 + $0x18] sm:$0xff] %v7423
    %7520 = vst [vmem:[%s21 + $0x20] sm:$0xff] %v7424
    %7521 = vst [vmem:[%s21 + $0x28] sm:$0xff] %v7425
    %7522 = vst [vmem:[%s21 + $0x30] sm:$0xff] %v7426
    %7523 = vst [vmem:[%s21 + $0x38] sm:$0xff] %v7427
    %7524 = vst [vmem:[%s21 + $0x40] sm:$0xff] %v7428
    %7525 = vst [vmem:[%s21 + $0x48] sm:$0xff] %v7429
    %7526 = vst [vmem:[%s21 + $0x50] sm:$0xff] %v7430
    %7527 = vst [vmem:[%s21 + $0x58] sm:$0xff] %v7431
    %7528 = vst [vmem:[%s21 + $0x60] sm:$0xff] %v7432
    %7529 = vst [vmem:[%s21 + $0x68] sm:$0xff] %v7433
    %7530 = vst [vmem:[%s21 + $0x70] sm:$0xff] %v7434
    %7531 = vst [vmem:[%s21 + $0x78] sm:$0xff] %v7435
    %7532 = vst [vmem:[%s21 + $0x80] sm:$0xff] %v7436
    %7533 = vst [vmem:[%s21 + $0x88] sm:$0xff] %v7437
    %7534 = vst [vmem:[%s21 + $0x90] sm:$0xff] %v7438
    %7535 = vst [vmem:[%s21 + $0x98] sm:$0xff] %v7439
    %7536 = vst [vmem:[%s21 + $0xa0] sm:$0xff] %v7440
    %7537 = vst [vmem:[%s21 + $0xa8] sm:$0xff] %v7441
    %7538 = vst [vmem:[%s21 + $0xb0] sm:$0xff] %v7442
    %7539 = vst [vmem:[%s21 + $0xb8] sm:$0xff] %v7443
    %7540 = vst [vmem:[%s21 + $0xc0] sm:$0xff] %v7444
    %7541 = vst [vmem:[%s21 + $0xc8] sm:$0xff] %v7445
    %7542 = vst [vmem:[%s21 + $0xd0] sm:$0xff] %v7446
    %7543 = vst [vmem:[%s21 + $0xd8] sm:$0xff] %v7447
    %7544 = vst [vmem:[%s21 + $0xe0] sm:$0xff] %v7448
    %7545 = vst [vmem:[%s21 + $0xe8] sm:$0xff] %v7449
    %7546 = vst [vmem:[%s21 + $0xf0] sm:$0xff] %v7450
    %7547 = vst [vmem:[%s21 + $0xf8] sm:$0xff] %v7451
    %7548 = vst [vmem:[%s21 + $0x100] sm:$0xff] %v7452
    %7549 = vst [vmem:[%s21 + $0x108] sm:$0xff] %v7453
    %7550 = vst [vmem:[%s21 + $0x110] sm:$0xff] %v7454
    %7551 = vst [vmem:[%s21 + $0x118] sm:$0xff] %v7455
    %7552 = vst [vmem:[%s21 + $0x120] sm:$0xff] %v7456
    %7553 = vst [vmem:[%s21 + $0x128] sm:$0xff] %v7457
    %7554 = vst [vmem:[%s21 + $0x130] sm:$0xff] %v7458
    %7555 = vst [vmem:[%s21 + $0x138] sm:$0xff] %v7459
    %7556 = vst [vmem:[%s21 + $0x140] sm:$0xff] %v7460
    %7557 = vst [vmem:[%s21 + $0x148] sm:$0xff] %v7461
    %7558 = vst [vmem:[%s21 + $0x150] sm:$0xff] %v7462
    %7559 = vst [vmem:[%s21 + $0x158] sm:$0xff] %v7463
    %7560 = vst [vmem:[%s21 + $0x160] sm:$0xff] %v7464
    %7561 = vst [vmem:[%s21 + $0x168] sm:$0xff] %v7465
    %7562 = vst [vmem:[%s21 + $0x170] sm:$0xff] %v7466
    %7563 = vst [vmem:[%s21 + $0x178] sm:$0xff] %v7467
    %7564 = vst [vmem:[%s21 + $0x180] sm:$0xff] %v7468
    %7565 = vst [vmem:[%s21 + $0x188] sm:$0xff] %v7469
    %7566 = vst [vmem:[%s21 + $0x190] sm:$0xff] %v7470
    %7567 = vst [vmem:[%s21 + $0x198] sm:$0xff] %v7471
    %7568 = vst [vmem:[%s21 + $0x1a0] sm:$0xff] %v7472
    %7569 = vst [vmem:[%s21 + $0x1a8] sm:$0xff] %v7473
    %7570 = vst [vmem:[%s21 + $0x1b0] sm:$0xff] %v7474
    %7571 = vst [vmem:[%s21 + $0x1b8] sm:$0xff] %v7475
    %7572 = vst [vmem:[%s21 + $0x1c0] sm:$0xff] %v7476
    %7573 = vst [vmem:[%s21 + $0x1c8] sm:$0xff] %v7477
    %7574 = vst [vmem:[%s21 + $0x1d0] sm:$0xff] %v7478
    %7575 = vst [vmem:[%s21 + $0x1d8] sm:$0xff] %v7479
    %7576 = vst [vmem:[%s21 + $0x1e0] sm:$0xff] %v7480
    %7577 = vst [vmem:[%s21 + $0x1e8] sm:$0xff] %v7481
    %7578 = vst [vmem:[%s21 + $0x1f0] sm:$0xff] %v7482
    %7579 = vst [vmem:[%s21 + $0x1f8] sm:$0xff] %v7483
    %7580 = vst [vmem:[%s21 + $0x200] sm:$0xff] %v7484
    %7581 = vst [vmem:[%s21 + $0x208] sm:$0xff] %v7485
    %7582 = vst [vmem:[%s21 + $0x210] sm:$0xff] %v7486
    %7583 = vst [vmem:[%s21 + $0x218] sm:$0xff] %v7487
    %7584 = vst [vmem:[%s21 + $0x220] sm:$0xff] %v7488
    %7585 = vst [vmem:[%s21 + $0x228] sm:$0xff] %v7489
    %7586 = vst [vmem:[%s21 + $0x230] sm:$0xff] %v7490
    %7587 = vst [vmem:[%s21 + $0x238] sm:$0xff] %v7491
    %7588 = vst [vmem:[%s21 + $0x240] sm:$0xff] %v7492
    %7589 = vst [vmem:[%s21 + $0x248] sm:$0xff] %v7493
    %7590 = vst [vmem:[%s21 + $0x250] sm:$0xff] %v7494
    %7591 = vst [vmem:[%s21 + $0x258] sm:$0xff] %v7495
    %7592 = vst [vmem:[%s21 + $0x260] sm:$0xff] %v7496
    %7593 = vst [vmem:[%s21 + $0x268] sm:$0xff] %v7497
    %7594 = vst [vmem:[%s21 + $0x270] sm:$0xff] %v7498
    %7595 = vst [vmem:[%s21 + $0x278] sm:$0xff] %v7499
    %7596 = vst [vmem:[%s21 + $0x280] sm:$0xff] %v7500
    %7597 = vst [vmem:[%s21 + $0x288] sm:$0xff] %v7501
    %7598 = vst [vmem:[%s21 + $0x290] sm:$0xff] %v7502
    %7599 = vst [vmem:[%s21 + $0x298] sm:$0xff] %v7503
    %7600 = vst [vmem:[%s21 + $0x2a0] sm:$0xff] %v7504
    %7601 = vst [vmem:[%s21 + $0x2a8] sm:$0xff] %v7505
    %7602 = vst [vmem:[%s21 + $0x2b0] sm:$0xff] %v7506
    %7603 = vst [vmem:[%s21 + $0x2b8] sm:$0xff] %v7507
    %7604 = vst [vmem:[%s21 + $0x2c0] sm:$0xff] %v7508
    %7605 = vst [vmem:[%s21 + $0x2c8] sm:$0xff] %v7509
    %7606 = vst [vmem:[%s21 + $0x2d0] sm:$0xff] %v7510
    %7607 = vst [vmem:[%s21 + $0x2d8] sm:$0xff] %v7511
    %7608 = vst [vmem:[%s21 + $0x2e0] sm:$0xff] %v7512
    %7609 = vst [vmem:[%s21 + $0x2e8] sm:$0xff] %v7513
    %7610 = vst [vmem:[%s21 + $0x2f0] sm:$0xff] %v7514
    %7611 = vst [vmem:[%s21 + $0x2f8] sm:$0xff] %v7515
    // Predicated region
    $region142: #{generator_forward.1} parent=1 // pred_check
      _
    $region143: #{generator_forward.1} parent=1 // pred_check_branch
      %7613 = sbr.rel (0) target = $region145
    $region144: #{generator_forward.1} parent=1 // pred_region
      _
    $region145: #{generator_forward.1} parent=1 // pred_fallthru
      _
    // Predicated region
    $region146: #{generator_forward.1} parent=1 // pred_check
      _
    $region147: #{generator_forward.1} parent=1 // pred_check_branch
      %7615 = sbr.rel (0) target = $region149
    $region148: #{generator_forward.1} parent=1 // pred_region
      _
    $region149: #{generator_forward.1} parent=1 // pred_fallthru
      _
    %7616 = vsyncpa [#allocation6], 1
    %7617 = vsyncpa [#allocation8], 1
    %7618 = vsyncpa [#allocation11], 1
    %7619 = vsyncpa [#allocation14], 1
    %7620 = vsyncpa [#allocation17], 1
    %7621 = vsyncpa [#allocation20], 1
    %7622 = vsyncpa [#allocation23], 1
    %7623 = vsyncpa [#allocation26], 1
    %7624 = vsyncpa [#allocation29], 1
  %7625 = vsyncmov [#allocation4]
  %s7626 = vpop.sfrf %7625
  %p7627 = scmp.eq.s32.totalorder %s7626, 0
  %p7628 = pneg %p7627
  %7630 = shalt.err (%p7628)
  %s7631 = scalar_lea.sflag [#allocation4], 1
  %7632 = vsyncmov %s7631
  %s7633 = vpop.sfrf %7632
  %p7634 = scmp.eq.s32.totalorder %s7633, 0
  %p7635 = pneg %p7634
  %7637 = shalt.err (%p7635)

</llo_original>
